<compile_context>
chip_gen: v7x
topology: tpu7x:2x2x1
jax: 0.10.0
libtpu: 0.0.40
codegen_flags: <defaults>
</compile_context>

<pallas_src>
from functools import partial
import math

import jax
import jax.numpy as jnp
from jax.experimental import pallas as pl
from jax.experimental.pallas import tpu as pltpu


_HALF_LOG_2PI = 0.5 * math.log(2.0 * math.pi)
_PARALLEL = pltpu.CompilerParams(dimension_semantics=("parallel",))


# ----------------------------------------------------------------- in-kernel conv helpers

def _shift_rows(x, s):
    """y[p] = x[p + s] if 0 <= p + s < HW else 0 (static shift along the flat pixel axis)."""
    if s == 0:
        return x
    hw, cin = x.shape
    pad = jnp.zeros((abs(s), cin), x.dtype)
    if s > 0:
        return jnp.concatenate([x[s:, :], pad], axis=0)
    return jnp.concatenate([pad, x[: hw + s, :]], axis=0)


def _conv3x3(x, w_taps_ref, bias_row, w_img):
    """3x3 same-padding conv on a flat (H*W, Cin) image, fully in-register/VMEM.

    Nine shifted views of the image are matmul'ed (bf16 operands, f32 accumulation)
    against per-tap (Cin, Cout) weight slices w_taps_ref[t], t = (di+1)*3 + (dj+1).
    Row-boundary wrap-around of the flat pixel axis is cancelled by zeroing the source
    columns a wrapped read would land on (col 0 for dj=+1, col W-1 for dj=-1); vertical
    out-of-bounds reads fall off the ends of the flat axis and are zero-filled.
    """
    hw = x.shape[0]
    cout = w_taps_ref.shape[-1]
    iota = jax.lax.broadcasted_iota(jnp.int32, (hw, 1), 0)
    if (w_img & (w_img - 1)) == 0:                   # W is a power of two (usual case)
        col = jnp.bitwise_and(iota, w_img - 1)
    else:
        col = jnp.remainder(iota, w_img)
    src = {
        -1: jnp.where(col == (w_img - 1), 0.0, x),   # taps with dj = -1
        0: x,                                        # taps with dj =  0
        1: jnp.where(col == 0, 0.0, x),              # taps with dj = +1
    }
    acc = jnp.zeros((hw, cout), jnp.float32)
    t = 0
    for di in (-1, 0, 1):
        for dj in (-1, 0, 1):
            xs = _shift_rows(src[dj], di * w_img + dj).astype(jnp.bfloat16)
            acc = acc + jnp.dot(xs, w_taps_ref[t], preferred_element_type=jnp.float32)
            t += 1
    return acc + bias_row


# ------------------------------------------------------------------------- Pallas kernels

def _flow_step_kernel(z_ref, anb_ref, anl_ref, wit_ref,
                      w1_ref, b1_ref, w2_ref, b2_ref, w3_ref, b3_ref,
                      zo_ref, ld_ref, *, w_img):
    """Fused FlowStep: ActNorm + Invert1x1Conv + AffineCoupling (NN + transform + logdet)."""
    c = z_ref.shape[-1]
    ch = c // 2
    x = z_ref[0]                                                    # (HW, C) f32
    # --- ActNorm (per-channel affine) ---
    y = (x + anb_ref[...]) * jnp.exp(anl_ref[...])
    # --- Invertible 1x1 conv: y @ W^T (bf16 MXU operands, f32 accumulation) ---
    y = jnp.dot(y.astype(jnp.bfloat16), wit_ref[...],
                preferred_element_type=jnp.float32)
    z1 = y[:, :ch]
    z2 = y[:, ch:]
    # --- coupling network: conv3x3 -> ReLU -> conv1x1 -> ReLU -> conv3x3, all in VMEM ---
    h = jnp.maximum(_conv3x3(z1, w1_ref, b1_ref[...], w_img), 0.0)
    h = jnp.dot(h.astype(jnp.bfloat16), w2_ref[...],
                preferred_element_type=jnp.float32) + b2_ref[...]
    h = jnp.maximum(h, 0.0)
    h = _conv3x3(h, w3_ref, b3_ref[...], w_img)
    shift_t = h[:, :ch]
    sraw = h[:, ch:]
    # --- affine coupling, stable log-sigmoid form: log s = log sigmoid(sraw + 2) ---
    t = sraw + 2.0
    logscale = jnp.minimum(t, 0.0) - jnp.log(1.0 + jnp.exp(-jnp.abs(t)))
    z2n = (z2 + shift_t) * jnp.exp(logscale)
    zo_ref[0] = jnp.concatenate([z1, z2n], axis=-1)
    # Lane-dense per-channel partial sums of log scale (summed over channels in XLA).
    ld_ref[0] = jnp.sum(logscale, axis=0, keepdims=True)            # (1, C/2)


def _split_kernel(z_ref, w_ref, b_ref, z1_ref, lp_ref, *, w_img):
    """Fused Split: learned conditional prior conv3x3 + Gaussian log-likelihood of z2."""
    c = z_ref.shape[-1]
    ch = c // 2
    z = z_ref[0]
    z1 = z[:, :ch]
    z2 = z[:, ch:]
    prior = _conv3x3(z1, w_ref, b_ref[...], w_img)                  # (HW, C) = mean | logsd
    mean = prior[:, :ch]
    logsd = prior[:, ch:]
    d = z2 - mean
    lp = -_HALF_LOG_2PI - logsd - 0.5 * d * d * jnp.exp(-2.0 * logsd)
    z1_ref[0] = z1
    lp_ref[0] = jnp.sum(lp, axis=0, keepdims=True)                  # (1, C/2)


def _prior_kernel(z_ref, m_ref, ls_ref, lp_ref):
    """Final GaussianPrior log-likelihood (z passes through unchanged)."""
    d = z_ref[0] - m_ref[0]
    ls = ls_ref[0]
    lp = -_HALF_LOG_2PI - ls - 0.5 * d * d * jnp.exp(-2.0 * ls)
    lp_ref[0] = jnp.sum(lp, axis=0, keepdims=True)                  # (1, C)


# ---------------------------------------------------------------------------- flow modules

def flow_step(zf, logdet, p, w_img):
    bsz, hw, c = zf.shape
    ch = c // 2
    f = p["nn"]["b1"].shape[-1]
    zf_out, ldch = pl.pallas_call(
        partial(_flow_step_kernel, w_img=w_img),
        out_shape=(jax.ShapeDtypeStruct((bsz, hw, c), jnp.float32),
                   jax.ShapeDtypeStruct((bsz, 1, ch), jnp.float32)),
        grid=(bsz,),
        in_specs=[
            pl.BlockSpec((1, hw, c), lambda b: (b, 0, 0)),       # z (one full image per step)
            pl.BlockSpec((1, c), lambda b: (0, 0)),              # actnorm bias
            pl.BlockSpec((1, c), lambda b: (0, 0)),              # actnorm logs
            pl.BlockSpec((c, c), lambda b: (0, 0)),              # W^T (bf16)
            pl.BlockSpec((9, ch, f), lambda b: (0, 0, 0)),       # conv3x3 #1 taps (bf16)
            pl.BlockSpec((1, f), lambda b: (0, 0)),
            pl.BlockSpec((f, f), lambda b: (0, 0)),              # conv1x1 (bf16)
            pl.BlockSpec((1, f), lambda b: (0, 0)),
            pl.BlockSpec((9, f, c), lambda b: (0, 0, 0)),        # conv3x3 #2 taps (bf16)
            pl.BlockSpec((1, c), lambda b: (0, 0)),
        ],
        out_specs=(
            pl.BlockSpec((1, hw, c), lambda b: (b, 0, 0)),
            pl.BlockSpec((1, 1, ch), lambda b: (b, 0, 0)),
        ),
        compiler_params=_PARALLEL,
    )(zf, p["an_bias"], p["an_logs"], p["w_inv_t"],
      p["nn"]["w1"], p["nn"]["b1"], p["nn"]["w2"], p["nn"]["b2"],
      p["nn"]["w3"], p["nn"]["b3"])
    _, w_logdet = jnp.linalg.slogdet(p["w_inv"])
    logdet = logdet + hw * (jnp.sum(p["an_logs"]) + w_logdet) + jnp.sum(ldch, axis=(1, 2))
    return zf_out, logdet


def split_forward(zf, logpz, p, w_img):
    bsz, hw, c = zf.shape
    ch = c // 2
    z1, lpch = pl.pallas_call(
        partial(_split_kernel, w_img=w_img),
        out_shape=(jax.ShapeDtypeStruct((bsz, hw, ch), jnp.float32),
                   jax.ShapeDtypeStruct((bsz, 1, ch), jnp.float32)),
        grid=(bsz,),
        in_specs=[
            pl.BlockSpec((1, hw, c), lambda b: (b, 0, 0)),
            pl.BlockSpec((9, ch, c), lambda b: (0, 0, 0)),
            pl.BlockSpec((1, c), lambda b: (0, 0)),
        ],
        out_specs=(
            pl.BlockSpec((1, hw, ch), lambda b: (b, 0, 0)),
            pl.BlockSpec((1, 1, ch), lambda b: (b, 0, 0)),
        ),
        compiler_params=_PARALLEL,
    )(zf, p["w"], p["b"])
    return z1, logpz + jnp.sum(lpch, axis=(1, 2))


def gaussian_prior_forward(zf, logpz, p):
    bsz, hw, c = zf.shape
    lpch = pl.pallas_call(
        _prior_kernel,
        out_shape=jax.ShapeDtypeStruct((bsz, 1, c), jnp.float32),
        grid=(bsz,),
        in_specs=[
            pl.BlockSpec((1, hw, c), lambda b: (b, 0, 0)),
            pl.BlockSpec((1, hw, c), lambda b: (b, 0, 0)),
            pl.BlockSpec((1, hw, c), lambda b: (b, 0, 0)),
        ],
        out_specs=pl.BlockSpec((1, 1, c), lambda b: (b, 0, 0)),
        compiler_params=_PARALLEL,
    )(zf, p["mean"], p["logsd"])
    return zf, logpz + jnp.sum(lpch, axis=(1, 2))


def squeeze2_nhwc(x):
    # Same channel ordering as PyTorch NCHW Squeeze(factor=2): c_new = 4*c + 2*a + b.
    b, h, w, c = x.shape
    x = x.reshape(b, h // 2, 2, w // 2, 2, c)
    x = jnp.transpose(x, (0, 1, 3, 5, 2, 4))
    return x.reshape(b, h // 2, w // 2, c * 4)


def lr_normflow_forward(z, params, L, K):
    """Forward (reverse=False) pass of LRNormFlowNet.  z is NCHW like the PyTorch module."""
    # TODO(synk): reverse=True inverse path and eps-based sampling in Split / GaussianPrior
    # are not exercised by the forward pass and are not implemented.
    bsz = z.shape[0]
    logdet = jnp.zeros((bsz,), jnp.float32)
    logpz = jnp.zeros((bsz,), jnp.float32)
    x = jnp.transpose(z, (0, 2, 3, 1))                         # one-time NCHW -> NHWC
    for i in range(L):
        x = squeeze2_nhwc(x)
        b, h, w, c = x.shape
        zf = x.reshape(b, h * w, c)                            # free reshape (channels-last)
        level = params["levels"][i]
        for k in range(K):
            zf, logdet = flow_step(zf, logdet, level["steps"][k], w)
        if i < L - 1:
            zf, logpz = split_forward(zf, logpz, level["split"], w)
            c //= 2
        x = zf.reshape(b, h, w, c)
    zf, logpz = gaussian_prior_forward(x.reshape(b, h * w, c), logpz, params["prior"])
    z_out = jnp.transpose(zf.reshape(b, h, w, c), (0, 3, 1, 2))   # back to NCHW
    return z_out, logdet, logpz


# ------------------------------------------------------------------------------ param init

def init_params(key, input_shape, filter_size, bsz, L, K):
    # Weights are generated directly in kernel-friendly layouts:
    #   3x3 conv taps as (9, Cin, Cout) with tap index t = (di+1)*3 + (dj+1),
    #   1x1 conv as (Cin, Cout), invertible-conv as pre-transposed W^T (bf16) + f32 W for
    #   slogdet, biases as (1, Cout).  MXU operands are stored in bf16 once at init.
    c, h, w = input_shape
    params = {"levels": []}
    for i in range(L):
        c, h, w = c * 4, h // 2, w // 2
        steps = []
        for _ in range(K):
            key, k0, k1, k2, k3, k4, k5 = jax.random.split(key, 7)
            ch = c // 2
            q, _ = jnp.linalg.qr(jax.random.normal(k0, (c, c), jnp.float32))
            steps.append({
                "an_bias": 0.05 * jax.random.normal(k1, (1, c), jnp.float32),
                "an_logs": 0.05 * jax.random.normal(k2, (1, c), jnp.float32),
                "w_inv": q.astype(jnp.float32),                       # f32, for slogdet
                "w_inv_t": jnp.transpose(q).astype(jnp.bfloat16),     # pre-transposed, MXU
                "nn": {
                    "w1": (0.05 * jax.random.normal(k3, (9, ch, filter_size),
                                                    jnp.float32)).astype(jnp.bfloat16),
                    "b1": jnp.zeros((1, filter_size), jnp.float32),
                    "w2": (0.05 * jax.random.normal(k4, (filter_size, filter_size),
                                                    jnp.float32)).astype(jnp.bfloat16),
                    "b2": jnp.zeros((1, filter_size), jnp.float32),
                    "w3": (0.05 * jax.random.normal(k5, (9, filter_size, c),
                                                    jnp.float32)).astype(jnp.bfloat16),
                    "b3": jnp.zeros((1, c), jnp.float32),
                },
            })
        level = {"steps": steps}
        if i < L - 1:
            key, ks = jax.random.split(key)
            level["split"] = {
                "w": (0.05 * jax.random.normal(ks, (9, c // 2, c),
                                               jnp.float32)).astype(jnp.bfloat16),
                "b": jnp.zeros((1, c), jnp.float32),
            }
            c = c // 2
        params["levels"].append(level)
    key, km, kl = jax.random.split(key, 3)
    params["prior"] = {                                   # channels-last flat (B, HW, C)
        "mean": 0.05 * jax.random.normal(km, (bsz, h * w, c), jnp.float32),
        "logsd": 0.05 * jax.random.normal(kl, (bsz, h * w, c), jnp.float32),
    }
    return params


# ------------------------------------------------------------------------------------ main

if __name__ == "__main__":
    B, C, H, W = 2, 4, 16, 16
    L, K, FILTER = 2, 2, 32

    x = jax.random.normal(jax.random.PRNGKey(0), (B, C, H, W), jnp.float32)
    params = init_params(jax.random.PRNGKey(42), (C, H, W), FILTER, B, L, K)

    fwd = jax.jit(partial(lr_normflow_forward, L=L, K=K))
    z, logdet, logpz = fwd(x, params)
    jax.block_until_ready((z, logdet, logpz))

    assert z.shape == (B, 32, 4, 4)
    assert logdet.shape == (B,) and logpz.shape == (B,)
    assert bool(jnp.isfinite(z).all())
    assert bool(jnp.isfinite(logdet).all()) and bool(jnp.isfinite(logpz).all())
    print("KERNEL_OK")
</pallas_src>

<mosaic_0001>
module attributes {stable_mosaic.version = 11 : i64} {
  func.func @_flow_step_kernel(%arg0: i32, %arg1: memref<1x64x16xf32, #tpu.memory_space<vmem>>, %arg2: memref<1x16xf32, #tpu.memory_space<vmem>>, %arg3: memref<1x16xf32, #tpu.memory_space<vmem>>, %arg4: memref<16x16xbf16, #tpu.memory_space<vmem>>, %arg5: memref<9x8x32xbf16, #tpu.memory_space<vmem>>, %arg6: memref<1x32xf32, #tpu.memory_space<vmem>>, %arg7: memref<32x32xbf16, #tpu.memory_space<vmem>>, %arg8: memref<1x32xf32, #tpu.memory_space<vmem>>, %arg9: memref<9x32x16xbf16, #tpu.memory_space<vmem>>, %arg10: memref<1x16xf32, #tpu.memory_space<vmem>>, %arg11: memref<1x64x16xf32, #tpu.memory_space<vmem>>, %arg12: memref<1x1x8xf32, #tpu.memory_space<vmem>>) attributes {dimension_semantics = [#tpu.dimension_semantics<parallel>], iteration_bounds = array<i64: 2>, scalar_prefetch = 0 : i64, scratch_operands = 0 : i64, tpu.core_type = #tpu.core_type<tc>, window_params = [{transform_indices = @transform_0, window_bounds = array<i64: 1, 64, 16>}, {pipeline_mode = #tpu.pipeline_mode<synchronous>, transform_indices = @transform_1, window_bounds = array<i64: 1, 16>}, {pipeline_mode = #tpu.pipeline_mode<synchronous>, transform_indices = @transform_2, window_bounds = array<i64: 1, 16>}, {pipeline_mode = #tpu.pipeline_mode<synchronous>, transform_indices = @transform_3, window_bounds = array<i64: 16, 16>}, {pipeline_mode = #tpu.pipeline_mode<synchronous>, transform_indices = @transform_4, window_bounds = array<i64: 9, 8, 32>}, {pipeline_mode = #tpu.pipeline_mode<synchronous>, transform_indices = @transform_5, window_bounds = array<i64: 1, 32>}, {pipeline_mode = #tpu.pipeline_mode<synchronous>, transform_indices = @transform_6, window_bounds = array<i64: 32, 32>}, {pipeline_mode = #tpu.pipeline_mode<synchronous>, transform_indices = @transform_7, window_bounds = array<i64: 1, 32>}, {pipeline_mode = #tpu.pipeline_mode<synchronous>, transform_indices = @transform_8, window_bounds = array<i64: 9, 32, 16>}, {pipeline_mode = #tpu.pipeline_mode<synchronous>, transform_indices = @transform_9, window_bounds = array<i64: 1, 16>}, {transform_indices = @transform_10, window_bounds = array<i64: 1, 64, 16>}, {transform_indices = @transform_11, window_bounds = array<i64: 1, 1, 8>}]} {
    %c0 = arith.constant 0 : index
    %c0_0 = arith.constant 0 : index
    %c0_1 = arith.constant 0 : index
    %0 = vector.load %arg1[%c0, %c0_0, %c0_1] : memref<1x64x16xf32, #tpu.memory_space<vmem>>, vector<1x64x16xf32>
    %1 = vector.shape_cast %0 : vector<1x64x16xf32> to vector<64x16xf32>
    %c0_2 = arith.constant 0 : index
    %c0_3 = arith.constant 0 : index
    %2 = vector.load %arg2[%c0_2, %c0_3] : memref<1x16xf32, #tpu.memory_space<vmem>>, vector<1x16xf32>
    %3 = vector.broadcast %2 : vector<1x16xf32> to vector<64x16xf32>
    %4 = arith.addf %1, %3 : vector<64x16xf32>
    %c0_4 = arith.constant 0 : index
    %c0_5 = arith.constant 0 : index
    %5 = vector.load %arg3[%c0_4, %c0_5] : memref<1x16xf32, #tpu.memory_space<vmem>>, vector<1x16xf32>
    %6 = math.exp %5 : vector<1x16xf32>
    %7 = vector.broadcast %6 : vector<1x16xf32> to vector<64x16xf32>
    %8 = arith.mulf %4, %7 : vector<64x16xf32>
    %9 = arith.truncf %8 : vector<64x16xf32> to vector<64x16xbf16>
    %c0_6 = arith.constant 0 : index
    %c0_7 = arith.constant 0 : index
    %10 = vector.load %arg4[%c0_6, %c0_7] : memref<16x16xbf16, #tpu.memory_space<vmem>>, vector<16x16xbf16>
    %cst = arith.constant dense<0.000000e+00> : vector<64x16xf32>
    %11 = tpu.matmul %9, %10, %cst {dimension_numbers = #tpu.dot_dimension_numbers<[1], [0], [0], [1], [0, 0, 1, 1], [], []>} : vector<64x16xbf16>, vector<16x16xbf16>, vector<64x16xf32> -> vector<64x16xf32>
    %12 = vector.extract_strided_slice %11 {offsets = [0, 0], sizes = [64, 8], strides = [1, 1]} : vector<64x16xf32> to vector<64x8xf32>
    %13 = vector.extract_strided_slice %11 {offsets = [0, 8], sizes = [64, 8], strides = [1, 1]} : vector<64x16xf32> to vector<64x8xf32>
    %c0_8 = arith.constant 0 : index
    %c0_9 = arith.constant 0 : index
    %14 = vector.load %arg6[%c0_8, %c0_9] : memref<1x32xf32, #tpu.memory_space<vmem>>, vector<1x32xf32>
    %15 = tpu.iota {dimensions = array<i32: 0>} : vector<64x1xi32>
    %c7_i32 = arith.constant 7 : i32
    %16 = vector.broadcast %c7_i32 : i32 to vector<64x1xi32>
    %17 = arith.andi %15, %16 : vector<64x1xi32>
    %c7_i32_10 = arith.constant 7 : i32
    %18 = vector.broadcast %c7_i32_10 : i32 to vector<64x1xi32>
    %19 = arith.cmpi eq, %17, %18 : vector<64x1xi32>
    %cst_11 = arith.constant 0.000000e+00 : f32
    %20 = vector.shape_cast %19 : vector<64x1xi1> to vector<64x1xi1>
    %21 = vector.broadcast %20 : vector<64x1xi1> to vector<64x8xi1>
    %22 = vector.broadcast %cst_11 : f32 to vector<64x8xf32>
    %23 = arith.select %21, %22, %12 : vector<64x8xi1>, vector<64x8xf32>
    %c0_i32 = arith.constant 0 : i32
    %24 = vector.broadcast %c0_i32 : i32 to vector<64x1xi32>
    %25 = arith.cmpi eq, %17, %24 : vector<64x1xi32>
    %cst_12 = arith.constant 0.000000e+00 : f32
    %26 = vector.shape_cast %25 : vector<64x1xi1> to vector<64x1xi1>
    %27 = vector.broadcast %26 : vector<64x1xi1> to vector<64x8xi1>
    %28 = vector.broadcast %cst_12 : f32 to vector<64x8xf32>
    %29 = arith.select %27, %28, %12 : vector<64x8xi1>, vector<64x8xf32>
    %cst_13 = arith.constant 0.000000e+00 : f32
    %30 = vector.broadcast %cst_13 : f32 to vector<64x32xf32>
    %cst_14 = arith.constant 0.000000e+00 : f32
    %31 = vector.broadcast %cst_14 : f32 to vector<9x8xf32>
    %32 = vector.extract_strided_slice %23 {offsets = [0, 0], sizes = [55, 8], strides = [1, 1]} : vector<64x8xf32> to vector<55x8xf32>
    %33 = tpu.concatenate %31, %32 in 0 : vector<9x8xf32>, vector<55x8xf32> -> vector<64x8xf32>
    %34 = arith.truncf %33 : vector<64x8xf32> to vector<64x8xbf16>
    %c0_15 = arith.constant 0 : index
    %c0_16 = arith.constant 0 : index
    %c0_17 = arith.constant 0 : index
    %35 = vector.load %arg5[%c0_15, %c0_16, %c0_17] : memref<9x8x32xbf16, #tpu.memory_space<vmem>>, vector<1x8x32xbf16>
    %36 = vector.shape_cast %35 : vector<1x8x32xbf16> to vector<8x32xbf16>
    %cst_18 = arith.constant dense<0.000000e+00> : vector<64x32xf32>
    %37 = tpu.matmul %34, %36, %cst_18 {dimension_numbers = #tpu.dot_dimension_numbers<[1], [0], [0], [1], [0, 0, 1, 1], [], []>} : vector<64x8xbf16>, vector<8x32xbf16>, vector<64x32xf32> -> vector<64x32xf32>
    %38 = arith.addf %30, %37 : vector<64x32xf32>
    %cst_19 = arith.constant 0.000000e+00 : f32
    %39 = vector.broadcast %cst_19 : f32 to vector<8x8xf32>
    %40 = vector.extract_strided_slice %12 {offsets = [0, 0], sizes = [56, 8], strides = [1, 1]} : vector<64x8xf32> to vector<56x8xf32>
    %41 = tpu.concatenate %39, %40 in 0 : vector<8x8xf32>, vector<56x8xf32> -> vector<64x8xf32>
    %42 = arith.truncf %41 : vector<64x8xf32> to vector<64x8xbf16>
    %c1 = arith.constant 1 : index
    %c0_20 = arith.constant 0 : index
    %c0_21 = arith.constant 0 : index
    %43 = vector.load %arg5[%c1, %c0_20, %c0_21] : memref<9x8x32xbf16, #tpu.memory_space<vmem>>, vector<1x8x32xbf16>
    %44 = vector.shape_cast %43 : vector<1x8x32xbf16> to vector<8x32xbf16>
    %cst_22 = arith.constant dense<0.000000e+00> : vector<64x32xf32>
    %45 = tpu.matmul %42, %44, %cst_22 {dimension_numbers = #tpu.dot_dimension_numbers<[1], [0], [0], [1], [0, 0, 1, 1], [], []>} : vector<64x8xbf16>, vector<8x32xbf16>, vector<64x32xf32> -> vector<64x32xf32>
    %46 = arith.addf %38, %45 : vector<64x32xf32>
    %cst_23 = arith.constant 0.000000e+00 : f32
    %47 = vector.broadcast %cst_23 : f32 to vector<7x8xf32>
    %48 = vector.extract_strided_slice %29 {offsets = [0, 0], sizes = [57, 8], strides = [1, 1]} : vector<64x8xf32> to vector<57x8xf32>
    %49 = tpu.concatenate %47, %48 in 0 : vector<7x8xf32>, vector<57x8xf32> -> vector<64x8xf32>
    %50 = arith.truncf %49 : vector<64x8xf32> to vector<64x8xbf16>
    %c2 = arith.constant 2 : index
    %c0_24 = arith.constant 0 : index
    %c0_25 = arith.constant 0 : index
    %51 = vector.load %arg5[%c2, %c0_24, %c0_25] : memref<9x8x32xbf16, #tpu.memory_space<vmem>>, vector<1x8x32xbf16>
    %52 = vector.shape_cast %51 : vector<1x8x32xbf16> to vector<8x32xbf16>
    %cst_26 = arith.constant dense<0.000000e+00> : vector<64x32xf32>
    %53 = tpu.matmul %50, %52, %cst_26 {dimension_numbers = #tpu.dot_dimension_numbers<[1], [0], [0], [1], [0, 0, 1, 1], [], []>} : vector<64x8xbf16>, vector<8x32xbf16>, vector<64x32xf32> -> vector<64x32xf32>
    %54 = arith.addf %46, %53 : vector<64x32xf32>
    %cst_27 = arith.constant 0.000000e+00 : f32
    %55 = vector.broadcast %cst_27 : f32 to vector<1x8xf32>
    %56 = vector.extract_strided_slice %23 {offsets = [0, 0], sizes = [63, 8], strides = [1, 1]} : vector<64x8xf32> to vector<63x8xf32>
    %57 = tpu.concatenate %55, %56 in 0 : vector<1x8xf32>, vector<63x8xf32> -> vector<64x8xf32>
    %58 = arith.truncf %57 : vector<64x8xf32> to vector<64x8xbf16>
    %c3 = arith.constant 3 : index
    %c0_28 = arith.constant 0 : index
    %c0_29 = arith.constant 0 : index
    %59 = vector.load %arg5[%c3, %c0_28, %c0_29] : memref<9x8x32xbf16, #tpu.memory_space<vmem>>, vector<1x8x32xbf16>
    %60 = vector.shape_cast %59 : vector<1x8x32xbf16> to vector<8x32xbf16>
    %cst_30 = arith.constant dense<0.000000e+00> : vector<64x32xf32>
    %61 = tpu.matmul %58, %60, %cst_30 {dimension_numbers = #tpu.dot_dimension_numbers<[1], [0], [0], [1], [0, 0, 1, 1], [], []>} : vector<64x8xbf16>, vector<8x32xbf16>, vector<64x32xf32> -> vector<64x32xf32>
    %62 = arith.addf %54, %61 : vector<64x32xf32>
    %63 = arith.truncf %12 : vector<64x8xf32> to vector<64x8xbf16>
    %c4 = arith.constant 4 : index
    %c0_31 = arith.constant 0 : index
    %c0_32 = arith.constant 0 : index
    %64 = vector.load %arg5[%c4, %c0_31, %c0_32] : memref<9x8x32xbf16, #tpu.memory_space<vmem>>, vector<1x8x32xbf16>
    %65 = vector.shape_cast %64 : vector<1x8x32xbf16> to vector<8x32xbf16>
    %cst_33 = arith.constant dense<0.000000e+00> : vector<64x32xf32>
    %66 = tpu.matmul %63, %65, %cst_33 {dimension_numbers = #tpu.dot_dimension_numbers<[1], [0], [0], [1], [0, 0, 1, 1], [], []>} : vector<64x8xbf16>, vector<8x32xbf16>, vector<64x32xf32> -> vector<64x32xf32>
    %67 = arith.addf %62, %66 : vector<64x32xf32>
    %cst_34 = arith.constant 0.000000e+00 : f32
    %68 = vector.broadcast %cst_34 : f32 to vector<1x8xf32>
    %69 = vector.extract_strided_slice %29 {offsets = [1, 0], sizes = [63, 8], strides = [1, 1]} : vector<64x8xf32> to vector<63x8xf32>
    %70 = tpu.concatenate %69, %68 in 0 : vector<63x8xf32>, vector<1x8xf32> -> vector<64x8xf32>
    %71 = arith.truncf %70 : vector<64x8xf32> to vector<64x8xbf16>
    %c5 = arith.constant 5 : index
    %c0_35 = arith.constant 0 : index
    %c0_36 = arith.constant 0 : index
    %72 = vector.load %arg5[%c5, %c0_35, %c0_36] : memref<9x8x32xbf16, #tpu.memory_space<vmem>>, vector<1x8x32xbf16>
    %73 = vector.shape_cast %72 : vector<1x8x32xbf16> to vector<8x32xbf16>
    %cst_37 = arith.constant dense<0.000000e+00> : vector<64x32xf32>
    %74 = tpu.matmul %71, %73, %cst_37 {dimension_numbers = #tpu.dot_dimension_numbers<[1], [0], [0], [1], [0, 0, 1, 1], [], []>} : vector<64x8xbf16>, vector<8x32xbf16>, vector<64x32xf32> -> vector<64x32xf32>
    %75 = arith.addf %67, %74 : vector<64x32xf32>
    %cst_38 = arith.constant 0.000000e+00 : f32
    %76 = vector.broadcast %cst_38 : f32 to vector<7x8xf32>
    %77 = vector.extract_strided_slice %23 {offsets = [7, 0], sizes = [57, 8], strides = [1, 1]} : vector<64x8xf32> to vector<57x8xf32>
    %78 = tpu.concatenate %77, %76 in 0 : vector<57x8xf32>, vector<7x8xf32> -> vector<64x8xf32>
    %79 = arith.truncf %78 : vector<64x8xf32> to vector<64x8xbf16>
    %c6 = arith.constant 6 : index
    %c0_39 = arith.constant 0 : index
    %c0_40 = arith.constant 0 : index
    %80 = vector.load %arg5[%c6, %c0_39, %c0_40] : memref<9x8x32xbf16, #tpu.memory_space<vmem>>, vector<1x8x32xbf16>
    %81 = vector.shape_cast %80 : vector<1x8x32xbf16> to vector<8x32xbf16>
    %cst_41 = arith.constant dense<0.000000e+00> : vector<64x32xf32>
    %82 = tpu.matmul %79, %81, %cst_41 {dimension_numbers = #tpu.dot_dimension_numbers<[1], [0], [0], [1], [0, 0, 1, 1], [], []>} : vector<64x8xbf16>, vector<8x32xbf16>, vector<64x32xf32> -> vector<64x32xf32>
    %83 = arith.addf %75, %82 : vector<64x32xf32>
    %cst_42 = arith.constant 0.000000e+00 : f32
    %84 = vector.broadcast %cst_42 : f32 to vector<8x8xf32>
    %85 = vector.extract_strided_slice %12 {offsets = [8, 0], sizes = [56, 8], strides = [1, 1]} : vector<64x8xf32> to vector<56x8xf32>
    %86 = tpu.concatenate %85, %84 in 0 : vector<56x8xf32>, vector<8x8xf32> -> vector<64x8xf32>
    %87 = arith.truncf %86 : vector<64x8xf32> to vector<64x8xbf16>
    %c7 = arith.constant 7 : index
    %c0_43 = arith.constant 0 : index
    %c0_44 = arith.constant 0 : index
    %88 = vector.load %arg5[%c7, %c0_43, %c0_44] : memref<9x8x32xbf16, #tpu.memory_space<vmem>>, vector<1x8x32xbf16>
    %89 = vector.shape_cast %88 : vector<1x8x32xbf16> to vector<8x32xbf16>
    %cst_45 = arith.constant dense<0.000000e+00> : vector<64x32xf32>
    %90 = tpu.matmul %87, %89, %cst_45 {dimension_numbers = #tpu.dot_dimension_numbers<[1], [0], [0], [1], [0, 0, 1, 1], [], []>} : vector<64x8xbf16>, vector<8x32xbf16>, vector<64x32xf32> -> vector<64x32xf32>
    %91 = arith.addf %83, %90 : vector<64x32xf32>
    %cst_46 = arith.constant 0.000000e+00 : f32
    %92 = vector.broadcast %cst_46 : f32 to vector<9x8xf32>
    %93 = vector.extract_strided_slice %29 {offsets = [9, 0], sizes = [55, 8], strides = [1, 1]} : vector<64x8xf32> to vector<55x8xf32>
    %94 = tpu.concatenate %93, %92 in 0 : vector<55x8xf32>, vector<9x8xf32> -> vector<64x8xf32>
    %95 = arith.truncf %94 : vector<64x8xf32> to vector<64x8xbf16>
    %c8 = arith.constant 8 : index
    %c0_47 = arith.constant 0 : index
    %c0_48 = arith.constant 0 : index
    %96 = vector.load %arg5[%c8, %c0_47, %c0_48] : memref<9x8x32xbf16, #tpu.memory_space<vmem>>, vector<1x8x32xbf16>
    %97 = vector.shape_cast %96 : vector<1x8x32xbf16> to vector<8x32xbf16>
    %cst_49 = arith.constant dense<0.000000e+00> : vector<64x32xf32>
    %98 = tpu.matmul %95, %97, %cst_49 {dimension_numbers = #tpu.dot_dimension_numbers<[1], [0], [0], [1], [0, 0, 1, 1], [], []>} : vector<64x8xbf16>, vector<8x32xbf16>, vector<64x32xf32> -> vector<64x32xf32>
    %99 = arith.addf %91, %98 : vector<64x32xf32>
    %100 = vector.broadcast %14 : vector<1x32xf32> to vector<64x32xf32>
    %101 = arith.addf %99, %100 : vector<64x32xf32>
    %cst_50 = arith.constant 0.000000e+00 : f32
    %102 = vector.broadcast %cst_50 : f32 to vector<64x32xf32>
    %103 = arith.maximumf %101, %102 : vector<64x32xf32>
    %104 = arith.truncf %103 : vector<64x32xf32> to vector<64x32xbf16>
    %c0_51 = arith.constant 0 : index
    %c0_52 = arith.constant 0 : index
    %105 = vector.load %arg7[%c0_51, %c0_52] : memref<32x32xbf16, #tpu.memory_space<vmem>>, vector<32x32xbf16>
    %cst_53 = arith.constant dense<0.000000e+00> : vector<64x32xf32>
    %106 = tpu.matmul %104, %105, %cst_53 {dimension_numbers = #tpu.dot_dimension_numbers<[1], [0], [0], [1], [0, 0, 1, 1], [], []>} : vector<64x32xbf16>, vector<32x32xbf16>, vector<64x32xf32> -> vector<64x32xf32>
    %c0_54 = arith.constant 0 : index
    %c0_55 = arith.constant 0 : index
    %107 = vector.load %arg8[%c0_54, %c0_55] : memref<1x32xf32, #tpu.memory_space<vmem>>, vector<1x32xf32>
    %108 = vector.broadcast %107 : vector<1x32xf32> to vector<64x32xf32>
    %109 = arith.addf %106, %108 : vector<64x32xf32>
    %cst_56 = arith.constant 0.000000e+00 : f32
    %110 = vector.broadcast %cst_56 : f32 to vector<64x32xf32>
    %111 = arith.maximumf %109, %110 : vector<64x32xf32>
    %c0_57 = arith.constant 0 : index
    %c0_58 = arith.constant 0 : index
    %112 = vector.load %arg10[%c0_57, %c0_58] : memref<1x16xf32, #tpu.memory_space<vmem>>, vector<1x16xf32>
    %113 = tpu.iota {dimensions = array<i32: 0>} : vector<64x1xi32>
    %c7_i32_59 = arith.constant 7 : i32
    %114 = vector.broadcast %c7_i32_59 : i32 to vector<64x1xi32>
    %115 = arith.andi %113, %114 : vector<64x1xi32>
    %c7_i32_60 = arith.constant 7 : i32
    %116 = vector.broadcast %c7_i32_60 : i32 to vector<64x1xi32>
    %117 = arith.cmpi eq, %115, %116 : vector<64x1xi32>
    %cst_61 = arith.constant 0.000000e+00 : f32
    %118 = vector.shape_cast %117 : vector<64x1xi1> to vector<64x1xi1>
    %119 = vector.broadcast %118 : vector<64x1xi1> to vector<64x32xi1>
    %120 = vector.broadcast %cst_61 : f32 to vector<64x32xf32>
    %121 = arith.select %119, %120, %111 : vector<64x32xi1>, vector<64x32xf32>
    %c0_i32_62 = arith.constant 0 : i32
    %122 = vector.broadcast %c0_i32_62 : i32 to vector<64x1xi32>
    %123 = arith.cmpi eq, %115, %122 : vector<64x1xi32>
    %cst_63 = arith.constant 0.000000e+00 : f32
    %124 = vector.shape_cast %123 : vector<64x1xi1> to vector<64x1xi1>
    %125 = vector.broadcast %124 : vector<64x1xi1> to vector<64x32xi1>
    %126 = vector.broadcast %cst_63 : f32 to vector<64x32xf32>
    %127 = arith.select %125, %126, %111 : vector<64x32xi1>, vector<64x32xf32>
    %cst_64 = arith.constant 0.000000e+00 : f32
    %128 = vector.broadcast %cst_64 : f32 to vector<64x16xf32>
    %cst_65 = arith.constant 0.000000e+00 : f32
    %129 = vector.broadcast %cst_65 : f32 to vector<9x32xf32>
    %130 = vector.extract_strided_slice %121 {offsets = [0, 0], sizes = [55, 32], strides = [1, 1]} : vector<64x32xf32> to vector<55x32xf32>
    %131 = tpu.concatenate %129, %130 in 0 : vector<9x32xf32>, vector<55x32xf32> -> vector<64x32xf32>
    %132 = arith.truncf %131 : vector<64x32xf32> to vector<64x32xbf16>
    %c0_66 = arith.constant 0 : index
    %c0_67 = arith.constant 0 : index
    %c0_68 = arith.constant 0 : index
    %133 = vector.load %arg9[%c0_66, %c0_67, %c0_68] : memref<9x32x16xbf16, #tpu.memory_space<vmem>>, vector<1x32x16xbf16>
    %134 = vector.shape_cast %133 : vector<1x32x16xbf16> to vector<32x16xbf16>
    %cst_69 = arith.constant dense<0.000000e+00> : vector<64x16xf32>
    %135 = tpu.matmul %132, %134, %cst_69 {dimension_numbers = #tpu.dot_dimension_numbers<[1], [0], [0], [1], [0, 0, 1, 1], [], []>} : vector<64x32xbf16>, vector<32x16xbf16>, vector<64x16xf32> -> vector<64x16xf32>
    %136 = arith.addf %128, %135 : vector<64x16xf32>
    %cst_70 = arith.constant 0.000000e+00 : f32
    %137 = vector.broadcast %cst_70 : f32 to vector<8x32xf32>
    %138 = vector.extract_strided_slice %111 {offsets = [0, 0], sizes = [56, 32], strides = [1, 1]} : vector<64x32xf32> to vector<56x32xf32>
    %139 = tpu.concatenate %137, %138 in 0 : vector<8x32xf32>, vector<56x32xf32> -> vector<64x32xf32>
    %140 = arith.truncf %139 : vector<64x32xf32> to vector<64x32xbf16>
    %c1_71 = arith.constant 1 : index
    %c0_72 = arith.constant 0 : index
    %c0_73 = arith.constant 0 : index
    %141 = vector.load %arg9[%c1_71, %c0_72, %c0_73] : memref<9x32x16xbf16, #tpu.memory_space<vmem>>, vector<1x32x16xbf16>
    %142 = vector.shape_cast %141 : vector<1x32x16xbf16> to vector<32x16xbf16>
    %cst_74 = arith.constant dense<0.000000e+00> : vector<64x16xf32>
    %143 = tpu.matmul %140, %142, %cst_74 {dimension_numbers = #tpu.dot_dimension_numbers<[1], [0], [0], [1], [0, 0, 1, 1], [], []>} : vector<64x32xbf16>, vector<32x16xbf16>, vector<64x16xf32> -> vector<64x16xf32>
    %144 = arith.addf %136, %143 : vector<64x16xf32>
    %cst_75 = arith.constant 0.000000e+00 : f32
    %145 = vector.broadcast %cst_75 : f32 to vector<7x32xf32>
    %146 = vector.extract_strided_slice %127 {offsets = [0, 0], sizes = [57, 32], strides = [1, 1]} : vector<64x32xf32> to vector<57x32xf32>
    %147 = tpu.concatenate %145, %146 in 0 : vector<7x32xf32>, vector<57x32xf32> -> vector<64x32xf32>
    %148 = arith.truncf %147 : vector<64x32xf32> to vector<64x32xbf16>
    %c2_76 = arith.constant 2 : index
    %c0_77 = arith.constant 0 : index
    %c0_78 = arith.constant 0 : index
    %149 = vector.load %arg9[%c2_76, %c0_77, %c0_78] : memref<9x32x16xbf16, #tpu.memory_space<vmem>>, vector<1x32x16xbf16>
    %150 = vector.shape_cast %149 : vector<1x32x16xbf16> to vector<32x16xbf16>
    %cst_79 = arith.constant dense<0.000000e+00> : vector<64x16xf32>
    %151 = tpu.matmul %148, %150, %cst_79 {dimension_numbers = #tpu.dot_dimension_numbers<[1], [0], [0], [1], [0, 0, 1, 1], [], []>} : vector<64x32xbf16>, vector<32x16xbf16>, vector<64x16xf32> -> vector<64x16xf32>
    %152 = arith.addf %144, %151 : vector<64x16xf32>
    %cst_80 = arith.constant 0.000000e+00 : f32
    %153 = vector.broadcast %cst_80 : f32 to vector<1x32xf32>
    %154 = vector.extract_strided_slice %121 {offsets = [0, 0], sizes = [63, 32], strides = [1, 1]} : vector<64x32xf32> to vector<63x32xf32>
    %155 = tpu.concatenate %153, %154 in 0 : vector<1x32xf32>, vector<63x32xf32> -> vector<64x32xf32>
    %156 = arith.truncf %155 : vector<64x32xf32> to vector<64x32xbf16>
    %c3_81 = arith.constant 3 : index
    %c0_82 = arith.constant 0 : index
    %c0_83 = arith.constant 0 : index
    %157 = vector.load %arg9[%c3_81, %c0_82, %c0_83] : memref<9x32x16xbf16, #tpu.memory_space<vmem>>, vector<1x32x16xbf16>
    %158 = vector.shape_cast %157 : vector<1x32x16xbf16> to vector<32x16xbf16>
    %cst_84 = arith.constant dense<0.000000e+00> : vector<64x16xf32>
    %159 = tpu.matmul %156, %158, %cst_84 {dimension_numbers = #tpu.dot_dimension_numbers<[1], [0], [0], [1], [0, 0, 1, 1], [], []>} : vector<64x32xbf16>, vector<32x16xbf16>, vector<64x16xf32> -> vector<64x16xf32>
    %160 = arith.addf %152, %159 : vector<64x16xf32>
    %161 = arith.truncf %111 : vector<64x32xf32> to vector<64x32xbf16>
    %c4_85 = arith.constant 4 : index
    %c0_86 = arith.constant 0 : index
    %c0_87 = arith.constant 0 : index
    %162 = vector.load %arg9[%c4_85, %c0_86, %c0_87] : memref<9x32x16xbf16, #tpu.memory_space<vmem>>, vector<1x32x16xbf16>
    %163 = vector.shape_cast %162 : vector<1x32x16xbf16> to vector<32x16xbf16>
    %cst_88 = arith.constant dense<0.000000e+00> : vector<64x16xf32>
    %164 = tpu.matmul %161, %163, %cst_88 {dimension_numbers = #tpu.dot_dimension_numbers<[1], [0], [0], [1], [0, 0, 1, 1], [], []>} : vector<64x32xbf16>, vector<32x16xbf16>, vector<64x16xf32> -> vector<64x16xf32>
    %165 = arith.addf %160, %164 : vector<64x16xf32>
    %cst_89 = arith.constant 0.000000e+00 : f32
    %166 = vector.broadcast %cst_89 : f32 to vector<1x32xf32>
    %167 = vector.extract_strided_slice %127 {offsets = [1, 0], sizes = [63, 32], strides = [1, 1]} : vector<64x32xf32> to vector<63x32xf32>
    %168 = tpu.concatenate %167, %166 in 0 : vector<63x32xf32>, vector<1x32xf32> -> vector<64x32xf32>
    %169 = arith.truncf %168 : vector<64x32xf32> to vector<64x32xbf16>
    %c5_90 = arith.constant 5 : index
    %c0_91 = arith.constant 0 : index
    %c0_92 = arith.constant 0 : index
    %170 = vector.load %arg9[%c5_90, %c0_91, %c0_92] : memref<9x32x16xbf16, #tpu.memory_space<vmem>>, vector<1x32x16xbf16>
    %171 = vector.shape_cast %170 : vector<1x32x16xbf16> to vector<32x16xbf16>
    %cst_93 = arith.constant dense<0.000000e+00> : vector<64x16xf32>
    %172 = tpu.matmul %169, %171, %cst_93 {dimension_numbers = #tpu.dot_dimension_numbers<[1], [0], [0], [1], [0, 0, 1, 1], [], []>} : vector<64x32xbf16>, vector<32x16xbf16>, vector<64x16xf32> -> vector<64x16xf32>
    %173 = arith.addf %165, %172 : vector<64x16xf32>
    %cst_94 = arith.constant 0.000000e+00 : f32
    %174 = vector.broadcast %cst_94 : f32 to vector<7x32xf32>
    %175 = vector.extract_strided_slice %121 {offsets = [7, 0], sizes = [57, 32], strides = [1, 1]} : vector<64x32xf32> to vector<57x32xf32>
    %176 = tpu.concatenate %175, %174 in 0 : vector<57x32xf32>, vector<7x32xf32> -> vector<64x32xf32>
    %177 = arith.truncf %176 : vector<64x32xf32> to vector<64x32xbf16>
    %c6_95 = arith.constant 6 : index
    %c0_96 = arith.constant 0 : index
    %c0_97 = arith.constant 0 : index
    %178 = vector.load %arg9[%c6_95, %c0_96, %c0_97] : memref<9x32x16xbf16, #tpu.memory_space<vmem>>, vector<1x32x16xbf16>
    %179 = vector.shape_cast %178 : vector<1x32x16xbf16> to vector<32x16xbf16>
    %cst_98 = arith.constant dense<0.000000e+00> : vector<64x16xf32>
    %180 = tpu.matmul %177, %179, %cst_98 {dimension_numbers = #tpu.dot_dimension_numbers<[1], [0], [0], [1], [0, 0, 1, 1], [], []>} : vector<64x32xbf16>, vector<32x16xbf16>, vector<64x16xf32> -> vector<64x16xf32>
    %181 = arith.addf %173, %180 : vector<64x16xf32>
    %cst_99 = arith.constant 0.000000e+00 : f32
    %182 = vector.broadcast %cst_99 : f32 to vector<8x32xf32>
    %183 = vector.extract_strided_slice %111 {offsets = [8, 0], sizes = [56, 32], strides = [1, 1]} : vector<64x32xf32> to vector<56x32xf32>
    %184 = tpu.concatenate %183, %182 in 0 : vector<56x32xf32>, vector<8x32xf32> -> vector<64x32xf32>
    %185 = arith.truncf %184 : vector<64x32xf32> to vector<64x32xbf16>
    %c7_100 = arith.constant 7 : index
    %c0_101 = arith.constant 0 : index
    %c0_102 = arith.constant 0 : index
    %186 = vector.load %arg9[%c7_100, %c0_101, %c0_102] : memref<9x32x16xbf16, #tpu.memory_space<vmem>>, vector<1x32x16xbf16>
    %187 = vector.shape_cast %186 : vector<1x32x16xbf16> to vector<32x16xbf16>
    %cst_103 = arith.constant dense<0.000000e+00> : vector<64x16xf32>
    %188 = tpu.matmul %185, %187, %cst_103 {dimension_numbers = #tpu.dot_dimension_numbers<[1], [0], [0], [1], [0, 0, 1, 1], [], []>} : vector<64x32xbf16>, vector<32x16xbf16>, vector<64x16xf32> -> vector<64x16xf32>
    %189 = arith.addf %181, %188 : vector<64x16xf32>
    %cst_104 = arith.constant 0.000000e+00 : f32
    %190 = vector.broadcast %cst_104 : f32 to vector<9x32xf32>
    %191 = vector.extract_strided_slice %127 {offsets = [9, 0], sizes = [55, 32], strides = [1, 1]} : vector<64x32xf32> to vector<55x32xf32>
    %192 = tpu.concatenate %191, %190 in 0 : vector<55x32xf32>, vector<9x32xf32> -> vector<64x32xf32>
    %193 = arith.truncf %192 : vector<64x32xf32> to vector<64x32xbf16>
    %c8_105 = arith.constant 8 : index
    %c0_106 = arith.constant 0 : index
    %c0_107 = arith.constant 0 : index
    %194 = vector.load %arg9[%c8_105, %c0_106, %c0_107] : memref<9x32x16xbf16, #tpu.memory_space<vmem>>, vector<1x32x16xbf16>
    %195 = vector.shape_cast %194 : vector<1x32x16xbf16> to vector<32x16xbf16>
    %cst_108 = arith.constant dense<0.000000e+00> : vector<64x16xf32>
    %196 = tpu.matmul %193, %195, %cst_108 {dimension_numbers = #tpu.dot_dimension_numbers<[1], [0], [0], [1], [0, 0, 1, 1], [], []>} : vector<64x32xbf16>, vector<32x16xbf16>, vector<64x16xf32> -> vector<64x16xf32>
    %197 = arith.addf %189, %196 : vector<64x16xf32>
    %198 = vector.broadcast %112 : vector<1x16xf32> to vector<64x16xf32>
    %199 = arith.addf %197, %198 : vector<64x16xf32>
    %200 = vector.extract_strided_slice %199 {offsets = [0, 0], sizes = [64, 8], strides = [1, 1]} : vector<64x16xf32> to vector<64x8xf32>
    %201 = vector.extract_strided_slice %199 {offsets = [0, 8], sizes = [64, 8], strides = [1, 1]} : vector<64x16xf32> to vector<64x8xf32>
    %cst_109 = arith.constant 2.000000e+00 : f32
    %202 = vector.broadcast %cst_109 : f32 to vector<64x8xf32>
    %203 = arith.addf %201, %202 : vector<64x8xf32>
    %cst_110 = arith.constant 0.000000e+00 : f32
    %204 = vector.broadcast %cst_110 : f32 to vector<64x8xf32>
    %205 = arith.minimumf %203, %204 : vector<64x8xf32>
    %206 = math.absf %203 : vector<64x8xf32>
    %cst_111 = arith.constant 0.000000e+00 : f32
    %207 = vector.broadcast %cst_111 : f32 to vector<64x8xf32>
    %208 = arith.subf %207, %206 : vector<64x8xf32>
    %209 = math.exp %208 : vector<64x8xf32>
    %cst_112 = arith.constant 1.000000e+00 : f32
    %210 = vector.broadcast %cst_112 : f32 to vector<64x8xf32>
    %211 = arith.addf %210, %209 : vector<64x8xf32>
    %212 = math.log %211 : vector<64x8xf32>
    %213 = arith.subf %205, %212 : vector<64x8xf32>
    %214 = arith.addf %13, %200 : vector<64x8xf32>
    %215 = math.exp %213 : vector<64x8xf32>
    %216 = arith.mulf %214, %215 : vector<64x8xf32>
    %217 = tpu.concatenate %12, %216 in 1 : vector<64x8xf32>, vector<64x8xf32> -> vector<64x16xf32>
    %c0_113 = arith.constant 0 : index
    %c0_114 = arith.constant 0 : index
    %c0_115 = arith.constant 0 : index
    %218 = vector.load %arg11[%c0_113, %c0_114, %c0_115] : memref<1x64x16xf32, #tpu.memory_space<vmem>>, vector<1x64x16xf32>
    %219 = vector.shape_cast %218 : vector<1x64x16xf32> to vector<64x16xf32>
    %220 = vector.shape_cast %217 : vector<64x16xf32> to vector<1x64x16xf32>
    tpu.vector_store %arg11[%c0_113, %c0_114, %c0_115], %220 {strides = array<i32>} : memref<1x64x16xf32, #tpu.memory_space<vmem>>, vector<1x64x16xf32>,
    %cst_116 = arith.constant dense<0.000000e+00> : vector<8xf32>
    %221 = vector.multi_reduction <add>, %213, %cst_116 [0] : vector<64x8xf32> to vector<8xf32>
    %222 = vector.shape_cast %221 : vector<8xf32> to vector<1x8xf32>
    %c0_117 = arith.constant 0 : index
    %c0_118 = arith.constant 0 : index
    %c0_119 = arith.constant 0 : index
    %223 = vector.load %arg12[%c0_117, %c0_118, %c0_119] : memref<1x1x8xf32, #tpu.memory_space<vmem>>, vector<1x1x8xf32>
    %224 = vector.shape_cast %223 : vector<1x1x8xf32> to vector<1x8xf32>
    %225 = vector.shape_cast %222 : vector<1x8xf32> to vector<1x1x8xf32>
    tpu.vector_store %arg12[%c0_117, %c0_118, %c0_119], %225 {strides = array<i32>} : memref<1x1x8xf32, #tpu.memory_space<vmem>>, vector<1x1x8xf32>,
    return
  }
  func.func @transform_0(%arg0: i32) -> (i32, i32, i32) {
    %c0_i32 = arith.constant 0 : i32
    %c0_i32_0 = arith.constant 0 : i32
    %c0_i32_1 = arith.constant 0 : i32
    return %arg0, %c0_i32, %c0_i32_0 : i32, i32, i32
  }
  func.func @transform_1(%arg0: i32) -> (i32, i32) {
    %c0_i32 = arith.constant 0 : i32
    %c0_i32_0 = arith.constant 0 : i32
    %c0_i32_1 = arith.constant 0 : i32
    return %c0_i32, %c0_i32_0 : i32, i32
  }
  func.func @transform_2(%arg0: i32) -> (i32, i32) {
    %c0_i32 = arith.constant 0 : i32
    %c0_i32_0 = arith.constant 0 : i32
    %c0_i32_1 = arith.constant 0 : i32
    return %c0_i32, %c0_i32_0 : i32, i32
  }
  func.func @transform_3(%arg0: i32) -> (i32, i32) {
    %c0_i32 = arith.constant 0 : i32
    %c0_i32_0 = arith.constant 0 : i32
    %c0_i32_1 = arith.constant 0 : i32
    return %c0_i32, %c0_i32_0 : i32, i32
  }
  func.func @transform_4(%arg0: i32) -> (i32, i32, i32) {
    %c0_i32 = arith.constant 0 : i32
    %c0_i32_0 = arith.constant 0 : i32
    %c0_i32_1 = arith.constant 0 : i32
    %c0_i32_2 = arith.constant 0 : i32
    return %c0_i32, %c0_i32_0, %c0_i32_1 : i32, i32, i32
  }
  func.func @transform_5(%arg0: i32) -> (i32, i32) {
    %c0_i32 = arith.constant 0 : i32
    %c0_i32_0 = arith.constant 0 : i32
    %c0_i32_1 = arith.constant 0 : i32
    return %c0_i32, %c0_i32_0 : i32, i32
  }
  func.func @transform_6(%arg0: i32) -> (i32, i32) {
    %c0_i32 = arith.constant 0 : i32
    %c0_i32_0 = arith.constant 0 : i32
    %c0_i32_1 = arith.constant 0 : i32
    return %c0_i32, %c0_i32_0 : i32, i32
  }
  func.func @transform_7(%arg0: i32) -> (i32, i32) {
    %c0_i32 = arith.constant 0 : i32
    %c0_i32_0 = arith.constant 0 : i32
    %c0_i32_1 = arith.constant 0 : i32
    return %c0_i32, %c0_i32_0 : i32, i32
  }
  func.func @transform_8(%arg0: i32) -> (i32, i32, i32) {
    %c0_i32 = arith.constant 0 : i32
    %c0_i32_0 = arith.constant 0 : i32
    %c0_i32_1 = arith.constant 0 : i32
    %c0_i32_2 = arith.constant 0 : i32
    return %c0_i32, %c0_i32_0, %c0_i32_1 : i32, i32, i32
  }
  func.func @transform_9(%arg0: i32) -> (i32, i32) {
    %c0_i32 = arith.constant 0 : i32
    %c0_i32_0 = arith.constant 0 : i32
    %c0_i32_1 = arith.constant 0 : i32
    return %c0_i32, %c0_i32_0 : i32, i32
  }
  func.func @transform_10(%arg0: i32) -> (i32, i32, i32) {
    %c0_i32 = arith.constant 0 : i32
    %c0_i32_0 = arith.constant 0 : i32
    %c0_i32_1 = arith.constant 0 : i32
    return %arg0, %c0_i32, %c0_i32_0 : i32, i32, i32
  }
  func.func @transform_11(%arg0: i32) -> (i32, i32, i32) {
    %c0_i32 = arith.constant 0 : i32
    %c0_i32_0 = arith.constant 0 : i32
    %c0_i32_1 = arith.constant 0 : i32
    return %arg0, %c0_i32, %c0_i32_0 : i32, i32, i32
  }
}

module attributes {stable_mosaic.version = 11 : i64} {
  func.func @_split_kernel(%arg0: i32, %arg1: memref<1x64x16xf32, #tpu.memory_space<vmem>>, %arg2: memref<9x8x16xbf16, #tpu.memory_space<vmem>>, %arg3: memref<1x16xf32, #tpu.memory_space<vmem>>, %arg4: memref<1x64x8xf32, #tpu.memory_space<vmem>>, %arg5: memref<1x1x8xf32, #tpu.memory_space<vmem>>) attributes {dimension_semantics = [#tpu.dimension_semantics<parallel>], iteration_bounds = array<i64: 2>, scalar_prefetch = 0 : i64, scratch_operands = 0 : i64, tpu.core_type = #tpu.core_type<tc>, window_params = [{transform_indices = @transform_0, window_bounds = array<i64: 1, 64, 16>}, {pipeline_mode = #tpu.pipeline_mode<synchronous>, transform_indices = @transform_1, window_bounds = array<i64: 9, 8, 16>}, {pipeline_mode = #tpu.pipeline_mode<synchronous>, transform_indices = @transform_2, window_bounds = array<i64: 1, 16>}, {transform_indices = @transform_3, window_bounds = array<i64: 1, 64, 8>}, {transform_indices = @transform_4, window_bounds = array<i64: 1, 1, 8>}]} {
    %c0 = arith.constant 0 : index
    %c0_0 = arith.constant 0 : index
    %c0_1 = arith.constant 0 : index
    %0 = vector.load %arg1[%c0, %c0_0, %c0_1] : memref<1x64x16xf32, #tpu.memory_space<vmem>>, vector<1x64x16xf32>
    %1 = vector.shape_cast %0 : vector<1x64x16xf32> to vector<64x16xf32>
    %2 = vector.extract_strided_slice %1 {offsets = [0, 0], sizes = [64, 8], strides = [1, 1]} : vector<64x16xf32> to vector<64x8xf32>
    %3 = vector.extract_strided_slice %1 {offsets = [0, 8], sizes = [64, 8], strides = [1, 1]} : vector<64x16xf32> to vector<64x8xf32>
    %c0_2 = arith.constant 0 : index
    %c0_3 = arith.constant 0 : index
    %4 = vector.load %arg3[%c0_2, %c0_3] : memref<1x16xf32, #tpu.memory_space<vmem>>, vector<1x16xf32>
    %5 = tpu.iota {dimensions = array<i32: 0>} : vector<64x1xi32>
    %c7_i32 = arith.constant 7 : i32
    %6 = vector.broadcast %c7_i32 : i32 to vector<64x1xi32>
    %7 = arith.andi %5, %6 : vector<64x1xi32>
    %c7_i32_4 = arith.constant 7 : i32
    %8 = vector.broadcast %c7_i32_4 : i32 to vector<64x1xi32>
    %9 = arith.cmpi eq, %7, %8 : vector<64x1xi32>
    %cst = arith.constant 0.000000e+00 : f32
    %10 = vector.shape_cast %9 : vector<64x1xi1> to vector<64x1xi1>
    %11 = vector.broadcast %10 : vector<64x1xi1> to vector<64x8xi1>
    %12 = vector.broadcast %cst : f32 to vector<64x8xf32>
    %13 = arith.select %11, %12, %2 : vector<64x8xi1>, vector<64x8xf32>
    %c0_i32 = arith.constant 0 : i32
    %14 = vector.broadcast %c0_i32 : i32 to vector<64x1xi32>
    %15 = arith.cmpi eq, %7, %14 : vector<64x1xi32>
    %cst_5 = arith.constant 0.000000e+00 : f32
    %16 = vector.shape_cast %15 : vector<64x1xi1> to vector<64x1xi1>
    %17 = vector.broadcast %16 : vector<64x1xi1> to vector<64x8xi1>
    %18 = vector.broadcast %cst_5 : f32 to vector<64x8xf32>
    %19 = arith.select %17, %18, %2 : vector<64x8xi1>, vector<64x8xf32>
    %cst_6 = arith.constant 0.000000e+00 : f32
    %20 = vector.broadcast %cst_6 : f32 to vector<64x16xf32>
    %cst_7 = arith.constant 0.000000e+00 : f32
    %21 = vector.broadcast %cst_7 : f32 to vector<9x8xf32>
    %22 = vector.extract_strided_slice %13 {offsets = [0, 0], sizes = [55, 8], strides = [1, 1]} : vector<64x8xf32> to vector<55x8xf32>
    %23 = tpu.concatenate %21, %22 in 0 : vector<9x8xf32>, vector<55x8xf32> -> vector<64x8xf32>
    %24 = arith.truncf %23 : vector<64x8xf32> to vector<64x8xbf16>
    %c0_8 = arith.constant 0 : index
    %c0_9 = arith.constant 0 : index
    %c0_10 = arith.constant 0 : index
    %25 = vector.load %arg2[%c0_8, %c0_9, %c0_10] : memref<9x8x16xbf16, #tpu.memory_space<vmem>>, vector<1x8x16xbf16>
    %26 = vector.shape_cast %25 : vector<1x8x16xbf16> to vector<8x16xbf16>
    %cst_11 = arith.constant dense<0.000000e+00> : vector<64x16xf32>
    %27 = tpu.matmul %24, %26, %cst_11 {dimension_numbers = #tpu.dot_dimension_numbers<[1], [0], [0], [1], [0, 0, 1, 1], [], []>} : vector<64x8xbf16>, vector<8x16xbf16>, vector<64x16xf32> -> vector<64x16xf32>
    %28 = arith.addf %20, %27 : vector<64x16xf32>
    %cst_12 = arith.constant 0.000000e+00 : f32
    %29 = vector.broadcast %cst_12 : f32 to vector<8x8xf32>
    %30 = vector.extract_strided_slice %2 {offsets = [0, 0], sizes = [56, 8], strides = [1, 1]} : vector<64x8xf32> to vector<56x8xf32>
    %31 = tpu.concatenate %29, %30 in 0 : vector<8x8xf32>, vector<56x8xf32> -> vector<64x8xf32>
    %32 = arith.truncf %31 : vector<64x8xf32> to vector<64x8xbf16>
    %c1 = arith.constant 1 : index
    %c0_13 = arith.constant 0 : index
    %c0_14 = arith.constant 0 : index
    %33 = vector.load %arg2[%c1, %c0_13, %c0_14] : memref<9x8x16xbf16, #tpu.memory_space<vmem>>, vector<1x8x16xbf16>
    %34 = vector.shape_cast %33 : vector<1x8x16xbf16> to vector<8x16xbf16>
    %cst_15 = arith.constant dense<0.000000e+00> : vector<64x16xf32>
    %35 = tpu.matmul %32, %34, %cst_15 {dimension_numbers = #tpu.dot_dimension_numbers<[1], [0], [0], [1], [0, 0, 1, 1], [], []>} : vector<64x8xbf16>, vector<8x16xbf16>, vector<64x16xf32> -> vector<64x16xf32>
    %36 = arith.addf %28, %35 : vector<64x16xf32>
    %cst_16 = arith.constant 0.000000e+00 : f32
    %37 = vector.broadcast %cst_16 : f32 to vector<7x8xf32>
    %38 = vector.extract_strided_slice %19 {offsets = [0, 0], sizes = [57, 8], strides = [1, 1]} : vector<64x8xf32> to vector<57x8xf32>
    %39 = tpu.concatenate %37, %38 in 0 : vector<7x8xf32>, vector<57x8xf32> -> vector<64x8xf32>
    %40 = arith.truncf %39 : vector<64x8xf32> to vector<64x8xbf16>
    %c2 = arith.constant 2 : index
    %c0_17 = arith.constant 0 : index
    %c0_18 = arith.constant 0 : index
    %41 = vector.load %arg2[%c2, %c0_17, %c0_18] : memref<9x8x16xbf16, #tpu.memory_space<vmem>>, vector<1x8x16xbf16>
    %42 = vector.shape_cast %41 : vector<1x8x16xbf16> to vector<8x16xbf16>
    %cst_19 = arith.constant dense<0.000000e+00> : vector<64x16xf32>
    %43 = tpu.matmul %40, %42, %cst_19 {dimension_numbers = #tpu.dot_dimension_numbers<[1], [0], [0], [1], [0, 0, 1, 1], [], []>} : vector<64x8xbf16>, vector<8x16xbf16>, vector<64x16xf32> -> vector<64x16xf32>
    %44 = arith.addf %36, %43 : vector<64x16xf32>
    %cst_20 = arith.constant 0.000000e+00 : f32
    %45 = vector.broadcast %cst_20 : f32 to vector<1x8xf32>
    %46 = vector.extract_strided_slice %13 {offsets = [0, 0], sizes = [63, 8], strides = [1, 1]} : vector<64x8xf32> to vector<63x8xf32>
    %47 = tpu.concatenate %45, %46 in 0 : vector<1x8xf32>, vector<63x8xf32> -> vector<64x8xf32>
    %48 = arith.truncf %47 : vector<64x8xf32> to vector<64x8xbf16>
    %c3 = arith.constant 3 : index
    %c0_21 = arith.constant 0 : index
    %c0_22 = arith.constant 0 : index
    %49 = vector.load %arg2[%c3, %c0_21, %c0_22] : memref<9x8x16xbf16, #tpu.memory_space<vmem>>, vector<1x8x16xbf16>
    %50 = vector.shape_cast %49 : vector<1x8x16xbf16> to vector<8x16xbf16>
    %cst_23 = arith.constant dense<0.000000e+00> : vector<64x16xf32>
    %51 = tpu.matmul %48, %50, %cst_23 {dimension_numbers = #tpu.dot_dimension_numbers<[1], [0], [0], [1], [0, 0, 1, 1], [], []>} : vector<64x8xbf16>, vector<8x16xbf16>, vector<64x16xf32> -> vector<64x16xf32>
    %52 = arith.addf %44, %51 : vector<64x16xf32>
    %53 = arith.truncf %2 : vector<64x8xf32> to vector<64x8xbf16>
    %c4 = arith.constant 4 : index
    %c0_24 = arith.constant 0 : index
    %c0_25 = arith.constant 0 : index
    %54 = vector.load %arg2[%c4, %c0_24, %c0_25] : memref<9x8x16xbf16, #tpu.memory_space<vmem>>, vector<1x8x16xbf16>
    %55 = vector.shape_cast %54 : vector<1x8x16xbf16> to vector<8x16xbf16>
    %cst_26 = arith.constant dense<0.000000e+00> : vector<64x16xf32>
    %56 = tpu.matmul %53, %55, %cst_26 {dimension_numbers = #tpu.dot_dimension_numbers<[1], [0], [0], [1], [0, 0, 1, 1], [], []>} : vector<64x8xbf16>, vector<8x16xbf16>, vector<64x16xf32> -> vector<64x16xf32>
    %57 = arith.addf %52, %56 : vector<64x16xf32>
    %cst_27 = arith.constant 0.000000e+00 : f32
    %58 = vector.broadcast %cst_27 : f32 to vector<1x8xf32>
    %59 = vector.extract_strided_slice %19 {offsets = [1, 0], sizes = [63, 8], strides = [1, 1]} : vector<64x8xf32> to vector<63x8xf32>
    %60 = tpu.concatenate %59, %58 in 0 : vector<63x8xf32>, vector<1x8xf32> -> vector<64x8xf32>
    %61 = arith.truncf %60 : vector<64x8xf32> to vector<64x8xbf16>
    %c5 = arith.constant 5 : index
    %c0_28 = arith.constant 0 : index
    %c0_29 = arith.constant 0 : index
    %62 = vector.load %arg2[%c5, %c0_28, %c0_29] : memref<9x8x16xbf16, #tpu.memory_space<vmem>>, vector<1x8x16xbf16>
    %63 = vector.shape_cast %62 : vector<1x8x16xbf16> to vector<8x16xbf16>
    %cst_30 = arith.constant dense<0.000000e+00> : vector<64x16xf32>
    %64 = tpu.matmul %61, %63, %cst_30 {dimension_numbers = #tpu.dot_dimension_numbers<[1], [0], [0], [1], [0, 0, 1, 1], [], []>} : vector<64x8xbf16>, vector<8x16xbf16>, vector<64x16xf32> -> vector<64x16xf32>
    %65 = arith.addf %57, %64 : vector<64x16xf32>
    %cst_31 = arith.constant 0.000000e+00 : f32
    %66 = vector.broadcast %cst_31 : f32 to vector<7x8xf32>
    %67 = vector.extract_strided_slice %13 {offsets = [7, 0], sizes = [57, 8], strides = [1, 1]} : vector<64x8xf32> to vector<57x8xf32>
    %68 = tpu.concatenate %67, %66 in 0 : vector<57x8xf32>, vector<7x8xf32> -> vector<64x8xf32>
    %69 = arith.truncf %68 : vector<64x8xf32> to vector<64x8xbf16>
    %c6 = arith.constant 6 : index
    %c0_32 = arith.constant 0 : index
    %c0_33 = arith.constant 0 : index
    %70 = vector.load %arg2[%c6, %c0_32, %c0_33] : memref<9x8x16xbf16, #tpu.memory_space<vmem>>, vector<1x8x16xbf16>
    %71 = vector.shape_cast %70 : vector<1x8x16xbf16> to vector<8x16xbf16>
    %cst_34 = arith.constant dense<0.000000e+00> : vector<64x16xf32>
    %72 = tpu.matmul %69, %71, %cst_34 {dimension_numbers = #tpu.dot_dimension_numbers<[1], [0], [0], [1], [0, 0, 1, 1], [], []>} : vector<64x8xbf16>, vector<8x16xbf16>, vector<64x16xf32> -> vector<64x16xf32>
    %73 = arith.addf %65, %72 : vector<64x16xf32>
    %cst_35 = arith.constant 0.000000e+00 : f32
    %74 = vector.broadcast %cst_35 : f32 to vector<8x8xf32>
    %75 = vector.extract_strided_slice %2 {offsets = [8, 0], sizes = [56, 8], strides = [1, 1]} : vector<64x8xf32> to vector<56x8xf32>
    %76 = tpu.concatenate %75, %74 in 0 : vector<56x8xf32>, vector<8x8xf32> -> vector<64x8xf32>
    %77 = arith.truncf %76 : vector<64x8xf32> to vector<64x8xbf16>
    %c7 = arith.constant 7 : index
    %c0_36 = arith.constant 0 : index
    %c0_37 = arith.constant 0 : index
    %78 = vector.load %arg2[%c7, %c0_36, %c0_37] : memref<9x8x16xbf16, #tpu.memory_space<vmem>>, vector<1x8x16xbf16>
    %79 = vector.shape_cast %78 : vector<1x8x16xbf16> to vector<8x16xbf16>
    %cst_38 = arith.constant dense<0.000000e+00> : vector<64x16xf32>
    %80 = tpu.matmul %77, %79, %cst_38 {dimension_numbers = #tpu.dot_dimension_numbers<[1], [0], [0], [1], [0, 0, 1, 1], [], []>} : vector<64x8xbf16>, vector<8x16xbf16>, vector<64x16xf32> -> vector<64x16xf32>
    %81 = arith.addf %73, %80 : vector<64x16xf32>
    %cst_39 = arith.constant 0.000000e+00 : f32
    %82 = vector.broadcast %cst_39 : f32 to vector<9x8xf32>
    %83 = vector.extract_strided_slice %19 {offsets = [9, 0], sizes = [55, 8], strides = [1, 1]} : vector<64x8xf32> to vector<55x8xf32>
    %84 = tpu.concatenate %83, %82 in 0 : vector<55x8xf32>, vector<9x8xf32> -> vector<64x8xf32>
    %85 = arith.truncf %84 : vector<64x8xf32> to vector<64x8xbf16>
    %c8 = arith.constant 8 : index
    %c0_40 = arith.constant 0 : index
    %c0_41 = arith.constant 0 : index
    %86 = vector.load %arg2[%c8, %c0_40, %c0_41] : memref<9x8x16xbf16, #tpu.memory_space<vmem>>, vector<1x8x16xbf16>
    %87 = vector.shape_cast %86 : vector<1x8x16xbf16> to vector<8x16xbf16>
    %cst_42 = arith.constant dense<0.000000e+00> : vector<64x16xf32>
    %88 = tpu.matmul %85, %87, %cst_42 {dimension_numbers = #tpu.dot_dimension_numbers<[1], [0], [0], [1], [0, 0, 1, 1], [], []>} : vector<64x8xbf16>, vector<8x16xbf16>, vector<64x16xf32> -> vector<64x16xf32>
    %89 = arith.addf %81, %88 : vector<64x16xf32>
    %90 = vector.broadcast %4 : vector<1x16xf32> to vector<64x16xf32>
    %91 = arith.addf %89, %90 : vector<64x16xf32>
    %92 = vector.extract_strided_slice %91 {offsets = [0, 0], sizes = [64, 8], strides = [1, 1]} : vector<64x16xf32> to vector<64x8xf32>
    %93 = vector.extract_strided_slice %91 {offsets = [0, 8], sizes = [64, 8], strides = [1, 1]} : vector<64x16xf32> to vector<64x8xf32>
    %94 = arith.subf %3, %92 : vector<64x8xf32>
    %cst_43 = arith.constant -0.918938517 : f32
    %95 = vector.broadcast %cst_43 : f32 to vector<64x8xf32>
    %96 = arith.subf %95, %93 : vector<64x8xf32>
    %cst_44 = arith.constant 5.000000e-01 : f32
    %97 = vector.broadcast %cst_44 : f32 to vector<64x8xf32>
    %98 = arith.mulf %97, %94 : vector<64x8xf32>
    %99 = arith.mulf %98, %94 : vector<64x8xf32>
    %cst_45 = arith.constant -2.000000e+00 : f32
    %100 = vector.broadcast %cst_45 : f32 to vector<64x8xf32>
    %101 = arith.mulf %100, %93 : vector<64x8xf32>
    %102 = math.exp %101 : vector<64x8xf32>
    %103 = arith.mulf %99, %102 : vector<64x8xf32>
    %104 = arith.subf %96, %103 : vector<64x8xf32>
    %c0_46 = arith.constant 0 : index
    %c0_47 = arith.constant 0 : index
    %c0_48 = arith.constant 0 : index
    %105 = vector.load %arg4[%c0_46, %c0_47, %c0_48] : memref<1x64x8xf32, #tpu.memory_space<vmem>>, vector<1x64x8xf32>
    %106 = vector.shape_cast %105 : vector<1x64x8xf32> to vector<64x8xf32>
    %107 = vector.shape_cast %2 : vector<64x8xf32> to vector<1x64x8xf32>
    tpu.vector_store %arg4[%c0_46, %c0_47, %c0_48], %107 {strides = array<i32>} : memref<1x64x8xf32, #tpu.memory_space<vmem>>, vector<1x64x8xf32>,
    %cst_49 = arith.constant dense<0.000000e+00> : vector<8xf32>
    %108 = vector.multi_reduction <add>, %104, %cst_49 [0] : vector<64x8xf32> to vector<8xf32>
    %109 = vector.shape_cast %108 : vector<8xf32> to vector<1x8xf32>
    %c0_50 = arith.constant 0 : index
    %c0_51 = arith.constant 0 : index
    %c0_52 = arith.constant 0 : index
    %110 = vector.load %arg5[%c0_50, %c0_51, %c0_52] : memref<1x1x8xf32, #tpu.memory_space<vmem>>, vector<1x1x8xf32>
    %111 = vector.shape_cast %110 : vector<1x1x8xf32> to vector<1x8xf32>
    %112 = vector.shape_cast %109 : vector<1x8xf32> to vector<1x1x8xf32>
    tpu.vector_store %arg5[%c0_50, %c0_51, %c0_52], %112 {strides = array<i32>} : memref<1x1x8xf32, #tpu.memory_space<vmem>>, vector<1x1x8xf32>,
    return
  }
  func.func @transform_0(%arg0: i32) -> (i32, i32, i32) {
    %c0_i32 = arith.constant 0 : i32
    %c0_i32_0 = arith.constant 0 : i32
    %c0_i32_1 = arith.constant 0 : i32
    return %arg0, %c0_i32, %c0_i32_0 : i32, i32, i32
  }
  func.func @transform_1(%arg0: i32) -> (i32, i32, i32) {
    %c0_i32 = arith.constant 0 : i32
    %c0_i32_0 = arith.constant 0 : i32
    %c0_i32_1 = arith.constant 0 : i32
    %c0_i32_2 = arith.constant 0 : i32
    return %c0_i32, %c0_i32_0, %c0_i32_1 : i32, i32, i32
  }
  func.func @transform_2(%arg0: i32) -> (i32, i32) {
    %c0_i32 = arith.constant 0 : i32
    %c0_i32_0 = arith.constant 0 : i32
    %c0_i32_1 = arith.constant 0 : i32
    return %c0_i32, %c0_i32_0 : i32, i32
  }
  func.func @transform_3(%arg0: i32) -> (i32, i32, i32) {
    %c0_i32 = arith.constant 0 : i32
    %c0_i32_0 = arith.constant 0 : i32
    %c0_i32_1 = arith.constant 0 : i32
    return %arg0, %c0_i32, %c0_i32_0 : i32, i32, i32
  }
  func.func @transform_4(%arg0: i32) -> (i32, i32, i32) {
    %c0_i32 = arith.constant 0 : i32
    %c0_i32_0 = arith.constant 0 : i32
    %c0_i32_1 = arith.constant 0 : i32
    return %arg0, %c0_i32, %c0_i32_0 : i32, i32, i32
  }
}

module attributes {stable_mosaic.version = 11 : i64} {
  func.func @_flow_step_kernel(%arg0: i32, %arg1: memref<1x16x32xf32, #tpu.memory_space<vmem>>, %arg2: memref<1x32xf32, #tpu.memory_space<vmem>>, %arg3: memref<1x32xf32, #tpu.memory_space<vmem>>, %arg4: memref<32x32xbf16, #tpu.memory_space<vmem>>, %arg5: memref<9x16x32xbf16, #tpu.memory_space<vmem>>, %arg6: memref<1x32xf32, #tpu.memory_space<vmem>>, %arg7: memref<32x32xbf16, #tpu.memory_space<vmem>>, %arg8: memref<1x32xf32, #tpu.memory_space<vmem>>, %arg9: memref<9x32x32xbf16, #tpu.memory_space<vmem>>, %arg10: memref<1x32xf32, #tpu.memory_space<vmem>>, %arg11: memref<1x16x32xf32, #tpu.memory_space<vmem>>, %arg12: memref<1x1x16xf32, #tpu.memory_space<vmem>>) attributes {dimension_semantics = [#tpu.dimension_semantics<parallel>], iteration_bounds = array<i64: 2>, scalar_prefetch = 0 : i64, scratch_operands = 0 : i64, tpu.core_type = #tpu.core_type<tc>, window_params = [{transform_indices = @transform_0, window_bounds = array<i64: 1, 16, 32>}, {pipeline_mode = #tpu.pipeline_mode<synchronous>, transform_indices = @transform_1, window_bounds = array<i64: 1, 32>}, {pipeline_mode = #tpu.pipeline_mode<synchronous>, transform_indices = @transform_2, window_bounds = array<i64: 1, 32>}, {pipeline_mode = #tpu.pipeline_mode<synchronous>, transform_indices = @transform_3, window_bounds = array<i64: 32, 32>}, {pipeline_mode = #tpu.pipeline_mode<synchronous>, transform_indices = @transform_4, window_bounds = array<i64: 9, 16, 32>}, {pipeline_mode = #tpu.pipeline_mode<synchronous>, transform_indices = @transform_5, window_bounds = array<i64: 1, 32>}, {pipeline_mode = #tpu.pipeline_mode<synchronous>, transform_indices = @transform_6, window_bounds = array<i64: 32, 32>}, {pipeline_mode = #tpu.pipeline_mode<synchronous>, transform_indices = @transform_7, window_bounds = array<i64: 1, 32>}, {pipeline_mode = #tpu.pipeline_mode<synchronous>, transform_indices = @transform_8, window_bounds = array<i64: 9, 32, 32>}, {pipeline_mode = #tpu.pipeline_mode<synchronous>, transform_indices = @transform_9, window_bounds = array<i64: 1, 32>}, {transform_indices = @transform_10, window_bounds = array<i64: 1, 16, 32>}, {transform_indices = @transform_11, window_bounds = array<i64: 1, 1, 16>}]} {
    %c0 = arith.constant 0 : index
    %c0_0 = arith.constant 0 : index
    %c0_1 = arith.constant 0 : index
    %0 = vector.load %arg1[%c0, %c0_0, %c0_1] : memref<1x16x32xf32, #tpu.memory_space<vmem>>, vector<1x16x32xf32>
    %1 = vector.shape_cast %0 : vector<1x16x32xf32> to vector<16x32xf32>
    %c0_2 = arith.constant 0 : index
    %c0_3 = arith.constant 0 : index
    %2 = vector.load %arg2[%c0_2, %c0_3] : memref<1x32xf32, #tpu.memory_space<vmem>>, vector<1x32xf32>
    %3 = vector.broadcast %2 : vector<1x32xf32> to vector<16x32xf32>
    %4 = arith.addf %1, %3 : vector<16x32xf32>
    %c0_4 = arith.constant 0 : index
    %c0_5 = arith.constant 0 : index
    %5 = vector.load %arg3[%c0_4, %c0_5] : memref<1x32xf32, #tpu.memory_space<vmem>>, vector<1x32xf32>
    %6 = math.exp %5 : vector<1x32xf32>
    %7 = vector.broadcast %6 : vector<1x32xf32> to vector<16x32xf32>
    %8 = arith.mulf %4, %7 : vector<16x32xf32>
    %9 = arith.truncf %8 : vector<16x32xf32> to vector<16x32xbf16>
    %c0_6 = arith.constant 0 : index
    %c0_7 = arith.constant 0 : index
    %10 = vector.load %arg4[%c0_6, %c0_7] : memref<32x32xbf16, #tpu.memory_space<vmem>>, vector<32x32xbf16>
    %cst = arith.constant dense<0.000000e+00> : vector<16x32xf32>
    %11 = tpu.matmul %9, %10, %cst {dimension_numbers = #tpu.dot_dimension_numbers<[1], [0], [0], [1], [0, 0, 1, 1], [], []>} : vector<16x32xbf16>, vector<32x32xbf16>, vector<16x32xf32> -> vector<16x32xf32>
    %12 = vector.extract_strided_slice %11 {offsets = [0, 0], sizes = [16, 16], strides = [1, 1]} : vector<16x32xf32> to vector<16x16xf32>
    %13 = vector.extract_strided_slice %11 {offsets = [0, 16], sizes = [16, 16], strides = [1, 1]} : vector<16x32xf32> to vector<16x16xf32>
    %c0_8 = arith.constant 0 : index
    %c0_9 = arith.constant 0 : index
    %14 = vector.load %arg6[%c0_8, %c0_9] : memref<1x32xf32, #tpu.memory_space<vmem>>, vector<1x32xf32>
    %15 = tpu.iota {dimensions = array<i32: 0>} : vector<16x1xi32>
    %c3_i32 = arith.constant 3 : i32
    %16 = vector.broadcast %c3_i32 : i32 to vector<16x1xi32>
    %17 = arith.andi %15, %16 : vector<16x1xi32>
    %c3_i32_10 = arith.constant 3 : i32
    %18 = vector.broadcast %c3_i32_10 : i32 to vector<16x1xi32>
    %19 = arith.cmpi eq, %17, %18 : vector<16x1xi32>
    %cst_11 = arith.constant 0.000000e+00 : f32
    %20 = vector.shape_cast %19 : vector<16x1xi1> to vector<16x1xi1>
    %21 = vector.broadcast %20 : vector<16x1xi1> to vector<16x16xi1>
    %22 = vector.broadcast %cst_11 : f32 to vector<16x16xf32>
    %23 = arith.select %21, %22, %12 : vector<16x16xi1>, vector<16x16xf32>
    %c0_i32 = arith.constant 0 : i32
    %24 = vector.broadcast %c0_i32 : i32 to vector<16x1xi32>
    %25 = arith.cmpi eq, %17, %24 : vector<16x1xi32>
    %cst_12 = arith.constant 0.000000e+00 : f32
    %26 = vector.shape_cast %25 : vector<16x1xi1> to vector<16x1xi1>
    %27 = vector.broadcast %26 : vector<16x1xi1> to vector<16x16xi1>
    %28 = vector.broadcast %cst_12 : f32 to vector<16x16xf32>
    %29 = arith.select %27, %28, %12 : vector<16x16xi1>, vector<16x16xf32>
    %cst_13 = arith.constant 0.000000e+00 : f32
    %30 = vector.broadcast %cst_13 : f32 to vector<16x32xf32>
    %cst_14 = arith.constant 0.000000e+00 : f32
    %31 = vector.broadcast %cst_14 : f32 to vector<5x16xf32>
    %32 = vector.extract_strided_slice %23 {offsets = [0, 0], sizes = [11, 16], strides = [1, 1]} : vector<16x16xf32> to vector<11x16xf32>
    %33 = tpu.concatenate %31, %32 in 0 : vector<5x16xf32>, vector<11x16xf32> -> vector<16x16xf32>
    %34 = arith.truncf %33 : vector<16x16xf32> to vector<16x16xbf16>
    %c0_15 = arith.constant 0 : index
    %c0_16 = arith.constant 0 : index
    %c0_17 = arith.constant 0 : index
    %35 = vector.load %arg5[%c0_15, %c0_16, %c0_17] : memref<9x16x32xbf16, #tpu.memory_space<vmem>>, vector<1x16x32xbf16>
    %36 = vector.shape_cast %35 : vector<1x16x32xbf16> to vector<16x32xbf16>
    %cst_18 = arith.constant dense<0.000000e+00> : vector<16x32xf32>
    %37 = tpu.matmul %34, %36, %cst_18 {dimension_numbers = #tpu.dot_dimension_numbers<[1], [0], [0], [1], [0, 0, 1, 1], [], []>} : vector<16x16xbf16>, vector<16x32xbf16>, vector<16x32xf32> -> vector<16x32xf32>
    %38 = arith.addf %30, %37 : vector<16x32xf32>
    %cst_19 = arith.constant 0.000000e+00 : f32
    %39 = vector.broadcast %cst_19 : f32 to vector<4x16xf32>
    %40 = vector.extract_strided_slice %12 {offsets = [0, 0], sizes = [12, 16], strides = [1, 1]} : vector<16x16xf32> to vector<12x16xf32>
    %41 = tpu.concatenate %39, %40 in 0 : vector<4x16xf32>, vector<12x16xf32> -> vector<16x16xf32>
    %42 = arith.truncf %41 : vector<16x16xf32> to vector<16x16xbf16>
    %c1 = arith.constant 1 : index
    %c0_20 = arith.constant 0 : index
    %c0_21 = arith.constant 0 : index
    %43 = vector.load %arg5[%c1, %c0_20, %c0_21] : memref<9x16x32xbf16, #tpu.memory_space<vmem>>, vector<1x16x32xbf16>
    %44 = vector.shape_cast %43 : vector<1x16x32xbf16> to vector<16x32xbf16>
    %cst_22 = arith.constant dense<0.000000e+00> : vector<16x32xf32>
    %45 = tpu.matmul %42, %44, %cst_22 {dimension_numbers = #tpu.dot_dimension_numbers<[1], [0], [0], [1], [0, 0, 1, 1], [], []>} : vector<16x16xbf16>, vector<16x32xbf16>, vector<16x32xf32> -> vector<16x32xf32>
    %46 = arith.addf %38, %45 : vector<16x32xf32>
    %cst_23 = arith.constant 0.000000e+00 : f32
    %47 = vector.broadcast %cst_23 : f32 to vector<3x16xf32>
    %48 = vector.extract_strided_slice %29 {offsets = [0, 0], sizes = [13, 16], strides = [1, 1]} : vector<16x16xf32> to vector<13x16xf32>
    %49 = tpu.concatenate %47, %48 in 0 : vector<3x16xf32>, vector<13x16xf32> -> vector<16x16xf32>
    %50 = arith.truncf %49 : vector<16x16xf32> to vector<16x16xbf16>
    %c2 = arith.constant 2 : index
    %c0_24 = arith.constant 0 : index
    %c0_25 = arith.constant 0 : index
    %51 = vector.load %arg5[%c2, %c0_24, %c0_25] : memref<9x16x32xbf16, #tpu.memory_space<vmem>>, vector<1x16x32xbf16>
    %52 = vector.shape_cast %51 : vector<1x16x32xbf16> to vector<16x32xbf16>
    %cst_26 = arith.constant dense<0.000000e+00> : vector<16x32xf32>
    %53 = tpu.matmul %50, %52, %cst_26 {dimension_numbers = #tpu.dot_dimension_numbers<[1], [0], [0], [1], [0, 0, 1, 1], [], []>} : vector<16x16xbf16>, vector<16x32xbf16>, vector<16x32xf32> -> vector<16x32xf32>
    %54 = arith.addf %46, %53 : vector<16x32xf32>
    %cst_27 = arith.constant 0.000000e+00 : f32
    %55 = vector.broadcast %cst_27 : f32 to vector<1x16xf32>
    %56 = vector.extract_strided_slice %23 {offsets = [0, 0], sizes = [15, 16], strides = [1, 1]} : vector<16x16xf32> to vector<15x16xf32>
    %57 = tpu.concatenate %55, %56 in 0 : vector<1x16xf32>, vector<15x16xf32> -> vector<16x16xf32>
    %58 = arith.truncf %57 : vector<16x16xf32> to vector<16x16xbf16>
    %c3 = arith.constant 3 : index
    %c0_28 = arith.constant 0 : index
    %c0_29 = arith.constant 0 : index
    %59 = vector.load %arg5[%c3, %c0_28, %c0_29] : memref<9x16x32xbf16, #tpu.memory_space<vmem>>, vector<1x16x32xbf16>
    %60 = vector.shape_cast %59 : vector<1x16x32xbf16> to vector<16x32xbf16>
    %cst_30 = arith.constant dense<0.000000e+00> : vector<16x32xf32>
    %61 = tpu.matmul %58, %60, %cst_30 {dimension_numbers = #tpu.dot_dimension_numbers<[1], [0], [0], [1], [0, 0, 1, 1], [], []>} : vector<16x16xbf16>, vector<16x32xbf16>, vector<16x32xf32> -> vector<16x32xf32>
    %62 = arith.addf %54, %61 : vector<16x32xf32>
    %63 = arith.truncf %12 : vector<16x16xf32> to vector<16x16xbf16>
    %c4 = arith.constant 4 : index
    %c0_31 = arith.constant 0 : index
    %c0_32 = arith.constant 0 : index
    %64 = vector.load %arg5[%c4, %c0_31, %c0_32] : memref<9x16x32xbf16, #tpu.memory_space<vmem>>, vector<1x16x32xbf16>
    %65 = vector.shape_cast %64 : vector<1x16x32xbf16> to vector<16x32xbf16>
    %cst_33 = arith.constant dense<0.000000e+00> : vector<16x32xf32>
    %66 = tpu.matmul %63, %65, %cst_33 {dimension_numbers = #tpu.dot_dimension_numbers<[1], [0], [0], [1], [0, 0, 1, 1], [], []>} : vector<16x16xbf16>, vector<16x32xbf16>, vector<16x32xf32> -> vector<16x32xf32>
    %67 = arith.addf %62, %66 : vector<16x32xf32>
    %cst_34 = arith.constant 0.000000e+00 : f32
    %68 = vector.broadcast %cst_34 : f32 to vector<1x16xf32>
    %69 = vector.extract_strided_slice %29 {offsets = [1, 0], sizes = [15, 16], strides = [1, 1]} : vector<16x16xf32> to vector<15x16xf32>
    %70 = tpu.concatenate %69, %68 in 0 : vector<15x16xf32>, vector<1x16xf32> -> vector<16x16xf32>
    %71 = arith.truncf %70 : vector<16x16xf32> to vector<16x16xbf16>
    %c5 = arith.constant 5 : index
    %c0_35 = arith.constant 0 : index
    %c0_36 = arith.constant 0 : index
    %72 = vector.load %arg5[%c5, %c0_35, %c0_36] : memref<9x16x32xbf16, #tpu.memory_space<vmem>>, vector<1x16x32xbf16>
    %73 = vector.shape_cast %72 : vector<1x16x32xbf16> to vector<16x32xbf16>
    %cst_37 = arith.constant dense<0.000000e+00> : vector<16x32xf32>
    %74 = tpu.matmul %71, %73, %cst_37 {dimension_numbers = #tpu.dot_dimension_numbers<[1], [0], [0], [1], [0, 0, 1, 1], [], []>} : vector<16x16xbf16>, vector<16x32xbf16>, vector<16x32xf32> -> vector<16x32xf32>
    %75 = arith.addf %67, %74 : vector<16x32xf32>
    %cst_38 = arith.constant 0.000000e+00 : f32
    %76 = vector.broadcast %cst_38 : f32 to vector<3x16xf32>
    %77 = vector.extract_strided_slice %23 {offsets = [3, 0], sizes = [13, 16], strides = [1, 1]} : vector<16x16xf32> to vector<13x16xf32>
    %78 = tpu.concatenate %77, %76 in 0 : vector<13x16xf32>, vector<3x16xf32> -> vector<16x16xf32>
    %79 = arith.truncf %78 : vector<16x16xf32> to vector<16x16xbf16>
    %c6 = arith.constant 6 : index
    %c0_39 = arith.constant 0 : index
    %c0_40 = arith.constant 0 : index
    %80 = vector.load %arg5[%c6, %c0_39, %c0_40] : memref<9x16x32xbf16, #tpu.memory_space<vmem>>, vector<1x16x32xbf16>
    %81 = vector.shape_cast %80 : vector<1x16x32xbf16> to vector<16x32xbf16>
    %cst_41 = arith.constant dense<0.000000e+00> : vector<16x32xf32>
    %82 = tpu.matmul %79, %81, %cst_41 {dimension_numbers = #tpu.dot_dimension_numbers<[1], [0], [0], [1], [0, 0, 1, 1], [], []>} : vector<16x16xbf16>, vector<16x32xbf16>, vector<16x32xf32> -> vector<16x32xf32>
    %83 = arith.addf %75, %82 : vector<16x32xf32>
    %cst_42 = arith.constant 0.000000e+00 : f32
    %84 = vector.broadcast %cst_42 : f32 to vector<4x16xf32>
    %85 = vector.extract_strided_slice %12 {offsets = [4, 0], sizes = [12, 16], strides = [1, 1]} : vector<16x16xf32> to vector<12x16xf32>
    %86 = tpu.concatenate %85, %84 in 0 : vector<12x16xf32>, vector<4x16xf32> -> vector<16x16xf32>
    %87 = arith.truncf %86 : vector<16x16xf32> to vector<16x16xbf16>
    %c7 = arith.constant 7 : index
    %c0_43 = arith.constant 0 : index
    %c0_44 = arith.constant 0 : index
    %88 = vector.load %arg5[%c7, %c0_43, %c0_44] : memref<9x16x32xbf16, #tpu.memory_space<vmem>>, vector<1x16x32xbf16>
    %89 = vector.shape_cast %88 : vector<1x16x32xbf16> to vector<16x32xbf16>
    %cst_45 = arith.constant dense<0.000000e+00> : vector<16x32xf32>
    %90 = tpu.matmul %87, %89, %cst_45 {dimension_numbers = #tpu.dot_dimension_numbers<[1], [0], [0], [1], [0, 0, 1, 1], [], []>} : vector<16x16xbf16>, vector<16x32xbf16>, vector<16x32xf32> -> vector<16x32xf32>
    %91 = arith.addf %83, %90 : vector<16x32xf32>
    %cst_46 = arith.constant 0.000000e+00 : f32
    %92 = vector.broadcast %cst_46 : f32 to vector<5x16xf32>
    %93 = vector.extract_strided_slice %29 {offsets = [5, 0], sizes = [11, 16], strides = [1, 1]} : vector<16x16xf32> to vector<11x16xf32>
    %94 = tpu.concatenate %93, %92 in 0 : vector<11x16xf32>, vector<5x16xf32> -> vector<16x16xf32>
    %95 = arith.truncf %94 : vector<16x16xf32> to vector<16x16xbf16>
    %c8 = arith.constant 8 : index
    %c0_47 = arith.constant 0 : index
    %c0_48 = arith.constant 0 : index
    %96 = vector.load %arg5[%c8, %c0_47, %c0_48] : memref<9x16x32xbf16, #tpu.memory_space<vmem>>, vector<1x16x32xbf16>
    %97 = vector.shape_cast %96 : vector<1x16x32xbf16> to vector<16x32xbf16>
    %cst_49 = arith.constant dense<0.000000e+00> : vector<16x32xf32>
    %98 = tpu.matmul %95, %97, %cst_49 {dimension_numbers = #tpu.dot_dimension_numbers<[1], [0], [0], [1], [0, 0, 1, 1], [], []>} : vector<16x16xbf16>, vector<16x32xbf16>, vector<16x32xf32> -> vector<16x32xf32>
    %99 = arith.addf %91, %98 : vector<16x32xf32>
    %100 = vector.broadcast %14 : vector<1x32xf32> to vector<16x32xf32>
    %101 = arith.addf %99, %100 : vector<16x32xf32>
    %cst_50 = arith.constant 0.000000e+00 : f32
    %102 = vector.broadcast %cst_50 : f32 to vector<16x32xf32>
    %103 = arith.maximumf %101, %102 : vector<16x32xf32>
    %104 = arith.truncf %103 : vector<16x32xf32> to vector<16x32xbf16>
    %c0_51 = arith.constant 0 : index
    %c0_52 = arith.constant 0 : index
    %105 = vector.load %arg7[%c0_51, %c0_52] : memref<32x32xbf16, #tpu.memory_space<vmem>>, vector<32x32xbf16>
    %cst_53 = arith.constant dense<0.000000e+00> : vector<16x32xf32>
    %106 = tpu.matmul %104, %105, %cst_53 {dimension_numbers = #tpu.dot_dimension_numbers<[1], [0], [0], [1], [0, 0, 1, 1], [], []>} : vector<16x32xbf16>, vector<32x32xbf16>, vector<16x32xf32> -> vector<16x32xf32>
    %c0_54 = arith.constant 0 : index
    %c0_55 = arith.constant 0 : index
    %107 = vector.load %arg8[%c0_54, %c0_55] : memref<1x32xf32, #tpu.memory_space<vmem>>, vector<1x32xf32>
    %108 = vector.broadcast %107 : vector<1x32xf32> to vector<16x32xf32>
    %109 = arith.addf %106, %108 : vector<16x32xf32>
    %cst_56 = arith.constant 0.000000e+00 : f32
    %110 = vector.broadcast %cst_56 : f32 to vector<16x32xf32>
    %111 = arith.maximumf %109, %110 : vector<16x32xf32>
    %c0_57 = arith.constant 0 : index
    %c0_58 = arith.constant 0 : index
    %112 = vector.load %arg10[%c0_57, %c0_58] : memref<1x32xf32, #tpu.memory_space<vmem>>, vector<1x32xf32>
    %113 = tpu.iota {dimensions = array<i32: 0>} : vector<16x1xi32>
    %c3_i32_59 = arith.constant 3 : i32
    %114 = vector.broadcast %c3_i32_59 : i32 to vector<16x1xi32>
    %115 = arith.andi %113, %114 : vector<16x1xi32>
    %c3_i32_60 = arith.constant 3 : i32
    %116 = vector.broadcast %c3_i32_60 : i32 to vector<16x1xi32>
    %117 = arith.cmpi eq, %115, %116 : vector<16x1xi32>
    %cst_61 = arith.constant 0.000000e+00 : f32
    %118 = vector.shape_cast %117 : vector<16x1xi1> to vector<16x1xi1>
    %119 = vector.broadcast %118 : vector<16x1xi1> to vector<16x32xi1>
    %120 = vector.broadcast %cst_61 : f32 to vector<16x32xf32>
    %121 = arith.select %119, %120, %111 : vector<16x32xi1>, vector<16x32xf32>
    %c0_i32_62 = arith.constant 0 : i32
    %122 = vector.broadcast %c0_i32_62 : i32 to vector<16x1xi32>
    %123 = arith.cmpi eq, %115, %122 : vector<16x1xi32>
    %cst_63 = arith.constant 0.000000e+00 : f32
    %124 = vector.shape_cast %123 : vector<16x1xi1> to vector<16x1xi1>
    %125 = vector.broadcast %124 : vector<16x1xi1> to vector<16x32xi1>
    %126 = vector.broadcast %cst_63 : f32 to vector<16x32xf32>
    %127 = arith.select %125, %126, %111 : vector<16x32xi1>, vector<16x32xf32>
    %cst_64 = arith.constant 0.000000e+00 : f32
    %128 = vector.broadcast %cst_64 : f32 to vector<16x32xf32>
    %cst_65 = arith.constant 0.000000e+00 : f32
    %129 = vector.broadcast %cst_65 : f32 to vector<5x32xf32>
    %130 = vector.extract_strided_slice %121 {offsets = [0, 0], sizes = [11, 32], strides = [1, 1]} : vector<16x32xf32> to vector<11x32xf32>
    %131 = tpu.concatenate %129, %130 in 0 : vector<5x32xf32>, vector<11x32xf32> -> vector<16x32xf32>
    %132 = arith.truncf %131 : vector<16x32xf32> to vector<16x32xbf16>
    %c0_66 = arith.constant 0 : index
    %c0_67 = arith.constant 0 : index
    %c0_68 = arith.constant 0 : index
    %133 = vector.load %arg9[%c0_66, %c0_67, %c0_68] : memref<9x32x32xbf16, #tpu.memory_space<vmem>>, vector<1x32x32xbf16>
    %134 = vector.shape_cast %133 : vector<1x32x32xbf16> to vector<32x32xbf16>
    %cst_69 = arith.constant dense<0.000000e+00> : vector<16x32xf32>
    %135 = tpu.matmul %132, %134, %cst_69 {dimension_numbers = #tpu.dot_dimension_numbers<[1], [0], [0], [1], [0, 0, 1, 1], [], []>} : vector<16x32xbf16>, vector<32x32xbf16>, vector<16x32xf32> -> vector<16x32xf32>
    %136 = arith.addf %128, %135 : vector<16x32xf32>
    %cst_70 = arith.constant 0.000000e+00 : f32
    %137 = vector.broadcast %cst_70 : f32 to vector<4x32xf32>
    %138 = vector.extract_strided_slice %111 {offsets = [0, 0], sizes = [12, 32], strides = [1, 1]} : vector<16x32xf32> to vector<12x32xf32>
    %139 = tpu.concatenate %137, %138 in 0 : vector<4x32xf32>, vector<12x32xf32> -> vector<16x32xf32>
    %140 = arith.truncf %139 : vector<16x32xf32> to vector<16x32xbf16>
    %c1_71 = arith.constant 1 : index
    %c0_72 = arith.constant 0 : index
    %c0_73 = arith.constant 0 : index
    %141 = vector.load %arg9[%c1_71, %c0_72, %c0_73] : memref<9x32x32xbf16, #tpu.memory_space<vmem>>, vector<1x32x32xbf16>
    %142 = vector.shape_cast %141 : vector<1x32x32xbf16> to vector<32x32xbf16>
    %cst_74 = arith.constant dense<0.000000e+00> : vector<16x32xf32>
    %143 = tpu.matmul %140, %142, %cst_74 {dimension_numbers = #tpu.dot_dimension_numbers<[1], [0], [0], [1], [0, 0, 1, 1], [], []>} : vector<16x32xbf16>, vector<32x32xbf16>, vector<16x32xf32> -> vector<16x32xf32>
    %144 = arith.addf %136, %143 : vector<16x32xf32>
    %cst_75 = arith.constant 0.000000e+00 : f32
    %145 = vector.broadcast %cst_75 : f32 to vector<3x32xf32>
    %146 = vector.extract_strided_slice %127 {offsets = [0, 0], sizes = [13, 32], strides = [1, 1]} : vector<16x32xf32> to vector<13x32xf32>
    %147 = tpu.concatenate %145, %146 in 0 : vector<3x32xf32>, vector<13x32xf32> -> vector<16x32xf32>
    %148 = arith.truncf %147 : vector<16x32xf32> to vector<16x32xbf16>
    %c2_76 = arith.constant 2 : index
    %c0_77 = arith.constant 0 : index
    %c0_78 = arith.constant 0 : index
    %149 = vector.load %arg9[%c2_76, %c0_77, %c0_78] : memref<9x32x32xbf16, #tpu.memory_space<vmem>>, vector<1x32x32xbf16>
    %150 = vector.shape_cast %149 : vector<1x32x32xbf16> to vector<32x32xbf16>
    %cst_79 = arith.constant dense<0.000000e+00> : vector<16x32xf32>
    %151 = tpu.matmul %148, %150, %cst_79 {dimension_numbers = #tpu.dot_dimension_numbers<[1], [0], [0], [1], [0, 0, 1, 1], [], []>} : vector<16x32xbf16>, vector<32x32xbf16>, vector<16x32xf32> -> vector<16x32xf32>
    %152 = arith.addf %144, %151 : vector<16x32xf32>
    %cst_80 = arith.constant 0.000000e+00 : f32
    %153 = vector.broadcast %cst_80 : f32 to vector<1x32xf32>
    %154 = vector.extract_strided_slice %121 {offsets = [0, 0], sizes = [15, 32], strides = [1, 1]} : vector<16x32xf32> to vector<15x32xf32>
    %155 = tpu.concatenate %153, %154 in 0 : vector<1x32xf32>, vector<15x32xf32> -> vector<16x32xf32>
    %156 = arith.truncf %155 : vector<16x32xf32> to vector<16x32xbf16>
    %c3_81 = arith.constant 3 : index
    %c0_82 = arith.constant 0 : index
    %c0_83 = arith.constant 0 : index
    %157 = vector.load %arg9[%c3_81, %c0_82, %c0_83] : memref<9x32x32xbf16, #tpu.memory_space<vmem>>, vector<1x32x32xbf16>
    %158 = vector.shape_cast %157 : vector<1x32x32xbf16> to vector<32x32xbf16>
    %cst_84 = arith.constant dense<0.000000e+00> : vector<16x32xf32>
    %159 = tpu.matmul %156, %158, %cst_84 {dimension_numbers = #tpu.dot_dimension_numbers<[1], [0], [0], [1], [0, 0, 1, 1], [], []>} : vector<16x32xbf16>, vector<32x32xbf16>, vector<16x32xf32> -> vector<16x32xf32>
    %160 = arith.addf %152, %159 : vector<16x32xf32>
    %161 = arith.truncf %111 : vector<16x32xf32> to vector<16x32xbf16>
    %c4_85 = arith.constant 4 : index
    %c0_86 = arith.constant 0 : index
    %c0_87 = arith.constant 0 : index
    %162 = vector.load %arg9[%c4_85, %c0_86, %c0_87] : memref<9x32x32xbf16, #tpu.memory_space<vmem>>, vector<1x32x32xbf16>
    %163 = vector.shape_cast %162 : vector<1x32x32xbf16> to vector<32x32xbf16>
    %cst_88 = arith.constant dense<0.000000e+00> : vector<16x32xf32>
    %164 = tpu.matmul %161, %163, %cst_88 {dimension_numbers = #tpu.dot_dimension_numbers<[1], [0], [0], [1], [0, 0, 1, 1], [], []>} : vector<16x32xbf16>, vector<32x32xbf16>, vector<16x32xf32> -> vector<16x32xf32>
    %165 = arith.addf %160, %164 : vector<16x32xf32>
    %cst_89 = arith.constant 0.000000e+00 : f32
    %166 = vector.broadcast %cst_89 : f32 to vector<1x32xf32>
    %167 = vector.extract_strided_slice %127 {offsets = [1, 0], sizes = [15, 32], strides = [1, 1]} : vector<16x32xf32> to vector<15x32xf32>
    %168 = tpu.concatenate %167, %166 in 0 : vector<15x32xf32>, vector<1x32xf32> -> vector<16x32xf32>
    %169 = arith.truncf %168 : vector<16x32xf32> to vector<16x32xbf16>
    %c5_90 = arith.constant 5 : index
    %c0_91 = arith.constant 0 : index
    %c0_92 = arith.constant 0 : index
    %170 = vector.load %arg9[%c5_90, %c0_91, %c0_92] : memref<9x32x32xbf16, #tpu.memory_space<vmem>>, vector<1x32x32xbf16>
    %171 = vector.shape_cast %170 : vector<1x32x32xbf16> to vector<32x32xbf16>
    %cst_93 = arith.constant dense<0.000000e+00> : vector<16x32xf32>
    %172 = tpu.matmul %169, %171, %cst_93 {dimension_numbers = #tpu.dot_dimension_numbers<[1], [0], [0], [1], [0, 0, 1, 1], [], []>} : vector<16x32xbf16>, vector<32x32xbf16>, vector<16x32xf32> -> vector<16x32xf32>
    %173 = arith.addf %165, %172 : vector<16x32xf32>
    %cst_94 = arith.constant 0.000000e+00 : f32
    %174 = vector.broadcast %cst_94 : f32 to vector<3x32xf32>
    %175 = vector.extract_strided_slice %121 {offsets = [3, 0], sizes = [13, 32], strides = [1, 1]} : vector<16x32xf32> to vector<13x32xf32>
    %176 = tpu.concatenate %175, %174 in 0 : vector<13x32xf32>, vector<3x32xf32> -> vector<16x32xf32>
    %177 = arith.truncf %176 : vector<16x32xf32> to vector<16x32xbf16>
    %c6_95 = arith.constant 6 : index
    %c0_96 = arith.constant 0 : index
    %c0_97 = arith.constant 0 : index
    %178 = vector.load %arg9[%c6_95, %c0_96, %c0_97] : memref<9x32x32xbf16, #tpu.memory_space<vmem>>, vector<1x32x32xbf16>
    %179 = vector.shape_cast %178 : vector<1x32x32xbf16> to vector<32x32xbf16>
    %cst_98 = arith.constant dense<0.000000e+00> : vector<16x32xf32>
    %180 = tpu.matmul %177, %179, %cst_98 {dimension_numbers = #tpu.dot_dimension_numbers<[1], [0], [0], [1], [0, 0, 1, 1], [], []>} : vector<16x32xbf16>, vector<32x32xbf16>, vector<16x32xf32> -> vector<16x32xf32>
    %181 = arith.addf %173, %180 : vector<16x32xf32>
    %cst_99 = arith.constant 0.000000e+00 : f32
    %182 = vector.broadcast %cst_99 : f32 to vector<4x32xf32>
    %183 = vector.extract_strided_slice %111 {offsets = [4, 0], sizes = [12, 32], strides = [1, 1]} : vector<16x32xf32> to vector<12x32xf32>
    %184 = tpu.concatenate %183, %182 in 0 : vector<12x32xf32>, vector<4x32xf32> -> vector<16x32xf32>
    %185 = arith.truncf %184 : vector<16x32xf32> to vector<16x32xbf16>
    %c7_100 = arith.constant 7 : index
    %c0_101 = arith.constant 0 : index
    %c0_102 = arith.constant 0 : index
    %186 = vector.load %arg9[%c7_100, %c0_101, %c0_102] : memref<9x32x32xbf16, #tpu.memory_space<vmem>>, vector<1x32x32xbf16>
    %187 = vector.shape_cast %186 : vector<1x32x32xbf16> to vector<32x32xbf16>
    %cst_103 = arith.constant dense<0.000000e+00> : vector<16x32xf32>
    %188 = tpu.matmul %185, %187, %cst_103 {dimension_numbers = #tpu.dot_dimension_numbers<[1], [0], [0], [1], [0, 0, 1, 1], [], []>} : vector<16x32xbf16>, vector<32x32xbf16>, vector<16x32xf32> -> vector<16x32xf32>
    %189 = arith.addf %181, %188 : vector<16x32xf32>
    %cst_104 = arith.constant 0.000000e+00 : f32
    %190 = vector.broadcast %cst_104 : f32 to vector<5x32xf32>
    %191 = vector.extract_strided_slice %127 {offsets = [5, 0], sizes = [11, 32], strides = [1, 1]} : vector<16x32xf32> to vector<11x32xf32>
    %192 = tpu.concatenate %191, %190 in 0 : vector<11x32xf32>, vector<5x32xf32> -> vector<16x32xf32>
    %193 = arith.truncf %192 : vector<16x32xf32> to vector<16x32xbf16>
    %c8_105 = arith.constant 8 : index
    %c0_106 = arith.constant 0 : index
    %c0_107 = arith.constant 0 : index
    %194 = vector.load %arg9[%c8_105, %c0_106, %c0_107] : memref<9x32x32xbf16, #tpu.memory_space<vmem>>, vector<1x32x32xbf16>
    %195 = vector.shape_cast %194 : vector<1x32x32xbf16> to vector<32x32xbf16>
    %cst_108 = arith.constant dense<0.000000e+00> : vector<16x32xf32>
    %196 = tpu.matmul %193, %195, %cst_108 {dimension_numbers = #tpu.dot_dimension_numbers<[1], [0], [0], [1], [0, 0, 1, 1], [], []>} : vector<16x32xbf16>, vector<32x32xbf16>, vector<16x32xf32> -> vector<16x32xf32>
    %197 = arith.addf %189, %196 : vector<16x32xf32>
    %198 = vector.broadcast %112 : vector<1x32xf32> to vector<16x32xf32>
    %199 = arith.addf %197, %198 : vector<16x32xf32>
    %200 = vector.extract_strided_slice %199 {offsets = [0, 0], sizes = [16, 16], strides = [1, 1]} : vector<16x32xf32> to vector<16x16xf32>
    %201 = vector.extract_strided_slice %199 {offsets = [0, 16], sizes = [16, 16], strides = [1, 1]} : vector<16x32xf32> to vector<16x16xf32>
    %cst_109 = arith.constant 2.000000e+00 : f32
    %202 = vector.broadcast %cst_109 : f32 to vector<16x16xf32>
    %203 = arith.addf %201, %202 : vector<16x16xf32>
    %cst_110 = arith.constant 0.000000e+00 : f32
    %204 = vector.broadcast %cst_110 : f32 to vector<16x16xf32>
    %205 = arith.minimumf %203, %204 : vector<16x16xf32>
    %206 = math.absf %203 : vector<16x16xf32>
    %cst_111 = arith.constant 0.000000e+00 : f32
    %207 = vector.broadcast %cst_111 : f32 to vector<16x16xf32>
    %208 = arith.subf %207, %206 : vector<16x16xf32>
    %209 = math.exp %208 : vector<16x16xf32>
    %cst_112 = arith.constant 1.000000e+00 : f32
    %210 = vector.broadcast %cst_112 : f32 to vector<16x16xf32>
    %211 = arith.addf %210, %209 : vector<16x16xf32>
    %212 = math.log %211 : vector<16x16xf32>
    %213 = arith.subf %205, %212 : vector<16x16xf32>
    %214 = arith.addf %13, %200 : vector<16x16xf32>
    %215 = math.exp %213 : vector<16x16xf32>
    %216 = arith.mulf %214, %215 : vector<16x16xf32>
    %217 = tpu.concatenate %12, %216 in 1 : vector<16x16xf32>, vector<16x16xf32> -> vector<16x32xf32>
    %c0_113 = arith.constant 0 : index
    %c0_114 = arith.constant 0 : index
    %c0_115 = arith.constant 0 : index
    %218 = vector.load %arg11[%c0_113, %c0_114, %c0_115] : memref<1x16x32xf32, #tpu.memory_space<vmem>>, vector<1x16x32xf32>
    %219 = vector.shape_cast %218 : vector<1x16x32xf32> to vector<16x32xf32>
    %220 = vector.shape_cast %217 : vector<16x32xf32> to vector<1x16x32xf32>
    tpu.vector_store %arg11[%c0_113, %c0_114, %c0_115], %220 {strides = array<i32>} : memref<1x16x32xf32, #tpu.memory_space<vmem>>, vector<1x16x32xf32>,
    %cst_116 = arith.constant dense<0.000000e+00> : vector<16xf32>
    %221 = vector.multi_reduction <add>, %213, %cst_116 [0] : vector<16x16xf32> to vector<16xf32>
    %222 = vector.shape_cast %221 : vector<16xf32> to vector<1x16xf32>
    %c0_117 = arith.constant 0 : index
    %c0_118 = arith.constant 0 : index
    %c0_119 = arith.constant 0 : index
    %223 = vector.load %arg12[%c0_117, %c0_118, %c0_119] : memref<1x1x16xf32, #tpu.memory_space<vmem>>, vector<1x1x16xf32>
    %224 = vector.shape_cast %223 : vector<1x1x16xf32> to vector<1x16xf32>
    %225 = vector.shape_cast %222 : vector<1x16xf32> to vector<1x1x16xf32>
    tpu.vector_store %arg12[%c0_117, %c0_118, %c0_119], %225 {strides = array<i32>} : memref<1x1x16xf32, #tpu.memory_space<vmem>>, vector<1x1x16xf32>,
    return
  }
  func.func @transform_0(%arg0: i32) -> (i32, i32, i32) {
    %c0_i32 = arith.constant 0 : i32
    %c0_i32_0 = arith.constant 0 : i32
    %c0_i32_1 = arith.constant 0 : i32
    return %arg0, %c0_i32, %c0_i32_0 : i32, i32, i32
  }
  func.func @transform_1(%arg0: i32) -> (i32, i32) {
    %c0_i32 = arith.constant 0 : i32
    %c0_i32_0 = arith.constant 0 : i32
    %c0_i32_1 = arith.constant 0 : i32
    return %c0_i32, %c0_i32_0 : i32, i32
  }
  func.func @transform_2(%arg0: i32) -> (i32, i32) {
    %c0_i32 = arith.constant 0 : i32
    %c0_i32_0 = arith.constant 0 : i32
    %c0_i32_1 = arith.constant 0 : i32
    return %c0_i32, %c0_i32_0 : i32, i32
  }
  func.func @transform_3(%arg0: i32) -> (i32, i32) {
    %c0_i32 = arith.constant 0 : i32
    %c0_i32_0 = arith.constant 0 : i32
    %c0_i32_1 = arith.constant 0 : i32
    return %c0_i32, %c0_i32_0 : i32, i32
  }
  func.func @transform_4(%arg0: i32) -> (i32, i32, i32) {
    %c0_i32 = arith.constant 0 : i32
    %c0_i32_0 = arith.constant 0 : i32
    %c0_i32_1 = arith.constant 0 : i32
    %c0_i32_2 = arith.constant 0 : i32
    return %c0_i32, %c0_i32_0, %c0_i32_1 : i32, i32, i32
  }
  func.func @transform_5(%arg0: i32) -> (i32, i32) {
    %c0_i32 = arith.constant 0 : i32
    %c0_i32_0 = arith.constant 0 : i32
    %c0_i32_1 = arith.constant 0 : i32
    return %c0_i32, %c0_i32_0 : i32, i32
  }
  func.func @transform_6(%arg0: i32) -> (i32, i32) {
    %c0_i32 = arith.constant 0 : i32
    %c0_i32_0 = arith.constant 0 : i32
    %c0_i32_1 = arith.constant 0 : i32
    return %c0_i32, %c0_i32_0 : i32, i32
  }
  func.func @transform_7(%arg0: i32) -> (i32, i32) {
    %c0_i32 = arith.constant 0 : i32
    %c0_i32_0 = arith.constant 0 : i32
    %c0_i32_1 = arith.constant 0 : i32
    return %c0_i32, %c0_i32_0 : i32, i32
  }
  func.func @transform_8(%arg0: i32) -> (i32, i32, i32) {
    %c0_i32 = arith.constant 0 : i32
    %c0_i32_0 = arith.constant 0 : i32
    %c0_i32_1 = arith.constant 0 : i32
    %c0_i32_2 = arith.constant 0 : i32
    return %c0_i32, %c0_i32_0, %c0_i32_1 : i32, i32, i32
  }
  func.func @transform_9(%arg0: i32) -> (i32, i32) {
    %c0_i32 = arith.constant 0 : i32
    %c0_i32_0 = arith.constant 0 : i32
    %c0_i32_1 = arith.constant 0 : i32
    return %c0_i32, %c0_i32_0 : i32, i32
  }
  func.func @transform_10(%arg0: i32) -> (i32, i32, i32) {
    %c0_i32 = arith.constant 0 : i32
    %c0_i32_0 = arith.constant 0 : i32
    %c0_i32_1 = arith.constant 0 : i32
    return %arg0, %c0_i32, %c0_i32_0 : i32, i32, i32
  }
  func.func @transform_11(%arg0: i32) -> (i32, i32, i32) {
    %c0_i32 = arith.constant 0 : i32
    %c0_i32_0 = arith.constant 0 : i32
    %c0_i32_1 = arith.constant 0 : i32
    return %arg0, %c0_i32, %c0_i32_0 : i32, i32, i32
  }
}

module attributes {stable_mosaic.version = 11 : i64} {
  func.func @_prior_kernel(%arg0: i32, %arg1: memref<1x16x32xf32, #tpu.memory_space<vmem>>, %arg2: memref<1x16x32xf32, #tpu.memory_space<vmem>>, %arg3: memref<1x16x32xf32, #tpu.memory_space<vmem>>, %arg4: memref<1x1x32xf32, #tpu.memory_space<vmem>>) attributes {dimension_semantics = [#tpu.dimension_semantics<parallel>], iteration_bounds = array<i64: 2>, scalar_prefetch = 0 : i64, scratch_operands = 0 : i64, tpu.core_type = #tpu.core_type<tc>, window_params = [{transform_indices = @transform_0, window_bounds = array<i64: 1, 16, 32>}, {transform_indices = @transform_1, window_bounds = array<i64: 1, 16, 32>}, {transform_indices = @transform_2, window_bounds = array<i64: 1, 16, 32>}, {transform_indices = @transform_3, window_bounds = array<i64: 1, 1, 32>}]} {
    %c0 = arith.constant 0 : index
    %c0_0 = arith.constant 0 : index
    %c0_1 = arith.constant 0 : index
    %0 = vector.load %arg1[%c0, %c0_0, %c0_1] : memref<1x16x32xf32, #tpu.memory_space<vmem>>, vector<1x16x32xf32>
    %1 = vector.shape_cast %0 : vector<1x16x32xf32> to vector<16x32xf32>
    %c0_2 = arith.constant 0 : index
    %c0_3 = arith.constant 0 : index
    %c0_4 = arith.constant 0 : index
    %2 = vector.load %arg2[%c0_2, %c0_3, %c0_4] : memref<1x16x32xf32, #tpu.memory_space<vmem>>, vector<1x16x32xf32>
    %3 = vector.shape_cast %2 : vector<1x16x32xf32> to vector<16x32xf32>
    %4 = arith.subf %1, %3 : vector<16x32xf32>
    %c0_5 = arith.constant 0 : index
    %c0_6 = arith.constant 0 : index
    %c0_7 = arith.constant 0 : index
    %5 = vector.load %arg3[%c0_5, %c0_6, %c0_7] : memref<1x16x32xf32, #tpu.memory_space<vmem>>, vector<1x16x32xf32>
    %6 = vector.shape_cast %5 : vector<1x16x32xf32> to vector<16x32xf32>
    %cst = arith.constant -0.918938517 : f32
    %7 = vector.broadcast %cst : f32 to vector<16x32xf32>
    %8 = arith.subf %7, %6 : vector<16x32xf32>
    %cst_8 = arith.constant 5.000000e-01 : f32
    %9 = vector.broadcast %cst_8 : f32 to vector<16x32xf32>
    %10 = arith.mulf %9, %4 : vector<16x32xf32>
    %11 = arith.mulf %10, %4 : vector<16x32xf32>
    %cst_9 = arith.constant -2.000000e+00 : f32
    %12 = vector.broadcast %cst_9 : f32 to vector<16x32xf32>
    %13 = arith.mulf %12, %6 : vector<16x32xf32>
    %14 = math.exp %13 : vector<16x32xf32>
    %15 = arith.mulf %11, %14 : vector<16x32xf32>
    %16 = arith.subf %8, %15 : vector<16x32xf32>
    %cst_10 = arith.constant dense<0.000000e+00> : vector<32xf32>
    %17 = vector.multi_reduction <add>, %16, %cst_10 [0] : vector<16x32xf32> to vector<32xf32>
    %18 = vector.shape_cast %17 : vector<32xf32> to vector<1x32xf32>
    %c0_11 = arith.constant 0 : index
    %c0_12 = arith.constant 0 : index
    %c0_13 = arith.constant 0 : index
    %19 = vector.load %arg4[%c0_11, %c0_12, %c0_13] : memref<1x1x32xf32, #tpu.memory_space<vmem>>, vector<1x1x32xf32>
    %20 = vector.shape_cast %19 : vector<1x1x32xf32> to vector<1x32xf32>
    %21 = vector.shape_cast %18 : vector<1x32xf32> to vector<1x1x32xf32>
    tpu.vector_store %arg4[%c0_11, %c0_12, %c0_13], %21 {strides = array<i32>} : memref<1x1x32xf32, #tpu.memory_space<vmem>>, vector<1x1x32xf32>,
    return
  }
  func.func @transform_0(%arg0: i32) -> (i32, i32, i32) {
    %c0_i32 = arith.constant 0 : i32
    %c0_i32_0 = arith.constant 0 : i32
    %c0_i32_1 = arith.constant 0 : i32
    return %arg0, %c0_i32, %c0_i32_0 : i32, i32, i32
  }
  func.func @transform_1(%arg0: i32) -> (i32, i32, i32) {
    %c0_i32 = arith.constant 0 : i32
    %c0_i32_0 = arith.constant 0 : i32
    %c0_i32_1 = arith.constant 0 : i32
    return %arg0, %c0_i32, %c0_i32_0 : i32, i32, i32
  }
  func.func @transform_2(%arg0: i32) -> (i32, i32, i32) {
    %c0_i32 = arith.constant 0 : i32
    %c0_i32_0 = arith.constant 0 : i32
    %c0_i32_1 = arith.constant 0 : i32
    return %arg0, %c0_i32, %c0_i32_0 : i32, i32, i32
  }
  func.func @transform_3(%arg0: i32) -> (i32, i32, i32) {
    %c0_i32 = arith.constant 0 : i32
    %c0_i32_0 = arith.constant 0 : i32
    %c0_i32_1 = arith.constant 0 : i32
    return %arg0, %c0_i32, %c0_i32_0 : i32, i32, i32
  }
}

</mosaic_0001>

<llo_original>
// kernel: custom-call.18
$region0: #{custom-call.18}
  %s0 = inlined_call_operand.hbm [shape: f32[32,32], index: 0, kind: input, shape index: {}]
  %s1 = inlined_call_operand.vmem [shape: f32[32,32], index: 1, kind: output, shape index: {0}]
  %s2 = inlined_call_operand.hbm [shape: s32[32], index: 2, kind: output, shape index: {1}]
  %s3 = inlined_call_operand.hbm [shape: s32[32], index: 3, kind: output, shape index: {2}]
  %4 = xla_tuple %s1, %s2, %s3
  $region1: #{custom-call.18} parent=0
    #allocation0 [shape = 'u8[16384]{0}', space=vmem, size = 0x4000, scoped, tag = 'operand span for operand 0']
    #allocation1 [shape = 's32[1]{0}', space=sflag, size = 0x4, scoped, tag = 'scoped memory for custom-call.18']
    #allocation2 [shape = 's32[1]{0}', space=sflag, size = 0x4, scoped, tag = 'scoped memory for custom-call.18']
    #allocation3 [shape = 'u8[16384]{0}', space=vmem, size = 0x4000, scoped, tag = 'operand span for operand 1']
    #allocation4 [shape = 'u8[4096]{0}', space=vmem, size = 0x1000, scoped, tag = 'operand span for operand 2']
    #allocation5 [shape = 'u8[512]{0}', space=vmem, size = 0x400, scoped, tag = 'packed  for operand 2']
    #allocation6 [shape = 'u8[4096]{0}', space=vmem, size = 0x1000, scoped, tag = 'operand span for operand 3']
    #allocation7 [shape = 'u8[512]{0}', space=vmem, size = 0x400, scoped, tag = 'packed  for operand 3']
    #allocation8 [shape = 's32[1]{0}', space=sflag, size = 0x4, scoped, tag = 'scoped memory for custom-call.18']
    #allocation9 [shape = 's32[32,128]{1,0}', space=vmem, size = 0x4000, scoped, tag = 'scratch for permutations']
    %5 = vsyncpa [#allocation1], 0
    %6 = vsyncpa [#allocation2], 0
    %7 = vsyncpa [#allocation8], 0
    %s9 = ssub.s32 512, 512
    %10 = vsyncadd [#allocation1], %s9
    %s11 = sshll.u32 [#allocation0], 4
    %s12 = int_to_ptr.vmem [resolvable:$true] %s11
    %14 = dma.hbm_to_vmem [thread:$0]  %s0, 512, %s12, [#allocation1]
    %15 = dma.done [#allocation1], 512
    %v16 = vld [vmem:[#allocation0] sm:$0xff]
    %17 = vst [vmem:[#allocation3] sm:$0xff] %v16
    %s18 = scalar_lea.vmem [#allocation3], 8
    %s19 = scalar_lea.vmem [#allocation0], 8
    %v20 = vld [vmem:[%s19] sm:$0xff]
    %21 = vst [vmem:[%s18] sm:$0xff] %v20
    %s22 = scalar_lea.vmem [#allocation3], 16
    %s23 = scalar_lea.vmem [#allocation0], 16
    %v24 = vld [vmem:[%s23] sm:$0xff]
    %25 = vst [vmem:[%s22] sm:$0xff] %v24
    %s26 = scalar_lea.vmem [#allocation3], 24
    %s27 = scalar_lea.vmem [#allocation0], 24
    %v28 = vld [vmem:[%s27] sm:$0xff]
    %29 = vst [vmem:[%s26] sm:$0xff] %v28
    %30 = vst [vmem:[#allocation4] sm:$0x1] 0
    %v31 = vlaneseq
    %v32 = vshrl.u32 %v31, 7
    %v33 = vmov %v32
    loop: start=0, step=1, limit=4
    $region2: #{custom-call.18} parent=1 // loop_pre_header
      _
    $region3: #{custom-call.18} parent=1 // loop_header
      %s35 = sphi 0, %s39
      %p36 = scmp.ge.s32.totalorder %s35, 4
    $region4: #{custom-call.18} parent=1 // loop_header_branch
      %38 = sbr.rel (%p36) target = $region8
    $region5: #{custom-call.18} parent=1 // loop_body
      %s40 = smul.addr %s35, 8
      %s41 = scalar_lea.vmem [#allocation9], %s40
      %s42 = smul.u32 %s35, 8
      %v43 = vstv %s42
      %v44 = vadd.s32 %v33, %v43
      %45 = vst [vmem:[%s41] sm:$0xff] %v44
    $region6: #{custom-call.18} parent=1 // loop_footer
      %s39 = sadd.s32 1, %s35
    $region7: #{custom-call.18} parent=1 // loop_footer_branch
      %34 = sbr.rel target = $region3
    $region8: #{custom-call.18} parent=1 // loop_exit
      _
    loop: start=0, step=1, limit=32
    $region9: #{custom-call.18} parent=1 // loop_pre_header
      _
    $region10: #{custom-call.18} parent=1 // loop_header
      %s47 = sphi 0, %s51
      %p48 = scmp.ge.s32.totalorder %s47, 32
    $region11: #{custom-call.18} parent=1 // loop_header_branch
      %50 = sbr.rel (%p48) target = $region15
    $region12: #{custom-call.18} parent=1 // loop_body
      %v52 = vstv %s47
      %v53 = vlaneseq
      %v54 = vshrl.u32 %v53, 7
      %v55 = vmov %v54
      %v56 = vld [vmem:[#allocation3] sm:$0xff]
      %v57 = vand.u32 2147483647, %v56
      %v59 = vstv %s47
      %vm60 = vcmp.ge.s32.totalorder %v55, %v59
      %vm61 = vcmp.lt.s32.totalorder %v55, 32
      %vm62 = vmand %vm60, %vm61
      %vm63 = vcmp.lt.f32.partialorder -inf, %v57
      %vm64 = vmand %vm62, %vm63
      %v65 = vsel %vm64, %v55, %v52
      %v66 = vsel %vm64, %v57, -inf
      %s67 = scalar_lea.vmem [#allocation3], 8
      %v68 = vld [vmem:[%s67] sm:$0xff]
      %v69 = vand.u32 2147483647, %v68
      %v70 = vadd.s32 %v55, 8
      %v71 = vstv %s47
      %vm72 = vcmp.ge.s32.totalorder %v70, %v71
      %vm73 = vcmp.lt.s32.totalorder %v70, 32
      %vm74 = vmand %vm72, %vm73
      %vm75 = vcmp.lt.f32.partialorder %v66, %v69
      %vm76 = vmand %vm74, %vm75
      %v77 = vsel %vm76, %v70, %v65
      %v78 = vsel %vm76, %v69, %v66
      %s79 = scalar_lea.vmem [#allocation3], 16
      %v80 = vld [vmem:[%s79] sm:$0xff]
      %v81 = vand.u32 2147483647, %v80
      %v82 = vadd.s32 %v55, 16
      %v83 = vstv %s47
      %vm84 = vcmp.ge.s32.totalorder %v82, %v83
      %vm85 = vcmp.lt.s32.totalorder %v82, 32
      %vm86 = vmand %vm84, %vm85
      %vm87 = vcmp.lt.f32.partialorder %v78, %v81
      %vm88 = vmand %vm86, %vm87
      %v89 = vsel %vm88, %v82, %v77
      %v90 = vsel %vm88, %v81, %v78
      %s91 = scalar_lea.vmem [#allocation3], 24
      %v92 = vld [vmem:[%s91] sm:$0xff]
      %v93 = vand.u32 2147483647, %v92
      %v94 = vadd.s32 %v55, 24
      %v95 = vstv %s47
      %vm96 = vcmp.ge.s32.totalorder %v94, %v95
      %vm97 = vcmp.lt.s32.totalorder %v94, 32
      %vm98 = vmand %vm96, %vm97
      %vm99 = vcmp.lt.f32.partialorder %v90, %v93
      %vm100 = vmand %vm98, %vm99
      %v101 = vsel %vm100, %v94, %v89
      %v102 = vsel %vm100, %v93, %v90
      %v103 = vrot.slane %v102, 1
      %v104 = vrot.slane %v101, 1
      %vm105 = vcmp.ge.f32.partialorder %v103, %v102
      %v106 = vsel %vm105, %v103, %v102
      %v107 = vsel %vm105, %v104, %v101
      %v108 = vrot.slane %v103, 1
      %v109 = vrot.slane %v104, 1
      %vm110 = vcmp.ge.f32.partialorder %v108, %v106
      %v111 = vsel %vm110, %v108, %v106
      %v112 = vsel %vm110, %v109, %v107
      %v113 = vrot.slane %v108, 1
      %v114 = vrot.slane %v109, 1
      %vm115 = vcmp.ge.f32.partialorder %v113, %v111
      %v116 = vsel %vm115, %v113, %v111
      %v117 = vsel %vm115, %v114, %v112
      %v118 = vrot.slane %v113, 1
      %v119 = vrot.slane %v114, 1
      %vm120 = vcmp.ge.f32.partialorder %v118, %v116
      %v121 = vsel %vm120, %v118, %v116
      %v122 = vsel %vm120, %v119, %v117
      %v123 = vrot.slane %v118, 1
      %v124 = vrot.slane %v119, 1
      %vm125 = vcmp.ge.f32.partialorder %v123, %v121
      %v126 = vsel %vm125, %v123, %v121
      %v127 = vsel %vm125, %v124, %v122
      %v128 = vrot.slane %v123, 1
      %v129 = vrot.slane %v124, 1
      %vm130 = vcmp.ge.f32.partialorder %v128, %v126
      %v131 = vsel %vm130, %v128, %v126
      %v132 = vsel %vm130, %v129, %v127
      %v133 = vrot.slane %v128, 1
      %v134 = vrot.slane %v129, 1
      %vm135 = vcmp.ge.f32.partialorder %v133, %v131
      %v136 = vsel %vm135, %v133, %v131
      %v137 = vsel %vm135, %v134, %v132
      %s138 = ssub.s32 128, %s47
      %139 = vrot.lane.b32.xlu0 %v137, %s138
      %v140 = vpop.permute.xlu0 %139
      %s141 = vtos %v140
      %v142 = vstv %s47
      %v143 = vlaneseq
      %v144 = vand.u32 %v143, 127
      %vm145 = vcmp.eq.s32.totalorder %v144, %v142
      %v146 = vstv %s141
      %v147 = vld [vmem:[#allocation4] ss:$0 sm:$0xff]
      %v148 = vsel %vm145, %v146, %v147
      %149 = vst [vmem:[#allocation4] sm:$0x1] %v148
      %s150 = scalar_lea.vmem [#allocation3], %s47
      %s151 = scalar_lea.vmem [#allocation3], %s141
      %v152 = vld [vmem:[%s150] ss:$0 sm:$0xff]
      %v153 = vld [vmem:[%s151] ss:$0 sm:$0xff]
      %154 = vst [vmem:[%s151] sm:$0x1] %v152
      %155 = vst [vmem:[%s150] sm:$0x1] %v153
      %s156 = scalar_lea.vmem [#allocation9], %s47
      %s157 = scalar_lea.vmem [#allocation9], %s141
      %v158 = vld [vmem:[%s156] ss:$0 sm:$0xff]
      %v159 = vld [vmem:[%s157] ss:$0 sm:$0xff]
      %160 = vst [vmem:[%s157] sm:$0x1] %v158
      %161 = vst [vmem:[%s156] sm:$0x1] %v159
      %vm162 = vcmp.ne.f32.partialorder %v153, 0.0
      %vm163 = vmand %vm145, %vm162
      %v164 = vsel %vm163, %v153, 1.0
      %v165 = vlaneseq
      %v166 = vand.u32 %v165, 127
      %v167 = vstv %s47
      %vm168 = vcmp.gt.s32.totalorder %v166, %v167
      %v169 = vsel %vm168, %v153, 0.0
      %v170 = vlaneseq
      %v171 = vshrl.u32 %v170, 7
      %v172 = vmov %v171
      %v173 = vld [vmem:[#allocation3] sm:$0xff]
      %v175 = vstv %s47
      %vm176 = vcmp.gt.s32.totalorder %v172, %v175
      %v177 = vsel %vm176, %v164, 1.0
      %v178 = vrcp.pop %v177
      %v179 = vmul.f32 %v173, %v178
      %vm180 = vmand %vm176, %vm145
      %v181 = vsel %vm180, %v179, 0.0
      %182 = vadd.xlane.f32.xlu0 %v181
      %v183 = vpop.xlane.xlu0 %182
      %v184 = vmul.f32 %v183, %v169
      %v185 = vsub.f32 %v179, %v184
      %186 = vst [vmem:[#allocation3] sm:$0xff] %v185
      %s187 = scalar_lea.vmem [#allocation3], 8
      %v188 = vld [vmem:[%s187] sm:$0xff]
      %v189 = vadd.s32 %v172, 8
      %v190 = vstv %s47
      %vm191 = vcmp.gt.s32.totalorder %v189, %v190
      %v192 = vsel %vm191, %v164, 1.0
      %v193 = vrcp.pop %v192
      %v194 = vmul.f32 %v188, %v193
      %vm195 = vmand %vm191, %vm145
      %v196 = vsel %vm195, %v194, 0.0
      %197 = vadd.xlane.f32.xlu0 %v196
      %v198 = vpop.xlane.xlu0 %197
      %v199 = vmul.f32 %v198, %v169
      %v200 = vsub.f32 %v194, %v199
      %201 = vst [vmem:[%s187] sm:$0xff] %v200
      %s202 = scalar_lea.vmem [#allocation3], 16
      %v203 = vld [vmem:[%s202] sm:$0xff]
      %v204 = vadd.s32 %v172, 16
      %v205 = vstv %s47
      %vm206 = vcmp.gt.s32.totalorder %v204, %v205
      %v207 = vsel %vm206, %v164, 1.0
      %v208 = vrcp.pop %v207
      %v209 = vmul.f32 %v203, %v208
      %vm210 = vmand %vm206, %vm145
      %v211 = vsel %vm210, %v209, 0.0
      %212 = vadd.xlane.f32.xlu0 %v211
      %v213 = vpop.xlane.xlu0 %212
      %v214 = vmul.f32 %v213, %v169
      %v215 = vsub.f32 %v209, %v214
      %216 = vst [vmem:[%s202] sm:$0xff] %v215
      %s217 = scalar_lea.vmem [#allocation3], 24
      %v218 = vld [vmem:[%s217] sm:$0xff]
      %v219 = vadd.s32 %v172, 24
      %v220 = vstv %s47
      %vm221 = vcmp.gt.s32.totalorder %v219, %v220
      %v222 = vsel %vm221, %v164, 1.0
      %v223 = vrcp.pop %v222
      %v224 = vmul.f32 %v218, %v223
      %vm225 = vmand %vm221, %vm145
      %v226 = vsel %vm225, %v224, 0.0
      %227 = vadd.xlane.f32.xlu0 %v226
      %v228 = vpop.xlane.xlu0 %227
      %v229 = vmul.f32 %v228, %v169
      %v230 = vsub.f32 %v224, %v229
      %231 = vst [vmem:[%s217] sm:$0xff] %v230
    $region13: #{custom-call.18} parent=1 // loop_footer
      %s51 = sadd.s32 1, %s47
    $region14: #{custom-call.18} parent=1 // loop_footer_branch
      %46 = sbr.rel target = $region10
    $region15: #{custom-call.18} parent=1 // loop_exit
      _
    %v232 = vld [vmem:[#allocation9] sm:$0xff]
    %s233 = scalar_lea.vmem [#allocation9], 8
    %v234 = vld [vmem:[%s233] sm:$0xff]
    %s235 = scalar_lea.vmem [#allocation9], 16
    %v236 = vld [vmem:[%s235] sm:$0xff]
    %s237 = scalar_lea.vmem [#allocation9], 24
    %v238 = vld [vmem:[%s237] sm:$0xff]
    %s239 = scalar_lea.vmem [#allocation9], 32
    %s240 = scalar_lea.vmem [#allocation9], 40
    %s241 = scalar_lea.vmem [#allocation9], 48
    %s242 = scalar_lea.vmem [#allocation9], 56
    %s243 = scalar_lea.vmem [#allocation9], 64
    %s244 = scalar_lea.vmem [#allocation9], 72
    %s245 = scalar_lea.vmem [#allocation9], 80
    %s246 = scalar_lea.vmem [#allocation9], 88
    %s247 = scalar_lea.vmem [#allocation9], 96
    %s248 = scalar_lea.vmem [#allocation9], 104
    %s249 = scalar_lea.vmem [#allocation9], 112
    %s250 = scalar_lea.vmem [#allocation9], 120
    %251 = vxpose.xlu0.b32.start [1/16] %v232, 128
    %252 = vxpose.xlu0.b32.cont [2/16] %v234, 128
    %253 = vxpose.xlu0.b32.cont [3/16] %v236, 128
    %254 = vxpose.xlu0.b32.cont [4/16] %v238, 128
    %255 = vxpose.xlu0.b32.cont [5/16] 0, 128
    %256 = vxpose.xlu0.b32.cont [6/16] 0, 128
    %257 = vxpose.xlu0.b32.cont [7/16] 0, 128
    %258 = vxpose.xlu0.b32.cont [8/16] 0, 128
    %259 = vxpose.xlu0.b32.cont [9/16] 0, 128
    %260 = vxpose.xlu0.b32.cont [10/16] 0, 128
    %261 = vxpose.xlu0.b32.cont [11/16] 0, 128
    %262 = vxpose.xlu0.b32.cont [12/16] 0, 128
    %263 = vxpose.xlu0.b32.cont [13/16] 0, 128
    %264 = vxpose.xlu0.b32.cont [14/16] 0, 128
    %265 = vxpose.xlu0.b32.cont [15/16] 0, 128
    %266 = vxpose.xlu0.b32.end [16/16] 0, 128
    %v267 = vpop.trf.xlu0
    %v268 = vpop.trf.xlu0
    %v269 = vpop.trf.xlu0
    %v270 = vpop.trf.xlu0
    %v271 = vpop.trf.xlu0
    %v272 = vpop.trf.xlu0
    %v273 = vpop.trf.xlu0
    %v274 = vpop.trf.xlu0
    %v275 = vpop.trf.xlu0
    %v276 = vpop.trf.xlu0
    %v277 = vpop.trf.xlu0
    %v278 = vpop.trf.xlu0
    %v279 = vpop.trf.xlu0
    %v280 = vpop.trf.xlu0
    %v281 = vpop.trf.xlu0
    %v282 = vpop.trf.xlu0
    %283 = vst [vmem:[#allocation6] sm:$0x1] %v267
    %s285 = sshllo.u32 0, 1
    %v287 = vld [vmem:[#allocation4] sm:%s285]
    %s288 = sshllo.u32 0, 1
    %289 = vst [vmem:[#allocation5] sm:%s288] %v287
    %s291 = sshllo.u32 0, 1
    %v293 = vld [vmem:[#allocation6] sm:%s291]
    %s294 = sshllo.u32 0, 1
    %295 = vst [vmem:[#allocation7] sm:%s294] %v293
    %p297 = scmp.gt.s32.totalorder 32, 0
    // Predicated region
    $region16: #{custom-call.18} parent=1 // pred_check
      %p298 = pneg %p297
    $region17: #{custom-call.18} parent=1 // pred_check_branch
      %300 = sbr.rel (%p298) target = $region19
    $region18: #{custom-call.18} parent=1 // pred_region
      %s301 = sshra.s32 32, 3
      %p302 = scmp.gt.s32.totalorder %s301, 0
      // Predicated region
      $region20: #{custom-call.18} parent=18 // pred_check
        %p303 = pneg %p302
      $region21: #{custom-call.18} parent=18 // pred_check_branch
        %305 = sbr.rel (%p303) target = $region23
      $region22: #{custom-call.18} parent=18 // pred_region
        %s306 = ssub.s32 %s301, 1
        %s307 = smul.u32 %s306, 128
        %s308 = sshra.s32 %s307, 4
        %s309 = scalar_lea.vmem [#allocation3], %s308
        %v310 = vld [vmem:[#allocation3] sm:$0xff]
        // While loop
        $region24: #{custom-call.18} parent=22 // loop_pre_header
          _
        $region25: #{custom-call.18} parent=22 // loop_header
          %s311 = sphi [#allocation3], %s333
          %s312 = sphi %s1, %s334
          %v313 = vphi %v310, %v335
          %s314 = ssub.s32 %s309, 64
          %p315 = scmp.gt.s32.totalorder %s311, %s314
        $region26: #{custom-call.18} parent=22 // loop_header_branch
          %317 = sbr.rel (%p315) target = $region30
        $region27: #{custom-call.18} parent=22 // loop_body
          %318 = vst [vmem:[%s312] sm:$0xff] %v313
          %v319 = vld [vmem:[%s311 + $0x8] sm:$0xff]
          %320 = vst [vmem:[%s312 + $0x8] sm:$0xff] %v319
          %v321 = vld [vmem:[%s311 + $0x10] sm:$0xff]
          %322 = vst [vmem:[%s312 + $0x10] sm:$0xff] %v321
          %v323 = vld [vmem:[%s311 + $0x18] sm:$0xff]
          %324 = vst [vmem:[%s312 + $0x18] sm:$0xff] %v323
          %v325 = vld [vmem:[%s311 + $0x20] sm:$0xff]
          %326 = vst [vmem:[%s312 + $0x20] sm:$0xff] %v325
          %v327 = vld [vmem:[%s311 + $0x28] sm:$0xff]
          %328 = vst [vmem:[%s312 + $0x28] sm:$0xff] %v327
          %v329 = vld [vmem:[%s311 + $0x30] sm:$0xff]
          %330 = vst [vmem:[%s312 + $0x30] sm:$0xff] %v329
          %v331 = vld [vmem:[%s311 + $0x38] sm:$0xff]
          %332 = vst [vmem:[%s312 + $0x38] sm:$0xff] %v331
        $region28: #{custom-call.18} parent=22 // loop_footer
          %s333 = scalar_lea.vmem %s311, 64
          %s334 = scalar_lea.vmem %s312, 64
          %v335 = vld [vmem:[%s311 + $0x40] sm:$0xff]
        $region29: #{custom-call.18} parent=22 // loop_footer_branch
          %336 = sbr.rel target = $region25
        $region30: #{custom-call.18} parent=22 // loop_exit
          _
        // While loop
        $region31: #{custom-call.18} parent=22 // loop_pre_header
          _
        $region32: #{custom-call.18} parent=22 // loop_header
          %s337 = sphi %s311, %s345
          %s338 = sphi %s312, %s346
          %v339 = vphi %v313, %v339
          %p340 = scmp.gt.s32.totalorder %s337, %s309
        $region33: #{custom-call.18} parent=22 // loop_header_branch
          %342 = sbr.rel (%p340) target = $region37
        $region34: #{custom-call.18} parent=22 // loop_body
          %v343 = vld [vmem:[%s337] sm:$0xff]
          %344 = vst [vmem:[%s338] sm:$0xff] %v343
        $region35: #{custom-call.18} parent=22 // loop_footer
          %s345 = scalar_lea.vmem %s337, 8
          %s346 = scalar_lea.vmem %s338, 8
        $region36: #{custom-call.18} parent=22 // loop_footer_branch
          %347 = sbr.rel target = $region32
        $region37: #{custom-call.18} parent=22 // loop_exit
          _
      $region23: #{custom-call.18} parent=18 // pred_fallthru
        _
      %s348 = sand.u32 32, 7
      %s349 = sshllo.u32 0, %s348
      %s350 = smul.u32 %s301, 128
      %s351 = sshra.s32 %s350, 4
      %s352 = scalar_lea.vmem %s1, %s351
      %s353 = smul.u32 %s301, 128
      %s354 = sshra.s32 %s353, 4
      %s355 = scalar_lea.vmem [#allocation3], %s354
      %v356 = vld [vmem:[%s355] sm:%s349]
      %357 = vst [vmem:[%s352] sm:%s349] %v356
    $region19: #{custom-call.18} parent=1 // pred_fallthru
      _
    // Predicated region
    $region38: #{custom-call.18} parent=1 // pred_check
      _
    $region39: #{custom-call.18} parent=1 // pred_check_branch
      %359 = sbr.rel (0) target = $region41
    $region40: #{custom-call.18} parent=1 // pred_region
      %s361 = ssub.s32 16, 16
      %362 = vsyncadd [#allocation2], %s361
      %s363 = sshll.u32 [#allocation5], 4
      %s364 = int_to_ptr.vmem [resolvable:$true] %s363
      %366 = dma.vmem_to_hbm [thread:$0]  %s364, 16, %s2, [#allocation2]
    $region41: #{custom-call.18} parent=1 // pred_fallthru
      _
    // Predicated region
    $region42: #{custom-call.18} parent=1 // pred_check
      _
    $region43: #{custom-call.18} parent=1 // pred_check_branch
      %368 = sbr.rel (0) target = $region45
    $region44: #{custom-call.18} parent=1 // pred_region
      %s370 = ssub.s32 16, 16
      %371 = vsyncadd [#allocation8], %s370
      %s372 = sshll.u32 [#allocation7], 4
      %s373 = int_to_ptr.vmem [resolvable:$true] %s372
      %375 = dma.vmem_to_hbm [thread:$0]  %s373, 16, %s3, [#allocation8]
    $region45: #{custom-call.18} parent=1 // pred_fallthru
      _
    // Predicated region
    $region46: #{custom-call.18} parent=1 // pred_check
      _
    $region47: #{custom-call.18} parent=1 // pred_check_branch
      %377 = sbr.rel (0) target = $region49
    $region48: #{custom-call.18} parent=1 // pred_region
      %378 = dma.done [#allocation2], 16
    $region49: #{custom-call.18} parent=1 // pred_fallthru
      _
    // Predicated region
    $region50: #{custom-call.18} parent=1 // pred_check
      _
    $region51: #{custom-call.18} parent=1 // pred_check_branch
      %380 = sbr.rel (0) target = $region53
    $region52: #{custom-call.18} parent=1 // pred_region
      %381 = dma.done [#allocation8], 16
    $region53: #{custom-call.18} parent=1 // pred_fallthru
      _
    %382 = vsyncpa [#allocation1], 1
    %383 = vsyncpa [#allocation2], 1
    %384 = vsyncpa [#allocation8], 1

// kernel: lr_normflow_forward.8
$region0: #{lr_normflow_forward.8}
  #allocation0 [shape = 'u32[]', space=smem, size = 0x4, offset = 0x4, fixed_abs, tag = 'smem constant byte address 0x4 - core index']
  #allocation1 [shape = 'u32[144,128]{1,0:T(1,128)}', space=vmem, size = 0x12000, scoped, tag = 'internal scratch']
  %s0 = inlined_call_operand.vmem [shape: f32[2,64,16], index: 0, kind: input, shape index: {}]
  %s1 = inlined_call_operand.vmem [shape: bf16[9,8,16], index: 1, kind: input, shape index: {}]
  %s2 = inlined_call_operand.vmem [shape: f32[1,16], index: 2, kind: input, shape index: {}]
  %s3 = inlined_call_operand.vmem [shape: f32[2,64,8], index: 3, kind: output, shape index: {0}]
  %s4 = inlined_call_operand.vmem [shape: f32[2,1,8], index: 4, kind: output, shape index: {1}]
  %5 = xla_tuple %s3, %s4
  %s6 = sld [smem:[#allocation0]]
  $region53: #{lr_normflow_forward.8} parent=0
    _
  %s8 = ssub.s32 1, %s6
  %s9 = scalar_select 0, %s8, %s6
  loop: start=0, step=1, limit=4
  $region2: #{lr_normflow_forward.8} parent=0 // loop_pre_header
    _
  $region3: #{lr_normflow_forward.8} parent=0 // loop_header
    %s11 = sphi 0, %s15
    %p12 = scmp.ge.s32.totalorder %s11, 4
    %s21 = sphi 0, %s23
    %s24 = sphi 0, %s21
    %s25 = sphi 0, %s24
    %s41 = sphi 0, %s25
    %s45 = sphi 0, %s45
    %s47 = sphi 0, %s45
    %s48 = sphi 0, %s47
    %s62 = sphi 0, %s48
    %s66 = sphi 0, %s66
    %s68 = sphi 0, %s66
    %s69 = sphi 0, %s68
    %s83 = sphi 0, %s69
    %s89 = sphi 0, %s91
    %s92 = sphi 0, %s89
    %s93 = sphi 0, %s92
    %s109 = sphi 0, %s93
    %s115 = sphi 0, %s117
    %s118 = sphi 0, %s115
    %s119 = sphi 0, %s118
    %s135 = sphi 0, %s119
  $region4: #{lr_normflow_forward.8} parent=0 // loop_header_branch
    %14 = sbr.rel (%p12) target = $region8
  $region5: #{lr_normflow_forward.8} parent=0 // loop_body
    %s16 = ssub.s32 %s11, 1
    %s17 = ssub.s32 %s11, 2
    %s18 = sadd.s32 %s11, 1
    %s19 = ssub.s32 %s11, %s18
    %p20 = scmp.eq.s32.totalorder %s19, 0
    %s22 = sadd.s32 %s21, 1
    %s23 = scalar_select %p20, %s21, %s22
    %p26 = pneg %p20
    %p27 = scmp.eq.s32.totalorder %s11, 1
    %p28 = por %p26, %p27
    %p29 = scmp.ne.s32.totalorder %s21, %s24
    %p30 = scmp.eq.s32.totalorder %s11, 0
    %p31 = por %p29, %p30
    %p32 = scmp.ne.s32.totalorder %s21, %s24
    %p33 = scmp.eq.s32.totalorder %s16, 1
    %p34 = por %p32, %p33
    %p35 = scmp.ne.s32.totalorder %s24, %s25
    %p36 = scmp.eq.s32.totalorder %s16, 0
    %p37 = por %p35, %p36
    %p38 = scmp.ne.s32.totalorder %s24, %s25
    %p39 = scmp.eq.s32.totalorder %s17, 1
    %p40 = por %p38, %p39
    %p42 = scmp.ne.s32.totalorder %s25, %s41
    %p43 = scmp.eq.s32.totalorder %s17, 0
    %p44 = por %p42, %p43
    %s46 = sadd.s32 %s45, 1
    %p49 = scmp.eq.s32.totalorder %s11, 1
    %p50 = scmp.ne.s32.totalorder %s45, %s47
    %p51 = scmp.eq.s32.totalorder %s11, 0
    %p52 = por %p50, %p51
    %p53 = scmp.ne.s32.totalorder %s45, %s47
    %p54 = scmp.eq.s32.totalorder %s16, 1
    %p55 = por %p53, %p54
    %p56 = scmp.ne.s32.totalorder %s47, %s48
    %p57 = scmp.eq.s32.totalorder %s16, 0
    %p58 = por %p56, %p57
    %p59 = scmp.ne.s32.totalorder %s47, %s48
    %p60 = scmp.eq.s32.totalorder %s17, 1
    %p61 = por %p59, %p60
    %p63 = scmp.ne.s32.totalorder %s48, %s62
    %p64 = scmp.eq.s32.totalorder %s17, 0
    %p65 = por %p63, %p64
    %s67 = sadd.s32 %s66, 1
    %p70 = scmp.eq.s32.totalorder %s11, 1
    %p71 = scmp.ne.s32.totalorder %s66, %s68
    %p72 = scmp.eq.s32.totalorder %s11, 0
    %p73 = por %p71, %p72
    %p74 = scmp.ne.s32.totalorder %s66, %s68
    %p75 = scmp.eq.s32.totalorder %s16, 1
    %p76 = por %p74, %p75
    %p77 = scmp.ne.s32.totalorder %s68, %s69
    %p78 = scmp.eq.s32.totalorder %s16, 0
    %p79 = por %p77, %p78
    %p80 = scmp.ne.s32.totalorder %s68, %s69
    %p81 = scmp.eq.s32.totalorder %s17, 1
    %p82 = por %p80, %p81
    %p84 = scmp.ne.s32.totalorder %s69, %s83
    %p85 = scmp.eq.s32.totalorder %s17, 0
    %p86 = por %p84, %p85
    %s87 = ssub.s32 %s11, %s18
    %p88 = scmp.eq.s32.totalorder %s87, 0
    %s90 = sadd.s32 %s89, 1
    %s91 = scalar_select %p88, %s89, %s90
    %p94 = pneg %p88
    %p95 = scmp.eq.s32.totalorder %s11, 1
    %p96 = por %p94, %p95
    %p97 = scmp.ne.s32.totalorder %s89, %s92
    %p98 = scmp.eq.s32.totalorder %s11, 0
    %p99 = por %p97, %p98
    %p100 = scmp.ne.s32.totalorder %s89, %s92
    %p101 = scmp.eq.s32.totalorder %s16, 1
    %p102 = por %p100, %p101
    %p103 = scmp.ne.s32.totalorder %s92, %s93
    %p104 = scmp.eq.s32.totalorder %s16, 0
    %p105 = por %p103, %p104
    %p106 = scmp.ne.s32.totalorder %s92, %s93
    %p107 = scmp.eq.s32.totalorder %s17, 1
    %p108 = por %p106, %p107
    %p110 = scmp.ne.s32.totalorder %s93, %s109
    %p111 = scmp.eq.s32.totalorder %s17, 0
    %p112 = por %p110, %p111
    %s113 = ssub.s32 %s11, %s18
    %p114 = scmp.eq.s32.totalorder %s113, 0
    %s116 = sadd.s32 %s115, 1
    %s117 = scalar_select %p114, %s115, %s116
    %p120 = pneg %p114
    %p121 = scmp.eq.s32.totalorder %s11, 1
    %p122 = por %p120, %p121
    %p123 = scmp.ne.s32.totalorder %s115, %s118
    %p124 = scmp.eq.s32.totalorder %s11, 0
    %p125 = por %p123, %p124
    %p126 = scmp.ne.s32.totalorder %s115, %s118
    %p127 = scmp.eq.s32.totalorder %s16, 1
    %p128 = por %p126, %p127
    %p129 = scmp.ne.s32.totalorder %s118, %s119
    %p130 = scmp.eq.s32.totalorder %s16, 0
    %p131 = por %p129, %p130
    %p132 = scmp.ne.s32.totalorder %s118, %s119
    %p133 = scmp.eq.s32.totalorder %s17, 1
    %p134 = por %p132, %p133
    %p136 = scmp.ne.s32.totalorder %s119, %s135
    %p137 = scmp.eq.s32.totalorder %s17, 0
    %p138 = por %p136, %p137
    %p139 = scmp.le.s32.totalorder 1, %s11
    %p140 = scmp.lt.s32.totalorder %s11, 3
    %p141 = pnand %p139, %p140
    %p142 = pneg %p141
    // Predicated region
    $region9: #{lr_normflow_forward.8} parent=5 // pred_check
      _
    $region10: #{lr_normflow_forward.8} parent=5 // pred_check_branch
      %144 = sbr.rel (%p141) target = $region12
    $region11: #{lr_normflow_forward.8} parent=5 // pred_region
      %s145 = ssub.s32 %s11, 1
      // Predicated region
      $region13: #{lr_normflow_forward.8} parent=11 // pred_check
        %p146 = pneg %p58
      $region14: #{lr_normflow_forward.8} parent=11 // pred_check_branch
        %148 = sbr.rel (%p146) target = $region16
      $region15: #{lr_normflow_forward.8} parent=11 // pred_region
        _
      $region16: #{lr_normflow_forward.8} parent=11 // pred_fallthru
        _
      // Predicated region
      $region17: #{lr_normflow_forward.8} parent=11 // pred_check
        %p149 = pneg %p79
      $region18: #{lr_normflow_forward.8} parent=11 // pred_check_branch
        %151 = sbr.rel (%p149) target = $region20
      $region19: #{lr_normflow_forward.8} parent=11 // pred_region
        _
      $region20: #{lr_normflow_forward.8} parent=11 // pred_fallthru
        _
    $region12: #{lr_normflow_forward.8} parent=5 // pred_fallthru
      _
    %p152 = scmp.lt.s32.totalorder %s11, 2
    // Predicated region
    $region21: #{lr_normflow_forward.8} parent=5 // pred_check
      %p153 = pneg %p152
    $region22: #{lr_normflow_forward.8} parent=5 // pred_check_branch
      %155 = sbr.rel (%p153) target = $region24
    $region23: #{lr_normflow_forward.8} parent=5 // pred_region
      // Predicated region
      $region25: #{lr_normflow_forward.8} parent=23 // pred_check
        %p156 = pneg %p31
      $region26: #{lr_normflow_forward.8} parent=23 // pred_check_branch
        %158 = sbr.rel (%p156) target = $region28
      $region27: #{lr_normflow_forward.8} parent=23 // pred_region
        %p159 = scmp.lt.s32.totalorder %s11, 1
        %s160 = scalar_select %p159, %s11, 1
        %s161 = smul.addr %s160, 8
        %s162 = smul.addr %s161, 8
        %s163 = scalar_lea.vmem %s0, %s162
      $region28: #{lr_normflow_forward.8} parent=23 // pred_fallthru
        _
    $region24: #{lr_normflow_forward.8} parent=5 // pred_fallthru
      _
    %p164 = scmp.le.s32.totalorder 1, %s11
    %p165 = scmp.lt.s32.totalorder %s11, 3
    %p166 = pnand %p164, %p165
    %p167 = pneg %p166
    // Predicated region
    $region29: #{lr_normflow_forward.8} parent=5 // pred_check
      _
    $region30: #{lr_normflow_forward.8} parent=5 // pred_check_branch
      %169 = sbr.rel (%p166) target = $region32
    $region31: #{lr_normflow_forward.8} parent=5 // pred_region
      %s170 = ssub.s32 %s11, 1
      %p171 = scmp.lt.s32.totalorder %s16, 1
      %s172 = scalar_select %p171, %s16, 1
      %s173 = smul.addr %s172, 8
      %s174 = smul.addr %s173, 8
      %s175 = scalar_lea.vmem %s0, %s174
      %p176 = pneg %p37
      %p177 = pneg %p34
      %p178 = pneg %p58
      %p179 = pneg %p55
      %p180 = pneg %p79
      %p181 = pneg %p76
      %p182 = pneg %p105
      %p183 = pneg %p102
      %p184 = scmp.lt.s32.totalorder %s16, 1
      %s185 = scalar_select %p184, %s16, 1
      %s186 = smul.addr %s185, 8
      %s187 = smul.addr %s186, 8
      %s188 = scalar_lea.vmem %s3, %s187
      %p189 = pneg %p131
      %p190 = pneg %p128
      %p191 = scmp.lt.s32.totalorder %s16, 1
      %s192 = scalar_select %p191, %s16, 1
      %s193 = scalar_lea.vmem %s4, %s192
      %p194 = scmp.lt.s32.totalorder %s16, 1
      %s195 = scalar_select %p194, %s16, 1
      %s196 = smul.addr %s195, 8
      %s197 = smul.addr %s196, 8
      %s198 = scalar_lea.vmem %s0, %s197
      %p199 = scmp.lt.s32.totalorder %s16, 1
      %s200 = scalar_select %p199, %s16, 1
      %s201 = smul.addr %s200, 8
      %s202 = smul.addr %s201, 8
      %s203 = scalar_lea.vmem %s3, %s202
      %p204 = scmp.lt.s32.totalorder %s16, 1
      %s205 = scalar_select %p204, %s16, 1
      %s206 = scalar_lea.vmem %s4, %s205
      %v208 = vld [vmem:[%s198] sm:$0xff]
      %v209 = vld [vmem:[%s198 + $0x8] sm:$0xff]
      %v210 = vld [vmem:[%s198 + $0x10] sm:$0xff]
      %v211 = vld [vmem:[%s198 + $0x18] sm:$0xff]
      %v212 = vld [vmem:[%s198 + $0x20] sm:$0xff]
      %v213 = vld [vmem:[%s198 + $0x28] sm:$0xff]
      %v214 = vld [vmem:[%s198 + $0x30] sm:$0xff]
      %v215 = vld [vmem:[%s198 + $0x38] sm:$0xff]
      %v216 = vld [vmem:[%s2] sm:$0x1]
      %v217 = vlaneseq
      %v218 = vshrl.u32 %v217, 7
      %v219 = vadd.s32 %v218, 8
      %v220 = vadd.s32 %v218, 16
      %v221 = vadd.s32 %v218, 24
      %v222 = vadd.s32 %v218, 32
      %v223 = vadd.s32 %v218, 40
      %v224 = vadd.s32 %v218, 48
      %v225 = vadd.s32 %v218, 56
      %v226 = vand.u32 %v218, 7
      %v227 = vand.u32 %v219, 7
      %v228 = vand.u32 %v220, 7
      %v229 = vand.u32 %v221, 7
      %v230 = vand.u32 %v222, 7
      %v231 = vand.u32 %v223, 7
      %v232 = vand.u32 %v224, 7
      %v233 = vand.u32 %v225, 7
      %vm234 = vcmp.eq.s32.totalorder %v226, 7
      %vm235 = vcmp.eq.s32.totalorder %v227, 7
      %vm236 = vcmp.eq.s32.totalorder %v228, 7
      %vm237 = vcmp.eq.s32.totalorder %v229, 7
      %vm238 = vcmp.eq.s32.totalorder %v230, 7
      %vm239 = vcmp.eq.s32.totalorder %v231, 7
      %vm240 = vcmp.eq.s32.totalorder %v232, 7
      %vm241 = vcmp.eq.s32.totalorder %v233, 7
      %v242 = vsel %vm234, 1, 0
      %v243 = vsel %vm235, 1, 0
      %v244 = vsel %vm236, 1, 0
      %v245 = vsel %vm237, 1, 0
      %v246 = vsel %vm238, 1, 0
      %v247 = vsel %vm239, 1, 0
      %v248 = vsel %vm240, 1, 0
      %v249 = vsel %vm241, 1, 0
      %vm250 = vcmp.eq.s32.totalorder %v242, 1
      %vm251 = vcmp.eq.s32.totalorder %v243, 1
      %vm252 = vcmp.eq.s32.totalorder %v244, 1
      %vm253 = vcmp.eq.s32.totalorder %v245, 1
      %vm254 = vcmp.eq.s32.totalorder %v246, 1
      %vm255 = vcmp.eq.s32.totalorder %v247, 1
      %vm256 = vcmp.eq.s32.totalorder %v248, 1
      %vm257 = vcmp.eq.s32.totalorder %v249, 1
      %v258 = vsel %vm250, 0.0, %v208
      %v259 = vsel %vm251, 0.0, %v209
      %v260 = vsel %vm252, 0.0, %v210
      %v261 = vsel %vm253, 0.0, %v211
      %v262 = vsel %vm254, 0.0, %v212
      %v263 = vsel %vm255, 0.0, %v213
      %v264 = vsel %vm256, 0.0, %v214
      %v265 = vsel %vm257, 0.0, %v215
      %vm266 = vcmp.eq.s32.totalorder %v226, 0
      %vm267 = vcmp.eq.s32.totalorder %v227, 0
      %vm268 = vcmp.eq.s32.totalorder %v228, 0
      %vm269 = vcmp.eq.s32.totalorder %v229, 0
      %vm270 = vcmp.eq.s32.totalorder %v230, 0
      %vm271 = vcmp.eq.s32.totalorder %v231, 0
      %vm272 = vcmp.eq.s32.totalorder %v232, 0
      %vm273 = vcmp.eq.s32.totalorder %v233, 0
      %v274 = vsel %vm266, 1, 0
      %v275 = vsel %vm267, 1, 0
      %v276 = vsel %vm268, 1, 0
      %v277 = vsel %vm269, 1, 0
      %v278 = vsel %vm270, 1, 0
      %v279 = vsel %vm271, 1, 0
      %v280 = vsel %vm272, 1, 0
      %v281 = vsel %vm273, 1, 0
      %vm282 = vcmp.eq.s32.totalorder %v274, 1
      %vm283 = vcmp.eq.s32.totalorder %v275, 1
      %vm284 = vcmp.eq.s32.totalorder %v276, 1
      %vm285 = vcmp.eq.s32.totalorder %v277, 1
      %vm286 = vcmp.eq.s32.totalorder %v278, 1
      %vm287 = vcmp.eq.s32.totalorder %v279, 1
      %vm288 = vcmp.eq.s32.totalorder %v280, 1
      %vm289 = vcmp.eq.s32.totalorder %v281, 1
      %v290 = vsel %vm282, 0.0, %v208
      %v291 = vsel %vm283, 0.0, %v209
      %v292 = vsel %vm284, 0.0, %v210
      %v293 = vsel %vm285, 0.0, %v211
      %v294 = vsel %vm286, 0.0, %v212
      %v295 = vsel %vm287, 0.0, %v213
      %v296 = vsel %vm288, 0.0, %v214
      %v297 = vsel %vm289, 0.0, %v215
      %vm305 = vcmask 1040384
      %v306 = vrot.slane %v258, 7
      %v307 = vrot.slane %v259, 7
      %v308 = vsel %vm305, %v306, %v307
      %v309 = vrot.slane %v260, 7
      %v310 = vsel %vm305, %v307, %v309
      %v311 = vrot.slane %v261, 7
      %v312 = vsel %vm305, %v309, %v311
      %v313 = vrot.slane %v262, 7
      %v314 = vsel %vm305, %v311, %v313
      %v315 = vrot.slane %v263, 7
      %v316 = vsel %vm305, %v313, %v315
      %v317 = vrot.slane %v264, 7
      %v318 = vsel %vm305, %v315, %v317
      %v326 = vsel %vm305, 0.0, %v306
      %v327 = vpack.c.bf16 %v326, 0.0
      %v328 = vpack.c.bf16 %v310, %v308
      %v329 = vpack.c.bf16 %v314, %v312
      %v330 = vpack.c.bf16 %v318, %v316
      %v331 = vld [vmem:[%s1] sm:$0xf]
      %v332 = vpack.c.bf16 %v208, 0.0
      %v333 = vpack.c.bf16 %v210, %v209
      %v334 = vpack.c.bf16 %v212, %v211
      %v335 = vpack.c.bf16 %v214, %v213
      %s336 = scalar_lea.vmem %s1, 4
      %v337 = vld [vmem:[%s336] sm:$0xf]
      %vm338 = vcmask 64512
      %v340 = vsel %vm338, %v332, 0
      %v343 = vsel %vm338, %v333, 0
      %v346 = vsel %vm338, %v334, 0
      %v349 = vsel %vm338, %v335, 0
      %vm351 = vcmask 1043456
      %v353 = vsel %vm351, %v337, 0
      %355 = vmatprep.subr.bf16.mxu0 0
      %356 = vmatpush1.bf16.msra.mxu0 %v353
      %357 = vmatprep.subr.bf16.mxu0 0
      %358 = vmatpush1.bf16.msra.mxu0 0
      %359 = vmatprep.subr.bf16.mxu0 0
      %360 = vmatpush1.bf16.msra.mxu0 0
      %361 = vmatprep.subr.bf16.mxu0 0
      %362 = vmatpush1.bf16.msra.mxu0 0
      %363 = vmatprep.subr.bf16.mxu0 0
      %364 = vmatpush1.bf16.msra.mxu0 0
      %365 = vmatprep.subr.bf16.mxu0 0
      %366 = vmatpush1.bf16.msra.mxu0 0
      %367 = vmatprep.subr.bf16.mxu0 0
      %368 = vmatpush1.bf16.msra.mxu0 0
      %369 = vmatprep.subr.bf16.mxu0 0
      %370 = vmatpush1.bf16.msra.mxu0 0
      %371 = vmatprep.subr.bf16.mxu0 0
      %372 = vmatpush1.bf16.msra.mxu0 0
      %373 = vmatprep.subr.bf16.mxu0 0
      %374 = vmatpush1.bf16.msra.mxu0 0
      %375 = vmatprep.subr.bf16.mxu0 0
      %376 = vmatpush1.bf16.msra.mxu0 0
      %377 = vmatprep.subr.bf16.mxu0 0
      %378 = vmatpush1.bf16.msra.mxu0 0
      %379 = vmatprep.subr.bf16.mxu0 0
      %380 = vmatpush1.bf16.msra.mxu0 0
      %381 = vmatprep.subr.bf16.mxu0 0
      %382 = vmatpush1.bf16.msra.mxu0 0
      %383 = vmatprep.subr.bf16.mxu0 0
      %384 = vmatpush1.bf16.msra.mxu0 0
      %385 = vmatprep.subr.bf16.mxu0 0
      %386 = vmatpush1.bf16.msra.mxu0 0
      %387 = vmatprep.mubr.bf16.mxu0 0
      %388 = vmatmul.mubr.bf16.gmra.mrb[0].mxu0 %v340
      %v389 = vpop.f32.mrb[0].mxu0
      %v390 = vadd.f32 0.0, %v389
      %v391 = vpop.f32.mrb[0].mxu0
      %v392 = vpop.f32.mrb[0].mxu0
      %v393 = vadd.f32 0.0, %v392
      %v394 = vpop.f32.mrb[0].mxu0
      %395 = vmatprep.mubr.bf16.mxu0 0
      %396 = vmatmul.mubr.bf16.gmra.mrb[0].mxu0 %v343
      %v397 = vpop.f32.mrb[0].mxu0
      %v398 = vadd.f32 0.0, %v397
      %v399 = vpop.f32.mrb[0].mxu0
      %v400 = vpop.f32.mrb[0].mxu0
      %v401 = vadd.f32 0.0, %v400
      %v402 = vpop.f32.mrb[0].mxu0
      %403 = vmatprep.mubr.bf16.mxu0 0
      %404 = vmatmul.mubr.bf16.gmra.mrb[0].mxu0 %v346
      %v405 = vpop.f32.mrb[0].mxu0
      %v406 = vadd.f32 0.0, %v405
      %v407 = vpop.f32.mrb[0].mxu0
      %v408 = vpop.f32.mrb[0].mxu0
      %v409 = vadd.f32 0.0, %v408
      %v410 = vpop.f32.mrb[0].mxu0
      %411 = vmatprep.mubr.bf16.mxu0 0
      %412 = vmatmul.mubr.bf16.gmra.mrb[0].mxu0 %v349
      %v413 = vpop.f32.mrb[0].mxu0
      %v414 = vadd.f32 0.0, %v413
      %v415 = vpop.f32.mrb[0].mxu0
      %v416 = vpop.f32.mrb[0].mxu0
      %v417 = vadd.f32 0.0, %v416
      %v418 = vpop.f32.mrb[0].mxu0
      %419 = vdwg.mxu0
      %v421 = vsel %vm338, %v327, 0
      %v424 = vsel %vm338, %v328, 0
      %v427 = vsel %vm338, %v329, 0
      %v430 = vsel %vm338, %v330, 0
      %v433 = vsel %vm351, %v331, 0
      %435 = vmatprep.subr.bf16.mxu0 0
      %436 = vmatpush1.bf16.msra.mxu0 %v433
      %437 = vmatprep.subr.bf16.mxu0 0
      %438 = vmatpush1.bf16.msra.mxu0 0
      %439 = vmatprep.subr.bf16.mxu0 0
      %440 = vmatpush1.bf16.msra.mxu0 0
      %441 = vmatprep.subr.bf16.mxu0 0
      %442 = vmatpush1.bf16.msra.mxu0 0
      %443 = vmatprep.subr.bf16.mxu0 0
      %444 = vmatpush1.bf16.msra.mxu0 0
      %445 = vmatprep.subr.bf16.mxu0 0
      %446 = vmatpush1.bf16.msra.mxu0 0
      %447 = vmatprep.subr.bf16.mxu0 0
      %448 = vmatpush1.bf16.msra.mxu0 0
      %449 = vmatprep.subr.bf16.mxu0 0
      %450 = vmatpush1.bf16.msra.mxu0 0
      %451 = vmatprep.subr.bf16.mxu0 0
      %452 = vmatpush1.bf16.msra.mxu0 0
      %453 = vmatprep.subr.bf16.mxu0 0
      %454 = vmatpush1.bf16.msra.mxu0 0
      %455 = vmatprep.subr.bf16.mxu0 0
      %456 = vmatpush1.bf16.msra.mxu0 0
      %457 = vmatprep.subr.bf16.mxu0 0
      %458 = vmatpush1.bf16.msra.mxu0 0
      %459 = vmatprep.subr.bf16.mxu0 0
      %460 = vmatpush1.bf16.msra.mxu0 0
      %461 = vmatprep.subr.bf16.mxu0 0
      %462 = vmatpush1.bf16.msra.mxu0 0
      %463 = vmatprep.subr.bf16.mxu0 0
      %464 = vmatpush1.bf16.msra.mxu0 0
      %465 = vmatprep.subr.bf16.mxu0 0
      %466 = vmatpush1.bf16.msra.mxu0 0
      %467 = vmatprep.mubr.bf16.mxu0 0
      %468 = vmatmul.mubr.bf16.gmra.mrb[0].mxu0 %v421
      %v469 = vpop.f32.mrb[0].mxu0
      %v470 = vadd.f32 %v390, %v469
      %v471 = vpop.f32.mrb[0].mxu0
      %v472 = vpop.f32.mrb[0].mxu0
      %v473 = vadd.f32 %v393, %v472
      %v474 = vpop.f32.mrb[0].mxu0
      %475 = vmatprep.mubr.bf16.mxu0 0
      %476 = vmatmul.mubr.bf16.gmra.mrb[0].mxu0 %v424
      %v477 = vpop.f32.mrb[0].mxu0
      %v478 = vadd.f32 %v398, %v477
      %v479 = vpop.f32.mrb[0].mxu0
      %v480 = vpop.f32.mrb[0].mxu0
      %v481 = vadd.f32 %v401, %v480
      %v482 = vpop.f32.mrb[0].mxu0
      %483 = vmatprep.mubr.bf16.mxu0 0
      %484 = vmatmul.mubr.bf16.gmra.mrb[0].mxu0 %v427
      %v485 = vpop.f32.mrb[0].mxu0
      %v486 = vadd.f32 %v406, %v485
      %v487 = vpop.f32.mrb[0].mxu0
      %v488 = vpop.f32.mrb[0].mxu0
      %v489 = vadd.f32 %v409, %v488
      %v490 = vpop.f32.mrb[0].mxu0
      %491 = vmatprep.mubr.bf16.mxu0 0
      %492 = vmatmul.mubr.bf16.gmra.mrb[0].mxu0 %v430
      %v493 = vpop.f32.mrb[0].mxu0
      %v494 = vadd.f32 %v414, %v493
      %v495 = vpop.f32.mrb[0].mxu0
      %v496 = vpop.f32.mrb[0].mxu0
      %v497 = vadd.f32 %v417, %v496
      %v498 = vpop.f32.mrb[0].mxu0
      %499 = vdwg.mxu0
      %vm508 = vcmask 1046528
      %v509 = vrot.slane %v290, 1
      %v510 = vrot.slane %v291, 1
      %v511 = vsel %vm508, %v509, %v510
      %v512 = vrot.slane %v292, 1
      %v513 = vsel %vm508, %v510, %v512
      %v514 = vrot.slane %v293, 1
      %v515 = vsel %vm508, %v512, %v514
      %v516 = vrot.slane %v294, 1
      %v517 = vsel %vm508, %v514, %v516
      %v518 = vrot.slane %v295, 1
      %v519 = vsel %vm508, %v516, %v518
      %v520 = vrot.slane %v296, 1
      %v521 = vsel %vm508, %v518, %v520
      %v522 = vrot.slane %v297, 1
      %v523 = vsel %vm508, %v520, %v522
      %v532 = vsel %vm508, 0.0, %v509
      %v533 = vpack.c.bf16 %v511, %v532
      %v534 = vpack.c.bf16 %v515, %v513
      %v535 = vpack.c.bf16 %v519, %v517
      %v536 = vpack.c.bf16 %v523, %v521
      %s537 = scalar_lea.vmem %s1, 8
      %v538 = vld [vmem:[%s537] sm:$0xf]
      %v540 = vsel %vm338, %v533, 0
      %v543 = vsel %vm338, %v534, 0
      %v546 = vsel %vm338, %v535, 0
      %v549 = vsel %vm338, %v536, 0
      %v552 = vsel %vm351, %v538, 0
      %554 = vmatprep.subr.bf16.mxu0 0
      %555 = vmatpush1.bf16.msra.mxu0 %v552
      %556 = vmatprep.subr.bf16.mxu0 0
      %557 = vmatpush1.bf16.msra.mxu0 0
      %558 = vmatprep.subr.bf16.mxu0 0
      %559 = vmatpush1.bf16.msra.mxu0 0
      %560 = vmatprep.subr.bf16.mxu0 0
      %561 = vmatpush1.bf16.msra.mxu0 0
      %562 = vmatprep.subr.bf16.mxu0 0
      %563 = vmatpush1.bf16.msra.mxu0 0
      %564 = vmatprep.subr.bf16.mxu0 0
      %565 = vmatpush1.bf16.msra.mxu0 0
      %566 = vmatprep.subr.bf16.mxu0 0
      %567 = vmatpush1.bf16.msra.mxu0 0
      %568 = vmatprep.subr.bf16.mxu0 0
      %569 = vmatpush1.bf16.msra.mxu0 0
      %570 = vmatprep.subr.bf16.mxu0 0
      %571 = vmatpush1.bf16.msra.mxu0 0
      %572 = vmatprep.subr.bf16.mxu0 0
      %573 = vmatpush1.bf16.msra.mxu0 0
      %574 = vmatprep.subr.bf16.mxu0 0
      %575 = vmatpush1.bf16.msra.mxu0 0
      %576 = vmatprep.subr.bf16.mxu0 0
      %577 = vmatpush1.bf16.msra.mxu0 0
      %578 = vmatprep.subr.bf16.mxu0 0
      %579 = vmatpush1.bf16.msra.mxu0 0
      %580 = vmatprep.subr.bf16.mxu0 0
      %581 = vmatpush1.bf16.msra.mxu0 0
      %582 = vmatprep.subr.bf16.mxu0 0
      %583 = vmatpush1.bf16.msra.mxu0 0
      %584 = vmatprep.subr.bf16.mxu0 0
      %585 = vmatpush1.bf16.msra.mxu0 0
      %586 = vmatprep.mubr.bf16.mxu0 0
      %587 = vmatmul.mubr.bf16.gmra.mrb[0].mxu0 %v540
      %v588 = vpop.f32.mrb[0].mxu0
      %v589 = vadd.f32 0.0, %v588
      %v590 = vpop.f32.mrb[0].mxu0
      %v591 = vpop.f32.mrb[0].mxu0
      %v592 = vadd.f32 0.0, %v591
      %v593 = vpop.f32.mrb[0].mxu0
      %594 = vmatprep.mubr.bf16.mxu0 0
      %595 = vmatmul.mubr.bf16.gmra.mrb[0].mxu0 %v543
      %v596 = vpop.f32.mrb[0].mxu0
      %v597 = vadd.f32 0.0, %v596
      %v598 = vpop.f32.mrb[0].mxu0
      %v599 = vpop.f32.mrb[0].mxu0
      %v600 = vadd.f32 0.0, %v599
      %v601 = vpop.f32.mrb[0].mxu0
      %602 = vmatprep.mubr.bf16.mxu0 0
      %603 = vmatmul.mubr.bf16.gmra.mrb[0].mxu0 %v546
      %v604 = vpop.f32.mrb[0].mxu0
      %v605 = vadd.f32 0.0, %v604
      %v606 = vpop.f32.mrb[0].mxu0
      %v607 = vpop.f32.mrb[0].mxu0
      %v608 = vadd.f32 0.0, %v607
      %v609 = vpop.f32.mrb[0].mxu0
      %610 = vmatprep.mubr.bf16.mxu0 0
      %611 = vmatmul.mubr.bf16.gmra.mrb[0].mxu0 %v549
      %v612 = vpop.f32.mrb[0].mxu0
      %v613 = vadd.f32 0.0, %v612
      %v614 = vpop.f32.mrb[0].mxu0
      %v615 = vpop.f32.mrb[0].mxu0
      %v616 = vadd.f32 0.0, %v615
      %v617 = vpop.f32.mrb[0].mxu0
      %618 = vdwg.mxu0
      %v619 = vadd.f32 %v470, %v589
      %v620 = vadd.f32 %v473, %v592
      %v621 = vadd.f32 %v478, %v597
      %v622 = vadd.f32 %v481, %v600
      %v623 = vadd.f32 %v486, %v605
      %v624 = vadd.f32 %v489, %v608
      %v625 = vadd.f32 %v494, %v613
      %v626 = vadd.f32 %v497, %v616
      %v628 = vrot.slane %v265, 7
      %v629 = vsel %vm305, %v317, %v628
      %v631 = vpack.c.bf16 %v308, %v326
      %v632 = vpack.c.bf16 %v312, %v310
      %v633 = vpack.c.bf16 %v316, %v314
      %v634 = vpack.c.bf16 %v629, %v318
      %s635 = scalar_lea.vmem %s1, 12
      %v636 = vld [vmem:[%s635] sm:$0xf]
      %v638 = vsel %vm338, %v631, 0
      %v641 = vsel %vm338, %v632, 0
      %v644 = vsel %vm338, %v633, 0
      %v647 = vsel %vm338, %v634, 0
      %v650 = vsel %vm351, %v636, 0
      %652 = vmatprep.subr.bf16.mxu0 0
      %653 = vmatpush1.bf16.msra.mxu0 %v650
      %654 = vmatprep.subr.bf16.mxu0 0
      %655 = vmatpush1.bf16.msra.mxu0 0
      %656 = vmatprep.subr.bf16.mxu0 0
      %657 = vmatpush1.bf16.msra.mxu0 0
      %658 = vmatprep.subr.bf16.mxu0 0
      %659 = vmatpush1.bf16.msra.mxu0 0
      %660 = vmatprep.subr.bf16.mxu0 0
      %661 = vmatpush1.bf16.msra.mxu0 0
      %662 = vmatprep.subr.bf16.mxu0 0
      %663 = vmatpush1.bf16.msra.mxu0 0
      %664 = vmatprep.subr.bf16.mxu0 0
      %665 = vmatpush1.bf16.msra.mxu0 0
      %666 = vmatprep.subr.bf16.mxu0 0
      %667 = vmatpush1.bf16.msra.mxu0 0
      %668 = vmatprep.subr.bf16.mxu0 0
      %669 = vmatpush1.bf16.msra.mxu0 0
      %670 = vmatprep.subr.bf16.mxu0 0
      %671 = vmatpush1.bf16.msra.mxu0 0
      %672 = vmatprep.subr.bf16.mxu0 0
      %673 = vmatpush1.bf16.msra.mxu0 0
      %674 = vmatprep.subr.bf16.mxu0 0
      %675 = vmatpush1.bf16.msra.mxu0 0
      %676 = vmatprep.subr.bf16.mxu0 0
      %677 = vmatpush1.bf16.msra.mxu0 0
      %678 = vmatprep.subr.bf16.mxu0 0
      %679 = vmatpush1.bf16.msra.mxu0 0
      %680 = vmatprep.subr.bf16.mxu0 0
      %681 = vmatpush1.bf16.msra.mxu0 0
      %682 = vmatprep.subr.bf16.mxu0 0
      %683 = vmatpush1.bf16.msra.mxu0 0
      %684 = vmatprep.mubr.bf16.mxu0 0
      %685 = vmatmul.mubr.bf16.gmra.mrb[0].mxu0 %v638
      %v686 = vpop.f32.mrb[0].mxu0
      %v687 = vadd.f32 0.0, %v686
      %v688 = vpop.f32.mrb[0].mxu0
      %v689 = vpop.f32.mrb[0].mxu0
      %v690 = vadd.f32 0.0, %v689
      %v691 = vpop.f32.mrb[0].mxu0
      %692 = vmatprep.mubr.bf16.mxu0 0
      %693 = vmatmul.mubr.bf16.gmra.mrb[0].mxu0 %v641
      %v694 = vpop.f32.mrb[0].mxu0
      %v695 = vadd.f32 0.0, %v694
      %v696 = vpop.f32.mrb[0].mxu0
      %v697 = vpop.f32.mrb[0].mxu0
      %v698 = vadd.f32 0.0, %v697
      %v699 = vpop.f32.mrb[0].mxu0
      %700 = vmatprep.mubr.bf16.mxu0 0
      %701 = vmatmul.mubr.bf16.gmra.mrb[0].mxu0 %v644
      %v702 = vpop.f32.mrb[0].mxu0
      %v703 = vadd.f32 0.0, %v702
      %v704 = vpop.f32.mrb[0].mxu0
      %v705 = vpop.f32.mrb[0].mxu0
      %v706 = vadd.f32 0.0, %v705
      %v707 = vpop.f32.mrb[0].mxu0
      %708 = vmatprep.mubr.bf16.mxu0 0
      %709 = vmatmul.mubr.bf16.gmra.mrb[0].mxu0 %v647
      %v710 = vpop.f32.mrb[0].mxu0
      %v711 = vadd.f32 0.0, %v710
      %v712 = vpop.f32.mrb[0].mxu0
      %v713 = vpop.f32.mrb[0].mxu0
      %v714 = vadd.f32 0.0, %v713
      %v715 = vpop.f32.mrb[0].mxu0
      %716 = vdwg.mxu0
      %v717 = vadd.f32 %v619, %v687
      %v718 = vadd.f32 %v620, %v690
      %v719 = vadd.f32 %v621, %v695
      %v720 = vadd.f32 %v622, %v698
      %v721 = vadd.f32 %v623, %v703
      %v722 = vadd.f32 %v624, %v706
      %v723 = vadd.f32 %v625, %v711
      %v724 = vadd.f32 %v626, %v714
      %v725 = vpack.c.bf16 %v209, %v208
      %v726 = vpack.c.bf16 %v211, %v210
      %v727 = vpack.c.bf16 %v213, %v212
      %v728 = vpack.c.bf16 %v215, %v214
      %s729 = scalar_lea.vmem %s1, 16
      %v730 = vld [vmem:[%s729] sm:$0xf]
      %v732 = vsel %vm338, %v725, 0
      %v735 = vsel %vm338, %v726, 0
      %v738 = vsel %vm338, %v727, 0
      %v741 = vsel %vm338, %v728, 0
      %v744 = vsel %vm351, %v730, 0
      %746 = vmatprep.subr.bf16.mxu0 0
      %747 = vmatpush1.bf16.msra.mxu0 %v744
      %748 = vmatprep.subr.bf16.mxu0 0
      %749 = vmatpush1.bf16.msra.mxu0 0
      %750 = vmatprep.subr.bf16.mxu0 0
      %751 = vmatpush1.bf16.msra.mxu0 0
      %752 = vmatprep.subr.bf16.mxu0 0
      %753 = vmatpush1.bf16.msra.mxu0 0
      %754 = vmatprep.subr.bf16.mxu0 0
      %755 = vmatpush1.bf16.msra.mxu0 0
      %756 = vmatprep.subr.bf16.mxu0 0
      %757 = vmatpush1.bf16.msra.mxu0 0
      %758 = vmatprep.subr.bf16.mxu0 0
      %759 = vmatpush1.bf16.msra.mxu0 0
      %760 = vmatprep.subr.bf16.mxu0 0
      %761 = vmatpush1.bf16.msra.mxu0 0
      %762 = vmatprep.subr.bf16.mxu0 0
      %763 = vmatpush1.bf16.msra.mxu0 0
      %764 = vmatprep.subr.bf16.mxu0 0
      %765 = vmatpush1.bf16.msra.mxu0 0
      %766 = vmatprep.subr.bf16.mxu0 0
      %767 = vmatpush1.bf16.msra.mxu0 0
      %768 = vmatprep.subr.bf16.mxu0 0
      %769 = vmatpush1.bf16.msra.mxu0 0
      %770 = vmatprep.subr.bf16.mxu0 0
      %771 = vmatpush1.bf16.msra.mxu0 0
      %772 = vmatprep.subr.bf16.mxu0 0
      %773 = vmatpush1.bf16.msra.mxu0 0
      %774 = vmatprep.subr.bf16.mxu0 0
      %775 = vmatpush1.bf16.msra.mxu0 0
      %776 = vmatprep.subr.bf16.mxu0 0
      %777 = vmatpush1.bf16.msra.mxu0 0
      %778 = vmatprep.mubr.bf16.mxu0 0
      %779 = vmatmul.mubr.bf16.gmra.mrb[0].mxu0 %v732
      %v780 = vpop.f32.mrb[0].mxu0
      %v781 = vadd.f32 0.0, %v780
      %v782 = vpop.f32.mrb[0].mxu0
      %v783 = vpop.f32.mrb[0].mxu0
      %v784 = vadd.f32 0.0, %v783
      %v785 = vpop.f32.mrb[0].mxu0
      %786 = vmatprep.mubr.bf16.mxu0 0
      %787 = vmatmul.mubr.bf16.gmra.mrb[0].mxu0 %v735
      %v788 = vpop.f32.mrb[0].mxu0
      %v789 = vadd.f32 0.0, %v788
      %v790 = vpop.f32.mrb[0].mxu0
      %v791 = vpop.f32.mrb[0].mxu0
      %v792 = vadd.f32 0.0, %v791
      %v793 = vpop.f32.mrb[0].mxu0
      %794 = vmatprep.mubr.bf16.mxu0 0
      %795 = vmatmul.mubr.bf16.gmra.mrb[0].mxu0 %v738
      %v796 = vpop.f32.mrb[0].mxu0
      %v797 = vadd.f32 0.0, %v796
      %v798 = vpop.f32.mrb[0].mxu0
      %v799 = vpop.f32.mrb[0].mxu0
      %v800 = vadd.f32 0.0, %v799
      %v801 = vpop.f32.mrb[0].mxu0
      %802 = vmatprep.mubr.bf16.mxu0 0
      %803 = vmatmul.mubr.bf16.gmra.mrb[0].mxu0 %v741
      %v804 = vpop.f32.mrb[0].mxu0
      %v805 = vadd.f32 0.0, %v804
      %v806 = vpop.f32.mrb[0].mxu0
      %v807 = vpop.f32.mrb[0].mxu0
      %v808 = vadd.f32 0.0, %v807
      %v809 = vpop.f32.mrb[0].mxu0
      %810 = vdwg.mxu0
      %v811 = vadd.f32 %v717, %v781
      %v812 = vadd.f32 %v718, %v784
      %v813 = vadd.f32 %v719, %v789
      %v814 = vadd.f32 %v720, %v792
      %v815 = vadd.f32 %v721, %v797
      %v816 = vadd.f32 %v722, %v800
      %v817 = vadd.f32 %v723, %v805
      %v818 = vadd.f32 %v724, %v808
      %v820 = vsel %vm508, %v522, 0.0
      %v821 = vpack.c.bf16 %v513, %v511
      %v822 = vpack.c.bf16 %v517, %v515
      %v823 = vpack.c.bf16 %v521, %v519
      %v824 = vpack.c.bf16 %v820, %v523
      %s825 = scalar_lea.vmem %s1, 20
      %v826 = vld [vmem:[%s825] sm:$0xf]
      %v828 = vsel %vm338, %v821, 0
      %v831 = vsel %vm338, %v822, 0
      %v834 = vsel %vm338, %v823, 0
      %v837 = vsel %vm338, %v824, 0
      %v840 = vsel %vm351, %v826, 0
      %842 = vmatprep.subr.bf16.mxu0 0
      %843 = vmatpush1.bf16.msra.mxu0 %v840
      %844 = vmatprep.subr.bf16.mxu0 0
      %845 = vmatpush1.bf16.msra.mxu0 0
      %846 = vmatprep.subr.bf16.mxu0 0
      %847 = vmatpush1.bf16.msra.mxu0 0
      %848 = vmatprep.subr.bf16.mxu0 0
      %849 = vmatpush1.bf16.msra.mxu0 0
      %850 = vmatprep.subr.bf16.mxu0 0
      %851 = vmatpush1.bf16.msra.mxu0 0
      %852 = vmatprep.subr.bf16.mxu0 0
      %853 = vmatpush1.bf16.msra.mxu0 0
      %854 = vmatprep.subr.bf16.mxu0 0
      %855 = vmatpush1.bf16.msra.mxu0 0
      %856 = vmatprep.subr.bf16.mxu0 0
      %857 = vmatpush1.bf16.msra.mxu0 0
      %858 = vmatprep.subr.bf16.mxu0 0
      %859 = vmatpush1.bf16.msra.mxu0 0
      %860 = vmatprep.subr.bf16.mxu0 0
      %861 = vmatpush1.bf16.msra.mxu0 0
      %862 = vmatprep.subr.bf16.mxu0 0
      %863 = vmatpush1.bf16.msra.mxu0 0
      %864 = vmatprep.subr.bf16.mxu0 0
      %865 = vmatpush1.bf16.msra.mxu0 0
      %866 = vmatprep.subr.bf16.mxu0 0
      %867 = vmatpush1.bf16.msra.mxu0 0
      %868 = vmatprep.subr.bf16.mxu0 0
      %869 = vmatpush1.bf16.msra.mxu0 0
      %870 = vmatprep.subr.bf16.mxu0 0
      %871 = vmatpush1.bf16.msra.mxu0 0
      %872 = vmatprep.subr.bf16.mxu0 0
      %873 = vmatpush1.bf16.msra.mxu0 0
      %874 = vmatprep.mubr.bf16.mxu0 0
      %875 = vmatmul.mubr.bf16.gmra.mrb[0].mxu0 %v828
      %v876 = vpop.f32.mrb[0].mxu0
      %v877 = vadd.f32 0.0, %v876
      %v878 = vpop.f32.mrb[0].mxu0
      %v879 = vpop.f32.mrb[0].mxu0
      %v880 = vadd.f32 0.0, %v879
      %v881 = vpop.f32.mrb[0].mxu0
      %882 = vmatprep.mubr.bf16.mxu0 0
      %883 = vmatmul.mubr.bf16.gmra.mrb[0].mxu0 %v831
      %v884 = vpop.f32.mrb[0].mxu0
      %v885 = vadd.f32 0.0, %v884
      %v886 = vpop.f32.mrb[0].mxu0
      %v887 = vpop.f32.mrb[0].mxu0
      %v888 = vadd.f32 0.0, %v887
      %v889 = vpop.f32.mrb[0].mxu0
      %890 = vmatprep.mubr.bf16.mxu0 0
      %891 = vmatmul.mubr.bf16.gmra.mrb[0].mxu0 %v834
      %v892 = vpop.f32.mrb[0].mxu0
      %v893 = vadd.f32 0.0, %v892
      %v894 = vpop.f32.mrb[0].mxu0
      %v895 = vpop.f32.mrb[0].mxu0
      %v896 = vadd.f32 0.0, %v895
      %v897 = vpop.f32.mrb[0].mxu0
      %898 = vmatprep.mubr.bf16.mxu0 0
      %899 = vmatmul.mubr.bf16.gmra.mrb[0].mxu0 %v837
      %v900 = vpop.f32.mrb[0].mxu0
      %v901 = vadd.f32 0.0, %v900
      %v902 = vpop.f32.mrb[0].mxu0
      %v903 = vpop.f32.mrb[0].mxu0
      %v904 = vadd.f32 0.0, %v903
      %v905 = vpop.f32.mrb[0].mxu0
      %906 = vdwg.mxu0
      %v907 = vadd.f32 %v811, %v877
      %v908 = vadd.f32 %v812, %v880
      %v909 = vadd.f32 %v813, %v885
      %v910 = vadd.f32 %v814, %v888
      %v911 = vadd.f32 %v815, %v893
      %v912 = vadd.f32 %v816, %v896
      %v913 = vadd.f32 %v817, %v901
      %v914 = vadd.f32 %v818, %v904
      %v916 = vsel %vm305, %v628, 0.0
      %v917 = vpack.c.bf16 %v916, %v629
      %s918 = scalar_lea.vmem %s1, 24
      %v919 = vld [vmem:[%s918] sm:$0xf]
      %v921 = vsel %vm338, %v917, 0
      %v924 = vsel %vm351, %v919, 0
      %926 = vmatprep.subr.bf16.mxu0 0
      %927 = vmatpush1.bf16.msra.mxu0 %v924
      %928 = vmatprep.subr.bf16.mxu0 0
      %929 = vmatpush1.bf16.msra.mxu0 0
      %930 = vmatprep.subr.bf16.mxu0 0
      %931 = vmatpush1.bf16.msra.mxu0 0
      %932 = vmatprep.subr.bf16.mxu0 0
      %933 = vmatpush1.bf16.msra.mxu0 0
      %934 = vmatprep.subr.bf16.mxu0 0
      %935 = vmatpush1.bf16.msra.mxu0 0
      %936 = vmatprep.subr.bf16.mxu0 0
      %937 = vmatpush1.bf16.msra.mxu0 0
      %938 = vmatprep.subr.bf16.mxu0 0
      %939 = vmatpush1.bf16.msra.mxu0 0
      %940 = vmatprep.subr.bf16.mxu0 0
      %941 = vmatpush1.bf16.msra.mxu0 0
      %942 = vmatprep.subr.bf16.mxu0 0
      %943 = vmatpush1.bf16.msra.mxu0 0
      %944 = vmatprep.subr.bf16.mxu0 0
      %945 = vmatpush1.bf16.msra.mxu0 0
      %946 = vmatprep.subr.bf16.mxu0 0
      %947 = vmatpush1.bf16.msra.mxu0 0
      %948 = vmatprep.subr.bf16.mxu0 0
      %949 = vmatpush1.bf16.msra.mxu0 0
      %950 = vmatprep.subr.bf16.mxu0 0
      %951 = vmatpush1.bf16.msra.mxu0 0
      %952 = vmatprep.subr.bf16.mxu0 0
      %953 = vmatpush1.bf16.msra.mxu0 0
      %954 = vmatprep.subr.bf16.mxu0 0
      %955 = vmatpush1.bf16.msra.mxu0 0
      %956 = vmatprep.subr.bf16.mxu0 0
      %957 = vmatpush1.bf16.msra.mxu0 0
      %958 = vmatprep.mubr.bf16.mxu0 0
      %959 = vmatmul.mubr.bf16.gmra.mrb[0].mxu0 %v424
      %v960 = vpop.f32.mrb[0].mxu0
      %v961 = vadd.f32 0.0, %v960
      %v962 = vpop.f32.mrb[0].mxu0
      %v963 = vpop.f32.mrb[0].mxu0
      %v964 = vadd.f32 0.0, %v963
      %v965 = vpop.f32.mrb[0].mxu0
      %966 = vmatprep.mubr.bf16.mxu0 0
      %967 = vmatmul.mubr.bf16.gmra.mrb[0].mxu0 %v427
      %v968 = vpop.f32.mrb[0].mxu0
      %v969 = vadd.f32 0.0, %v968
      %v970 = vpop.f32.mrb[0].mxu0
      %v971 = vpop.f32.mrb[0].mxu0
      %v972 = vadd.f32 0.0, %v971
      %v973 = vpop.f32.mrb[0].mxu0
      %974 = vmatprep.mubr.bf16.mxu0 0
      %975 = vmatmul.mubr.bf16.gmra.mrb[0].mxu0 %v430
      %v976 = vpop.f32.mrb[0].mxu0
      %v977 = vadd.f32 0.0, %v976
      %v978 = vpop.f32.mrb[0].mxu0
      %v979 = vpop.f32.mrb[0].mxu0
      %v980 = vadd.f32 0.0, %v979
      %v981 = vpop.f32.mrb[0].mxu0
      %982 = vmatprep.mubr.bf16.mxu0 0
      %983 = vmatmul.mubr.bf16.gmra.mrb[0].mxu0 %v921
      %v984 = vpop.f32.mrb[0].mxu0
      %v985 = vadd.f32 0.0, %v984
      %v986 = vpop.f32.mrb[0].mxu0
      %v987 = vpop.f32.mrb[0].mxu0
      %v988 = vadd.f32 0.0, %v987
      %v989 = vpop.f32.mrb[0].mxu0
      %990 = vdwg.mxu0
      %v991 = vadd.f32 %v907, %v961
      %v992 = vadd.f32 %v908, %v964
      %v993 = vadd.f32 %v909, %v969
      %v994 = vadd.f32 %v910, %v972
      %v995 = vadd.f32 %v911, %v977
      %v996 = vadd.f32 %v912, %v980
      %v997 = vadd.f32 %v913, %v985
      %v998 = vadd.f32 %v914, %v988
      %v999 = vpack.c.bf16 0.0, %v215
      %s1000 = scalar_lea.vmem %s1, 28
      %v1001 = vld [vmem:[%s1000] sm:$0xf]
      %v1003 = vsel %vm338, %v999, 0
      %v1006 = vsel %vm351, %v1001, 0
      %1008 = vmatprep.subr.bf16.mxu0 0
      %1009 = vmatpush1.bf16.msra.mxu0 %v1006
      %1010 = vmatprep.subr.bf16.mxu0 0
      %1011 = vmatpush1.bf16.msra.mxu0 0
      %1012 = vmatprep.subr.bf16.mxu0 0
      %1013 = vmatpush1.bf16.msra.mxu0 0
      %1014 = vmatprep.subr.bf16.mxu0 0
      %1015 = vmatpush1.bf16.msra.mxu0 0
      %1016 = vmatprep.subr.bf16.mxu0 0
      %1017 = vmatpush1.bf16.msra.mxu0 0
      %1018 = vmatprep.subr.bf16.mxu0 0
      %1019 = vmatpush1.bf16.msra.mxu0 0
      %1020 = vmatprep.subr.bf16.mxu0 0
      %1021 = vmatpush1.bf16.msra.mxu0 0
      %1022 = vmatprep.subr.bf16.mxu0 0
      %1023 = vmatpush1.bf16.msra.mxu0 0
      %1024 = vmatprep.subr.bf16.mxu0 0
      %1025 = vmatpush1.bf16.msra.mxu0 0
      %1026 = vmatprep.subr.bf16.mxu0 0
      %1027 = vmatpush1.bf16.msra.mxu0 0
      %1028 = vmatprep.subr.bf16.mxu0 0
      %1029 = vmatpush1.bf16.msra.mxu0 0
      %1030 = vmatprep.subr.bf16.mxu0 0
      %1031 = vmatpush1.bf16.msra.mxu0 0
      %1032 = vmatprep.subr.bf16.mxu0 0
      %1033 = vmatpush1.bf16.msra.mxu0 0
      %1034 = vmatprep.subr.bf16.mxu0 0
      %1035 = vmatpush1.bf16.msra.mxu0 0
      %1036 = vmatprep.subr.bf16.mxu0 0
      %1037 = vmatpush1.bf16.msra.mxu0 0
      %1038 = vmatprep.subr.bf16.mxu0 0
      %1039 = vmatpush1.bf16.msra.mxu0 0
      %1040 = vmatprep.mubr.bf16.mxu0 0
      %1041 = vmatmul.mubr.bf16.gmra.mrb[0].mxu0 %v343
      %v1042 = vpop.f32.mrb[0].mxu0
      %v1043 = vadd.f32 0.0, %v1042
      %v1044 = vpop.f32.mrb[0].mxu0
      %v1045 = vpop.f32.mrb[0].mxu0
      %v1046 = vadd.f32 0.0, %v1045
      %v1047 = vpop.f32.mrb[0].mxu0
      %1048 = vmatprep.mubr.bf16.mxu0 0
      %1049 = vmatmul.mubr.bf16.gmra.mrb[0].mxu0 %v346
      %v1050 = vpop.f32.mrb[0].mxu0
      %v1051 = vadd.f32 0.0, %v1050
      %v1052 = vpop.f32.mrb[0].mxu0
      %v1053 = vpop.f32.mrb[0].mxu0
      %v1054 = vadd.f32 0.0, %v1053
      %v1055 = vpop.f32.mrb[0].mxu0
      %1056 = vmatprep.mubr.bf16.mxu0 0
      %1057 = vmatmul.mubr.bf16.gmra.mrb[0].mxu0 %v349
      %v1058 = vpop.f32.mrb[0].mxu0
      %v1059 = vadd.f32 0.0, %v1058
      %v1060 = vpop.f32.mrb[0].mxu0
      %v1061 = vpop.f32.mrb[0].mxu0
      %v1062 = vadd.f32 0.0, %v1061
      %v1063 = vpop.f32.mrb[0].mxu0
      %1064 = vmatprep.mubr.bf16.mxu0 0
      %1065 = vmatmul.mubr.bf16.gmra.mrb[0].mxu0 %v1003
      %v1066 = vpop.f32.mrb[0].mxu0
      %v1067 = vadd.f32 0.0, %v1066
      %v1068 = vpop.f32.mrb[0].mxu0
      %v1069 = vpop.f32.mrb[0].mxu0
      %v1070 = vadd.f32 0.0, %v1069
      %v1071 = vpop.f32.mrb[0].mxu0
      %1072 = vdwg.mxu0
      %v1073 = vadd.f32 %v991, %v1043
      %v1074 = vadd.f32 %v992, %v1046
      %v1075 = vadd.f32 %v993, %v1051
      %v1076 = vadd.f32 %v994, %v1054
      %v1077 = vadd.f32 %v995, %v1059
      %v1078 = vadd.f32 %v996, %v1062
      %v1079 = vadd.f32 %v997, %v1067
      %v1080 = vadd.f32 %v998, %v1070
      %v1081 = vpack.c.bf16 0.0, %v820
      %s1082 = scalar_lea.vmem %s1, 32
      %v1083 = vld [vmem:[%s1082] sm:$0xf]
      %v1085 = vsel %vm338, %v1081, 0
      %v1088 = vsel %vm351, %v1083, 0
      %1090 = vmatprep.subr.bf16.mxu0 0
      %1091 = vmatpush1.bf16.msra.mxu0 %v1088
      %1092 = vmatprep.subr.bf16.mxu0 0
      %1093 = vmatpush1.bf16.msra.mxu0 0
      %1094 = vmatprep.subr.bf16.mxu0 0
      %1095 = vmatpush1.bf16.msra.mxu0 0
      %1096 = vmatprep.subr.bf16.mxu0 0
      %1097 = vmatpush1.bf16.msra.mxu0 0
      %1098 = vmatprep.subr.bf16.mxu0 0
      %1099 = vmatpush1.bf16.msra.mxu0 0
      %1100 = vmatprep.subr.bf16.mxu0 0
      %1101 = vmatpush1.bf16.msra.mxu0 0
      %1102 = vmatprep.subr.bf16.mxu0 0
      %1103 = vmatpush1.bf16.msra.mxu0 0
      %1104 = vmatprep.subr.bf16.mxu0 0
      %1105 = vmatpush1.bf16.msra.mxu0 0
      %1106 = vmatprep.subr.bf16.mxu0 0
      %1107 = vmatpush1.bf16.msra.mxu0 0
      %1108 = vmatprep.subr.bf16.mxu0 0
      %1109 = vmatpush1.bf16.msra.mxu0 0
      %1110 = vmatprep.subr.bf16.mxu0 0
      %1111 = vmatpush1.bf16.msra.mxu0 0
      %1112 = vmatprep.subr.bf16.mxu0 0
      %1113 = vmatpush1.bf16.msra.mxu0 0
      %1114 = vmatprep.subr.bf16.mxu0 0
      %1115 = vmatpush1.bf16.msra.mxu0 0
      %1116 = vmatprep.subr.bf16.mxu0 0
      %1117 = vmatpush1.bf16.msra.mxu0 0
      %1118 = vmatprep.subr.bf16.mxu0 0
      %1119 = vmatpush1.bf16.msra.mxu0 0
      %1120 = vmatprep.subr.bf16.mxu0 0
      %1121 = vmatpush1.bf16.msra.mxu0 0
      %1122 = vmatprep.mubr.bf16.mxu0 0
      %1123 = vmatmul.mubr.bf16.gmra.mrb[0].mxu0 %v543
      %v1124 = vpop.f32.mrb[0].mxu0
      %v1125 = vadd.f32 0.0, %v1124
      %v1126 = vpop.f32.mrb[0].mxu0
      %v1127 = vpop.f32.mrb[0].mxu0
      %v1128 = vadd.f32 0.0, %v1127
      %v1129 = vpop.f32.mrb[0].mxu0
      %1130 = vmatprep.mubr.bf16.mxu0 0
      %1131 = vmatmul.mubr.bf16.gmra.mrb[0].mxu0 %v546
      %v1132 = vpop.f32.mrb[0].mxu0
      %v1133 = vadd.f32 0.0, %v1132
      %v1134 = vpop.f32.mrb[0].mxu0
      %v1135 = vpop.f32.mrb[0].mxu0
      %v1136 = vadd.f32 0.0, %v1135
      %v1137 = vpop.f32.mrb[0].mxu0
      %1138 = vmatprep.mubr.bf16.mxu0 0
      %1139 = vmatmul.mubr.bf16.gmra.mrb[0].mxu0 %v549
      %v1140 = vpop.f32.mrb[0].mxu0
      %v1141 = vadd.f32 0.0, %v1140
      %v1142 = vpop.f32.mrb[0].mxu0
      %v1143 = vpop.f32.mrb[0].mxu0
      %v1144 = vadd.f32 0.0, %v1143
      %v1145 = vpop.f32.mrb[0].mxu0
      %1146 = vmatprep.mubr.bf16.mxu0 0
      %1147 = vmatmul.mubr.bf16.gmra.mrb[0].mxu0 %v1085
      %v1148 = vpop.f32.mrb[0].mxu0
      %v1149 = vadd.f32 0.0, %v1148
      %v1150 = vpop.f32.mrb[0].mxu0
      %v1151 = vpop.f32.mrb[0].mxu0
      %v1152 = vadd.f32 0.0, %v1151
      %v1153 = vpop.f32.mrb[0].mxu0
      %1154 = vdwg.mxu0
      %v1155 = vadd.f32 %v1073, %v1125
      %v1156 = vadd.f32 %v1074, %v1128
      %v1157 = vadd.f32 %v1075, %v1133
      %v1158 = vadd.f32 %v1076, %v1136
      %v1159 = vadd.f32 %v1077, %v1141
      %v1160 = vadd.f32 %v1078, %v1144
      %v1161 = vadd.f32 %v1079, %v1149
      %v1162 = vadd.f32 %v1080, %v1152
      %v1164 = vlaneseq
      %v1165 = vshrl.u32 %v1164, 7
      %v1166 = vsub.s32 0, %v1165
      %v1167 = vrot.slane %v216, %v1166
      %v1169 = vadd.f32 %v1155, %v1167
      %v1170 = vadd.f32 %v1156, %v1167
      %v1171 = vadd.f32 %v1157, %v1167
      %v1172 = vadd.f32 %v1158, %v1167
      %v1173 = vadd.f32 %v1159, %v1167
      %v1174 = vadd.f32 %v1160, %v1167
      %v1175 = vadd.f32 %v1161, %v1167
      %v1176 = vadd.f32 %v1162, %v1167
      %1185 = vrot.lane.b32.xlu0 %v1169, 8
      %v1186 = vpop.permute.xlu0 %1185
      %1187 = vrot.lane.b32.xlu0 %v1170, 8
      %v1188 = vpop.permute.xlu0 %1187
      %1189 = vrot.lane.b32.xlu0 %v1171, 8
      %v1190 = vpop.permute.xlu0 %1189
      %1191 = vrot.lane.b32.xlu0 %v1172, 8
      %v1192 = vpop.permute.xlu0 %1191
      %1193 = vrot.lane.b32.xlu0 %v1173, 8
      %v1194 = vpop.permute.xlu0 %1193
      %1195 = vrot.lane.b32.xlu0 %v1174, 8
      %v1196 = vpop.permute.xlu0 %1195
      %1197 = vrot.lane.b32.xlu0 %v1175, 8
      %v1198 = vpop.permute.xlu0 %1197
      %1199 = vrot.lane.b32.xlu0 %v1176, 8
      %v1200 = vpop.permute.xlu0 %1199
      %v1209 = vsub.f32 %v208, %v1186
      %v1210 = vsub.f32 %v209, %v1188
      %v1211 = vsub.f32 %v210, %v1190
      %v1212 = vsub.f32 %v211, %v1192
      %v1213 = vsub.f32 %v212, %v1194
      %v1214 = vsub.f32 %v213, %v1196
      %v1215 = vsub.f32 %v214, %v1198
      %v1216 = vsub.f32 %v215, %v1200
      %v1217 = vsub.f32 -0.9189385, %v1169
      %v1218 = vsub.f32 -0.9189385, %v1170
      %v1219 = vsub.f32 -0.9189385, %v1171
      %v1220 = vsub.f32 -0.9189385, %v1172
      %v1221 = vsub.f32 -0.9189385, %v1173
      %v1222 = vsub.f32 -0.9189385, %v1174
      %v1223 = vsub.f32 -0.9189385, %v1175
      %v1224 = vsub.f32 -0.9189385, %v1176
      %v1225 = vmul.f32 %v1209, 0.5
      %v1226 = vmul.f32 %v1210, 0.5
      %v1227 = vmul.f32 %v1211, 0.5
      %v1228 = vmul.f32 %v1212, 0.5
      %v1229 = vmul.f32 %v1213, 0.5
      %v1230 = vmul.f32 %v1214, 0.5
      %v1231 = vmul.f32 %v1215, 0.5
      %v1232 = vmul.f32 %v1216, 0.5
      %v1233 = vmul.f32 %v1225, %v1209
      %v1234 = vmul.f32 %v1226, %v1210
      %v1235 = vmul.f32 %v1227, %v1211
      %v1236 = vmul.f32 %v1228, %v1212
      %v1237 = vmul.f32 %v1229, %v1213
      %v1238 = vmul.f32 %v1230, %v1214
      %v1239 = vmul.f32 %v1231, %v1215
      %v1240 = vmul.f32 %v1232, %v1216
      %v1241 = vmul.f32 %v1169, -2.0
      %v1242 = vmul.f32 %v1170, -2.0
      %v1243 = vmul.f32 %v1171, -2.0
      %v1244 = vmul.f32 %v1172, -2.0
      %v1245 = vmul.f32 %v1173, -2.0
      %v1246 = vmul.f32 %v1174, -2.0
      %v1247 = vmul.f32 %v1175, -2.0
      %v1248 = vmul.f32 %v1176, -2.0
      %v1249 = vmul.f32 %v1241, 1.442695
      %v1250 = vpow.pop %v1249
      %v1251 = vmul.f32 %v1242, 1.442695
      %v1252 = vpow.pop %v1251
      %v1253 = vmul.f32 %v1243, 1.442695
      %v1254 = vpow.pop %v1253
      %v1255 = vmul.f32 %v1244, 1.442695
      %v1256 = vpow.pop %v1255
      %v1257 = vmul.f32 %v1245, 1.442695
      %v1258 = vpow.pop %v1257
      %v1259 = vmul.f32 %v1246, 1.442695
      %v1260 = vpow.pop %v1259
      %v1261 = vmul.f32 %v1247, 1.442695
      %v1262 = vpow.pop %v1261
      %v1263 = vmul.f32 %v1248, 1.442695
      %v1264 = vpow.pop %v1263
      %v1265 = vmul.f32 %v1233, %v1250
      %v1266 = vmul.f32 %v1234, %v1252
      %v1267 = vmul.f32 %v1235, %v1254
      %v1268 = vmul.f32 %v1236, %v1256
      %v1269 = vmul.f32 %v1237, %v1258
      %v1270 = vmul.f32 %v1238, %v1260
      %v1271 = vmul.f32 %v1239, %v1262
      %v1272 = vmul.f32 %v1240, %v1264
      %v1273 = vsub.f32 %v1217, %v1265
      %v1274 = vsub.f32 %v1218, %v1266
      %v1275 = vsub.f32 %v1219, %v1267
      %v1276 = vsub.f32 %v1220, %v1268
      %v1277 = vsub.f32 %v1221, %v1269
      %v1278 = vsub.f32 %v1222, %v1270
      %v1279 = vsub.f32 %v1223, %v1271
      %v1280 = vsub.f32 %v1224, %v1272
      %1281 = vst.msk [vmem:[%s203] sm:$0xff] %vm338, %v208
      %1282 = vst.msk [vmem:[%s203 + $0x8] sm:$0xff] %vm338, %v209
      %1283 = vst.msk [vmem:[%s203 + $0x10] sm:$0xff] %vm338, %v210
      %1284 = vst.msk [vmem:[%s203 + $0x18] sm:$0xff] %vm338, %v211
      %1285 = vst.msk [vmem:[%s203 + $0x20] sm:$0xff] %vm338, %v212
      %1286 = vst.msk [vmem:[%s203 + $0x28] sm:$0xff] %vm338, %v213
      %1287 = vst.msk [vmem:[%s203 + $0x30] sm:$0xff] %vm338, %v214
      %1288 = vst.msk [vmem:[%s203 + $0x38] sm:$0xff] %vm338, %v215
      %vm1289 = vcmask 130112
      %v1290 = vsel %vm1289, %v1273, 0.0
      %v1291 = vsel %vm1289, %v1274, 0.0
      %v1292 = vadd.f32 %v1290, %v1291
      %v1293 = vsel %vm1289, %v1275, 0.0
      %v1294 = vadd.f32 %v1292, %v1293
      %v1295 = vsel %vm1289, %v1276, 0.0
      %v1296 = vadd.f32 %v1294, %v1295
      %v1297 = vsel %vm1289, %v1277, 0.0
      %v1298 = vadd.f32 %v1296, %v1297
      %v1299 = vsel %vm1289, %v1278, 0.0
      %v1300 = vadd.f32 %v1298, %v1299
      %v1301 = vsel %vm1289, %v1279, 0.0
      %v1302 = vadd.f32 %v1300, %v1301
      %v1303 = vsel %vm1289, %v1280, 0.0
      %v1304 = vadd.f32 %v1302, %v1303
      %v1305 = vrot.slane %v1304, 4
      %v1306 = vadd.f32 %v1304, %v1305
      %v1307 = vrot.slane %v1306, 2
      %v1308 = vadd.f32 %v1306, %v1307
      %v1309 = vrot.slane %v1308, 1
      %v1310 = vadd.f32 %v1308, %v1309
      %1312 = vrot.lane.b32.xlu0 %v1310, 120
      %v1313 = vpop.permute.xlu0 %1312
      %vm1315 = vcmask 57344
      %1316 = vst.msk [vmem:[%s206] sm:$0x1] %vm1315, %v1313
      %p1317 = scmp.lt.s32.totalorder %s16, 1
      %s1318 = scalar_select %p1317, %s16, 1
      %s1319 = smul.addr %s1318, 8
      %s1320 = smul.addr %s1319, 8
      %s1321 = scalar_lea.vmem %s3, %s1320
      %p1322 = scmp.lt.s32.totalorder %s16, 1
      %s1323 = scalar_select %p1322, %s16, 1
      %s1324 = scalar_lea.vmem %s4, %s1323
      // Predicated region
      $region33: #{lr_normflow_forward.8} parent=31 // pred_check
        %p1325 = pneg %p102
      $region34: #{lr_normflow_forward.8} parent=31 // pred_check_branch
        %1327 = sbr.rel (%p1325) target = $region36
      $region35: #{lr_normflow_forward.8} parent=31 // pred_region
        _
      $region36: #{lr_normflow_forward.8} parent=31 // pred_fallthru
        _
      // Predicated region
      $region37: #{lr_normflow_forward.8} parent=31 // pred_check
        %p1328 = pneg %p128
      $region38: #{lr_normflow_forward.8} parent=31 // pred_check_branch
        %1330 = sbr.rel (%p1328) target = $region40
      $region39: #{lr_normflow_forward.8} parent=31 // pred_region
        _
      $region40: #{lr_normflow_forward.8} parent=31 // pred_fallthru
        _
    $region32: #{lr_normflow_forward.8} parent=5 // pred_fallthru
      _
    %p1331 = scmp.le.s32.totalorder 2, %s11
    // Predicated region
    $region41: #{lr_normflow_forward.8} parent=5 // pred_check
      %p1332 = pneg %p1331
    $region42: #{lr_normflow_forward.8} parent=5 // pred_check_branch
      %1334 = sbr.rel (%p1332) target = $region44
    $region43: #{lr_normflow_forward.8} parent=5 // pred_region
      %s1335 = ssub.s32 %s11, 2
      // Predicated region
      $region45: #{lr_normflow_forward.8} parent=43 // pred_check
        %p1336 = pneg %p108
      $region46: #{lr_normflow_forward.8} parent=43 // pred_check_branch
        %1338 = sbr.rel (%p1336) target = $region48
      $region47: #{lr_normflow_forward.8} parent=43 // pred_region
        %p1339 = scmp.lt.s32.totalorder %s17, 1
        %s1340 = scalar_select %p1339, %s17, 1
        %s1341 = smul.addr %s1340, 8
        %s1342 = smul.addr %s1341, 8
        %s1343 = scalar_lea.vmem %s3, %s1342
      $region48: #{lr_normflow_forward.8} parent=43 // pred_fallthru
        _
      // Predicated region
      $region49: #{lr_normflow_forward.8} parent=43 // pred_check
        %p1344 = pneg %p134
      $region50: #{lr_normflow_forward.8} parent=43 // pred_check_branch
        %1346 = sbr.rel (%p1344) target = $region52
      $region51: #{lr_normflow_forward.8} parent=43 // pred_region
        %p1347 = scmp.lt.s32.totalorder %s17, 1
        %s1348 = scalar_select %p1347, %s17, 1
        %s1349 = scalar_lea.vmem %s4, %s1348
      $region52: #{lr_normflow_forward.8} parent=43 // pred_fallthru
        _
    $region44: #{lr_normflow_forward.8} parent=5 // pred_fallthru
      _
  $region6: #{lr_normflow_forward.8} parent=0 // loop_footer
    %s15 = sadd.s32 1, %s11
  $region7: #{lr_normflow_forward.8} parent=0 // loop_footer_branch
    %10 = sbr.rel target = $region3
  $region8: #{lr_normflow_forward.8} parent=0 // loop_exit
    _

// kernel: lr_normflow_forward.6
$region0: #{lr_normflow_forward.6}
  #allocation0 [shape = 'u32[]', space=smem, size = 0x4, offset = 0x4, fixed_abs, tag = 'smem constant byte address 0x4 - core index']
  #allocation1 [shape = 'u32[144,128]{1,0:T(1,128)}', space=vmem, size = 0x12000, scoped, tag = 'internal scratch']
  %s0 = inlined_call_operand.vmem [shape: f32[2,64,16], index: 0, kind: input, shape index: {}]
  %s1 = inlined_call_operand.vmem [shape: f32[1,16], index: 1, kind: input, shape index: {}]
  %s2 = inlined_call_operand.vmem [shape: f32[1,16], index: 2, kind: input, shape index: {}]
  %s3 = inlined_call_operand.vmem [shape: bf16[16,16], index: 3, kind: input, shape index: {}]
  %s4 = inlined_call_operand.vmem [shape: bf16[9,8,32], index: 4, kind: input, shape index: {}]
  %s5 = inlined_call_operand.vmem [shape: f32[1,32], index: 5, kind: input, shape index: {}]
  %s6 = inlined_call_operand.vmem [shape: bf16[32,32], index: 6, kind: input, shape index: {}]
  %s7 = inlined_call_operand.vmem [shape: f32[1,32], index: 7, kind: input, shape index: {}]
  %s8 = inlined_call_operand.vmem [shape: bf16[9,32,16], index: 8, kind: input, shape index: {}]
  %s9 = inlined_call_operand.vmem [shape: f32[1,16], index: 9, kind: input, shape index: {}]
  %s10 = inlined_call_operand.vmem [shape: f32[2,64,16], index: 10, kind: output, shape index: {0}]
  %s11 = inlined_call_operand.vmem [shape: f32[2,1,8], index: 11, kind: output, shape index: {1}]
  %12 = xla_tuple %s10, %s11
  %s13 = sld [smem:[#allocation0]]
  $region81: #{lr_normflow_forward.6} parent=0
    _
  %s15 = ssub.s32 1, %s13
  %s16 = scalar_select 0, %s15, %s13
  loop: start=0, step=1, limit=4
  $region2: #{lr_normflow_forward.6} parent=0 // loop_pre_header
    _
  $region3: #{lr_normflow_forward.6} parent=0 // loop_header
    %s18 = sphi 0, %s22
    %p19 = scmp.ge.s32.totalorder %s18, 4
    %s28 = sphi 0, %s30
    %s31 = sphi 0, %s28
    %s32 = sphi 0, %s31
    %s48 = sphi 0, %s32
    %s52 = sphi 0, %s52
    %s54 = sphi 0, %s52
    %s55 = sphi 0, %s54
    %s69 = sphi 0, %s55
    %s73 = sphi 0, %s73
    %s75 = sphi 0, %s73
    %s76 = sphi 0, %s75
    %s90 = sphi 0, %s76
    %s94 = sphi 0, %s94
    %s96 = sphi 0, %s94
    %s97 = sphi 0, %s96
    %s111 = sphi 0, %s97
    %s115 = sphi 0, %s115
    %s117 = sphi 0, %s115
    %s118 = sphi 0, %s117
    %s132 = sphi 0, %s118
    %s136 = sphi 0, %s136
    %s138 = sphi 0, %s136
    %s139 = sphi 0, %s138
    %s153 = sphi 0, %s139
    %s157 = sphi 0, %s157
    %s159 = sphi 0, %s157
    %s160 = sphi 0, %s159
    %s174 = sphi 0, %s160
    %s178 = sphi 0, %s178
    %s180 = sphi 0, %s178
    %s181 = sphi 0, %s180
    %s195 = sphi 0, %s181
    %s199 = sphi 0, %s199
    %s201 = sphi 0, %s199
    %s202 = sphi 0, %s201
    %s216 = sphi 0, %s202
    %s220 = sphi 0, %s220
    %s222 = sphi 0, %s220
    %s223 = sphi 0, %s222
    %s237 = sphi 0, %s223
    %s243 = sphi 0, %s245
    %s246 = sphi 0, %s243
    %s247 = sphi 0, %s246
    %s263 = sphi 0, %s247
    %s269 = sphi 0, %s271
    %s272 = sphi 0, %s269
    %s273 = sphi 0, %s272
    %s289 = sphi 0, %s273
  $region4: #{lr_normflow_forward.6} parent=0 // loop_header_branch
    %21 = sbr.rel (%p19) target = $region8
  $region5: #{lr_normflow_forward.6} parent=0 // loop_body
    %s23 = ssub.s32 %s18, 1
    %s24 = ssub.s32 %s18, 2
    %s25 = sadd.s32 %s18, 1
    %s26 = ssub.s32 %s18, %s25
    %p27 = scmp.eq.s32.totalorder %s26, 0
    %s29 = sadd.s32 %s28, 1
    %s30 = scalar_select %p27, %s28, %s29
    %p33 = pneg %p27
    %p34 = scmp.eq.s32.totalorder %s18, 1
    %p35 = por %p33, %p34
    %p36 = scmp.ne.s32.totalorder %s28, %s31
    %p37 = scmp.eq.s32.totalorder %s18, 0
    %p38 = por %p36, %p37
    %p39 = scmp.ne.s32.totalorder %s28, %s31
    %p40 = scmp.eq.s32.totalorder %s23, 1
    %p41 = por %p39, %p40
    %p42 = scmp.ne.s32.totalorder %s31, %s32
    %p43 = scmp.eq.s32.totalorder %s23, 0
    %p44 = por %p42, %p43
    %p45 = scmp.ne.s32.totalorder %s31, %s32
    %p46 = scmp.eq.s32.totalorder %s24, 1
    %p47 = por %p45, %p46
    %p49 = scmp.ne.s32.totalorder %s32, %s48
    %p50 = scmp.eq.s32.totalorder %s24, 0
    %p51 = por %p49, %p50
    %s53 = sadd.s32 %s52, 1
    %p56 = scmp.eq.s32.totalorder %s18, 1
    %p57 = scmp.ne.s32.totalorder %s52, %s54
    %p58 = scmp.eq.s32.totalorder %s18, 0
    %p59 = por %p57, %p58
    %p60 = scmp.ne.s32.totalorder %s52, %s54
    %p61 = scmp.eq.s32.totalorder %s23, 1
    %p62 = por %p60, %p61
    %p63 = scmp.ne.s32.totalorder %s54, %s55
    %p64 = scmp.eq.s32.totalorder %s23, 0
    %p65 = por %p63, %p64
    %p66 = scmp.ne.s32.totalorder %s54, %s55
    %p67 = scmp.eq.s32.totalorder %s24, 1
    %p68 = por %p66, %p67
    %p70 = scmp.ne.s32.totalorder %s55, %s69
    %p71 = scmp.eq.s32.totalorder %s24, 0
    %p72 = por %p70, %p71
    %s74 = sadd.s32 %s73, 1
    %p77 = scmp.eq.s32.totalorder %s18, 1
    %p78 = scmp.ne.s32.totalorder %s73, %s75
    %p79 = scmp.eq.s32.totalorder %s18, 0
    %p80 = por %p78, %p79
    %p81 = scmp.ne.s32.totalorder %s73, %s75
    %p82 = scmp.eq.s32.totalorder %s23, 1
    %p83 = por %p81, %p82
    %p84 = scmp.ne.s32.totalorder %s75, %s76
    %p85 = scmp.eq.s32.totalorder %s23, 0
    %p86 = por %p84, %p85
    %p87 = scmp.ne.s32.totalorder %s75, %s76
    %p88 = scmp.eq.s32.totalorder %s24, 1
    %p89 = por %p87, %p88
    %p91 = scmp.ne.s32.totalorder %s76, %s90
    %p92 = scmp.eq.s32.totalorder %s24, 0
    %p93 = por %p91, %p92
    %s95 = sadd.s32 %s94, 1
    %p98 = scmp.eq.s32.totalorder %s18, 1
    %p99 = scmp.ne.s32.totalorder %s94, %s96
    %p100 = scmp.eq.s32.totalorder %s18, 0
    %p101 = por %p99, %p100
    %p102 = scmp.ne.s32.totalorder %s94, %s96
    %p103 = scmp.eq.s32.totalorder %s23, 1
    %p104 = por %p102, %p103
    %p105 = scmp.ne.s32.totalorder %s96, %s97
    %p106 = scmp.eq.s32.totalorder %s23, 0
    %p107 = por %p105, %p106
    %p108 = scmp.ne.s32.totalorder %s96, %s97
    %p109 = scmp.eq.s32.totalorder %s24, 1
    %p110 = por %p108, %p109
    %p112 = scmp.ne.s32.totalorder %s97, %s111
    %p113 = scmp.eq.s32.totalorder %s24, 0
    %p114 = por %p112, %p113
    %s116 = sadd.s32 %s115, 1
    %p119 = scmp.eq.s32.totalorder %s18, 1
    %p120 = scmp.ne.s32.totalorder %s115, %s117
    %p121 = scmp.eq.s32.totalorder %s18, 0
    %p122 = por %p120, %p121
    %p123 = scmp.ne.s32.totalorder %s115, %s117
    %p124 = scmp.eq.s32.totalorder %s23, 1
    %p125 = por %p123, %p124
    %p126 = scmp.ne.s32.totalorder %s117, %s118
    %p127 = scmp.eq.s32.totalorder %s23, 0
    %p128 = por %p126, %p127
    %p129 = scmp.ne.s32.totalorder %s117, %s118
    %p130 = scmp.eq.s32.totalorder %s24, 1
    %p131 = por %p129, %p130
    %p133 = scmp.ne.s32.totalorder %s118, %s132
    %p134 = scmp.eq.s32.totalorder %s24, 0
    %p135 = por %p133, %p134
    %s137 = sadd.s32 %s136, 1
    %p140 = scmp.eq.s32.totalorder %s18, 1
    %p141 = scmp.ne.s32.totalorder %s136, %s138
    %p142 = scmp.eq.s32.totalorder %s18, 0
    %p143 = por %p141, %p142
    %p144 = scmp.ne.s32.totalorder %s136, %s138
    %p145 = scmp.eq.s32.totalorder %s23, 1
    %p146 = por %p144, %p145
    %p147 = scmp.ne.s32.totalorder %s138, %s139
    %p148 = scmp.eq.s32.totalorder %s23, 0
    %p149 = por %p147, %p148
    %p150 = scmp.ne.s32.totalorder %s138, %s139
    %p151 = scmp.eq.s32.totalorder %s24, 1
    %p152 = por %p150, %p151
    %p154 = scmp.ne.s32.totalorder %s139, %s153
    %p155 = scmp.eq.s32.totalorder %s24, 0
    %p156 = por %p154, %p155
    %s158 = sadd.s32 %s157, 1
    %p161 = scmp.eq.s32.totalorder %s18, 1
    %p162 = scmp.ne.s32.totalorder %s157, %s159
    %p163 = scmp.eq.s32.totalorder %s18, 0
    %p164 = por %p162, %p163
    %p165 = scmp.ne.s32.totalorder %s157, %s159
    %p166 = scmp.eq.s32.totalorder %s23, 1
    %p167 = por %p165, %p166
    %p168 = scmp.ne.s32.totalorder %s159, %s160
    %p169 = scmp.eq.s32.totalorder %s23, 0
    %p170 = por %p168, %p169
    %p171 = scmp.ne.s32.totalorder %s159, %s160
    %p172 = scmp.eq.s32.totalorder %s24, 1
    %p173 = por %p171, %p172
    %p175 = scmp.ne.s32.totalorder %s160, %s174
    %p176 = scmp.eq.s32.totalorder %s24, 0
    %p177 = por %p175, %p176
    %s179 = sadd.s32 %s178, 1
    %p182 = scmp.eq.s32.totalorder %s18, 1
    %p183 = scmp.ne.s32.totalorder %s178, %s180
    %p184 = scmp.eq.s32.totalorder %s18, 0
    %p185 = por %p183, %p184
    %p186 = scmp.ne.s32.totalorder %s178, %s180
    %p187 = scmp.eq.s32.totalorder %s23, 1
    %p188 = por %p186, %p187
    %p189 = scmp.ne.s32.totalorder %s180, %s181
    %p190 = scmp.eq.s32.totalorder %s23, 0
    %p191 = por %p189, %p190
    %p192 = scmp.ne.s32.totalorder %s180, %s181
    %p193 = scmp.eq.s32.totalorder %s24, 1
    %p194 = por %p192, %p193
    %p196 = scmp.ne.s32.totalorder %s181, %s195
    %p197 = scmp.eq.s32.totalorder %s24, 0
    %p198 = por %p196, %p197
    %s200 = sadd.s32 %s199, 1
    %p203 = scmp.eq.s32.totalorder %s18, 1
    %p204 = scmp.ne.s32.totalorder %s199, %s201
    %p205 = scmp.eq.s32.totalorder %s18, 0
    %p206 = por %p204, %p205
    %p207 = scmp.ne.s32.totalorder %s199, %s201
    %p208 = scmp.eq.s32.totalorder %s23, 1
    %p209 = por %p207, %p208
    %p210 = scmp.ne.s32.totalorder %s201, %s202
    %p211 = scmp.eq.s32.totalorder %s23, 0
    %p212 = por %p210, %p211
    %p213 = scmp.ne.s32.totalorder %s201, %s202
    %p214 = scmp.eq.s32.totalorder %s24, 1
    %p215 = por %p213, %p214
    %p217 = scmp.ne.s32.totalorder %s202, %s216
    %p218 = scmp.eq.s32.totalorder %s24, 0
    %p219 = por %p217, %p218
    %s221 = sadd.s32 %s220, 1
    %p224 = scmp.eq.s32.totalorder %s18, 1
    %p225 = scmp.ne.s32.totalorder %s220, %s222
    %p226 = scmp.eq.s32.totalorder %s18, 0
    %p227 = por %p225, %p226
    %p228 = scmp.ne.s32.totalorder %s220, %s222
    %p229 = scmp.eq.s32.totalorder %s23, 1
    %p230 = por %p228, %p229
    %p231 = scmp.ne.s32.totalorder %s222, %s223
    %p232 = scmp.eq.s32.totalorder %s23, 0
    %p233 = por %p231, %p232
    %p234 = scmp.ne.s32.totalorder %s222, %s223
    %p235 = scmp.eq.s32.totalorder %s24, 1
    %p236 = por %p234, %p235
    %p238 = scmp.ne.s32.totalorder %s223, %s237
    %p239 = scmp.eq.s32.totalorder %s24, 0
    %p240 = por %p238, %p239
    %s241 = ssub.s32 %s18, %s25
    %p242 = scmp.eq.s32.totalorder %s241, 0
    %s244 = sadd.s32 %s243, 1
    %s245 = scalar_select %p242, %s243, %s244
    %p248 = pneg %p242
    %p249 = scmp.eq.s32.totalorder %s18, 1
    %p250 = por %p248, %p249
    %p251 = scmp.ne.s32.totalorder %s243, %s246
    %p252 = scmp.eq.s32.totalorder %s18, 0
    %p253 = por %p251, %p252
    %p254 = scmp.ne.s32.totalorder %s243, %s246
    %p255 = scmp.eq.s32.totalorder %s23, 1
    %p256 = por %p254, %p255
    %p257 = scmp.ne.s32.totalorder %s246, %s247
    %p258 = scmp.eq.s32.totalorder %s23, 0
    %p259 = por %p257, %p258
    %p260 = scmp.ne.s32.totalorder %s246, %s247
    %p261 = scmp.eq.s32.totalorder %s24, 1
    %p262 = por %p260, %p261
    %p264 = scmp.ne.s32.totalorder %s247, %s263
    %p265 = scmp.eq.s32.totalorder %s24, 0
    %p266 = por %p264, %p265
    %s267 = ssub.s32 %s18, %s25
    %p268 = scmp.eq.s32.totalorder %s267, 0
    %s270 = sadd.s32 %s269, 1
    %s271 = scalar_select %p268, %s269, %s270
    %p274 = pneg %p268
    %p275 = scmp.eq.s32.totalorder %s18, 1
    %p276 = por %p274, %p275
    %p277 = scmp.ne.s32.totalorder %s269, %s272
    %p278 = scmp.eq.s32.totalorder %s18, 0
    %p279 = por %p277, %p278
    %p280 = scmp.ne.s32.totalorder %s269, %s272
    %p281 = scmp.eq.s32.totalorder %s23, 1
    %p282 = por %p280, %p281
    %p283 = scmp.ne.s32.totalorder %s272, %s273
    %p284 = scmp.eq.s32.totalorder %s23, 0
    %p285 = por %p283, %p284
    %p286 = scmp.ne.s32.totalorder %s272, %s273
    %p287 = scmp.eq.s32.totalorder %s24, 1
    %p288 = por %p286, %p287
    %p290 = scmp.ne.s32.totalorder %s273, %s289
    %p291 = scmp.eq.s32.totalorder %s24, 0
    %p292 = por %p290, %p291
    %p293 = scmp.le.s32.totalorder 1, %s18
    %p294 = scmp.lt.s32.totalorder %s18, 3
    %p295 = pnand %p293, %p294
    %p296 = pneg %p295
    // Predicated region
    $region9: #{lr_normflow_forward.6} parent=5 // pred_check
      _
    $region10: #{lr_normflow_forward.6} parent=5 // pred_check_branch
      %298 = sbr.rel (%p295) target = $region12
    $region11: #{lr_normflow_forward.6} parent=5 // pred_region
      %s299 = ssub.s32 %s18, 1
      // Predicated region
      $region13: #{lr_normflow_forward.6} parent=11 // pred_check
        %p300 = pneg %p65
      $region14: #{lr_normflow_forward.6} parent=11 // pred_check_branch
        %302 = sbr.rel (%p300) target = $region16
      $region15: #{lr_normflow_forward.6} parent=11 // pred_region
        _
      $region16: #{lr_normflow_forward.6} parent=11 // pred_fallthru
        _
      // Predicated region
      $region17: #{lr_normflow_forward.6} parent=11 // pred_check
        %p303 = pneg %p86
      $region18: #{lr_normflow_forward.6} parent=11 // pred_check_branch
        %305 = sbr.rel (%p303) target = $region20
      $region19: #{lr_normflow_forward.6} parent=11 // pred_region
        _
      $region20: #{lr_normflow_forward.6} parent=11 // pred_fallthru
        _
      // Predicated region
      $region21: #{lr_normflow_forward.6} parent=11 // pred_check
        %p306 = pneg %p107
      $region22: #{lr_normflow_forward.6} parent=11 // pred_check_branch
        %308 = sbr.rel (%p306) target = $region24
      $region23: #{lr_normflow_forward.6} parent=11 // pred_region
        _
      $region24: #{lr_normflow_forward.6} parent=11 // pred_fallthru
        _
      // Predicated region
      $region25: #{lr_normflow_forward.6} parent=11 // pred_check
        %p309 = pneg %p128
      $region26: #{lr_normflow_forward.6} parent=11 // pred_check_branch
        %311 = sbr.rel (%p309) target = $region28
      $region27: #{lr_normflow_forward.6} parent=11 // pred_region
        _
      $region28: #{lr_normflow_forward.6} parent=11 // pred_fallthru
        _
      // Predicated region
      $region29: #{lr_normflow_forward.6} parent=11 // pred_check
        %p312 = pneg %p149
      $region30: #{lr_normflow_forward.6} parent=11 // pred_check_branch
        %314 = sbr.rel (%p312) target = $region32
      $region31: #{lr_normflow_forward.6} parent=11 // pred_region
        _
      $region32: #{lr_normflow_forward.6} parent=11 // pred_fallthru
        _
      // Predicated region
      $region33: #{lr_normflow_forward.6} parent=11 // pred_check
        %p315 = pneg %p170
      $region34: #{lr_normflow_forward.6} parent=11 // pred_check_branch
        %317 = sbr.rel (%p315) target = $region36
      $region35: #{lr_normflow_forward.6} parent=11 // pred_region
        _
      $region36: #{lr_normflow_forward.6} parent=11 // pred_fallthru
        _
      // Predicated region
      $region37: #{lr_normflow_forward.6} parent=11 // pred_check
        %p318 = pneg %p191
      $region38: #{lr_normflow_forward.6} parent=11 // pred_check_branch
        %320 = sbr.rel (%p318) target = $region40
      $region39: #{lr_normflow_forward.6} parent=11 // pred_region
        _
      $region40: #{lr_normflow_forward.6} parent=11 // pred_fallthru
        _
      // Predicated region
      $region41: #{lr_normflow_forward.6} parent=11 // pred_check
        %p321 = pneg %p212
      $region42: #{lr_normflow_forward.6} parent=11 // pred_check_branch
        %323 = sbr.rel (%p321) target = $region44
      $region43: #{lr_normflow_forward.6} parent=11 // pred_region
        _
      $region44: #{lr_normflow_forward.6} parent=11 // pred_fallthru
        _
      // Predicated region
      $region45: #{lr_normflow_forward.6} parent=11 // pred_check
        %p324 = pneg %p233
      $region46: #{lr_normflow_forward.6} parent=11 // pred_check_branch
        %326 = sbr.rel (%p324) target = $region48
      $region47: #{lr_normflow_forward.6} parent=11 // pred_region
        _
      $region48: #{lr_normflow_forward.6} parent=11 // pred_fallthru
        _
    $region12: #{lr_normflow_forward.6} parent=5 // pred_fallthru
      _
    %p327 = scmp.lt.s32.totalorder %s18, 2
    // Predicated region
    $region49: #{lr_normflow_forward.6} parent=5 // pred_check
      %p328 = pneg %p327
    $region50: #{lr_normflow_forward.6} parent=5 // pred_check_branch
      %330 = sbr.rel (%p328) target = $region52
    $region51: #{lr_normflow_forward.6} parent=5 // pred_region
      // Predicated region
      $region53: #{lr_normflow_forward.6} parent=51 // pred_check
        %p331 = pneg %p38
      $region54: #{lr_normflow_forward.6} parent=51 // pred_check_branch
        %333 = sbr.rel (%p331) target = $region56
      $region55: #{lr_normflow_forward.6} parent=51 // pred_region
        %p334 = scmp.lt.s32.totalorder %s18, 1
        %s335 = scalar_select %p334, %s18, 1
        %s336 = smul.addr %s335, 8
        %s337 = smul.addr %s336, 8
        %s338 = scalar_lea.vmem %s0, %s337
      $region56: #{lr_normflow_forward.6} parent=51 // pred_fallthru
        _
    $region52: #{lr_normflow_forward.6} parent=5 // pred_fallthru
      _
    %p339 = scmp.le.s32.totalorder 1, %s18
    %p340 = scmp.lt.s32.totalorder %s18, 3
    %p341 = pnand %p339, %p340
    %p342 = pneg %p341
    // Predicated region
    $region57: #{lr_normflow_forward.6} parent=5 // pred_check
      _
    $region58: #{lr_normflow_forward.6} parent=5 // pred_check_branch
      %344 = sbr.rel (%p341) target = $region60
    $region59: #{lr_normflow_forward.6} parent=5 // pred_region
      %s345 = ssub.s32 %s18, 1
      %p346 = scmp.lt.s32.totalorder %s23, 1
      %s347 = scalar_select %p346, %s23, 1
      %s348 = smul.addr %s347, 8
      %s349 = smul.addr %s348, 8
      %s350 = scalar_lea.vmem %s0, %s349
      %p351 = pneg %p44
      %p352 = pneg %p41
      %p353 = pneg %p65
      %p354 = pneg %p62
      %p355 = pneg %p86
      %p356 = pneg %p83
      %p357 = pneg %p107
      %p358 = pneg %p104
      %p359 = pneg %p128
      %p360 = pneg %p125
      %p361 = pneg %p149
      %p362 = pneg %p146
      %p363 = pneg %p170
      %p364 = pneg %p167
      %p365 = pneg %p191
      %p366 = pneg %p188
      %p367 = pneg %p212
      %p368 = pneg %p209
      %p369 = pneg %p233
      %p370 = pneg %p230
      %p371 = pneg %p259
      %p372 = pneg %p256
      %p373 = scmp.lt.s32.totalorder %s23, 1
      %s374 = scalar_select %p373, %s23, 1
      %s375 = smul.addr %s374, 8
      %s376 = smul.addr %s375, 8
      %s377 = scalar_lea.vmem %s10, %s376
      %p378 = pneg %p285
      %p379 = pneg %p282
      %p380 = scmp.lt.s32.totalorder %s23, 1
      %s381 = scalar_select %p380, %s23, 1
      %s382 = scalar_lea.vmem %s11, %s381
      %p383 = scmp.lt.s32.totalorder %s23, 1
      %s384 = scalar_select %p383, %s23, 1
      %s385 = smul.addr %s384, 8
      %s386 = smul.addr %s385, 8
      %s387 = scalar_lea.vmem %s0, %s386
      %p388 = scmp.lt.s32.totalorder %s23, 1
      %s389 = scalar_select %p388, %s23, 1
      %s390 = smul.addr %s389, 8
      %s391 = smul.addr %s390, 8
      %s392 = scalar_lea.vmem %s10, %s391
      %p393 = scmp.lt.s32.totalorder %s23, 1
      %s394 = scalar_select %p393, %s23, 1
      %s395 = scalar_lea.vmem %s11, %s394
      %v397 = vld [vmem:[%s387] sm:$0xff]
      %v398 = vld [vmem:[%s387 + $0x8] sm:$0xff]
      %v399 = vld [vmem:[%s387 + $0x10] sm:$0xff]
      %v400 = vld [vmem:[%s387 + $0x18] sm:$0xff]
      %v401 = vld [vmem:[%s387 + $0x20] sm:$0xff]
      %v402 = vld [vmem:[%s387 + $0x28] sm:$0xff]
      %v403 = vld [vmem:[%s387 + $0x30] sm:$0xff]
      %v404 = vld [vmem:[%s387 + $0x38] sm:$0xff]
      %v405 = vld [vmem:[%s1] sm:$0x1]
      %v407 = vlaneseq
      %v408 = vshrl.u32 %v407, 7
      %v409 = vsub.s32 0, %v408
      %v410 = vrot.slane %v405, %v409
      %v412 = vadd.f32 %v397, %v410
      %v413 = vadd.f32 %v398, %v410
      %v414 = vadd.f32 %v399, %v410
      %v415 = vadd.f32 %v400, %v410
      %v416 = vadd.f32 %v401, %v410
      %v417 = vadd.f32 %v402, %v410
      %v418 = vadd.f32 %v403, %v410
      %v419 = vadd.f32 %v404, %v410
      %v420 = vld [vmem:[%s2] sm:$0x1]
      %v421 = vmul.f32 %v420, 1.442695
      %v422 = vpow.pop %v421
      %v424 = vlaneseq
      %v425 = vshrl.u32 %v424, 7
      %v426 = vsub.s32 0, %v425
      %v427 = vrot.slane %v422, %v426
      %v429 = vmul.f32 %v412, %v427
      %v430 = vmul.f32 %v413, %v427
      %v431 = vmul.f32 %v414, %v427
      %v432 = vmul.f32 %v415, %v427
      %v433 = vmul.f32 %v416, %v427
      %v434 = vmul.f32 %v417, %v427
      %v435 = vmul.f32 %v418, %v427
      %v436 = vmul.f32 %v419, %v427
      %v437 = vpack.c.bf16 %v430, %v429
      %v438 = vpack.c.bf16 %v432, %v431
      %v439 = vpack.c.bf16 %v434, %v433
      %v440 = vpack.c.bf16 %v436, %v435
      %v441 = vld [vmem:[%s3] sm:$0xf]
      %v442 = vld [vmem:[%s3 + $0x4] sm:$0xf]
      %v445 = vunpack.c.l.b16 %v441
      %v446 = vunpack.c.l.b16 %v442
      %v447 = vpack.c.b16 %v446, %v445
      %vm449 = vcmask 130048
      %v451 = vsel %vm449, %v437, 0
      %v454 = vsel %vm449, %v438, 0
      %v457 = vsel %vm449, %v439, 0
      %v460 = vsel %vm449, %v440, 0
      %462 = vmatprep.subr.bf16.mxu0 0
      %463 = vmatpush1.bf16.msra.mxu0 %v447
      %464 = vmatprep.subr.bf16.mxu0 0
      %465 = vmatpush1.bf16.msra.mxu0 0
      %466 = vmatprep.subr.bf16.mxu0 0
      %467 = vmatpush1.bf16.msra.mxu0 0
      %468 = vmatprep.subr.bf16.mxu0 0
      %469 = vmatpush1.bf16.msra.mxu0 0
      %470 = vmatprep.subr.bf16.mxu0 0
      %471 = vmatpush1.bf16.msra.mxu0 0
      %472 = vmatprep.subr.bf16.mxu0 0
      %473 = vmatpush1.bf16.msra.mxu0 0
      %474 = vmatprep.subr.bf16.mxu0 0
      %475 = vmatpush1.bf16.msra.mxu0 0
      %476 = vmatprep.subr.bf16.mxu0 0
      %477 = vmatpush1.bf16.msra.mxu0 0
      %478 = vmatprep.subr.bf16.mxu0 0
      %479 = vmatpush1.bf16.msra.mxu0 0
      %480 = vmatprep.subr.bf16.mxu0 0
      %481 = vmatpush1.bf16.msra.mxu0 0
      %482 = vmatprep.subr.bf16.mxu0 0
      %483 = vmatpush1.bf16.msra.mxu0 0
      %484 = vmatprep.subr.bf16.mxu0 0
      %485 = vmatpush1.bf16.msra.mxu0 0
      %486 = vmatprep.subr.bf16.mxu0 0
      %487 = vmatpush1.bf16.msra.mxu0 0
      %488 = vmatprep.subr.bf16.mxu0 0
      %489 = vmatpush1.bf16.msra.mxu0 0
      %490 = vmatprep.subr.bf16.mxu0 0
      %491 = vmatpush1.bf16.msra.mxu0 0
      %492 = vmatprep.subr.bf16.mxu0 0
      %493 = vmatpush1.bf16.msra.mxu0 0
      %494 = vmatprep.mubr.bf16.mxu0 0
      %495 = vmatmul.mubr.bf16.gmra.mrb[0].mxu0 %v451
      %v496 = vpop.f32.mrb[0].mxu0
      %v497 = vadd.f32 0.0, %v496
      %v498 = vpop.f32.mrb[0].mxu0
      %v499 = vpop.f32.mrb[0].mxu0
      %v500 = vadd.f32 0.0, %v499
      %v501 = vpop.f32.mrb[0].mxu0
      %502 = vmatprep.mubr.bf16.mxu0 0
      %503 = vmatmul.mubr.bf16.gmra.mrb[0].mxu0 %v454
      %v504 = vpop.f32.mrb[0].mxu0
      %v505 = vadd.f32 0.0, %v504
      %v506 = vpop.f32.mrb[0].mxu0
      %v507 = vpop.f32.mrb[0].mxu0
      %v508 = vadd.f32 0.0, %v507
      %v509 = vpop.f32.mrb[0].mxu0
      %510 = vmatprep.mubr.bf16.mxu0 0
      %511 = vmatmul.mubr.bf16.gmra.mrb[0].mxu0 %v457
      %v512 = vpop.f32.mrb[0].mxu0
      %v513 = vadd.f32 0.0, %v512
      %v514 = vpop.f32.mrb[0].mxu0
      %v515 = vpop.f32.mrb[0].mxu0
      %v516 = vadd.f32 0.0, %v515
      %v517 = vpop.f32.mrb[0].mxu0
      %518 = vmatprep.mubr.bf16.mxu0 0
      %519 = vmatmul.mubr.bf16.gmra.mrb[0].mxu0 %v460
      %v520 = vpop.f32.mrb[0].mxu0
      %v521 = vadd.f32 0.0, %v520
      %v522 = vpop.f32.mrb[0].mxu0
      %v523 = vpop.f32.mrb[0].mxu0
      %v524 = vadd.f32 0.0, %v523
      %v525 = vpop.f32.mrb[0].mxu0
      %526 = vdwg.mxu0
      %v527 = vld [vmem:[%s5] sm:$0x1]
      %v528 = vlaneseq
      %v529 = vshrl.u32 %v528, 7
      %v530 = vadd.s32 %v529, 8
      %v531 = vadd.s32 %v529, 16
      %v532 = vadd.s32 %v529, 24
      %v533 = vadd.s32 %v529, 32
      %v534 = vadd.s32 %v529, 40
      %v535 = vadd.s32 %v529, 48
      %v536 = vadd.s32 %v529, 56
      %v537 = vand.u32 %v529, 7
      %v538 = vand.u32 %v530, 7
      %v539 = vand.u32 %v531, 7
      %v540 = vand.u32 %v532, 7
      %v541 = vand.u32 %v533, 7
      %v542 = vand.u32 %v534, 7
      %v543 = vand.u32 %v535, 7
      %v544 = vand.u32 %v536, 7
      %vm545 = vcmp.eq.s32.totalorder %v537, 7
      %vm546 = vcmp.eq.s32.totalorder %v538, 7
      %vm547 = vcmp.eq.s32.totalorder %v539, 7
      %vm548 = vcmp.eq.s32.totalorder %v540, 7
      %vm549 = vcmp.eq.s32.totalorder %v541, 7
      %vm550 = vcmp.eq.s32.totalorder %v542, 7
      %vm551 = vcmp.eq.s32.totalorder %v543, 7
      %vm552 = vcmp.eq.s32.totalorder %v544, 7
      %v553 = vsel %vm545, 1, 0
      %v554 = vsel %vm546, 1, 0
      %v555 = vsel %vm547, 1, 0
      %v556 = vsel %vm548, 1, 0
      %v557 = vsel %vm549, 1, 0
      %v558 = vsel %vm550, 1, 0
      %v559 = vsel %vm551, 1, 0
      %v560 = vsel %vm552, 1, 0
      %vm561 = vcmp.eq.s32.totalorder %v553, 1
      %vm562 = vcmp.eq.s32.totalorder %v554, 1
      %vm563 = vcmp.eq.s32.totalorder %v555, 1
      %vm564 = vcmp.eq.s32.totalorder %v556, 1
      %vm565 = vcmp.eq.s32.totalorder %v557, 1
      %vm566 = vcmp.eq.s32.totalorder %v558, 1
      %vm567 = vcmp.eq.s32.totalorder %v559, 1
      %vm568 = vcmp.eq.s32.totalorder %v560, 1
      %v569 = vsel %vm561, 0.0, %v497
      %v570 = vsel %vm562, 0.0, %v500
      %v571 = vsel %vm563, 0.0, %v505
      %v572 = vsel %vm564, 0.0, %v508
      %v573 = vsel %vm565, 0.0, %v513
      %v574 = vsel %vm566, 0.0, %v516
      %v575 = vsel %vm567, 0.0, %v521
      %v576 = vsel %vm568, 0.0, %v524
      %vm577 = vcmp.eq.s32.totalorder %v537, 0
      %vm578 = vcmp.eq.s32.totalorder %v538, 0
      %vm579 = vcmp.eq.s32.totalorder %v539, 0
      %vm580 = vcmp.eq.s32.totalorder %v540, 0
      %vm581 = vcmp.eq.s32.totalorder %v541, 0
      %vm582 = vcmp.eq.s32.totalorder %v542, 0
      %vm583 = vcmp.eq.s32.totalorder %v543, 0
      %vm584 = vcmp.eq.s32.totalorder %v544, 0
      %v585 = vsel %vm577, 1, 0
      %v586 = vsel %vm578, 1, 0
      %v587 = vsel %vm579, 1, 0
      %v588 = vsel %vm580, 1, 0
      %v589 = vsel %vm581, 1, 0
      %v590 = vsel %vm582, 1, 0
      %v591 = vsel %vm583, 1, 0
      %v592 = vsel %vm584, 1, 0
      %vm593 = vcmp.eq.s32.totalorder %v585, 1
      %vm594 = vcmp.eq.s32.totalorder %v586, 1
      %vm595 = vcmp.eq.s32.totalorder %v587, 1
      %vm596 = vcmp.eq.s32.totalorder %v588, 1
      %vm597 = vcmp.eq.s32.totalorder %v589, 1
      %vm598 = vcmp.eq.s32.totalorder %v590, 1
      %vm599 = vcmp.eq.s32.totalorder %v591, 1
      %vm600 = vcmp.eq.s32.totalorder %v592, 1
      %v601 = vsel %vm593, 0.0, %v497
      %v602 = vsel %vm594, 0.0, %v500
      %v603 = vsel %vm595, 0.0, %v505
      %v604 = vsel %vm596, 0.0, %v508
      %v605 = vsel %vm597, 0.0, %v513
      %v606 = vsel %vm598, 0.0, %v516
      %v607 = vsel %vm599, 0.0, %v521
      %v608 = vsel %vm600, 0.0, %v524
      %vm616 = vcmask 1040384
      %v617 = vrot.slane %v569, 7
      %v618 = vrot.slane %v570, 7
      %v619 = vsel %vm616, %v617, %v618
      %v620 = vrot.slane %v571, 7
      %v621 = vsel %vm616, %v618, %v620
      %v622 = vrot.slane %v572, 7
      %v623 = vsel %vm616, %v620, %v622
      %v624 = vrot.slane %v573, 7
      %v625 = vsel %vm616, %v622, %v624
      %v626 = vrot.slane %v574, 7
      %v627 = vsel %vm616, %v624, %v626
      %v628 = vrot.slane %v575, 7
      %v629 = vsel %vm616, %v626, %v628
      %v637 = vsel %vm616, 0.0, %v617
      %v638 = vpack.c.bf16 %v637, 0.0
      %v639 = vpack.c.bf16 %v621, %v619
      %v640 = vpack.c.bf16 %v625, %v623
      %v641 = vpack.c.bf16 %v629, %v627
      %v642 = vld [vmem:[%s4] sm:$0xf]
      %v643 = vpack.c.bf16 %v497, 0.0
      %v644 = vpack.c.bf16 %v505, %v500
      %v645 = vpack.c.bf16 %v513, %v508
      %v646 = vpack.c.bf16 %v521, %v516
      %s647 = scalar_lea.vmem %s4, 4
      %v648 = vld [vmem:[%s647] sm:$0xf]
      %vm649 = vcmask 64512
      %v651 = vsel %vm649, %v643, 0
      %v654 = vsel %vm649, %v644, 0
      %v657 = vsel %vm649, %v645, 0
      %v660 = vsel %vm649, %v646, 0
      %vm662 = vcmask 1043456
      %v664 = vsel %vm662, %v648, 0
      %666 = vmatprep.subr.bf16.mxu0 0
      %667 = vmatpush1.bf16.msra.mxu0 %v664
      %668 = vmatprep.subr.bf16.mxu0 0
      %669 = vmatpush1.bf16.msra.mxu0 0
      %670 = vmatprep.subr.bf16.mxu0 0
      %671 = vmatpush1.bf16.msra.mxu0 0
      %672 = vmatprep.subr.bf16.mxu0 0
      %673 = vmatpush1.bf16.msra.mxu0 0
      %674 = vmatprep.subr.bf16.mxu0 0
      %675 = vmatpush1.bf16.msra.mxu0 0
      %676 = vmatprep.subr.bf16.mxu0 0
      %677 = vmatpush1.bf16.msra.mxu0 0
      %678 = vmatprep.subr.bf16.mxu0 0
      %679 = vmatpush1.bf16.msra.mxu0 0
      %680 = vmatprep.subr.bf16.mxu0 0
      %681 = vmatpush1.bf16.msra.mxu0 0
      %682 = vmatprep.subr.bf16.mxu0 0
      %683 = vmatpush1.bf16.msra.mxu0 0
      %684 = vmatprep.subr.bf16.mxu0 0
      %685 = vmatpush1.bf16.msra.mxu0 0
      %686 = vmatprep.subr.bf16.mxu0 0
      %687 = vmatpush1.bf16.msra.mxu0 0
      %688 = vmatprep.subr.bf16.mxu0 0
      %689 = vmatpush1.bf16.msra.mxu0 0
      %690 = vmatprep.subr.bf16.mxu0 0
      %691 = vmatpush1.bf16.msra.mxu0 0
      %692 = vmatprep.subr.bf16.mxu0 0
      %693 = vmatpush1.bf16.msra.mxu0 0
      %694 = vmatprep.subr.bf16.mxu0 0
      %695 = vmatpush1.bf16.msra.mxu0 0
      %696 = vmatprep.subr.bf16.mxu0 0
      %697 = vmatpush1.bf16.msra.mxu0 0
      %698 = vmatprep.mubr.bf16.mxu0 0
      %699 = vmatmul.mubr.bf16.gmra.mrb[0].mxu0 %v651
      %v700 = vpop.f32.mrb[0].mxu0
      %v701 = vadd.f32 0.0, %v700
      %v702 = vpop.f32.mrb[0].mxu0
      %v703 = vpop.f32.mrb[0].mxu0
      %v704 = vadd.f32 0.0, %v703
      %v705 = vpop.f32.mrb[0].mxu0
      %706 = vmatprep.mubr.bf16.mxu0 0
      %707 = vmatmul.mubr.bf16.gmra.mrb[0].mxu0 %v654
      %v708 = vpop.f32.mrb[0].mxu0
      %v709 = vadd.f32 0.0, %v708
      %v710 = vpop.f32.mrb[0].mxu0
      %v711 = vpop.f32.mrb[0].mxu0
      %v712 = vadd.f32 0.0, %v711
      %v713 = vpop.f32.mrb[0].mxu0
      %714 = vmatprep.mubr.bf16.mxu0 0
      %715 = vmatmul.mubr.bf16.gmra.mrb[0].mxu0 %v657
      %v716 = vpop.f32.mrb[0].mxu0
      %v717 = vadd.f32 0.0, %v716
      %v718 = vpop.f32.mrb[0].mxu0
      %v719 = vpop.f32.mrb[0].mxu0
      %v720 = vadd.f32 0.0, %v719
      %v721 = vpop.f32.mrb[0].mxu0
      %722 = vmatprep.mubr.bf16.mxu0 0
      %723 = vmatmul.mubr.bf16.gmra.mrb[0].mxu0 %v660
      %v724 = vpop.f32.mrb[0].mxu0
      %v725 = vadd.f32 0.0, %v724
      %v726 = vpop.f32.mrb[0].mxu0
      %v727 = vpop.f32.mrb[0].mxu0
      %v728 = vadd.f32 0.0, %v727
      %v729 = vpop.f32.mrb[0].mxu0
      %730 = vdwg.mxu0
      %v732 = vsel %vm649, %v638, 0
      %v735 = vsel %vm649, %v639, 0
      %v738 = vsel %vm649, %v640, 0
      %v741 = vsel %vm649, %v641, 0
      %v744 = vsel %vm662, %v642, 0
      %746 = vmatprep.subr.bf16.mxu0 0
      %747 = vmatpush1.bf16.msra.mxu0 %v744
      %748 = vmatprep.subr.bf16.mxu0 0
      %749 = vmatpush1.bf16.msra.mxu0 0
      %750 = vmatprep.subr.bf16.mxu0 0
      %751 = vmatpush1.bf16.msra.mxu0 0
      %752 = vmatprep.subr.bf16.mxu0 0
      %753 = vmatpush1.bf16.msra.mxu0 0
      %754 = vmatprep.subr.bf16.mxu0 0
      %755 = vmatpush1.bf16.msra.mxu0 0
      %756 = vmatprep.subr.bf16.mxu0 0
      %757 = vmatpush1.bf16.msra.mxu0 0
      %758 = vmatprep.subr.bf16.mxu0 0
      %759 = vmatpush1.bf16.msra.mxu0 0
      %760 = vmatprep.subr.bf16.mxu0 0
      %761 = vmatpush1.bf16.msra.mxu0 0
      %762 = vmatprep.subr.bf16.mxu0 0
      %763 = vmatpush1.bf16.msra.mxu0 0
      %764 = vmatprep.subr.bf16.mxu0 0
      %765 = vmatpush1.bf16.msra.mxu0 0
      %766 = vmatprep.subr.bf16.mxu0 0
      %767 = vmatpush1.bf16.msra.mxu0 0
      %768 = vmatprep.subr.bf16.mxu0 0
      %769 = vmatpush1.bf16.msra.mxu0 0
      %770 = vmatprep.subr.bf16.mxu0 0
      %771 = vmatpush1.bf16.msra.mxu0 0
      %772 = vmatprep.subr.bf16.mxu0 0
      %773 = vmatpush1.bf16.msra.mxu0 0
      %774 = vmatprep.subr.bf16.mxu0 0
      %775 = vmatpush1.bf16.msra.mxu0 0
      %776 = vmatprep.subr.bf16.mxu0 0
      %777 = vmatpush1.bf16.msra.mxu0 0
      %778 = vmatprep.mubr.bf16.mxu0 0
      %779 = vmatmul.mubr.bf16.gmra.mrb[0].mxu0 %v732
      %v780 = vpop.f32.mrb[0].mxu0
      %v781 = vadd.f32 %v701, %v780
      %v782 = vpop.f32.mrb[0].mxu0
      %v783 = vpop.f32.mrb[0].mxu0
      %v784 = vadd.f32 %v704, %v783
      %v785 = vpop.f32.mrb[0].mxu0
      %786 = vmatprep.mubr.bf16.mxu0 0
      %787 = vmatmul.mubr.bf16.gmra.mrb[0].mxu0 %v735
      %v788 = vpop.f32.mrb[0].mxu0
      %v789 = vadd.f32 %v709, %v788
      %v790 = vpop.f32.mrb[0].mxu0
      %v791 = vpop.f32.mrb[0].mxu0
      %v792 = vadd.f32 %v712, %v791
      %v793 = vpop.f32.mrb[0].mxu0
      %794 = vmatprep.mubr.bf16.mxu0 0
      %795 = vmatmul.mubr.bf16.gmra.mrb[0].mxu0 %v738
      %v796 = vpop.f32.mrb[0].mxu0
      %v797 = vadd.f32 %v717, %v796
      %v798 = vpop.f32.mrb[0].mxu0
      %v799 = vpop.f32.mrb[0].mxu0
      %v800 = vadd.f32 %v720, %v799
      %v801 = vpop.f32.mrb[0].mxu0
      %802 = vmatprep.mubr.bf16.mxu0 0
      %803 = vmatmul.mubr.bf16.gmra.mrb[0].mxu0 %v741
      %v804 = vpop.f32.mrb[0].mxu0
      %v805 = vadd.f32 %v725, %v804
      %v806 = vpop.f32.mrb[0].mxu0
      %v807 = vpop.f32.mrb[0].mxu0
      %v808 = vadd.f32 %v728, %v807
      %v809 = vpop.f32.mrb[0].mxu0
      %810 = vdwg.mxu0
      %vm819 = vcmask 1046528
      %v820 = vrot.slane %v601, 1
      %v821 = vrot.slane %v602, 1
      %v822 = vsel %vm819, %v820, %v821
      %v823 = vrot.slane %v603, 1
      %v824 = vsel %vm819, %v821, %v823
      %v825 = vrot.slane %v604, 1
      %v826 = vsel %vm819, %v823, %v825
      %v827 = vrot.slane %v605, 1
      %v828 = vsel %vm819, %v825, %v827
      %v829 = vrot.slane %v606, 1
      %v830 = vsel %vm819, %v827, %v829
      %v831 = vrot.slane %v607, 1
      %v832 = vsel %vm819, %v829, %v831
      %v833 = vrot.slane %v608, 1
      %v834 = vsel %vm819, %v831, %v833
      %v843 = vsel %vm819, 0.0, %v820
      %v844 = vpack.c.bf16 %v822, %v843
      %v845 = vpack.c.bf16 %v826, %v824
      %v846 = vpack.c.bf16 %v830, %v828
      %v847 = vpack.c.bf16 %v834, %v832
      %s848 = scalar_lea.vmem %s4, 8
      %v849 = vld [vmem:[%s848] sm:$0xf]
      %v851 = vsel %vm649, %v844, 0
      %v854 = vsel %vm649, %v845, 0
      %v857 = vsel %vm649, %v846, 0
      %v860 = vsel %vm649, %v847, 0
      %v863 = vsel %vm662, %v849, 0
      %865 = vmatprep.subr.bf16.mxu0 0
      %866 = vmatpush1.bf16.msra.mxu0 %v863
      %867 = vmatprep.subr.bf16.mxu0 0
      %868 = vmatpush1.bf16.msra.mxu0 0
      %869 = vmatprep.subr.bf16.mxu0 0
      %870 = vmatpush1.bf16.msra.mxu0 0
      %871 = vmatprep.subr.bf16.mxu0 0
      %872 = vmatpush1.bf16.msra.mxu0 0
      %873 = vmatprep.subr.bf16.mxu0 0
      %874 = vmatpush1.bf16.msra.mxu0 0
      %875 = vmatprep.subr.bf16.mxu0 0
      %876 = vmatpush1.bf16.msra.mxu0 0
      %877 = vmatprep.subr.bf16.mxu0 0
      %878 = vmatpush1.bf16.msra.mxu0 0
      %879 = vmatprep.subr.bf16.mxu0 0
      %880 = vmatpush1.bf16.msra.mxu0 0
      %881 = vmatprep.subr.bf16.mxu0 0
      %882 = vmatpush1.bf16.msra.mxu0 0
      %883 = vmatprep.subr.bf16.mxu0 0
      %884 = vmatpush1.bf16.msra.mxu0 0
      %885 = vmatprep.subr.bf16.mxu0 0
      %886 = vmatpush1.bf16.msra.mxu0 0
      %887 = vmatprep.subr.bf16.mxu0 0
      %888 = vmatpush1.bf16.msra.mxu0 0
      %889 = vmatprep.subr.bf16.mxu0 0
      %890 = vmatpush1.bf16.msra.mxu0 0
      %891 = vmatprep.subr.bf16.mxu0 0
      %892 = vmatpush1.bf16.msra.mxu0 0
      %893 = vmatprep.subr.bf16.mxu0 0
      %894 = vmatpush1.bf16.msra.mxu0 0
      %895 = vmatprep.subr.bf16.mxu0 0
      %896 = vmatpush1.bf16.msra.mxu0 0
      %897 = vmatprep.mubr.bf16.mxu0 0
      %898 = vmatmul.mubr.bf16.gmra.mrb[0].mxu0 %v851
      %v899 = vpop.f32.mrb[0].mxu0
      %v900 = vadd.f32 0.0, %v899
      %v901 = vpop.f32.mrb[0].mxu0
      %v902 = vpop.f32.mrb[0].mxu0
      %v903 = vadd.f32 0.0, %v902
      %v904 = vpop.f32.mrb[0].mxu0
      %905 = vmatprep.mubr.bf16.mxu0 0
      %906 = vmatmul.mubr.bf16.gmra.mrb[0].mxu0 %v854
      %v907 = vpop.f32.mrb[0].mxu0
      %v908 = vadd.f32 0.0, %v907
      %v909 = vpop.f32.mrb[0].mxu0
      %v910 = vpop.f32.mrb[0].mxu0
      %v911 = vadd.f32 0.0, %v910
      %v912 = vpop.f32.mrb[0].mxu0
      %913 = vmatprep.mubr.bf16.mxu0 0
      %914 = vmatmul.mubr.bf16.gmra.mrb[0].mxu0 %v857
      %v915 = vpop.f32.mrb[0].mxu0
      %v916 = vadd.f32 0.0, %v915
      %v917 = vpop.f32.mrb[0].mxu0
      %v918 = vpop.f32.mrb[0].mxu0
      %v919 = vadd.f32 0.0, %v918
      %v920 = vpop.f32.mrb[0].mxu0
      %921 = vmatprep.mubr.bf16.mxu0 0
      %922 = vmatmul.mubr.bf16.gmra.mrb[0].mxu0 %v860
      %v923 = vpop.f32.mrb[0].mxu0
      %v924 = vadd.f32 0.0, %v923
      %v925 = vpop.f32.mrb[0].mxu0
      %v926 = vpop.f32.mrb[0].mxu0
      %v927 = vadd.f32 0.0, %v926
      %v928 = vpop.f32.mrb[0].mxu0
      %929 = vdwg.mxu0
      %v930 = vadd.f32 %v781, %v900
      %v931 = vadd.f32 %v784, %v903
      %v932 = vadd.f32 %v789, %v908
      %v933 = vadd.f32 %v792, %v911
      %v934 = vadd.f32 %v797, %v916
      %v935 = vadd.f32 %v800, %v919
      %v936 = vadd.f32 %v805, %v924
      %v937 = vadd.f32 %v808, %v927
      %v939 = vrot.slane %v576, 7
      %v940 = vsel %vm616, %v628, %v939
      %v942 = vpack.c.bf16 %v619, %v637
      %v943 = vpack.c.bf16 %v623, %v621
      %v944 = vpack.c.bf16 %v627, %v625
      %v945 = vpack.c.bf16 %v940, %v629
      %s946 = scalar_lea.vmem %s4, 12
      %v947 = vld [vmem:[%s946] sm:$0xf]
      %v949 = vsel %vm649, %v942, 0
      %v952 = vsel %vm649, %v943, 0
      %v955 = vsel %vm649, %v944, 0
      %v958 = vsel %vm649, %v945, 0
      %v961 = vsel %vm662, %v947, 0
      %963 = vmatprep.subr.bf16.mxu0 0
      %964 = vmatpush1.bf16.msra.mxu0 %v961
      %965 = vmatprep.subr.bf16.mxu0 0
      %966 = vmatpush1.bf16.msra.mxu0 0
      %967 = vmatprep.subr.bf16.mxu0 0
      %968 = vmatpush1.bf16.msra.mxu0 0
      %969 = vmatprep.subr.bf16.mxu0 0
      %970 = vmatpush1.bf16.msra.mxu0 0
      %971 = vmatprep.subr.bf16.mxu0 0
      %972 = vmatpush1.bf16.msra.mxu0 0
      %973 = vmatprep.subr.bf16.mxu0 0
      %974 = vmatpush1.bf16.msra.mxu0 0
      %975 = vmatprep.subr.bf16.mxu0 0
      %976 = vmatpush1.bf16.msra.mxu0 0
      %977 = vmatprep.subr.bf16.mxu0 0
      %978 = vmatpush1.bf16.msra.mxu0 0
      %979 = vmatprep.subr.bf16.mxu0 0
      %980 = vmatpush1.bf16.msra.mxu0 0
      %981 = vmatprep.subr.bf16.mxu0 0
      %982 = vmatpush1.bf16.msra.mxu0 0
      %983 = vmatprep.subr.bf16.mxu0 0
      %984 = vmatpush1.bf16.msra.mxu0 0
      %985 = vmatprep.subr.bf16.mxu0 0
      %986 = vmatpush1.bf16.msra.mxu0 0
      %987 = vmatprep.subr.bf16.mxu0 0
      %988 = vmatpush1.bf16.msra.mxu0 0
      %989 = vmatprep.subr.bf16.mxu0 0
      %990 = vmatpush1.bf16.msra.mxu0 0
      %991 = vmatprep.subr.bf16.mxu0 0
      %992 = vmatpush1.bf16.msra.mxu0 0
      %993 = vmatprep.subr.bf16.mxu0 0
      %994 = vmatpush1.bf16.msra.mxu0 0
      %995 = vmatprep.mubr.bf16.mxu0 0
      %996 = vmatmul.mubr.bf16.gmra.mrb[0].mxu0 %v949
      %v997 = vpop.f32.mrb[0].mxu0
      %v998 = vadd.f32 0.0, %v997
      %v999 = vpop.f32.mrb[0].mxu0
      %v1000 = vpop.f32.mrb[0].mxu0
      %v1001 = vadd.f32 0.0, %v1000
      %v1002 = vpop.f32.mrb[0].mxu0
      %1003 = vmatprep.mubr.bf16.mxu0 0
      %1004 = vmatmul.mubr.bf16.gmra.mrb[0].mxu0 %v952
      %v1005 = vpop.f32.mrb[0].mxu0
      %v1006 = vadd.f32 0.0, %v1005
      %v1007 = vpop.f32.mrb[0].mxu0
      %v1008 = vpop.f32.mrb[0].mxu0
      %v1009 = vadd.f32 0.0, %v1008
      %v1010 = vpop.f32.mrb[0].mxu0
      %1011 = vmatprep.mubr.bf16.mxu0 0
      %1012 = vmatmul.mubr.bf16.gmra.mrb[0].mxu0 %v955
      %v1013 = vpop.f32.mrb[0].mxu0
      %v1014 = vadd.f32 0.0, %v1013
      %v1015 = vpop.f32.mrb[0].mxu0
      %v1016 = vpop.f32.mrb[0].mxu0
      %v1017 = vadd.f32 0.0, %v1016
      %v1018 = vpop.f32.mrb[0].mxu0
      %1019 = vmatprep.mubr.bf16.mxu0 0
      %1020 = vmatmul.mubr.bf16.gmra.mrb[0].mxu0 %v958
      %v1021 = vpop.f32.mrb[0].mxu0
      %v1022 = vadd.f32 0.0, %v1021
      %v1023 = vpop.f32.mrb[0].mxu0
      %v1024 = vpop.f32.mrb[0].mxu0
      %v1025 = vadd.f32 0.0, %v1024
      %v1026 = vpop.f32.mrb[0].mxu0
      %1027 = vdwg.mxu0
      %v1028 = vadd.f32 %v930, %v998
      %v1029 = vadd.f32 %v931, %v1001
      %v1030 = vadd.f32 %v932, %v1006
      %v1031 = vadd.f32 %v933, %v1009
      %v1032 = vadd.f32 %v934, %v1014
      %v1033 = vadd.f32 %v935, %v1017
      %v1034 = vadd.f32 %v936, %v1022
      %v1035 = vadd.f32 %v937, %v1025
      %v1036 = vpack.c.bf16 %v500, %v497
      %v1037 = vpack.c.bf16 %v508, %v505
      %v1038 = vpack.c.bf16 %v516, %v513
      %v1039 = vpack.c.bf16 %v524, %v521
      %s1040 = scalar_lea.vmem %s4, 16
      %v1041 = vld [vmem:[%s1040] sm:$0xf]
      %v1043 = vsel %vm649, %v1036, 0
      %v1046 = vsel %vm649, %v1037, 0
      %v1049 = vsel %vm649, %v1038, 0
      %v1052 = vsel %vm649, %v1039, 0
      %v1055 = vsel %vm662, %v1041, 0
      %1057 = vmatprep.subr.bf16.mxu0 0
      %1058 = vmatpush1.bf16.msra.mxu0 %v1055
      %1059 = vmatprep.subr.bf16.mxu0 0
      %1060 = vmatpush1.bf16.msra.mxu0 0
      %1061 = vmatprep.subr.bf16.mxu0 0
      %1062 = vmatpush1.bf16.msra.mxu0 0
      %1063 = vmatprep.subr.bf16.mxu0 0
      %1064 = vmatpush1.bf16.msra.mxu0 0
      %1065 = vmatprep.subr.bf16.mxu0 0
      %1066 = vmatpush1.bf16.msra.mxu0 0
      %1067 = vmatprep.subr.bf16.mxu0 0
      %1068 = vmatpush1.bf16.msra.mxu0 0
      %1069 = vmatprep.subr.bf16.mxu0 0
      %1070 = vmatpush1.bf16.msra.mxu0 0
      %1071 = vmatprep.subr.bf16.mxu0 0
      %1072 = vmatpush1.bf16.msra.mxu0 0
      %1073 = vmatprep.subr.bf16.mxu0 0
      %1074 = vmatpush1.bf16.msra.mxu0 0
      %1075 = vmatprep.subr.bf16.mxu0 0
      %1076 = vmatpush1.bf16.msra.mxu0 0
      %1077 = vmatprep.subr.bf16.mxu0 0
      %1078 = vmatpush1.bf16.msra.mxu0 0
      %1079 = vmatprep.subr.bf16.mxu0 0
      %1080 = vmatpush1.bf16.msra.mxu0 0
      %1081 = vmatprep.subr.bf16.mxu0 0
      %1082 = vmatpush1.bf16.msra.mxu0 0
      %1083 = vmatprep.subr.bf16.mxu0 0
      %1084 = vmatpush1.bf16.msra.mxu0 0
      %1085 = vmatprep.subr.bf16.mxu0 0
      %1086 = vmatpush1.bf16.msra.mxu0 0
      %1087 = vmatprep.subr.bf16.mxu0 0
      %1088 = vmatpush1.bf16.msra.mxu0 0
      %1089 = vmatprep.mubr.bf16.mxu0 0
      %1090 = vmatmul.mubr.bf16.gmra.mrb[0].mxu0 %v1043
      %v1091 = vpop.f32.mrb[0].mxu0
      %v1092 = vadd.f32 0.0, %v1091
      %v1093 = vpop.f32.mrb[0].mxu0
      %v1094 = vpop.f32.mrb[0].mxu0
      %v1095 = vadd.f32 0.0, %v1094
      %v1096 = vpop.f32.mrb[0].mxu0
      %1097 = vmatprep.mubr.bf16.mxu0 0
      %1098 = vmatmul.mubr.bf16.gmra.mrb[0].mxu0 %v1046
      %v1099 = vpop.f32.mrb[0].mxu0
      %v1100 = vadd.f32 0.0, %v1099
      %v1101 = vpop.f32.mrb[0].mxu0
      %v1102 = vpop.f32.mrb[0].mxu0
      %v1103 = vadd.f32 0.0, %v1102
      %v1104 = vpop.f32.mrb[0].mxu0
      %1105 = vmatprep.mubr.bf16.mxu0 0
      %1106 = vmatmul.mubr.bf16.gmra.mrb[0].mxu0 %v1049
      %v1107 = vpop.f32.mrb[0].mxu0
      %v1108 = vadd.f32 0.0, %v1107
      %v1109 = vpop.f32.mrb[0].mxu0
      %v1110 = vpop.f32.mrb[0].mxu0
      %v1111 = vadd.f32 0.0, %v1110
      %v1112 = vpop.f32.mrb[0].mxu0
      %1113 = vmatprep.mubr.bf16.mxu0 0
      %1114 = vmatmul.mubr.bf16.gmra.mrb[0].mxu0 %v1052
      %v1115 = vpop.f32.mrb[0].mxu0
      %v1116 = vadd.f32 0.0, %v1115
      %v1117 = vpop.f32.mrb[0].mxu0
      %v1118 = vpop.f32.mrb[0].mxu0
      %v1119 = vadd.f32 0.0, %v1118
      %v1120 = vpop.f32.mrb[0].mxu0
      %1121 = vdwg.mxu0
      %v1122 = vadd.f32 %v1028, %v1092
      %v1123 = vadd.f32 %v1029, %v1095
      %v1124 = vadd.f32 %v1030, %v1100
      %v1125 = vadd.f32 %v1031, %v1103
      %v1126 = vadd.f32 %v1032, %v1108
      %v1127 = vadd.f32 %v1033, %v1111
      %v1128 = vadd.f32 %v1034, %v1116
      %v1129 = vadd.f32 %v1035, %v1119
      %v1131 = vsel %vm819, %v833, 0.0
      %v1132 = vpack.c.bf16 %v824, %v822
      %v1133 = vpack.c.bf16 %v828, %v826
      %v1134 = vpack.c.bf16 %v832, %v830
      %v1135 = vpack.c.bf16 %v1131, %v834
      %s1136 = scalar_lea.vmem %s4, 20
      %v1137 = vld [vmem:[%s1136] sm:$0xf]
      %v1139 = vsel %vm649, %v1132, 0
      %v1142 = vsel %vm649, %v1133, 0
      %v1145 = vsel %vm649, %v1134, 0
      %v1148 = vsel %vm649, %v1135, 0
      %v1151 = vsel %vm662, %v1137, 0
      %1153 = vmatprep.subr.bf16.mxu0 0
      %1154 = vmatpush1.bf16.msra.mxu0 %v1151
      %1155 = vmatprep.subr.bf16.mxu0 0
      %1156 = vmatpush1.bf16.msra.mxu0 0
      %1157 = vmatprep.subr.bf16.mxu0 0
      %1158 = vmatpush1.bf16.msra.mxu0 0
      %1159 = vmatprep.subr.bf16.mxu0 0
      %1160 = vmatpush1.bf16.msra.mxu0 0
      %1161 = vmatprep.subr.bf16.mxu0 0
      %1162 = vmatpush1.bf16.msra.mxu0 0
      %1163 = vmatprep.subr.bf16.mxu0 0
      %1164 = vmatpush1.bf16.msra.mxu0 0
      %1165 = vmatprep.subr.bf16.mxu0 0
      %1166 = vmatpush1.bf16.msra.mxu0 0
      %1167 = vmatprep.subr.bf16.mxu0 0
      %1168 = vmatpush1.bf16.msra.mxu0 0
      %1169 = vmatprep.subr.bf16.mxu0 0
      %1170 = vmatpush1.bf16.msra.mxu0 0
      %1171 = vmatprep.subr.bf16.mxu0 0
      %1172 = vmatpush1.bf16.msra.mxu0 0
      %1173 = vmatprep.subr.bf16.mxu0 0
      %1174 = vmatpush1.bf16.msra.mxu0 0
      %1175 = vmatprep.subr.bf16.mxu0 0
      %1176 = vmatpush1.bf16.msra.mxu0 0
      %1177 = vmatprep.subr.bf16.mxu0 0
      %1178 = vmatpush1.bf16.msra.mxu0 0
      %1179 = vmatprep.subr.bf16.mxu0 0
      %1180 = vmatpush1.bf16.msra.mxu0 0
      %1181 = vmatprep.subr.bf16.mxu0 0
      %1182 = vmatpush1.bf16.msra.mxu0 0
      %1183 = vmatprep.subr.bf16.mxu0 0
      %1184 = vmatpush1.bf16.msra.mxu0 0
      %1185 = vmatprep.mubr.bf16.mxu0 0
      %1186 = vmatmul.mubr.bf16.gmra.mrb[0].mxu0 %v1139
      %v1187 = vpop.f32.mrb[0].mxu0
      %v1188 = vadd.f32 0.0, %v1187
      %v1189 = vpop.f32.mrb[0].mxu0
      %v1190 = vpop.f32.mrb[0].mxu0
      %v1191 = vadd.f32 0.0, %v1190
      %v1192 = vpop.f32.mrb[0].mxu0
      %1193 = vmatprep.mubr.bf16.mxu0 0
      %1194 = vmatmul.mubr.bf16.gmra.mrb[0].mxu0 %v1142
      %v1195 = vpop.f32.mrb[0].mxu0
      %v1196 = vadd.f32 0.0, %v1195
      %v1197 = vpop.f32.mrb[0].mxu0
      %v1198 = vpop.f32.mrb[0].mxu0
      %v1199 = vadd.f32 0.0, %v1198
      %v1200 = vpop.f32.mrb[0].mxu0
      %1201 = vmatprep.mubr.bf16.mxu0 0
      %1202 = vmatmul.mubr.bf16.gmra.mrb[0].mxu0 %v1145
      %v1203 = vpop.f32.mrb[0].mxu0
      %v1204 = vadd.f32 0.0, %v1203
      %v1205 = vpop.f32.mrb[0].mxu0
      %v1206 = vpop.f32.mrb[0].mxu0
      %v1207 = vadd.f32 0.0, %v1206
      %v1208 = vpop.f32.mrb[0].mxu0
      %1209 = vmatprep.mubr.bf16.mxu0 0
      %1210 = vmatmul.mubr.bf16.gmra.mrb[0].mxu0 %v1148
      %v1211 = vpop.f32.mrb[0].mxu0
      %v1212 = vadd.f32 0.0, %v1211
      %v1213 = vpop.f32.mrb[0].mxu0
      %v1214 = vpop.f32.mrb[0].mxu0
      %v1215 = vadd.f32 0.0, %v1214
      %v1216 = vpop.f32.mrb[0].mxu0
      %1217 = vdwg.mxu0
      %v1218 = vadd.f32 %v1122, %v1188
      %v1219 = vadd.f32 %v1123, %v1191
      %v1220 = vadd.f32 %v1124, %v1196
      %v1221 = vadd.f32 %v1125, %v1199
      %v1222 = vadd.f32 %v1126, %v1204
      %v1223 = vadd.f32 %v1127, %v1207
      %v1224 = vadd.f32 %v1128, %v1212
      %v1225 = vadd.f32 %v1129, %v1215
      %v1227 = vsel %vm616, %v939, 0.0
      %v1228 = vpack.c.bf16 %v1227, %v940
      %s1229 = scalar_lea.vmem %s4, 24
      %v1230 = vld [vmem:[%s1229] sm:$0xf]
      %v1232 = vsel %vm649, %v1228, 0
      %v1235 = vsel %vm662, %v1230, 0
      %1237 = vmatprep.subr.bf16.mxu0 0
      %1238 = vmatpush1.bf16.msra.mxu0 %v1235
      %1239 = vmatprep.subr.bf16.mxu0 0
      %1240 = vmatpush1.bf16.msra.mxu0 0
      %1241 = vmatprep.subr.bf16.mxu0 0
      %1242 = vmatpush1.bf16.msra.mxu0 0
      %1243 = vmatprep.subr.bf16.mxu0 0
      %1244 = vmatpush1.bf16.msra.mxu0 0
      %1245 = vmatprep.subr.bf16.mxu0 0
      %1246 = vmatpush1.bf16.msra.mxu0 0
      %1247 = vmatprep.subr.bf16.mxu0 0
      %1248 = vmatpush1.bf16.msra.mxu0 0
      %1249 = vmatprep.subr.bf16.mxu0 0
      %1250 = vmatpush1.bf16.msra.mxu0 0
      %1251 = vmatprep.subr.bf16.mxu0 0
      %1252 = vmatpush1.bf16.msra.mxu0 0
      %1253 = vmatprep.subr.bf16.mxu0 0
      %1254 = vmatpush1.bf16.msra.mxu0 0
      %1255 = vmatprep.subr.bf16.mxu0 0
      %1256 = vmatpush1.bf16.msra.mxu0 0
      %1257 = vmatprep.subr.bf16.mxu0 0
      %1258 = vmatpush1.bf16.msra.mxu0 0
      %1259 = vmatprep.subr.bf16.mxu0 0
      %1260 = vmatpush1.bf16.msra.mxu0 0
      %1261 = vmatprep.subr.bf16.mxu0 0
      %1262 = vmatpush1.bf16.msra.mxu0 0
      %1263 = vmatprep.subr.bf16.mxu0 0
      %1264 = vmatpush1.bf16.msra.mxu0 0
      %1265 = vmatprep.subr.bf16.mxu0 0
      %1266 = vmatpush1.bf16.msra.mxu0 0
      %1267 = vmatprep.subr.bf16.mxu0 0
      %1268 = vmatpush1.bf16.msra.mxu0 0
      %1269 = vmatprep.mubr.bf16.mxu0 0
      %1270 = vmatmul.mubr.bf16.gmra.mrb[0].mxu0 %v735
      %v1271 = vpop.f32.mrb[0].mxu0
      %v1272 = vadd.f32 0.0, %v1271
      %v1273 = vpop.f32.mrb[0].mxu0
      %v1274 = vpop.f32.mrb[0].mxu0
      %v1275 = vadd.f32 0.0, %v1274
      %v1276 = vpop.f32.mrb[0].mxu0
      %1277 = vmatprep.mubr.bf16.mxu0 0
      %1278 = vmatmul.mubr.bf16.gmra.mrb[0].mxu0 %v738
      %v1279 = vpop.f32.mrb[0].mxu0
      %v1280 = vadd.f32 0.0, %v1279
      %v1281 = vpop.f32.mrb[0].mxu0
      %v1282 = vpop.f32.mrb[0].mxu0
      %v1283 = vadd.f32 0.0, %v1282
      %v1284 = vpop.f32.mrb[0].mxu0
      %1285 = vmatprep.mubr.bf16.mxu0 0
      %1286 = vmatmul.mubr.bf16.gmra.mrb[0].mxu0 %v741
      %v1287 = vpop.f32.mrb[0].mxu0
      %v1288 = vadd.f32 0.0, %v1287
      %v1289 = vpop.f32.mrb[0].mxu0
      %v1290 = vpop.f32.mrb[0].mxu0
      %v1291 = vadd.f32 0.0, %v1290
      %v1292 = vpop.f32.mrb[0].mxu0
      %1293 = vmatprep.mubr.bf16.mxu0 0
      %1294 = vmatmul.mubr.bf16.gmra.mrb[0].mxu0 %v1232
      %v1295 = vpop.f32.mrb[0].mxu0
      %v1296 = vadd.f32 0.0, %v1295
      %v1297 = vpop.f32.mrb[0].mxu0
      %v1298 = vpop.f32.mrb[0].mxu0
      %v1299 = vadd.f32 0.0, %v1298
      %v1300 = vpop.f32.mrb[0].mxu0
      %1301 = vdwg.mxu0
      %v1302 = vadd.f32 %v1218, %v1272
      %v1303 = vadd.f32 %v1219, %v1275
      %v1304 = vadd.f32 %v1220, %v1280
      %v1305 = vadd.f32 %v1221, %v1283
      %v1306 = vadd.f32 %v1222, %v1288
      %v1307 = vadd.f32 %v1223, %v1291
      %v1308 = vadd.f32 %v1224, %v1296
      %v1309 = vadd.f32 %v1225, %v1299
      %v1310 = vpack.c.bf16 0.0, %v524
      %s1311 = scalar_lea.vmem %s4, 28
      %v1312 = vld [vmem:[%s1311] sm:$0xf]
      %v1314 = vsel %vm649, %v1310, 0
      %v1317 = vsel %vm662, %v1312, 0
      %1319 = vmatprep.subr.bf16.mxu0 0
      %1320 = vmatpush1.bf16.msra.mxu0 %v1317
      %1321 = vmatprep.subr.bf16.mxu0 0
      %1322 = vmatpush1.bf16.msra.mxu0 0
      %1323 = vmatprep.subr.bf16.mxu0 0
      %1324 = vmatpush1.bf16.msra.mxu0 0
      %1325 = vmatprep.subr.bf16.mxu0 0
      %1326 = vmatpush1.bf16.msra.mxu0 0
      %1327 = vmatprep.subr.bf16.mxu0 0
      %1328 = vmatpush1.bf16.msra.mxu0 0
      %1329 = vmatprep.subr.bf16.mxu0 0
      %1330 = vmatpush1.bf16.msra.mxu0 0
      %1331 = vmatprep.subr.bf16.mxu0 0
      %1332 = vmatpush1.bf16.msra.mxu0 0
      %1333 = vmatprep.subr.bf16.mxu0 0
      %1334 = vmatpush1.bf16.msra.mxu0 0
      %1335 = vmatprep.subr.bf16.mxu0 0
      %1336 = vmatpush1.bf16.msra.mxu0 0
      %1337 = vmatprep.subr.bf16.mxu0 0
      %1338 = vmatpush1.bf16.msra.mxu0 0
      %1339 = vmatprep.subr.bf16.mxu0 0
      %1340 = vmatpush1.bf16.msra.mxu0 0
      %1341 = vmatprep.subr.bf16.mxu0 0
      %1342 = vmatpush1.bf16.msra.mxu0 0
      %1343 = vmatprep.subr.bf16.mxu0 0
      %1344 = vmatpush1.bf16.msra.mxu0 0
      %1345 = vmatprep.subr.bf16.mxu0 0
      %1346 = vmatpush1.bf16.msra.mxu0 0
      %1347 = vmatprep.subr.bf16.mxu0 0
      %1348 = vmatpush1.bf16.msra.mxu0 0
      %1349 = vmatprep.subr.bf16.mxu0 0
      %1350 = vmatpush1.bf16.msra.mxu0 0
      %1351 = vmatprep.mubr.bf16.mxu0 0
      %1352 = vmatmul.mubr.bf16.gmra.mrb[0].mxu0 %v654
      %v1353 = vpop.f32.mrb[0].mxu0
      %v1354 = vadd.f32 0.0, %v1353
      %v1355 = vpop.f32.mrb[0].mxu0
      %v1356 = vpop.f32.mrb[0].mxu0
      %v1357 = vadd.f32 0.0, %v1356
      %v1358 = vpop.f32.mrb[0].mxu0
      %1359 = vmatprep.mubr.bf16.mxu0 0
      %1360 = vmatmul.mubr.bf16.gmra.mrb[0].mxu0 %v657
      %v1361 = vpop.f32.mrb[0].mxu0
      %v1362 = vadd.f32 0.0, %v1361
      %v1363 = vpop.f32.mrb[0].mxu0
      %v1364 = vpop.f32.mrb[0].mxu0
      %v1365 = vadd.f32 0.0, %v1364
      %v1366 = vpop.f32.mrb[0].mxu0
      %1367 = vmatprep.mubr.bf16.mxu0 0
      %1368 = vmatmul.mubr.bf16.gmra.mrb[0].mxu0 %v660
      %v1369 = vpop.f32.mrb[0].mxu0
      %v1370 = vadd.f32 0.0, %v1369
      %v1371 = vpop.f32.mrb[0].mxu0
      %v1372 = vpop.f32.mrb[0].mxu0
      %v1373 = vadd.f32 0.0, %v1372
      %v1374 = vpop.f32.mrb[0].mxu0
      %1375 = vmatprep.mubr.bf16.mxu0 0
      %1376 = vmatmul.mubr.bf16.gmra.mrb[0].mxu0 %v1314
      %v1377 = vpop.f32.mrb[0].mxu0
      %v1378 = vadd.f32 0.0, %v1377
      %v1379 = vpop.f32.mrb[0].mxu0
      %v1380 = vpop.f32.mrb[0].mxu0
      %v1381 = vadd.f32 0.0, %v1380
      %v1382 = vpop.f32.mrb[0].mxu0
      %1383 = vdwg.mxu0
      %v1384 = vadd.f32 %v1302, %v1354
      %v1385 = vadd.f32 %v1303, %v1357
      %v1386 = vadd.f32 %v1304, %v1362
      %v1387 = vadd.f32 %v1305, %v1365
      %v1388 = vadd.f32 %v1306, %v1370
      %v1389 = vadd.f32 %v1307, %v1373
      %v1390 = vadd.f32 %v1308, %v1378
      %v1391 = vadd.f32 %v1309, %v1381
      %v1392 = vpack.c.bf16 0.0, %v1131
      %s1393 = scalar_lea.vmem %s4, 32
      %v1394 = vld [vmem:[%s1393] sm:$0xf]
      %v1396 = vsel %vm649, %v1392, 0
      %v1399 = vsel %vm662, %v1394, 0
      %1401 = vmatprep.subr.bf16.mxu0 0
      %1402 = vmatpush1.bf16.msra.mxu0 %v1399
      %1403 = vmatprep.subr.bf16.mxu0 0
      %1404 = vmatpush1.bf16.msra.mxu0 0
      %1405 = vmatprep.subr.bf16.mxu0 0
      %1406 = vmatpush1.bf16.msra.mxu0 0
      %1407 = vmatprep.subr.bf16.mxu0 0
      %1408 = vmatpush1.bf16.msra.mxu0 0
      %1409 = vmatprep.subr.bf16.mxu0 0
      %1410 = vmatpush1.bf16.msra.mxu0 0
      %1411 = vmatprep.subr.bf16.mxu0 0
      %1412 = vmatpush1.bf16.msra.mxu0 0
      %1413 = vmatprep.subr.bf16.mxu0 0
      %1414 = vmatpush1.bf16.msra.mxu0 0
      %1415 = vmatprep.subr.bf16.mxu0 0
      %1416 = vmatpush1.bf16.msra.mxu0 0
      %1417 = vmatprep.subr.bf16.mxu0 0
      %1418 = vmatpush1.bf16.msra.mxu0 0
      %1419 = vmatprep.subr.bf16.mxu0 0
      %1420 = vmatpush1.bf16.msra.mxu0 0
      %1421 = vmatprep.subr.bf16.mxu0 0
      %1422 = vmatpush1.bf16.msra.mxu0 0
      %1423 = vmatprep.subr.bf16.mxu0 0
      %1424 = vmatpush1.bf16.msra.mxu0 0
      %1425 = vmatprep.subr.bf16.mxu0 0
      %1426 = vmatpush1.bf16.msra.mxu0 0
      %1427 = vmatprep.subr.bf16.mxu0 0
      %1428 = vmatpush1.bf16.msra.mxu0 0
      %1429 = vmatprep.subr.bf16.mxu0 0
      %1430 = vmatpush1.bf16.msra.mxu0 0
      %1431 = vmatprep.subr.bf16.mxu0 0
      %1432 = vmatpush1.bf16.msra.mxu0 0
      %1433 = vmatprep.mubr.bf16.mxu0 0
      %1434 = vmatmul.mubr.bf16.gmra.mrb[0].mxu0 %v854
      %v1435 = vpop.f32.mrb[0].mxu0
      %v1436 = vadd.f32 0.0, %v1435
      %v1437 = vpop.f32.mrb[0].mxu0
      %v1438 = vpop.f32.mrb[0].mxu0
      %v1439 = vadd.f32 0.0, %v1438
      %v1440 = vpop.f32.mrb[0].mxu0
      %1441 = vmatprep.mubr.bf16.mxu0 0
      %1442 = vmatmul.mubr.bf16.gmra.mrb[0].mxu0 %v857
      %v1443 = vpop.f32.mrb[0].mxu0
      %v1444 = vadd.f32 0.0, %v1443
      %v1445 = vpop.f32.mrb[0].mxu0
      %v1446 = vpop.f32.mrb[0].mxu0
      %v1447 = vadd.f32 0.0, %v1446
      %v1448 = vpop.f32.mrb[0].mxu0
      %1449 = vmatprep.mubr.bf16.mxu0 0
      %1450 = vmatmul.mubr.bf16.gmra.mrb[0].mxu0 %v860
      %v1451 = vpop.f32.mrb[0].mxu0
      %v1452 = vadd.f32 0.0, %v1451
      %v1453 = vpop.f32.mrb[0].mxu0
      %v1454 = vpop.f32.mrb[0].mxu0
      %v1455 = vadd.f32 0.0, %v1454
      %v1456 = vpop.f32.mrb[0].mxu0
      %1457 = vmatprep.mubr.bf16.mxu0 0
      %1458 = vmatmul.mubr.bf16.gmra.mrb[0].mxu0 %v1396
      %v1459 = vpop.f32.mrb[0].mxu0
      %v1460 = vadd.f32 0.0, %v1459
      %v1461 = vpop.f32.mrb[0].mxu0
      %v1462 = vpop.f32.mrb[0].mxu0
      %v1463 = vadd.f32 0.0, %v1462
      %v1464 = vpop.f32.mrb[0].mxu0
      %1465 = vdwg.mxu0
      %v1466 = vadd.f32 %v1384, %v1436
      %v1467 = vadd.f32 %v1385, %v1439
      %v1468 = vadd.f32 %v1386, %v1444
      %v1469 = vadd.f32 %v1387, %v1447
      %v1470 = vadd.f32 %v1388, %v1452
      %v1471 = vadd.f32 %v1389, %v1455
      %v1472 = vadd.f32 %v1390, %v1460
      %v1473 = vadd.f32 %v1391, %v1463
      %v1475 = vlaneseq
      %v1476 = vshrl.u32 %v1475, 7
      %v1477 = vsub.s32 0, %v1476
      %v1478 = vrot.slane %v527, %v1477
      %v1480 = vadd.f32 %v1466, %v1478
      %v1481 = vadd.f32 %v1467, %v1478
      %v1482 = vadd.f32 %v1468, %v1478
      %v1483 = vadd.f32 %v1469, %v1478
      %v1484 = vadd.f32 %v1470, %v1478
      %v1485 = vadd.f32 %v1471, %v1478
      %v1486 = vadd.f32 %v1472, %v1478
      %v1487 = vadd.f32 %v1473, %v1478
      %v1488 = vmax.f32 %v1480, 0.0
      %v1489 = vmax.f32 %v1481, 0.0
      %v1490 = vmax.f32 %v1482, 0.0
      %v1491 = vmax.f32 %v1483, 0.0
      %v1492 = vmax.f32 %v1484, 0.0
      %v1493 = vmax.f32 %v1485, 0.0
      %v1494 = vmax.f32 %v1486, 0.0
      %v1495 = vmax.f32 %v1487, 0.0
      %v1496 = vpack.c.bf16 %v1489, %v1488
      %v1497 = vpack.c.bf16 %v1491, %v1490
      %v1498 = vpack.c.bf16 %v1493, %v1492
      %v1499 = vpack.c.bf16 %v1495, %v1494
      %v1500 = vld [vmem:[%s6] sm:$0xf]
      %v1501 = vld [vmem:[%s6 + $0x4] sm:$0xf]
      %v1502 = vld [vmem:[%s6 + $0x8] sm:$0xf]
      %v1503 = vld [vmem:[%s6 + $0xc] sm:$0xf]
      %v1504 = vld [vmem:[%s7] sm:$0x1]
      %v1506 = vlaneseq
      %v1507 = vshrl.u32 %v1506, 7
      %v1508 = vsub.s32 0, %v1507
      %v1509 = vrot.slane %v1504, %v1508
      %v1515 = vunpack.c.l.b16 %v1500
      %v1516 = vunpack.c.l.b16 %v1501
      %v1517 = vunpack.c.l.b16 %v1502
      %v1518 = vunpack.c.l.b16 %v1503
      %v1519 = vpack.c.b16 %v1516, %v1515
      %v1520 = vpack.c.b16 %v1518, %v1517
      %vm1523 = vcmask 261120
      %v1525 = vsel %vm1523, %v1496, 0
      %v1528 = vsel %vm1523, %v1497, 0
      %v1531 = vsel %vm1523, %v1498, 0
      %v1534 = vsel %vm1523, %v1499, 0
      %1536 = vmatprep.subr.bf16.mxu0 0
      %1537 = vmatpush1.bf16.msra.mxu0 %v1519
      %1538 = vmatprep.subr.bf16.mxu0 0
      %1539 = vmatpush1.bf16.msra.mxu0 %v1520
      %1540 = vmatprep.subr.bf16.mxu0 0
      %1541 = vmatpush1.bf16.msra.mxu0 0
      %1542 = vmatprep.subr.bf16.mxu0 0
      %1543 = vmatpush1.bf16.msra.mxu0 0
      %1544 = vmatprep.subr.bf16.mxu0 0
      %1545 = vmatpush1.bf16.msra.mxu0 0
      %1546 = vmatprep.subr.bf16.mxu0 0
      %1547 = vmatpush1.bf16.msra.mxu0 0
      %1548 = vmatprep.subr.bf16.mxu0 0
      %1549 = vmatpush1.bf16.msra.mxu0 0
      %1550 = vmatprep.subr.bf16.mxu0 0
      %1551 = vmatpush1.bf16.msra.mxu0 0
      %1552 = vmatprep.subr.bf16.mxu0 0
      %1553 = vmatpush1.bf16.msra.mxu0 0
      %1554 = vmatprep.subr.bf16.mxu0 0
      %1555 = vmatpush1.bf16.msra.mxu0 0
      %1556 = vmatprep.subr.bf16.mxu0 0
      %1557 = vmatpush1.bf16.msra.mxu0 0
      %1558 = vmatprep.subr.bf16.mxu0 0
      %1559 = vmatpush1.bf16.msra.mxu0 0
      %1560 = vmatprep.subr.bf16.mxu0 0
      %1561 = vmatpush1.bf16.msra.mxu0 0
      %1562 = vmatprep.subr.bf16.mxu0 0
      %1563 = vmatpush1.bf16.msra.mxu0 0
      %1564 = vmatprep.subr.bf16.mxu0 0
      %1565 = vmatpush1.bf16.msra.mxu0 0
      %1566 = vmatprep.subr.bf16.mxu0 0
      %1567 = vmatpush1.bf16.msra.mxu0 0
      %1568 = vmatprep.mubr.bf16.mxu0 0
      %1569 = vmatmul.mubr.bf16.gmra.mrb[0].mxu0 %v1525
      %v1570 = vpop.f32.mrb[0].mxu0
      %v1571 = vadd.f32 %v1509, %v1570
      %v1572 = vpop.f32.mrb[0].mxu0
      %v1573 = vpop.f32.mrb[0].mxu0
      %v1574 = vadd.f32 %v1509, %v1573
      %v1575 = vpop.f32.mrb[0].mxu0
      %1576 = vmatprep.mubr.bf16.mxu0 0
      %1577 = vmatmul.mubr.bf16.gmra.mrb[0].mxu0 %v1528
      %v1578 = vpop.f32.mrb[0].mxu0
      %v1579 = vadd.f32 %v1509, %v1578
      %v1580 = vpop.f32.mrb[0].mxu0
      %v1581 = vpop.f32.mrb[0].mxu0
      %v1582 = vadd.f32 %v1509, %v1581
      %v1583 = vpop.f32.mrb[0].mxu0
      %1584 = vmatprep.mubr.bf16.mxu0 0
      %1585 = vmatmul.mubr.bf16.gmra.mrb[0].mxu0 %v1531
      %v1586 = vpop.f32.mrb[0].mxu0
      %v1587 = vadd.f32 %v1509, %v1586
      %v1588 = vpop.f32.mrb[0].mxu0
      %v1589 = vpop.f32.mrb[0].mxu0
      %v1590 = vadd.f32 %v1509, %v1589
      %v1591 = vpop.f32.mrb[0].mxu0
      %1592 = vmatprep.mubr.bf16.mxu0 0
      %1593 = vmatmul.mubr.bf16.gmra.mrb[0].mxu0 %v1534
      %v1594 = vpop.f32.mrb[0].mxu0
      %v1595 = vadd.f32 %v1509, %v1594
      %v1596 = vpop.f32.mrb[0].mxu0
      %v1597 = vpop.f32.mrb[0].mxu0
      %v1598 = vadd.f32 %v1509, %v1597
      %v1599 = vpop.f32.mrb[0].mxu0
      %1600 = vdwg.mxu0
      %v1601 = vmax.f32 %v1571, 0.0
      %v1602 = vmax.f32 %v1574, 0.0
      %v1603 = vmax.f32 %v1579, 0.0
      %v1604 = vmax.f32 %v1582, 0.0
      %v1605 = vmax.f32 %v1587, 0.0
      %v1606 = vmax.f32 %v1590, 0.0
      %v1607 = vmax.f32 %v1595, 0.0
      %v1608 = vmax.f32 %v1598, 0.0
      %v1609 = vld [vmem:[%s9] sm:$0x1]
      %v1610 = vsel %vm561, 0.0, %v1601
      %v1611 = vsel %vm562, 0.0, %v1602
      %v1612 = vsel %vm563, 0.0, %v1603
      %v1613 = vsel %vm564, 0.0, %v1604
      %v1614 = vsel %vm565, 0.0, %v1605
      %v1615 = vsel %vm566, 0.0, %v1606
      %v1616 = vsel %vm567, 0.0, %v1607
      %v1617 = vsel %vm568, 0.0, %v1608
      %v1618 = vsel %vm593, 0.0, %v1601
      %v1619 = vsel %vm594, 0.0, %v1602
      %v1620 = vsel %vm595, 0.0, %v1603
      %v1621 = vsel %vm596, 0.0, %v1604
      %v1622 = vsel %vm597, 0.0, %v1605
      %v1623 = vsel %vm598, 0.0, %v1606
      %v1624 = vsel %vm599, 0.0, %v1607
      %v1625 = vsel %vm600, 0.0, %v1608
      %v1633 = vrot.slane %v1610, 7
      %v1634 = vrot.slane %v1611, 7
      %v1635 = vsel %vm616, %v1633, %v1634
      %v1636 = vrot.slane %v1612, 7
      %v1637 = vsel %vm616, %v1634, %v1636
      %v1638 = vrot.slane %v1613, 7
      %v1639 = vsel %vm616, %v1636, %v1638
      %v1640 = vrot.slane %v1614, 7
      %v1641 = vsel %vm616, %v1638, %v1640
      %v1642 = vrot.slane %v1615, 7
      %v1643 = vsel %vm616, %v1640, %v1642
      %v1644 = vrot.slane %v1616, 7
      %v1645 = vsel %vm616, %v1642, %v1644
      %v1653 = vsel %vm616, 0.0, %v1633
      %v1654 = vpack.c.bf16 %v1653, 0.0
      %v1655 = vpack.c.bf16 %v1637, %v1635
      %v1656 = vpack.c.bf16 %v1641, %v1639
      %v1657 = vpack.c.bf16 %v1645, %v1643
      %v1658 = vld [vmem:[%s8] sm:$0xf]
      %v1659 = vld [vmem:[%s8 + $0x4] sm:$0xf]
      %v1660 = vld [vmem:[%s8 + $0x8] sm:$0xf]
      %v1661 = vld [vmem:[%s8 + $0xc] sm:$0xf]
      %v1662 = vpack.c.bf16 %v1601, 0.0
      %v1663 = vpack.c.bf16 %v1603, %v1602
      %v1664 = vpack.c.bf16 %v1605, %v1604
      %v1665 = vpack.c.bf16 %v1607, %v1606
      %s1666 = scalar_lea.vmem %s8, 16
      %v1667 = vld [vmem:[%s1666] sm:$0xf]
      %v1668 = vld [vmem:[%s1666 + $0x4] sm:$0xf]
      %v1669 = vld [vmem:[%s1666 + $0x8] sm:$0xf]
      %v1670 = vld [vmem:[%s1666 + $0xc] sm:$0xf]
      %v1675 = vunpack.c.l.b16 %v1667
      %v1676 = vunpack.c.l.b16 %v1668
      %v1677 = vunpack.c.l.b16 %v1669
      %v1678 = vunpack.c.l.b16 %v1670
      %v1679 = vpack.c.b16 %v1676, %v1675
      %v1680 = vpack.c.b16 %v1678, %v1677
      %v1684 = vsel %vm1523, %v1662, 0
      %v1687 = vsel %vm1523, %v1663, 0
      %v1690 = vsel %vm1523, %v1664, 0
      %v1693 = vsel %vm1523, %v1665, 0
      %1695 = vmatprep.subr.bf16.mxu0 0
      %1696 = vmatpush1.bf16.msra.mxu0 %v1679
      %1697 = vmatprep.subr.bf16.mxu0 0
      %1698 = vmatpush1.bf16.msra.mxu0 %v1680
      %1699 = vmatprep.subr.bf16.mxu0 0
      %1700 = vmatpush1.bf16.msra.mxu0 0
      %1701 = vmatprep.subr.bf16.mxu0 0
      %1702 = vmatpush1.bf16.msra.mxu0 0
      %1703 = vmatprep.subr.bf16.mxu0 0
      %1704 = vmatpush1.bf16.msra.mxu0 0
      %1705 = vmatprep.subr.bf16.mxu0 0
      %1706 = vmatpush1.bf16.msra.mxu0 0
      %1707 = vmatprep.subr.bf16.mxu0 0
      %1708 = vmatpush1.bf16.msra.mxu0 0
      %1709 = vmatprep.subr.bf16.mxu0 0
      %1710 = vmatpush1.bf16.msra.mxu0 0
      %1711 = vmatprep.subr.bf16.mxu0 0
      %1712 = vmatpush1.bf16.msra.mxu0 0
      %1713 = vmatprep.subr.bf16.mxu0 0
      %1714 = vmatpush1.bf16.msra.mxu0 0
      %1715 = vmatprep.subr.bf16.mxu0 0
      %1716 = vmatpush1.bf16.msra.mxu0 0
      %1717 = vmatprep.subr.bf16.mxu0 0
      %1718 = vmatpush1.bf16.msra.mxu0 0
      %1719 = vmatprep.subr.bf16.mxu0 0
      %1720 = vmatpush1.bf16.msra.mxu0 0
      %1721 = vmatprep.subr.bf16.mxu0 0
      %1722 = vmatpush1.bf16.msra.mxu0 0
      %1723 = vmatprep.subr.bf16.mxu0 0
      %1724 = vmatpush1.bf16.msra.mxu0 0
      %1725 = vmatprep.subr.bf16.mxu0 0
      %1726 = vmatpush1.bf16.msra.mxu0 0
      %1727 = vmatprep.mubr.bf16.mxu0 0
      %1728 = vmatmul.mubr.bf16.gmra.mrb[0].mxu0 %v1684
      %v1729 = vpop.f32.mrb[0].mxu0
      %v1730 = vadd.f32 0.0, %v1729
      %v1731 = vpop.f32.mrb[0].mxu0
      %v1732 = vpop.f32.mrb[0].mxu0
      %v1733 = vadd.f32 0.0, %v1732
      %v1734 = vpop.f32.mrb[0].mxu0
      %1735 = vmatprep.mubr.bf16.mxu0 0
      %1736 = vmatmul.mubr.bf16.gmra.mrb[0].mxu0 %v1687
      %v1737 = vpop.f32.mrb[0].mxu0
      %v1738 = vadd.f32 0.0, %v1737
      %v1739 = vpop.f32.mrb[0].mxu0
      %v1740 = vpop.f32.mrb[0].mxu0
      %v1741 = vadd.f32 0.0, %v1740
      %v1742 = vpop.f32.mrb[0].mxu0
      %1743 = vmatprep.mubr.bf16.mxu0 0
      %1744 = vmatmul.mubr.bf16.gmra.mrb[0].mxu0 %v1690
      %v1745 = vpop.f32.mrb[0].mxu0
      %v1746 = vadd.f32 0.0, %v1745
      %v1747 = vpop.f32.mrb[0].mxu0
      %v1748 = vpop.f32.mrb[0].mxu0
      %v1749 = vadd.f32 0.0, %v1748
      %v1750 = vpop.f32.mrb[0].mxu0
      %1751 = vmatprep.mubr.bf16.mxu0 0
      %1752 = vmatmul.mubr.bf16.gmra.mrb[0].mxu0 %v1693
      %v1753 = vpop.f32.mrb[0].mxu0
      %v1754 = vadd.f32 0.0, %v1753
      %v1755 = vpop.f32.mrb[0].mxu0
      %v1756 = vpop.f32.mrb[0].mxu0
      %v1757 = vadd.f32 0.0, %v1756
      %v1758 = vpop.f32.mrb[0].mxu0
      %1759 = vdwg.mxu0
      %v1764 = vunpack.c.l.b16 %v1658
      %v1765 = vunpack.c.l.b16 %v1659
      %v1766 = vunpack.c.l.b16 %v1660
      %v1767 = vunpack.c.l.b16 %v1661
      %v1768 = vpack.c.b16 %v1765, %v1764
      %v1769 = vpack.c.b16 %v1767, %v1766
      %v1773 = vsel %vm1523, %v1654, 0
      %v1776 = vsel %vm1523, %v1655, 0
      %v1779 = vsel %vm1523, %v1656, 0
      %v1782 = vsel %vm1523, %v1657, 0
      %1784 = vmatprep.subr.bf16.mxu0 0
      %1785 = vmatpush1.bf16.msra.mxu0 %v1768
      %1786 = vmatprep.subr.bf16.mxu0 0
      %1787 = vmatpush1.bf16.msra.mxu0 %v1769
      %1788 = vmatprep.subr.bf16.mxu0 0
      %1789 = vmatpush1.bf16.msra.mxu0 0
      %1790 = vmatprep.subr.bf16.mxu0 0
      %1791 = vmatpush1.bf16.msra.mxu0 0
      %1792 = vmatprep.subr.bf16.mxu0 0
      %1793 = vmatpush1.bf16.msra.mxu0 0
      %1794 = vmatprep.subr.bf16.mxu0 0
      %1795 = vmatpush1.bf16.msra.mxu0 0
      %1796 = vmatprep.subr.bf16.mxu0 0
      %1797 = vmatpush1.bf16.msra.mxu0 0
      %1798 = vmatprep.subr.bf16.mxu0 0
      %1799 = vmatpush1.bf16.msra.mxu0 0
      %1800 = vmatprep.subr.bf16.mxu0 0
      %1801 = vmatpush1.bf16.msra.mxu0 0
      %1802 = vmatprep.subr.bf16.mxu0 0
      %1803 = vmatpush1.bf16.msra.mxu0 0
      %1804 = vmatprep.subr.bf16.mxu0 0
      %1805 = vmatpush1.bf16.msra.mxu0 0
      %1806 = vmatprep.subr.bf16.mxu0 0
      %1807 = vmatpush1.bf16.msra.mxu0 0
      %1808 = vmatprep.subr.bf16.mxu0 0
      %1809 = vmatpush1.bf16.msra.mxu0 0
      %1810 = vmatprep.subr.bf16.mxu0 0
      %1811 = vmatpush1.bf16.msra.mxu0 0
      %1812 = vmatprep.subr.bf16.mxu0 0
      %1813 = vmatpush1.bf16.msra.mxu0 0
      %1814 = vmatprep.subr.bf16.mxu0 0
      %1815 = vmatpush1.bf16.msra.mxu0 0
      %1816 = vmatprep.mubr.bf16.mxu0 0
      %1817 = vmatmul.mubr.bf16.gmra.mrb[0].mxu0 %v1773
      %v1818 = vpop.f32.mrb[0].mxu0
      %v1819 = vadd.f32 %v1730, %v1818
      %v1820 = vpop.f32.mrb[0].mxu0
      %v1821 = vpop.f32.mrb[0].mxu0
      %v1822 = vadd.f32 %v1733, %v1821
      %v1823 = vpop.f32.mrb[0].mxu0
      %1824 = vmatprep.mubr.bf16.mxu0 0
      %1825 = vmatmul.mubr.bf16.gmra.mrb[0].mxu0 %v1776
      %v1826 = vpop.f32.mrb[0].mxu0
      %v1827 = vadd.f32 %v1738, %v1826
      %v1828 = vpop.f32.mrb[0].mxu0
      %v1829 = vpop.f32.mrb[0].mxu0
      %v1830 = vadd.f32 %v1741, %v1829
      %v1831 = vpop.f32.mrb[0].mxu0
      %1832 = vmatprep.mubr.bf16.mxu0 0
      %1833 = vmatmul.mubr.bf16.gmra.mrb[0].mxu0 %v1779
      %v1834 = vpop.f32.mrb[0].mxu0
      %v1835 = vadd.f32 %v1746, %v1834
      %v1836 = vpop.f32.mrb[0].mxu0
      %v1837 = vpop.f32.mrb[0].mxu0
      %v1838 = vadd.f32 %v1749, %v1837
      %v1839 = vpop.f32.mrb[0].mxu0
      %1840 = vmatprep.mubr.bf16.mxu0 0
      %1841 = vmatmul.mubr.bf16.gmra.mrb[0].mxu0 %v1782
      %v1842 = vpop.f32.mrb[0].mxu0
      %v1843 = vadd.f32 %v1754, %v1842
      %v1844 = vpop.f32.mrb[0].mxu0
      %v1845 = vpop.f32.mrb[0].mxu0
      %v1846 = vadd.f32 %v1757, %v1845
      %v1847 = vpop.f32.mrb[0].mxu0
      %1848 = vdwg.mxu0
      %v1857 = vrot.slane %v1618, 1
      %v1858 = vrot.slane %v1619, 1
      %v1859 = vsel %vm819, %v1857, %v1858
      %v1860 = vrot.slane %v1620, 1
      %v1861 = vsel %vm819, %v1858, %v1860
      %v1862 = vrot.slane %v1621, 1
      %v1863 = vsel %vm819, %v1860, %v1862
      %v1864 = vrot.slane %v1622, 1
      %v1865 = vsel %vm819, %v1862, %v1864
      %v1866 = vrot.slane %v1623, 1
      %v1867 = vsel %vm819, %v1864, %v1866
      %v1868 = vrot.slane %v1624, 1
      %v1869 = vsel %vm819, %v1866, %v1868
      %v1870 = vrot.slane %v1625, 1
      %v1871 = vsel %vm819, %v1868, %v1870
      %v1880 = vsel %vm819, 0.0, %v1857
      %v1881 = vpack.c.bf16 %v1859, %v1880
      %v1882 = vpack.c.bf16 %v1863, %v1861
      %v1883 = vpack.c.bf16 %v1867, %v1865
      %v1884 = vpack.c.bf16 %v1871, %v1869
      %s1885 = scalar_lea.vmem %s8, 32
      %v1886 = vld [vmem:[%s1885] sm:$0xf]
      %v1887 = vld [vmem:[%s1885 + $0x4] sm:$0xf]
      %v1888 = vld [vmem:[%s1885 + $0x8] sm:$0xf]
      %v1889 = vld [vmem:[%s1885 + $0xc] sm:$0xf]
      %v1894 = vunpack.c.l.b16 %v1886
      %v1895 = vunpack.c.l.b16 %v1887
      %v1896 = vunpack.c.l.b16 %v1888
      %v1897 = vunpack.c.l.b16 %v1889
      %v1898 = vpack.c.b16 %v1895, %v1894
      %v1899 = vpack.c.b16 %v1897, %v1896
      %v1903 = vsel %vm1523, %v1881, 0
      %v1906 = vsel %vm1523, %v1882, 0
      %v1909 = vsel %vm1523, %v1883, 0
      %v1912 = vsel %vm1523, %v1884, 0
      %1914 = vmatprep.subr.bf16.mxu0 0
      %1915 = vmatpush1.bf16.msra.mxu0 %v1898
      %1916 = vmatprep.subr.bf16.mxu0 0
      %1917 = vmatpush1.bf16.msra.mxu0 %v1899
      %1918 = vmatprep.subr.bf16.mxu0 0
      %1919 = vmatpush1.bf16.msra.mxu0 0
      %1920 = vmatprep.subr.bf16.mxu0 0
      %1921 = vmatpush1.bf16.msra.mxu0 0
      %1922 = vmatprep.subr.bf16.mxu0 0
      %1923 = vmatpush1.bf16.msra.mxu0 0
      %1924 = vmatprep.subr.bf16.mxu0 0
      %1925 = vmatpush1.bf16.msra.mxu0 0
      %1926 = vmatprep.subr.bf16.mxu0 0
      %1927 = vmatpush1.bf16.msra.mxu0 0
      %1928 = vmatprep.subr.bf16.mxu0 0
      %1929 = vmatpush1.bf16.msra.mxu0 0
      %1930 = vmatprep.subr.bf16.mxu0 0
      %1931 = vmatpush1.bf16.msra.mxu0 0
      %1932 = vmatprep.subr.bf16.mxu0 0
      %1933 = vmatpush1.bf16.msra.mxu0 0
      %1934 = vmatprep.subr.bf16.mxu0 0
      %1935 = vmatpush1.bf16.msra.mxu0 0
      %1936 = vmatprep.subr.bf16.mxu0 0
      %1937 = vmatpush1.bf16.msra.mxu0 0
      %1938 = vmatprep.subr.bf16.mxu0 0
      %1939 = vmatpush1.bf16.msra.mxu0 0
      %1940 = vmatprep.subr.bf16.mxu0 0
      %1941 = vmatpush1.bf16.msra.mxu0 0
      %1942 = vmatprep.subr.bf16.mxu0 0
      %1943 = vmatpush1.bf16.msra.mxu0 0
      %1944 = vmatprep.subr.bf16.mxu0 0
      %1945 = vmatpush1.bf16.msra.mxu0 0
      %1946 = vmatprep.mubr.bf16.mxu0 0
      %1947 = vmatmul.mubr.bf16.gmra.mrb[0].mxu0 %v1903
      %v1948 = vpop.f32.mrb[0].mxu0
      %v1949 = vadd.f32 0.0, %v1948
      %v1950 = vpop.f32.mrb[0].mxu0
      %v1951 = vpop.f32.mrb[0].mxu0
      %v1952 = vadd.f32 0.0, %v1951
      %v1953 = vpop.f32.mrb[0].mxu0
      %1954 = vmatprep.mubr.bf16.mxu0 0
      %1955 = vmatmul.mubr.bf16.gmra.mrb[0].mxu0 %v1906
      %v1956 = vpop.f32.mrb[0].mxu0
      %v1957 = vadd.f32 0.0, %v1956
      %v1958 = vpop.f32.mrb[0].mxu0
      %v1959 = vpop.f32.mrb[0].mxu0
      %v1960 = vadd.f32 0.0, %v1959
      %v1961 = vpop.f32.mrb[0].mxu0
      %1962 = vmatprep.mubr.bf16.mxu0 0
      %1963 = vmatmul.mubr.bf16.gmra.mrb[0].mxu0 %v1909
      %v1964 = vpop.f32.mrb[0].mxu0
      %v1965 = vadd.f32 0.0, %v1964
      %v1966 = vpop.f32.mrb[0].mxu0
      %v1967 = vpop.f32.mrb[0].mxu0
      %v1968 = vadd.f32 0.0, %v1967
      %v1969 = vpop.f32.mrb[0].mxu0
      %1970 = vmatprep.mubr.bf16.mxu0 0
      %1971 = vmatmul.mubr.bf16.gmra.mrb[0].mxu0 %v1912
      %v1972 = vpop.f32.mrb[0].mxu0
      %v1973 = vadd.f32 0.0, %v1972
      %v1974 = vpop.f32.mrb[0].mxu0
      %v1975 = vpop.f32.mrb[0].mxu0
      %v1976 = vadd.f32 0.0, %v1975
      %v1977 = vpop.f32.mrb[0].mxu0
      %1978 = vdwg.mxu0
      %v1979 = vadd.f32 %v1819, %v1949
      %v1980 = vadd.f32 %v1822, %v1952
      %v1981 = vadd.f32 %v1827, %v1957
      %v1982 = vadd.f32 %v1830, %v1960
      %v1983 = vadd.f32 %v1835, %v1965
      %v1984 = vadd.f32 %v1838, %v1968
      %v1985 = vadd.f32 %v1843, %v1973
      %v1986 = vadd.f32 %v1846, %v1976
      %v1988 = vrot.slane %v1617, 7
      %v1989 = vsel %vm616, %v1644, %v1988
      %v1991 = vpack.c.bf16 %v1635, %v1653
      %v1992 = vpack.c.bf16 %v1639, %v1637
      %v1993 = vpack.c.bf16 %v1643, %v1641
      %v1994 = vpack.c.bf16 %v1989, %v1645
      %s1995 = scalar_lea.vmem %s8, 48
      %v1996 = vld [vmem:[%s1995] sm:$0xf]
      %v1997 = vld [vmem:[%s1995 + $0x4] sm:$0xf]
      %v1998 = vld [vmem:[%s1995 + $0x8] sm:$0xf]
      %v1999 = vld [vmem:[%s1995 + $0xc] sm:$0xf]
      %v2004 = vunpack.c.l.b16 %v1996
      %v2005 = vunpack.c.l.b16 %v1997
      %v2006 = vunpack.c.l.b16 %v1998
      %v2007 = vunpack.c.l.b16 %v1999
      %v2008 = vpack.c.b16 %v2005, %v2004
      %v2009 = vpack.c.b16 %v2007, %v2006
      %v2013 = vsel %vm1523, %v1991, 0
      %v2016 = vsel %vm1523, %v1992, 0
      %v2019 = vsel %vm1523, %v1993, 0
      %v2022 = vsel %vm1523, %v1994, 0
      %2024 = vmatprep.subr.bf16.mxu0 0
      %2025 = vmatpush1.bf16.msra.mxu0 %v2008
      %2026 = vmatprep.subr.bf16.mxu0 0
      %2027 = vmatpush1.bf16.msra.mxu0 %v2009
      %2028 = vmatprep.subr.bf16.mxu0 0
      %2029 = vmatpush1.bf16.msra.mxu0 0
      %2030 = vmatprep.subr.bf16.mxu0 0
      %2031 = vmatpush1.bf16.msra.mxu0 0
      %2032 = vmatprep.subr.bf16.mxu0 0
      %2033 = vmatpush1.bf16.msra.mxu0 0
      %2034 = vmatprep.subr.bf16.mxu0 0
      %2035 = vmatpush1.bf16.msra.mxu0 0
      %2036 = vmatprep.subr.bf16.mxu0 0
      %2037 = vmatpush1.bf16.msra.mxu0 0
      %2038 = vmatprep.subr.bf16.mxu0 0
      %2039 = vmatpush1.bf16.msra.mxu0 0
      %2040 = vmatprep.subr.bf16.mxu0 0
      %2041 = vmatpush1.bf16.msra.mxu0 0
      %2042 = vmatprep.subr.bf16.mxu0 0
      %2043 = vmatpush1.bf16.msra.mxu0 0
      %2044 = vmatprep.subr.bf16.mxu0 0
      %2045 = vmatpush1.bf16.msra.mxu0 0
      %2046 = vmatprep.subr.bf16.mxu0 0
      %2047 = vmatpush1.bf16.msra.mxu0 0
      %2048 = vmatprep.subr.bf16.mxu0 0
      %2049 = vmatpush1.bf16.msra.mxu0 0
      %2050 = vmatprep.subr.bf16.mxu0 0
      %2051 = vmatpush1.bf16.msra.mxu0 0
      %2052 = vmatprep.subr.bf16.mxu0 0
      %2053 = vmatpush1.bf16.msra.mxu0 0
      %2054 = vmatprep.subr.bf16.mxu0 0
      %2055 = vmatpush1.bf16.msra.mxu0 0
      %2056 = vmatprep.mubr.bf16.mxu0 0
      %2057 = vmatmul.mubr.bf16.gmra.mrb[0].mxu0 %v2013
      %v2058 = vpop.f32.mrb[0].mxu0
      %v2059 = vadd.f32 0.0, %v2058
      %v2060 = vpop.f32.mrb[0].mxu0
      %v2061 = vpop.f32.mrb[0].mxu0
      %v2062 = vadd.f32 0.0, %v2061
      %v2063 = vpop.f32.mrb[0].mxu0
      %2064 = vmatprep.mubr.bf16.mxu0 0
      %2065 = vmatmul.mubr.bf16.gmra.mrb[0].mxu0 %v2016
      %v2066 = vpop.f32.mrb[0].mxu0
      %v2067 = vadd.f32 0.0, %v2066
      %v2068 = vpop.f32.mrb[0].mxu0
      %v2069 = vpop.f32.mrb[0].mxu0
      %v2070 = vadd.f32 0.0, %v2069
      %v2071 = vpop.f32.mrb[0].mxu0
      %2072 = vmatprep.mubr.bf16.mxu0 0
      %2073 = vmatmul.mubr.bf16.gmra.mrb[0].mxu0 %v2019
      %v2074 = vpop.f32.mrb[0].mxu0
      %v2075 = vadd.f32 0.0, %v2074
      %v2076 = vpop.f32.mrb[0].mxu0
      %v2077 = vpop.f32.mrb[0].mxu0
      %v2078 = vadd.f32 0.0, %v2077
      %v2079 = vpop.f32.mrb[0].mxu0
      %2080 = vmatprep.mubr.bf16.mxu0 0
      %2081 = vmatmul.mubr.bf16.gmra.mrb[0].mxu0 %v2022
      %v2082 = vpop.f32.mrb[0].mxu0
      %v2083 = vadd.f32 0.0, %v2082
      %v2084 = vpop.f32.mrb[0].mxu0
      %v2085 = vpop.f32.mrb[0].mxu0
      %v2086 = vadd.f32 0.0, %v2085
      %v2087 = vpop.f32.mrb[0].mxu0
      %2088 = vdwg.mxu0
      %v2089 = vadd.f32 %v1979, %v2059
      %v2090 = vadd.f32 %v1980, %v2062
      %v2091 = vadd.f32 %v1981, %v2067
      %v2092 = vadd.f32 %v1982, %v2070
      %v2093 = vadd.f32 %v1983, %v2075
      %v2094 = vadd.f32 %v1984, %v2078
      %v2095 = vadd.f32 %v1985, %v2083
      %v2096 = vadd.f32 %v1986, %v2086
      %v2097 = vpack.c.bf16 %v1602, %v1601
      %v2098 = vpack.c.bf16 %v1604, %v1603
      %v2099 = vpack.c.bf16 %v1606, %v1605
      %v2100 = vpack.c.bf16 %v1608, %v1607
      %s2101 = scalar_lea.vmem %s8, 64
      %v2102 = vld [vmem:[%s2101] sm:$0xf]
      %v2103 = vld [vmem:[%s2101 + $0x4] sm:$0xf]
      %v2104 = vld [vmem:[%s2101 + $0x8] sm:$0xf]
      %v2105 = vld [vmem:[%s2101 + $0xc] sm:$0xf]
      %v2110 = vunpack.c.l.b16 %v2102
      %v2111 = vunpack.c.l.b16 %v2103
      %v2112 = vunpack.c.l.b16 %v2104
      %v2113 = vunpack.c.l.b16 %v2105
      %v2114 = vpack.c.b16 %v2111, %v2110
      %v2115 = vpack.c.b16 %v2113, %v2112
      %v2119 = vsel %vm1523, %v2097, 0
      %v2122 = vsel %vm1523, %v2098, 0
      %v2125 = vsel %vm1523, %v2099, 0
      %v2128 = vsel %vm1523, %v2100, 0
      %2130 = vmatprep.subr.bf16.mxu0 0
      %2131 = vmatpush1.bf16.msra.mxu0 %v2114
      %2132 = vmatprep.subr.bf16.mxu0 0
      %2133 = vmatpush1.bf16.msra.mxu0 %v2115
      %2134 = vmatprep.subr.bf16.mxu0 0
      %2135 = vmatpush1.bf16.msra.mxu0 0
      %2136 = vmatprep.subr.bf16.mxu0 0
      %2137 = vmatpush1.bf16.msra.mxu0 0
      %2138 = vmatprep.subr.bf16.mxu0 0
      %2139 = vmatpush1.bf16.msra.mxu0 0
      %2140 = vmatprep.subr.bf16.mxu0 0
      %2141 = vmatpush1.bf16.msra.mxu0 0
      %2142 = vmatprep.subr.bf16.mxu0 0
      %2143 = vmatpush1.bf16.msra.mxu0 0
      %2144 = vmatprep.subr.bf16.mxu0 0
      %2145 = vmatpush1.bf16.msra.mxu0 0
      %2146 = vmatprep.subr.bf16.mxu0 0
      %2147 = vmatpush1.bf16.msra.mxu0 0
      %2148 = vmatprep.subr.bf16.mxu0 0
      %2149 = vmatpush1.bf16.msra.mxu0 0
      %2150 = vmatprep.subr.bf16.mxu0 0
      %2151 = vmatpush1.bf16.msra.mxu0 0
      %2152 = vmatprep.subr.bf16.mxu0 0
      %2153 = vmatpush1.bf16.msra.mxu0 0
      %2154 = vmatprep.subr.bf16.mxu0 0
      %2155 = vmatpush1.bf16.msra.mxu0 0
      %2156 = vmatprep.subr.bf16.mxu0 0
      %2157 = vmatpush1.bf16.msra.mxu0 0
      %2158 = vmatprep.subr.bf16.mxu0 0
      %2159 = vmatpush1.bf16.msra.mxu0 0
      %2160 = vmatprep.subr.bf16.mxu0 0
      %2161 = vmatpush1.bf16.msra.mxu0 0
      %2162 = vmatprep.mubr.bf16.mxu0 0
      %2163 = vmatmul.mubr.bf16.gmra.mrb[0].mxu0 %v2119
      %v2164 = vpop.f32.mrb[0].mxu0
      %v2165 = vadd.f32 0.0, %v2164
      %v2166 = vpop.f32.mrb[0].mxu0
      %v2167 = vpop.f32.mrb[0].mxu0
      %v2168 = vadd.f32 0.0, %v2167
      %v2169 = vpop.f32.mrb[0].mxu0
      %2170 = vmatprep.mubr.bf16.mxu0 0
      %2171 = vmatmul.mubr.bf16.gmra.mrb[0].mxu0 %v2122
      %v2172 = vpop.f32.mrb[0].mxu0
      %v2173 = vadd.f32 0.0, %v2172
      %v2174 = vpop.f32.mrb[0].mxu0
      %v2175 = vpop.f32.mrb[0].mxu0
      %v2176 = vadd.f32 0.0, %v2175
      %v2177 = vpop.f32.mrb[0].mxu0
      %2178 = vmatprep.mubr.bf16.mxu0 0
      %2179 = vmatmul.mubr.bf16.gmra.mrb[0].mxu0 %v2125
      %v2180 = vpop.f32.mrb[0].mxu0
      %v2181 = vadd.f32 0.0, %v2180
      %v2182 = vpop.f32.mrb[0].mxu0
      %v2183 = vpop.f32.mrb[0].mxu0
      %v2184 = vadd.f32 0.0, %v2183
      %v2185 = vpop.f32.mrb[0].mxu0
      %2186 = vmatprep.mubr.bf16.mxu0 0
      %2187 = vmatmul.mubr.bf16.gmra.mrb[0].mxu0 %v2128
      %v2188 = vpop.f32.mrb[0].mxu0
      %v2189 = vadd.f32 0.0, %v2188
      %v2190 = vpop.f32.mrb[0].mxu0
      %v2191 = vpop.f32.mrb[0].mxu0
      %v2192 = vadd.f32 0.0, %v2191
      %v2193 = vpop.f32.mrb[0].mxu0
      %2194 = vdwg.mxu0
      %v2195 = vadd.f32 %v2089, %v2165
      %v2196 = vadd.f32 %v2090, %v2168
      %v2197 = vadd.f32 %v2091, %v2173
      %v2198 = vadd.f32 %v2092, %v2176
      %v2199 = vadd.f32 %v2093, %v2181
      %v2200 = vadd.f32 %v2094, %v2184
      %v2201 = vadd.f32 %v2095, %v2189
      %v2202 = vadd.f32 %v2096, %v2192
      %v2204 = vsel %vm819, %v1870, 0.0
      %v2205 = vpack.c.bf16 %v1861, %v1859
      %v2206 = vpack.c.bf16 %v1865, %v1863
      %v2207 = vpack.c.bf16 %v1869, %v1867
      %v2208 = vpack.c.bf16 %v2204, %v1871
      %s2209 = scalar_lea.vmem %s8, 80
      %v2210 = vld [vmem:[%s2209] sm:$0xf]
      %v2211 = vld [vmem:[%s2209 + $0x4] sm:$0xf]
      %v2212 = vld [vmem:[%s2209 + $0x8] sm:$0xf]
      %v2213 = vld [vmem:[%s2209 + $0xc] sm:$0xf]
      %v2218 = vunpack.c.l.b16 %v2210
      %v2219 = vunpack.c.l.b16 %v2211
      %v2220 = vunpack.c.l.b16 %v2212
      %v2221 = vunpack.c.l.b16 %v2213
      %v2222 = vpack.c.b16 %v2219, %v2218
      %v2223 = vpack.c.b16 %v2221, %v2220
      %v2227 = vsel %vm1523, %v2205, 0
      %v2230 = vsel %vm1523, %v2206, 0
      %v2233 = vsel %vm1523, %v2207, 0
      %v2236 = vsel %vm1523, %v2208, 0
      %2238 = vmatprep.subr.bf16.mxu0 0
      %2239 = vmatpush1.bf16.msra.mxu0 %v2222
      %2240 = vmatprep.subr.bf16.mxu0 0
      %2241 = vmatpush1.bf16.msra.mxu0 %v2223
      %2242 = vmatprep.subr.bf16.mxu0 0
      %2243 = vmatpush1.bf16.msra.mxu0 0
      %2244 = vmatprep.subr.bf16.mxu0 0
      %2245 = vmatpush1.bf16.msra.mxu0 0
      %2246 = vmatprep.subr.bf16.mxu0 0
      %2247 = vmatpush1.bf16.msra.mxu0 0
      %2248 = vmatprep.subr.bf16.mxu0 0
      %2249 = vmatpush1.bf16.msra.mxu0 0
      %2250 = vmatprep.subr.bf16.mxu0 0
      %2251 = vmatpush1.bf16.msra.mxu0 0
      %2252 = vmatprep.subr.bf16.mxu0 0
      %2253 = vmatpush1.bf16.msra.mxu0 0
      %2254 = vmatprep.subr.bf16.mxu0 0
      %2255 = vmatpush1.bf16.msra.mxu0 0
      %2256 = vmatprep.subr.bf16.mxu0 0
      %2257 = vmatpush1.bf16.msra.mxu0 0
      %2258 = vmatprep.subr.bf16.mxu0 0
      %2259 = vmatpush1.bf16.msra.mxu0 0
      %2260 = vmatprep.subr.bf16.mxu0 0
      %2261 = vmatpush1.bf16.msra.mxu0 0
      %2262 = vmatprep.subr.bf16.mxu0 0
      %2263 = vmatpush1.bf16.msra.mxu0 0
      %2264 = vmatprep.subr.bf16.mxu0 0
      %2265 = vmatpush1.bf16.msra.mxu0 0
      %2266 = vmatprep.subr.bf16.mxu0 0
      %2267 = vmatpush1.bf16.msra.mxu0 0
      %2268 = vmatprep.subr.bf16.mxu0 0
      %2269 = vmatpush1.bf16.msra.mxu0 0
      %2270 = vmatprep.mubr.bf16.mxu0 0
      %2271 = vmatmul.mubr.bf16.gmra.mrb[0].mxu0 %v2227
      %v2272 = vpop.f32.mrb[0].mxu0
      %v2273 = vadd.f32 0.0, %v2272
      %v2274 = vpop.f32.mrb[0].mxu0
      %v2275 = vpop.f32.mrb[0].mxu0
      %v2276 = vadd.f32 0.0, %v2275
      %v2277 = vpop.f32.mrb[0].mxu0
      %2278 = vmatprep.mubr.bf16.mxu0 0
      %2279 = vmatmul.mubr.bf16.gmra.mrb[0].mxu0 %v2230
      %v2280 = vpop.f32.mrb[0].mxu0
      %v2281 = vadd.f32 0.0, %v2280
      %v2282 = vpop.f32.mrb[0].mxu0
      %v2283 = vpop.f32.mrb[0].mxu0
      %v2284 = vadd.f32 0.0, %v2283
      %v2285 = vpop.f32.mrb[0].mxu0
      %2286 = vmatprep.mubr.bf16.mxu0 0
      %2287 = vmatmul.mubr.bf16.gmra.mrb[0].mxu0 %v2233
      %v2288 = vpop.f32.mrb[0].mxu0
      %v2289 = vadd.f32 0.0, %v2288
      %v2290 = vpop.f32.mrb[0].mxu0
      %v2291 = vpop.f32.mrb[0].mxu0
      %v2292 = vadd.f32 0.0, %v2291
      %v2293 = vpop.f32.mrb[0].mxu0
      %2294 = vmatprep.mubr.bf16.mxu0 0
      %2295 = vmatmul.mubr.bf16.gmra.mrb[0].mxu0 %v2236
      %v2296 = vpop.f32.mrb[0].mxu0
      %v2297 = vadd.f32 0.0, %v2296
      %v2298 = vpop.f32.mrb[0].mxu0
      %v2299 = vpop.f32.mrb[0].mxu0
      %v2300 = vadd.f32 0.0, %v2299
      %v2301 = vpop.f32.mrb[0].mxu0
      %2302 = vdwg.mxu0
      %v2303 = vadd.f32 %v2195, %v2273
      %v2304 = vadd.f32 %v2196, %v2276
      %v2305 = vadd.f32 %v2197, %v2281
      %v2306 = vadd.f32 %v2198, %v2284
      %v2307 = vadd.f32 %v2199, %v2289
      %v2308 = vadd.f32 %v2200, %v2292
      %v2309 = vadd.f32 %v2201, %v2297
      %v2310 = vadd.f32 %v2202, %v2300
      %v2312 = vsel %vm616, %v1988, 0.0
      %v2313 = vpack.c.bf16 %v2312, %v1989
      %s2314 = scalar_lea.vmem %s8, 96
      %v2315 = vld [vmem:[%s2314] sm:$0xf]
      %v2316 = vld [vmem:[%s2314 + $0x4] sm:$0xf]
      %v2317 = vld [vmem:[%s2314 + $0x8] sm:$0xf]
      %v2318 = vld [vmem:[%s2314 + $0xc] sm:$0xf]
      %v2323 = vunpack.c.l.b16 %v2315
      %v2324 = vunpack.c.l.b16 %v2316
      %v2325 = vunpack.c.l.b16 %v2317
      %v2326 = vunpack.c.l.b16 %v2318
      %v2327 = vpack.c.b16 %v2324, %v2323
      %v2328 = vpack.c.b16 %v2326, %v2325
      %v2332 = vsel %vm1523, %v2313, 0
      %2334 = vmatprep.subr.bf16.mxu0 0
      %2335 = vmatpush1.bf16.msra.mxu0 %v2327
      %2336 = vmatprep.subr.bf16.mxu0 0
      %2337 = vmatpush1.bf16.msra.mxu0 %v2328
      %2338 = vmatprep.subr.bf16.mxu0 0
      %2339 = vmatpush1.bf16.msra.mxu0 0
      %2340 = vmatprep.subr.bf16.mxu0 0
      %2341 = vmatpush1.bf16.msra.mxu0 0
      %2342 = vmatprep.subr.bf16.mxu0 0
      %2343 = vmatpush1.bf16.msra.mxu0 0
      %2344 = vmatprep.subr.bf16.mxu0 0
      %2345 = vmatpush1.bf16.msra.mxu0 0
      %2346 = vmatprep.subr.bf16.mxu0 0
      %2347 = vmatpush1.bf16.msra.mxu0 0
      %2348 = vmatprep.subr.bf16.mxu0 0
      %2349 = vmatpush1.bf16.msra.mxu0 0
      %2350 = vmatprep.subr.bf16.mxu0 0
      %2351 = vmatpush1.bf16.msra.mxu0 0
      %2352 = vmatprep.subr.bf16.mxu0 0
      %2353 = vmatpush1.bf16.msra.mxu0 0
      %2354 = vmatprep.subr.bf16.mxu0 0
      %2355 = vmatpush1.bf16.msra.mxu0 0
      %2356 = vmatprep.subr.bf16.mxu0 0
      %2357 = vmatpush1.bf16.msra.mxu0 0
      %2358 = vmatprep.subr.bf16.mxu0 0
      %2359 = vmatpush1.bf16.msra.mxu0 0
      %2360 = vmatprep.subr.bf16.mxu0 0
      %2361 = vmatpush1.bf16.msra.mxu0 0
      %2362 = vmatprep.subr.bf16.mxu0 0
      %2363 = vmatpush1.bf16.msra.mxu0 0
      %2364 = vmatprep.subr.bf16.mxu0 0
      %2365 = vmatpush1.bf16.msra.mxu0 0
      %2366 = vmatprep.mubr.bf16.mxu0 0
      %2367 = vmatmul.mubr.bf16.gmra.mrb[0].mxu0 %v1776
      %v2368 = vpop.f32.mrb[0].mxu0
      %v2369 = vadd.f32 0.0, %v2368
      %v2370 = vpop.f32.mrb[0].mxu0
      %v2371 = vpop.f32.mrb[0].mxu0
      %v2372 = vadd.f32 0.0, %v2371
      %v2373 = vpop.f32.mrb[0].mxu0
      %2374 = vmatprep.mubr.bf16.mxu0 0
      %2375 = vmatmul.mubr.bf16.gmra.mrb[0].mxu0 %v1779
      %v2376 = vpop.f32.mrb[0].mxu0
      %v2377 = vadd.f32 0.0, %v2376
      %v2378 = vpop.f32.mrb[0].mxu0
      %v2379 = vpop.f32.mrb[0].mxu0
      %v2380 = vadd.f32 0.0, %v2379
      %v2381 = vpop.f32.mrb[0].mxu0
      %2382 = vmatprep.mubr.bf16.mxu0 0
      %2383 = vmatmul.mubr.bf16.gmra.mrb[0].mxu0 %v1782
      %v2384 = vpop.f32.mrb[0].mxu0
      %v2385 = vadd.f32 0.0, %v2384
      %v2386 = vpop.f32.mrb[0].mxu0
      %v2387 = vpop.f32.mrb[0].mxu0
      %v2388 = vadd.f32 0.0, %v2387
      %v2389 = vpop.f32.mrb[0].mxu0
      %2390 = vmatprep.mubr.bf16.mxu0 0
      %2391 = vmatmul.mubr.bf16.gmra.mrb[0].mxu0 %v2332
      %v2392 = vpop.f32.mrb[0].mxu0
      %v2393 = vadd.f32 0.0, %v2392
      %v2394 = vpop.f32.mrb[0].mxu0
      %v2395 = vpop.f32.mrb[0].mxu0
      %v2396 = vadd.f32 0.0, %v2395
      %v2397 = vpop.f32.mrb[0].mxu0
      %2398 = vdwg.mxu0
      %v2399 = vadd.f32 %v2303, %v2369
      %v2400 = vadd.f32 %v2304, %v2372
      %v2401 = vadd.f32 %v2305, %v2377
      %v2402 = vadd.f32 %v2306, %v2380
      %v2403 = vadd.f32 %v2307, %v2385
      %v2404 = vadd.f32 %v2308, %v2388
      %v2405 = vadd.f32 %v2309, %v2393
      %v2406 = vadd.f32 %v2310, %v2396
      %v2407 = vpack.c.bf16 0.0, %v1608
      %s2408 = scalar_lea.vmem %s8, 112
      %v2409 = vld [vmem:[%s2408] sm:$0xf]
      %v2410 = vld [vmem:[%s2408 + $0x4] sm:$0xf]
      %v2411 = vld [vmem:[%s2408 + $0x8] sm:$0xf]
      %v2412 = vld [vmem:[%s2408 + $0xc] sm:$0xf]
      %v2417 = vunpack.c.l.b16 %v2409
      %v2418 = vunpack.c.l.b16 %v2410
      %v2419 = vunpack.c.l.b16 %v2411
      %v2420 = vunpack.c.l.b16 %v2412
      %v2421 = vpack.c.b16 %v2418, %v2417
      %v2422 = vpack.c.b16 %v2420, %v2419
      %v2426 = vsel %vm1523, %v2407, 0
      %2428 = vmatprep.subr.bf16.mxu0 0
      %2429 = vmatpush1.bf16.msra.mxu0 %v2421
      %2430 = vmatprep.subr.bf16.mxu0 0
      %2431 = vmatpush1.bf16.msra.mxu0 %v2422
      %2432 = vmatprep.subr.bf16.mxu0 0
      %2433 = vmatpush1.bf16.msra.mxu0 0
      %2434 = vmatprep.subr.bf16.mxu0 0
      %2435 = vmatpush1.bf16.msra.mxu0 0
      %2436 = vmatprep.subr.bf16.mxu0 0
      %2437 = vmatpush1.bf16.msra.mxu0 0
      %2438 = vmatprep.subr.bf16.mxu0 0
      %2439 = vmatpush1.bf16.msra.mxu0 0
      %2440 = vmatprep.subr.bf16.mxu0 0
      %2441 = vmatpush1.bf16.msra.mxu0 0
      %2442 = vmatprep.subr.bf16.mxu0 0
      %2443 = vmatpush1.bf16.msra.mxu0 0
      %2444 = vmatprep.subr.bf16.mxu0 0
      %2445 = vmatpush1.bf16.msra.mxu0 0
      %2446 = vmatprep.subr.bf16.mxu0 0
      %2447 = vmatpush1.bf16.msra.mxu0 0
      %2448 = vmatprep.subr.bf16.mxu0 0
      %2449 = vmatpush1.bf16.msra.mxu0 0
      %2450 = vmatprep.subr.bf16.mxu0 0
      %2451 = vmatpush1.bf16.msra.mxu0 0
      %2452 = vmatprep.subr.bf16.mxu0 0
      %2453 = vmatpush1.bf16.msra.mxu0 0
      %2454 = vmatprep.subr.bf16.mxu0 0
      %2455 = vmatpush1.bf16.msra.mxu0 0
      %2456 = vmatprep.subr.bf16.mxu0 0
      %2457 = vmatpush1.bf16.msra.mxu0 0
      %2458 = vmatprep.subr.bf16.mxu0 0
      %2459 = vmatpush1.bf16.msra.mxu0 0
      %2460 = vmatprep.mubr.bf16.mxu0 0
      %2461 = vmatmul.mubr.bf16.gmra.mrb[0].mxu0 %v1687
      %v2462 = vpop.f32.mrb[0].mxu0
      %v2463 = vadd.f32 0.0, %v2462
      %v2464 = vpop.f32.mrb[0].mxu0
      %v2465 = vpop.f32.mrb[0].mxu0
      %v2466 = vadd.f32 0.0, %v2465
      %v2467 = vpop.f32.mrb[0].mxu0
      %2468 = vmatprep.mubr.bf16.mxu0 0
      %2469 = vmatmul.mubr.bf16.gmra.mrb[0].mxu0 %v1690
      %v2470 = vpop.f32.mrb[0].mxu0
      %v2471 = vadd.f32 0.0, %v2470
      %v2472 = vpop.f32.mrb[0].mxu0
      %v2473 = vpop.f32.mrb[0].mxu0
      %v2474 = vadd.f32 0.0, %v2473
      %v2475 = vpop.f32.mrb[0].mxu0
      %2476 = vmatprep.mubr.bf16.mxu0 0
      %2477 = vmatmul.mubr.bf16.gmra.mrb[0].mxu0 %v1693
      %v2478 = vpop.f32.mrb[0].mxu0
      %v2479 = vadd.f32 0.0, %v2478
      %v2480 = vpop.f32.mrb[0].mxu0
      %v2481 = vpop.f32.mrb[0].mxu0
      %v2482 = vadd.f32 0.0, %v2481
      %v2483 = vpop.f32.mrb[0].mxu0
      %2484 = vmatprep.mubr.bf16.mxu0 0
      %2485 = vmatmul.mubr.bf16.gmra.mrb[0].mxu0 %v2426
      %v2486 = vpop.f32.mrb[0].mxu0
      %v2487 = vadd.f32 0.0, %v2486
      %v2488 = vpop.f32.mrb[0].mxu0
      %v2489 = vpop.f32.mrb[0].mxu0
      %v2490 = vadd.f32 0.0, %v2489
      %v2491 = vpop.f32.mrb[0].mxu0
      %2492 = vdwg.mxu0
      %v2493 = vadd.f32 %v2399, %v2463
      %v2494 = vadd.f32 %v2400, %v2466
      %v2495 = vadd.f32 %v2401, %v2471
      %v2496 = vadd.f32 %v2402, %v2474
      %v2497 = vadd.f32 %v2403, %v2479
      %v2498 = vadd.f32 %v2404, %v2482
      %v2499 = vadd.f32 %v2405, %v2487
      %v2500 = vadd.f32 %v2406, %v2490
      %v2501 = vpack.c.bf16 0.0, %v2204
      %s2502 = scalar_lea.vmem %s8, 128
      %v2503 = vld [vmem:[%s2502] sm:$0xf]
      %v2504 = vld [vmem:[%s2502 + $0x4] sm:$0xf]
      %v2505 = vld [vmem:[%s2502 + $0x8] sm:$0xf]
      %v2506 = vld [vmem:[%s2502 + $0xc] sm:$0xf]
      %v2511 = vunpack.c.l.b16 %v2503
      %v2512 = vunpack.c.l.b16 %v2504
      %v2513 = vunpack.c.l.b16 %v2505
      %v2514 = vunpack.c.l.b16 %v2506
      %v2515 = vpack.c.b16 %v2512, %v2511
      %v2516 = vpack.c.b16 %v2514, %v2513
      %v2520 = vsel %vm1523, %v2501, 0
      %2522 = vmatprep.subr.bf16.mxu0 0
      %2523 = vmatpush1.bf16.msra.mxu0 %v2515
      %2524 = vmatprep.subr.bf16.mxu0 0
      %2525 = vmatpush1.bf16.msra.mxu0 %v2516
      %2526 = vmatprep.subr.bf16.mxu0 0
      %2527 = vmatpush1.bf16.msra.mxu0 0
      %2528 = vmatprep.subr.bf16.mxu0 0
      %2529 = vmatpush1.bf16.msra.mxu0 0
      %2530 = vmatprep.subr.bf16.mxu0 0
      %2531 = vmatpush1.bf16.msra.mxu0 0
      %2532 = vmatprep.subr.bf16.mxu0 0
      %2533 = vmatpush1.bf16.msra.mxu0 0
      %2534 = vmatprep.subr.bf16.mxu0 0
      %2535 = vmatpush1.bf16.msra.mxu0 0
      %2536 = vmatprep.subr.bf16.mxu0 0
      %2537 = vmatpush1.bf16.msra.mxu0 0
      %2538 = vmatprep.subr.bf16.mxu0 0
      %2539 = vmatpush1.bf16.msra.mxu0 0
      %2540 = vmatprep.subr.bf16.mxu0 0
      %2541 = vmatpush1.bf16.msra.mxu0 0
      %2542 = vmatprep.subr.bf16.mxu0 0
      %2543 = vmatpush1.bf16.msra.mxu0 0
      %2544 = vmatprep.subr.bf16.mxu0 0
      %2545 = vmatpush1.bf16.msra.mxu0 0
      %2546 = vmatprep.subr.bf16.mxu0 0
      %2547 = vmatpush1.bf16.msra.mxu0 0
      %2548 = vmatprep.subr.bf16.mxu0 0
      %2549 = vmatpush1.bf16.msra.mxu0 0
      %2550 = vmatprep.subr.bf16.mxu0 0
      %2551 = vmatpush1.bf16.msra.mxu0 0
      %2552 = vmatprep.subr.bf16.mxu0 0
      %2553 = vmatpush1.bf16.msra.mxu0 0
      %2554 = vmatprep.mubr.bf16.mxu0 0
      %2555 = vmatmul.mubr.bf16.gmra.mrb[0].mxu0 %v1906
      %v2556 = vpop.f32.mrb[0].mxu0
      %v2557 = vadd.f32 0.0, %v2556
      %v2558 = vpop.f32.mrb[0].mxu0
      %v2559 = vpop.f32.mrb[0].mxu0
      %v2560 = vadd.f32 0.0, %v2559
      %v2561 = vpop.f32.mrb[0].mxu0
      %2562 = vmatprep.mubr.bf16.mxu0 0
      %2563 = vmatmul.mubr.bf16.gmra.mrb[0].mxu0 %v1909
      %v2564 = vpop.f32.mrb[0].mxu0
      %v2565 = vadd.f32 0.0, %v2564
      %v2566 = vpop.f32.mrb[0].mxu0
      %v2567 = vpop.f32.mrb[0].mxu0
      %v2568 = vadd.f32 0.0, %v2567
      %v2569 = vpop.f32.mrb[0].mxu0
      %2570 = vmatprep.mubr.bf16.mxu0 0
      %2571 = vmatmul.mubr.bf16.gmra.mrb[0].mxu0 %v1912
      %v2572 = vpop.f32.mrb[0].mxu0
      %v2573 = vadd.f32 0.0, %v2572
      %v2574 = vpop.f32.mrb[0].mxu0
      %v2575 = vpop.f32.mrb[0].mxu0
      %v2576 = vadd.f32 0.0, %v2575
      %v2577 = vpop.f32.mrb[0].mxu0
      %2578 = vmatprep.mubr.bf16.mxu0 0
      %2579 = vmatmul.mubr.bf16.gmra.mrb[0].mxu0 %v2520
      %v2580 = vpop.f32.mrb[0].mxu0
      %v2581 = vadd.f32 0.0, %v2580
      %v2582 = vpop.f32.mrb[0].mxu0
      %v2583 = vpop.f32.mrb[0].mxu0
      %v2584 = vadd.f32 0.0, %v2583
      %v2585 = vpop.f32.mrb[0].mxu0
      %2586 = vdwg.mxu0
      %v2587 = vadd.f32 %v2493, %v2557
      %v2588 = vadd.f32 %v2494, %v2560
      %v2589 = vadd.f32 %v2495, %v2565
      %v2590 = vadd.f32 %v2496, %v2568
      %v2591 = vadd.f32 %v2497, %v2573
      %v2592 = vadd.f32 %v2498, %v2576
      %v2593 = vadd.f32 %v2499, %v2581
      %v2594 = vadd.f32 %v2500, %v2584
      %v2596 = vlaneseq
      %v2597 = vshrl.u32 %v2596, 7
      %v2598 = vsub.s32 0, %v2597
      %v2599 = vrot.slane %v1609, %v2598
      %v2601 = vadd.f32 %v2587, %v2599
      %v2602 = vadd.f32 %v2588, %v2599
      %v2603 = vadd.f32 %v2589, %v2599
      %v2604 = vadd.f32 %v2590, %v2599
      %v2605 = vadd.f32 %v2591, %v2599
      %v2606 = vadd.f32 %v2592, %v2599
      %v2607 = vadd.f32 %v2593, %v2599
      %v2608 = vadd.f32 %v2594, %v2599
      %v2609 = vadd.f32 %v2601, 2.0
      %v2610 = vadd.f32 %v2602, 2.0
      %v2611 = vadd.f32 %v2603, 2.0
      %v2612 = vadd.f32 %v2604, 2.0
      %v2613 = vadd.f32 %v2605, 2.0
      %v2614 = vadd.f32 %v2606, 2.0
      %v2615 = vadd.f32 %v2607, 2.0
      %v2616 = vadd.f32 %v2608, 2.0
      %v2617 = vmin.f32 %v2609, 0.0
      %v2618 = vmin.f32 %v2610, 0.0
      %v2619 = vmin.f32 %v2611, 0.0
      %v2620 = vmin.f32 %v2612, 0.0
      %v2621 = vmin.f32 %v2613, 0.0
      %v2622 = vmin.f32 %v2614, 0.0
      %v2623 = vmin.f32 %v2615, 0.0
      %v2624 = vmin.f32 %v2616, 0.0
      %v2625 = vand.u32 2147483647, %v2609
      %v2626 = vand.u32 2147483647, %v2610
      %v2627 = vand.u32 2147483647, %v2611
      %v2628 = vand.u32 2147483647, %v2612
      %v2629 = vand.u32 2147483647, %v2613
      %v2630 = vand.u32 2147483647, %v2614
      %v2631 = vand.u32 2147483647, %v2615
      %v2632 = vand.u32 2147483647, %v2616
      %v2633 = vsub.f32 0.0, %v2625
      %v2634 = vsub.f32 0.0, %v2626
      %v2635 = vsub.f32 0.0, %v2627
      %v2636 = vsub.f32 0.0, %v2628
      %v2637 = vsub.f32 0.0, %v2629
      %v2638 = vsub.f32 0.0, %v2630
      %v2639 = vsub.f32 0.0, %v2631
      %v2640 = vsub.f32 0.0, %v2632
      %v2641 = vmul.f32 %v2633, 1.442695
      %v2642 = vpow.pop %v2641
      %v2643 = vmul.f32 %v2634, 1.442695
      %v2644 = vpow.pop %v2643
      %v2645 = vmul.f32 %v2635, 1.442695
      %v2646 = vpow.pop %v2645
      %v2647 = vmul.f32 %v2636, 1.442695
      %v2648 = vpow.pop %v2647
      %v2649 = vmul.f32 %v2637, 1.442695
      %v2650 = vpow.pop %v2649
      %v2651 = vmul.f32 %v2638, 1.442695
      %v2652 = vpow.pop %v2651
      %v2653 = vmul.f32 %v2639, 1.442695
      %v2654 = vpow.pop %v2653
      %v2655 = vmul.f32 %v2640, 1.442695
      %v2656 = vpow.pop %v2655
      %v2657 = vadd.f32 %v2642, 1.0
      %v2658 = vadd.f32 %v2644, 1.0
      %v2659 = vadd.f32 %v2646, 1.0
      %v2660 = vadd.f32 %v2648, 1.0
      %v2661 = vadd.f32 %v2650, 1.0
      %v2662 = vadd.f32 %v2652, 1.0
      %v2663 = vadd.f32 %v2654, 1.0
      %v2664 = vadd.f32 %v2656, 1.0
      %v2665 = vlog2.pop %v2657
      %v2666 = vmul.f32 %v2665, 0.6931472
      %v2667 = vlog2.pop %v2658
      %v2668 = vmul.f32 %v2667, 0.6931472
      %v2669 = vlog2.pop %v2659
      %v2670 = vmul.f32 %v2669, 0.6931472
      %v2671 = vlog2.pop %v2660
      %v2672 = vmul.f32 %v2671, 0.6931472
      %v2673 = vlog2.pop %v2661
      %v2674 = vmul.f32 %v2673, 0.6931472
      %v2675 = vlog2.pop %v2662
      %v2676 = vmul.f32 %v2675, 0.6931472
      %v2677 = vlog2.pop %v2663
      %v2678 = vmul.f32 %v2677, 0.6931472
      %v2679 = vlog2.pop %v2664
      %v2680 = vmul.f32 %v2679, 0.6931472
      %v2681 = vsub.f32 %v2617, %v2666
      %v2682 = vsub.f32 %v2618, %v2668
      %v2683 = vsub.f32 %v2619, %v2670
      %v2684 = vsub.f32 %v2620, %v2672
      %v2685 = vsub.f32 %v2621, %v2674
      %v2686 = vsub.f32 %v2622, %v2676
      %v2687 = vsub.f32 %v2623, %v2678
      %v2688 = vsub.f32 %v2624, %v2680
      %2697 = vrot.lane.b32.xlu0 %v2601, 8
      %v2698 = vpop.permute.xlu0 %2697
      %2699 = vrot.lane.b32.xlu0 %v2602, 8
      %v2700 = vpop.permute.xlu0 %2699
      %2701 = vrot.lane.b32.xlu0 %v2603, 8
      %v2702 = vpop.permute.xlu0 %2701
      %2703 = vrot.lane.b32.xlu0 %v2604, 8
      %v2704 = vpop.permute.xlu0 %2703
      %2705 = vrot.lane.b32.xlu0 %v2605, 8
      %v2706 = vpop.permute.xlu0 %2705
      %2707 = vrot.lane.b32.xlu0 %v2606, 8
      %v2708 = vpop.permute.xlu0 %2707
      %2709 = vrot.lane.b32.xlu0 %v2607, 8
      %v2710 = vpop.permute.xlu0 %2709
      %2711 = vrot.lane.b32.xlu0 %v2608, 8
      %v2712 = vpop.permute.xlu0 %2711
      %v2721 = vadd.f32 %v497, %v2698
      %v2722 = vadd.f32 %v500, %v2700
      %v2723 = vadd.f32 %v505, %v2702
      %v2724 = vadd.f32 %v508, %v2704
      %v2725 = vadd.f32 %v513, %v2706
      %v2726 = vadd.f32 %v516, %v2708
      %v2727 = vadd.f32 %v521, %v2710
      %v2728 = vadd.f32 %v524, %v2712
      %v2729 = vmul.f32 %v2681, 1.442695
      %v2730 = vpow.pop %v2729
      %v2731 = vmul.f32 %v2682, 1.442695
      %v2732 = vpow.pop %v2731
      %v2733 = vmul.f32 %v2683, 1.442695
      %v2734 = vpow.pop %v2733
      %v2735 = vmul.f32 %v2684, 1.442695
      %v2736 = vpow.pop %v2735
      %v2737 = vmul.f32 %v2685, 1.442695
      %v2738 = vpow.pop %v2737
      %v2739 = vmul.f32 %v2686, 1.442695
      %v2740 = vpow.pop %v2739
      %v2741 = vmul.f32 %v2687, 1.442695
      %v2742 = vpow.pop %v2741
      %v2743 = vmul.f32 %v2688, 1.442695
      %v2744 = vpow.pop %v2743
      %v2745 = vmul.f32 %v2721, %v2730
      %v2746 = vmul.f32 %v2722, %v2732
      %v2747 = vmul.f32 %v2723, %v2734
      %v2748 = vmul.f32 %v2724, %v2736
      %v2749 = vmul.f32 %v2725, %v2738
      %v2750 = vmul.f32 %v2726, %v2740
      %v2751 = vmul.f32 %v2727, %v2742
      %v2752 = vmul.f32 %v2728, %v2744
      %v2753 = vsel %vm649, %v497, %v2745
      %v2754 = vsel %vm649, %v500, %v2746
      %v2755 = vsel %vm649, %v505, %v2747
      %v2756 = vsel %vm649, %v508, %v2748
      %v2757 = vsel %vm649, %v513, %v2749
      %v2758 = vsel %vm649, %v516, %v2750
      %v2759 = vsel %vm649, %v521, %v2751
      %v2760 = vsel %vm649, %v524, %v2752
      %2761 = vst.msk [vmem:[%s392] sm:$0xff] %vm449, %v2753
      %2762 = vst.msk [vmem:[%s392 + $0x8] sm:$0xff] %vm449, %v2754
      %2763 = vst.msk [vmem:[%s392 + $0x10] sm:$0xff] %vm449, %v2755
      %2764 = vst.msk [vmem:[%s392 + $0x18] sm:$0xff] %vm449, %v2756
      %2765 = vst.msk [vmem:[%s392 + $0x20] sm:$0xff] %vm449, %v2757
      %2766 = vst.msk [vmem:[%s392 + $0x28] sm:$0xff] %vm449, %v2758
      %2767 = vst.msk [vmem:[%s392 + $0x30] sm:$0xff] %vm449, %v2759
      %2768 = vst.msk [vmem:[%s392 + $0x38] sm:$0xff] %vm449, %v2760
      %vm2769 = vcmask 130112
      %v2770 = vsel %vm2769, %v2681, 0.0
      %v2771 = vsel %vm2769, %v2682, 0.0
      %v2772 = vadd.f32 %v2770, %v2771
      %v2773 = vsel %vm2769, %v2683, 0.0
      %v2774 = vadd.f32 %v2772, %v2773
      %v2775 = vsel %vm2769, %v2684, 0.0
      %v2776 = vadd.f32 %v2774, %v2775
      %v2777 = vsel %vm2769, %v2685, 0.0
      %v2778 = vadd.f32 %v2776, %v2777
      %v2779 = vsel %vm2769, %v2686, 0.0
      %v2780 = vadd.f32 %v2778, %v2779
      %v2781 = vsel %vm2769, %v2687, 0.0
      %v2782 = vadd.f32 %v2780, %v2781
      %v2783 = vsel %vm2769, %v2688, 0.0
      %v2784 = vadd.f32 %v2782, %v2783
      %v2785 = vrot.slane %v2784, 4
      %v2786 = vadd.f32 %v2784, %v2785
      %v2787 = vrot.slane %v2786, 2
      %v2788 = vadd.f32 %v2786, %v2787
      %v2789 = vrot.slane %v2788, 1
      %v2790 = vadd.f32 %v2788, %v2789
      %2792 = vrot.lane.b32.xlu0 %v2790, 120
      %v2793 = vpop.permute.xlu0 %2792
      %vm2795 = vcmask 57344
      %2796 = vst.msk [vmem:[%s395] sm:$0x1] %vm2795, %v2793
      %p2797 = scmp.lt.s32.totalorder %s23, 1
      %s2798 = scalar_select %p2797, %s23, 1
      %s2799 = smul.addr %s2798, 8
      %s2800 = smul.addr %s2799, 8
      %s2801 = scalar_lea.vmem %s10, %s2800
      %p2802 = scmp.lt.s32.totalorder %s23, 1
      %s2803 = scalar_select %p2802, %s23, 1
      %s2804 = scalar_lea.vmem %s11, %s2803
      // Predicated region
      $region61: #{lr_normflow_forward.6} parent=59 // pred_check
        %p2805 = pneg %p256
      $region62: #{lr_normflow_forward.6} parent=59 // pred_check_branch
        %2807 = sbr.rel (%p2805) target = $region64
      $region63: #{lr_normflow_forward.6} parent=59 // pred_region
        _
      $region64: #{lr_normflow_forward.6} parent=59 // pred_fallthru
        _
      // Predicated region
      $region65: #{lr_normflow_forward.6} parent=59 // pred_check
        %p2808 = pneg %p282
      $region66: #{lr_normflow_forward.6} parent=59 // pred_check_branch
        %2810 = sbr.rel (%p2808) target = $region68
      $region67: #{lr_normflow_forward.6} parent=59 // pred_region
        _
      $region68: #{lr_normflow_forward.6} parent=59 // pred_fallthru
        _
    $region60: #{lr_normflow_forward.6} parent=5 // pred_fallthru
      _
    %p2811 = scmp.le.s32.totalorder 2, %s18
    // Predicated region
    $region69: #{lr_normflow_forward.6} parent=5 // pred_check
      %p2812 = pneg %p2811
    $region70: #{lr_normflow_forward.6} parent=5 // pred_check_branch
      %2814 = sbr.rel (%p2812) target = $region72
    $region71: #{lr_normflow_forward.6} parent=5 // pred_region
      %s2815 = ssub.s32 %s18, 2
      // Predicated region
      $region73: #{lr_normflow_forward.6} parent=71 // pred_check
        %p2816 = pneg %p262
      $region74: #{lr_normflow_forward.6} parent=71 // pred_check_branch
        %2818 = sbr.rel (%p2816) target = $region76
      $region75: #{lr_normflow_forward.6} parent=71 // pred_region
        %p2819 = scmp.lt.s32.totalorder %s24, 1
        %s2820 = scalar_select %p2819, %s24, 1
        %s2821 = smul.addr %s2820, 8
        %s2822 = smul.addr %s2821, 8
        %s2823 = scalar_lea.vmem %s10, %s2822
      $region76: #{lr_normflow_forward.6} parent=71 // pred_fallthru
        _
      // Predicated region
      $region77: #{lr_normflow_forward.6} parent=71 // pred_check
        %p2824 = pneg %p288
      $region78: #{lr_normflow_forward.6} parent=71 // pred_check_branch
        %2826 = sbr.rel (%p2824) target = $region80
      $region79: #{lr_normflow_forward.6} parent=71 // pred_region
        %p2827 = scmp.lt.s32.totalorder %s24, 1
        %s2828 = scalar_select %p2827, %s24, 1
        %s2829 = scalar_lea.vmem %s11, %s2828
      $region80: #{lr_normflow_forward.6} parent=71 // pred_fallthru
        _
    $region72: #{lr_normflow_forward.6} parent=5 // pred_fallthru
      _
  $region6: #{lr_normflow_forward.6} parent=0 // loop_footer
    %s22 = sadd.s32 1, %s18
  $region7: #{lr_normflow_forward.6} parent=0 // loop_footer_branch
    %17 = sbr.rel target = $region3
  $region8: #{lr_normflow_forward.6} parent=0 // loop_exit
    _

// kernel: lr_normflow_forward.9
$region0: #{lr_normflow_forward.9}
  #allocation0 [shape = 'u32[]', space=smem, size = 0x4, offset = 0x4, fixed_abs, tag = 'smem constant byte address 0x4 - core index']
  #allocation1 [shape = 'u32[144,128]{1,0:T(1,128)}', space=vmem, size = 0x12000, scoped, tag = 'internal scratch']
  %s0 = inlined_call_operand.vmem [shape: f32[2,16,32], index: 0, kind: input, shape index: {}]
  %s1 = inlined_call_operand.vmem [shape: f32[1,32], index: 1, kind: input, shape index: {}]
  %s2 = inlined_call_operand.vmem [shape: f32[1,32], index: 2, kind: input, shape index: {}]
  %s3 = inlined_call_operand.vmem [shape: bf16[32,32], index: 3, kind: input, shape index: {}]
  %s4 = inlined_call_operand.vmem [shape: bf16[9,16,32], index: 4, kind: input, shape index: {}]
  %s5 = inlined_call_operand.vmem [shape: f32[1,32], index: 5, kind: input, shape index: {}]
  %s6 = inlined_call_operand.vmem [shape: bf16[32,32], index: 6, kind: input, shape index: {}]
  %s7 = inlined_call_operand.vmem [shape: f32[1,32], index: 7, kind: input, shape index: {}]
  %s8 = inlined_call_operand.vmem [shape: bf16[9,32,32], index: 8, kind: input, shape index: {}]
  %s9 = inlined_call_operand.vmem [shape: f32[1,32], index: 9, kind: input, shape index: {}]
  %s10 = inlined_call_operand.vmem [shape: f32[2,16,32], index: 10, kind: output, shape index: {0}]
  %s11 = inlined_call_operand.vmem [shape: f32[2,1,16], index: 11, kind: output, shape index: {1}]
  %12 = xla_tuple %s10, %s11
  %s13 = sld [smem:[#allocation0]]
  $region81: #{lr_normflow_forward.9} parent=0
    _
  %s15 = ssub.s32 1, %s13
  %s16 = scalar_select 0, %s15, %s13
  loop: start=0, step=1, limit=4
  $region2: #{lr_normflow_forward.9} parent=0 // loop_pre_header
    _
  $region3: #{lr_normflow_forward.9} parent=0 // loop_header
    %s18 = sphi 0, %s22
    %p19 = scmp.ge.s32.totalorder %s18, 4
    %s28 = sphi 0, %s30
    %s31 = sphi 0, %s28
    %s32 = sphi 0, %s31
    %s48 = sphi 0, %s32
    %s52 = sphi 0, %s52
    %s54 = sphi 0, %s52
    %s55 = sphi 0, %s54
    %s69 = sphi 0, %s55
    %s73 = sphi 0, %s73
    %s75 = sphi 0, %s73
    %s76 = sphi 0, %s75
    %s90 = sphi 0, %s76
    %s94 = sphi 0, %s94
    %s96 = sphi 0, %s94
    %s97 = sphi 0, %s96
    %s111 = sphi 0, %s97
    %s115 = sphi 0, %s115
    %s117 = sphi 0, %s115
    %s118 = sphi 0, %s117
    %s132 = sphi 0, %s118
    %s136 = sphi 0, %s136
    %s138 = sphi 0, %s136
    %s139 = sphi 0, %s138
    %s153 = sphi 0, %s139
    %s157 = sphi 0, %s157
    %s159 = sphi 0, %s157
    %s160 = sphi 0, %s159
    %s174 = sphi 0, %s160
    %s178 = sphi 0, %s178
    %s180 = sphi 0, %s178
    %s181 = sphi 0, %s180
    %s195 = sphi 0, %s181
    %s199 = sphi 0, %s199
    %s201 = sphi 0, %s199
    %s202 = sphi 0, %s201
    %s216 = sphi 0, %s202
    %s220 = sphi 0, %s220
    %s222 = sphi 0, %s220
    %s223 = sphi 0, %s222
    %s237 = sphi 0, %s223
    %s243 = sphi 0, %s245
    %s246 = sphi 0, %s243
    %s247 = sphi 0, %s246
    %s263 = sphi 0, %s247
    %s269 = sphi 0, %s271
    %s272 = sphi 0, %s269
    %s273 = sphi 0, %s272
    %s289 = sphi 0, %s273
  $region4: #{lr_normflow_forward.9} parent=0 // loop_header_branch
    %21 = sbr.rel (%p19) target = $region8
  $region5: #{lr_normflow_forward.9} parent=0 // loop_body
    %s23 = ssub.s32 %s18, 1
    %s24 = ssub.s32 %s18, 2
    %s25 = sadd.s32 %s18, 1
    %s26 = ssub.s32 %s18, %s25
    %p27 = scmp.eq.s32.totalorder %s26, 0
    %s29 = sadd.s32 %s28, 1
    %s30 = scalar_select %p27, %s28, %s29
    %p33 = pneg %p27
    %p34 = scmp.eq.s32.totalorder %s18, 1
    %p35 = por %p33, %p34
    %p36 = scmp.ne.s32.totalorder %s28, %s31
    %p37 = scmp.eq.s32.totalorder %s18, 0
    %p38 = por %p36, %p37
    %p39 = scmp.ne.s32.totalorder %s28, %s31
    %p40 = scmp.eq.s32.totalorder %s23, 1
    %p41 = por %p39, %p40
    %p42 = scmp.ne.s32.totalorder %s31, %s32
    %p43 = scmp.eq.s32.totalorder %s23, 0
    %p44 = por %p42, %p43
    %p45 = scmp.ne.s32.totalorder %s31, %s32
    %p46 = scmp.eq.s32.totalorder %s24, 1
    %p47 = por %p45, %p46
    %p49 = scmp.ne.s32.totalorder %s32, %s48
    %p50 = scmp.eq.s32.totalorder %s24, 0
    %p51 = por %p49, %p50
    %s53 = sadd.s32 %s52, 1
    %p56 = scmp.eq.s32.totalorder %s18, 1
    %p57 = scmp.ne.s32.totalorder %s52, %s54
    %p58 = scmp.eq.s32.totalorder %s18, 0
    %p59 = por %p57, %p58
    %p60 = scmp.ne.s32.totalorder %s52, %s54
    %p61 = scmp.eq.s32.totalorder %s23, 1
    %p62 = por %p60, %p61
    %p63 = scmp.ne.s32.totalorder %s54, %s55
    %p64 = scmp.eq.s32.totalorder %s23, 0
    %p65 = por %p63, %p64
    %p66 = scmp.ne.s32.totalorder %s54, %s55
    %p67 = scmp.eq.s32.totalorder %s24, 1
    %p68 = por %p66, %p67
    %p70 = scmp.ne.s32.totalorder %s55, %s69
    %p71 = scmp.eq.s32.totalorder %s24, 0
    %p72 = por %p70, %p71
    %s74 = sadd.s32 %s73, 1
    %p77 = scmp.eq.s32.totalorder %s18, 1
    %p78 = scmp.ne.s32.totalorder %s73, %s75
    %p79 = scmp.eq.s32.totalorder %s18, 0
    %p80 = por %p78, %p79
    %p81 = scmp.ne.s32.totalorder %s73, %s75
    %p82 = scmp.eq.s32.totalorder %s23, 1
    %p83 = por %p81, %p82
    %p84 = scmp.ne.s32.totalorder %s75, %s76
    %p85 = scmp.eq.s32.totalorder %s23, 0
    %p86 = por %p84, %p85
    %p87 = scmp.ne.s32.totalorder %s75, %s76
    %p88 = scmp.eq.s32.totalorder %s24, 1
    %p89 = por %p87, %p88
    %p91 = scmp.ne.s32.totalorder %s76, %s90
    %p92 = scmp.eq.s32.totalorder %s24, 0
    %p93 = por %p91, %p92
    %s95 = sadd.s32 %s94, 1
    %p98 = scmp.eq.s32.totalorder %s18, 1
    %p99 = scmp.ne.s32.totalorder %s94, %s96
    %p100 = scmp.eq.s32.totalorder %s18, 0
    %p101 = por %p99, %p100
    %p102 = scmp.ne.s32.totalorder %s94, %s96
    %p103 = scmp.eq.s32.totalorder %s23, 1
    %p104 = por %p102, %p103
    %p105 = scmp.ne.s32.totalorder %s96, %s97
    %p106 = scmp.eq.s32.totalorder %s23, 0
    %p107 = por %p105, %p106
    %p108 = scmp.ne.s32.totalorder %s96, %s97
    %p109 = scmp.eq.s32.totalorder %s24, 1
    %p110 = por %p108, %p109
    %p112 = scmp.ne.s32.totalorder %s97, %s111
    %p113 = scmp.eq.s32.totalorder %s24, 0
    %p114 = por %p112, %p113
    %s116 = sadd.s32 %s115, 1
    %p119 = scmp.eq.s32.totalorder %s18, 1
    %p120 = scmp.ne.s32.totalorder %s115, %s117
    %p121 = scmp.eq.s32.totalorder %s18, 0
    %p122 = por %p120, %p121
    %p123 = scmp.ne.s32.totalorder %s115, %s117
    %p124 = scmp.eq.s32.totalorder %s23, 1
    %p125 = por %p123, %p124
    %p126 = scmp.ne.s32.totalorder %s117, %s118
    %p127 = scmp.eq.s32.totalorder %s23, 0
    %p128 = por %p126, %p127
    %p129 = scmp.ne.s32.totalorder %s117, %s118
    %p130 = scmp.eq.s32.totalorder %s24, 1
    %p131 = por %p129, %p130
    %p133 = scmp.ne.s32.totalorder %s118, %s132
    %p134 = scmp.eq.s32.totalorder %s24, 0
    %p135 = por %p133, %p134
    %s137 = sadd.s32 %s136, 1
    %p140 = scmp.eq.s32.totalorder %s18, 1
    %p141 = scmp.ne.s32.totalorder %s136, %s138
    %p142 = scmp.eq.s32.totalorder %s18, 0
    %p143 = por %p141, %p142
    %p144 = scmp.ne.s32.totalorder %s136, %s138
    %p145 = scmp.eq.s32.totalorder %s23, 1
    %p146 = por %p144, %p145
    %p147 = scmp.ne.s32.totalorder %s138, %s139
    %p148 = scmp.eq.s32.totalorder %s23, 0
    %p149 = por %p147, %p148
    %p150 = scmp.ne.s32.totalorder %s138, %s139
    %p151 = scmp.eq.s32.totalorder %s24, 1
    %p152 = por %p150, %p151
    %p154 = scmp.ne.s32.totalorder %s139, %s153
    %p155 = scmp.eq.s32.totalorder %s24, 0
    %p156 = por %p154, %p155
    %s158 = sadd.s32 %s157, 1
    %p161 = scmp.eq.s32.totalorder %s18, 1
    %p162 = scmp.ne.s32.totalorder %s157, %s159
    %p163 = scmp.eq.s32.totalorder %s18, 0
    %p164 = por %p162, %p163
    %p165 = scmp.ne.s32.totalorder %s157, %s159
    %p166 = scmp.eq.s32.totalorder %s23, 1
    %p167 = por %p165, %p166
    %p168 = scmp.ne.s32.totalorder %s159, %s160
    %p169 = scmp.eq.s32.totalorder %s23, 0
    %p170 = por %p168, %p169
    %p171 = scmp.ne.s32.totalorder %s159, %s160
    %p172 = scmp.eq.s32.totalorder %s24, 1
    %p173 = por %p171, %p172
    %p175 = scmp.ne.s32.totalorder %s160, %s174
    %p176 = scmp.eq.s32.totalorder %s24, 0
    %p177 = por %p175, %p176
    %s179 = sadd.s32 %s178, 1
    %p182 = scmp.eq.s32.totalorder %s18, 1
    %p183 = scmp.ne.s32.totalorder %s178, %s180
    %p184 = scmp.eq.s32.totalorder %s18, 0
    %p185 = por %p183, %p184
    %p186 = scmp.ne.s32.totalorder %s178, %s180
    %p187 = scmp.eq.s32.totalorder %s23, 1
    %p188 = por %p186, %p187
    %p189 = scmp.ne.s32.totalorder %s180, %s181
    %p190 = scmp.eq.s32.totalorder %s23, 0
    %p191 = por %p189, %p190
    %p192 = scmp.ne.s32.totalorder %s180, %s181
    %p193 = scmp.eq.s32.totalorder %s24, 1
    %p194 = por %p192, %p193
    %p196 = scmp.ne.s32.totalorder %s181, %s195
    %p197 = scmp.eq.s32.totalorder %s24, 0
    %p198 = por %p196, %p197
    %s200 = sadd.s32 %s199, 1
    %p203 = scmp.eq.s32.totalorder %s18, 1
    %p204 = scmp.ne.s32.totalorder %s199, %s201
    %p205 = scmp.eq.s32.totalorder %s18, 0
    %p206 = por %p204, %p205
    %p207 = scmp.ne.s32.totalorder %s199, %s201
    %p208 = scmp.eq.s32.totalorder %s23, 1
    %p209 = por %p207, %p208
    %p210 = scmp.ne.s32.totalorder %s201, %s202
    %p211 = scmp.eq.s32.totalorder %s23, 0
    %p212 = por %p210, %p211
    %p213 = scmp.ne.s32.totalorder %s201, %s202
    %p214 = scmp.eq.s32.totalorder %s24, 1
    %p215 = por %p213, %p214
    %p217 = scmp.ne.s32.totalorder %s202, %s216
    %p218 = scmp.eq.s32.totalorder %s24, 0
    %p219 = por %p217, %p218
    %s221 = sadd.s32 %s220, 1
    %p224 = scmp.eq.s32.totalorder %s18, 1
    %p225 = scmp.ne.s32.totalorder %s220, %s222
    %p226 = scmp.eq.s32.totalorder %s18, 0
    %p227 = por %p225, %p226
    %p228 = scmp.ne.s32.totalorder %s220, %s222
    %p229 = scmp.eq.s32.totalorder %s23, 1
    %p230 = por %p228, %p229
    %p231 = scmp.ne.s32.totalorder %s222, %s223
    %p232 = scmp.eq.s32.totalorder %s23, 0
    %p233 = por %p231, %p232
    %p234 = scmp.ne.s32.totalorder %s222, %s223
    %p235 = scmp.eq.s32.totalorder %s24, 1
    %p236 = por %p234, %p235
    %p238 = scmp.ne.s32.totalorder %s223, %s237
    %p239 = scmp.eq.s32.totalorder %s24, 0
    %p240 = por %p238, %p239
    %s241 = ssub.s32 %s18, %s25
    %p242 = scmp.eq.s32.totalorder %s241, 0
    %s244 = sadd.s32 %s243, 1
    %s245 = scalar_select %p242, %s243, %s244
    %p248 = pneg %p242
    %p249 = scmp.eq.s32.totalorder %s18, 1
    %p250 = por %p248, %p249
    %p251 = scmp.ne.s32.totalorder %s243, %s246
    %p252 = scmp.eq.s32.totalorder %s18, 0
    %p253 = por %p251, %p252
    %p254 = scmp.ne.s32.totalorder %s243, %s246
    %p255 = scmp.eq.s32.totalorder %s23, 1
    %p256 = por %p254, %p255
    %p257 = scmp.ne.s32.totalorder %s246, %s247
    %p258 = scmp.eq.s32.totalorder %s23, 0
    %p259 = por %p257, %p258
    %p260 = scmp.ne.s32.totalorder %s246, %s247
    %p261 = scmp.eq.s32.totalorder %s24, 1
    %p262 = por %p260, %p261
    %p264 = scmp.ne.s32.totalorder %s247, %s263
    %p265 = scmp.eq.s32.totalorder %s24, 0
    %p266 = por %p264, %p265
    %s267 = ssub.s32 %s18, %s25
    %p268 = scmp.eq.s32.totalorder %s267, 0
    %s270 = sadd.s32 %s269, 1
    %s271 = scalar_select %p268, %s269, %s270
    %p274 = pneg %p268
    %p275 = scmp.eq.s32.totalorder %s18, 1
    %p276 = por %p274, %p275
    %p277 = scmp.ne.s32.totalorder %s269, %s272
    %p278 = scmp.eq.s32.totalorder %s18, 0
    %p279 = por %p277, %p278
    %p280 = scmp.ne.s32.totalorder %s269, %s272
    %p281 = scmp.eq.s32.totalorder %s23, 1
    %p282 = por %p280, %p281
    %p283 = scmp.ne.s32.totalorder %s272, %s273
    %p284 = scmp.eq.s32.totalorder %s23, 0
    %p285 = por %p283, %p284
    %p286 = scmp.ne.s32.totalorder %s272, %s273
    %p287 = scmp.eq.s32.totalorder %s24, 1
    %p288 = por %p286, %p287
    %p290 = scmp.ne.s32.totalorder %s273, %s289
    %p291 = scmp.eq.s32.totalorder %s24, 0
    %p292 = por %p290, %p291
    %p293 = scmp.le.s32.totalorder 1, %s18
    %p294 = scmp.lt.s32.totalorder %s18, 3
    %p295 = pnand %p293, %p294
    %p296 = pneg %p295
    // Predicated region
    $region9: #{lr_normflow_forward.9} parent=5 // pred_check
      _
    $region10: #{lr_normflow_forward.9} parent=5 // pred_check_branch
      %298 = sbr.rel (%p295) target = $region12
    $region11: #{lr_normflow_forward.9} parent=5 // pred_region
      %s299 = ssub.s32 %s18, 1
      // Predicated region
      $region13: #{lr_normflow_forward.9} parent=11 // pred_check
        %p300 = pneg %p65
      $region14: #{lr_normflow_forward.9} parent=11 // pred_check_branch
        %302 = sbr.rel (%p300) target = $region16
      $region15: #{lr_normflow_forward.9} parent=11 // pred_region
        _
      $region16: #{lr_normflow_forward.9} parent=11 // pred_fallthru
        _
      // Predicated region
      $region17: #{lr_normflow_forward.9} parent=11 // pred_check
        %p303 = pneg %p86
      $region18: #{lr_normflow_forward.9} parent=11 // pred_check_branch
        %305 = sbr.rel (%p303) target = $region20
      $region19: #{lr_normflow_forward.9} parent=11 // pred_region
        _
      $region20: #{lr_normflow_forward.9} parent=11 // pred_fallthru
        _
      // Predicated region
      $region21: #{lr_normflow_forward.9} parent=11 // pred_check
        %p306 = pneg %p107
      $region22: #{lr_normflow_forward.9} parent=11 // pred_check_branch
        %308 = sbr.rel (%p306) target = $region24
      $region23: #{lr_normflow_forward.9} parent=11 // pred_region
        _
      $region24: #{lr_normflow_forward.9} parent=11 // pred_fallthru
        _
      // Predicated region
      $region25: #{lr_normflow_forward.9} parent=11 // pred_check
        %p309 = pneg %p128
      $region26: #{lr_normflow_forward.9} parent=11 // pred_check_branch
        %311 = sbr.rel (%p309) target = $region28
      $region27: #{lr_normflow_forward.9} parent=11 // pred_region
        _
      $region28: #{lr_normflow_forward.9} parent=11 // pred_fallthru
        _
      // Predicated region
      $region29: #{lr_normflow_forward.9} parent=11 // pred_check
        %p312 = pneg %p149
      $region30: #{lr_normflow_forward.9} parent=11 // pred_check_branch
        %314 = sbr.rel (%p312) target = $region32
      $region31: #{lr_normflow_forward.9} parent=11 // pred_region
        _
      $region32: #{lr_normflow_forward.9} parent=11 // pred_fallthru
        _
      // Predicated region
      $region33: #{lr_normflow_forward.9} parent=11 // pred_check
        %p315 = pneg %p170
      $region34: #{lr_normflow_forward.9} parent=11 // pred_check_branch
        %317 = sbr.rel (%p315) target = $region36
      $region35: #{lr_normflow_forward.9} parent=11 // pred_region
        _
      $region36: #{lr_normflow_forward.9} parent=11 // pred_fallthru
        _
      // Predicated region
      $region37: #{lr_normflow_forward.9} parent=11 // pred_check
        %p318 = pneg %p191
      $region38: #{lr_normflow_forward.9} parent=11 // pred_check_branch
        %320 = sbr.rel (%p318) target = $region40
      $region39: #{lr_normflow_forward.9} parent=11 // pred_region
        _
      $region40: #{lr_normflow_forward.9} parent=11 // pred_fallthru
        _
      // Predicated region
      $region41: #{lr_normflow_forward.9} parent=11 // pred_check
        %p321 = pneg %p212
      $region42: #{lr_normflow_forward.9} parent=11 // pred_check_branch
        %323 = sbr.rel (%p321) target = $region44
      $region43: #{lr_normflow_forward.9} parent=11 // pred_region
        _
      $region44: #{lr_normflow_forward.9} parent=11 // pred_fallthru
        _
      // Predicated region
      $region45: #{lr_normflow_forward.9} parent=11 // pred_check
        %p324 = pneg %p233
      $region46: #{lr_normflow_forward.9} parent=11 // pred_check_branch
        %326 = sbr.rel (%p324) target = $region48
      $region47: #{lr_normflow_forward.9} parent=11 // pred_region
        _
      $region48: #{lr_normflow_forward.9} parent=11 // pred_fallthru
        _
    $region12: #{lr_normflow_forward.9} parent=5 // pred_fallthru
      _
    %p327 = scmp.lt.s32.totalorder %s18, 2
    // Predicated region
    $region49: #{lr_normflow_forward.9} parent=5 // pred_check
      %p328 = pneg %p327
    $region50: #{lr_normflow_forward.9} parent=5 // pred_check_branch
      %330 = sbr.rel (%p328) target = $region52
    $region51: #{lr_normflow_forward.9} parent=5 // pred_region
      // Predicated region
      $region53: #{lr_normflow_forward.9} parent=51 // pred_check
        %p331 = pneg %p38
      $region54: #{lr_normflow_forward.9} parent=51 // pred_check_branch
        %333 = sbr.rel (%p331) target = $region56
      $region55: #{lr_normflow_forward.9} parent=51 // pred_region
        %p334 = scmp.lt.s32.totalorder %s18, 1
        %s335 = scalar_select %p334, %s18, 1
        %s336 = smul.addr %s335, 2
        %s337 = smul.addr %s336, 8
        %s338 = scalar_lea.vmem %s0, %s337
      $region56: #{lr_normflow_forward.9} parent=51 // pred_fallthru
        _
    $region52: #{lr_normflow_forward.9} parent=5 // pred_fallthru
      _
    %p339 = scmp.le.s32.totalorder 1, %s18
    %p340 = scmp.lt.s32.totalorder %s18, 3
    %p341 = pnand %p339, %p340
    %p342 = pneg %p341
    // Predicated region
    $region57: #{lr_normflow_forward.9} parent=5 // pred_check
      _
    $region58: #{lr_normflow_forward.9} parent=5 // pred_check_branch
      %344 = sbr.rel (%p341) target = $region60
    $region59: #{lr_normflow_forward.9} parent=5 // pred_region
      %s345 = ssub.s32 %s18, 1
      %p346 = scmp.lt.s32.totalorder %s23, 1
      %s347 = scalar_select %p346, %s23, 1
      %s348 = smul.addr %s347, 2
      %s349 = smul.addr %s348, 8
      %s350 = scalar_lea.vmem %s0, %s349
      %p351 = pneg %p44
      %p352 = pneg %p41
      %p353 = pneg %p65
      %p354 = pneg %p62
      %p355 = pneg %p86
      %p356 = pneg %p83
      %p357 = pneg %p107
      %p358 = pneg %p104
      %p359 = pneg %p128
      %p360 = pneg %p125
      %p361 = pneg %p149
      %p362 = pneg %p146
      %p363 = pneg %p170
      %p364 = pneg %p167
      %p365 = pneg %p191
      %p366 = pneg %p188
      %p367 = pneg %p212
      %p368 = pneg %p209
      %p369 = pneg %p233
      %p370 = pneg %p230
      %p371 = pneg %p259
      %p372 = pneg %p256
      %p373 = scmp.lt.s32.totalorder %s23, 1
      %s374 = scalar_select %p373, %s23, 1
      %s375 = smul.addr %s374, 2
      %s376 = smul.addr %s375, 8
      %s377 = scalar_lea.vmem %s10, %s376
      %p378 = pneg %p285
      %p379 = pneg %p282
      %p380 = scmp.lt.s32.totalorder %s23, 1
      %s381 = scalar_select %p380, %s23, 1
      %s382 = scalar_lea.vmem %s11, %s381
      %p383 = scmp.lt.s32.totalorder %s23, 1
      %s384 = scalar_select %p383, %s23, 1
      %s385 = smul.addr %s384, 2
      %s386 = smul.addr %s385, 8
      %s387 = scalar_lea.vmem %s0, %s386
      %p388 = scmp.lt.s32.totalorder %s23, 1
      %s389 = scalar_select %p388, %s23, 1
      %s390 = smul.addr %s389, 2
      %s391 = smul.addr %s390, 8
      %s392 = scalar_lea.vmem %s10, %s391
      %p393 = scmp.lt.s32.totalorder %s23, 1
      %s394 = scalar_select %p393, %s23, 1
      %s395 = scalar_lea.vmem %s11, %s394
      %v397 = vld [vmem:[%s387] sm:$0xff]
      %v398 = vld [vmem:[%s387 + $0x8] sm:$0xff]
      %v399 = vld [vmem:[%s1] sm:$0x1]
      %v401 = vlaneseq
      %v402 = vshrl.u32 %v401, 7
      %v403 = vsub.s32 0, %v402
      %v404 = vrot.slane %v399, %v403
      %v406 = vadd.f32 %v397, %v404
      %v407 = vadd.f32 %v398, %v404
      %v408 = vld [vmem:[%s2] sm:$0x1]
      %v409 = vmul.f32 %v408, 1.442695
      %v410 = vpow.pop %v409
      %v412 = vlaneseq
      %v413 = vshrl.u32 %v412, 7
      %v414 = vsub.s32 0, %v413
      %v415 = vrot.slane %v410, %v414
      %v417 = vmul.f32 %v406, %v415
      %v418 = vmul.f32 %v407, %v415
      %v419 = vpack.c.bf16 %v418, %v417
      %v420 = vld [vmem:[%s3] sm:$0xf]
      %v421 = vld [vmem:[%s3 + $0x4] sm:$0xf]
      %v422 = vld [vmem:[%s3 + $0x8] sm:$0xf]
      %v423 = vld [vmem:[%s3 + $0xc] sm:$0xf]
      %v428 = vunpack.c.l.b16 %v420
      %v429 = vunpack.c.l.b16 %v421
      %v430 = vunpack.c.l.b16 %v422
      %v431 = vunpack.c.l.b16 %v423
      %v432 = vpack.c.b16 %v429, %v428
      %v433 = vpack.c.b16 %v431, %v430
      %vm436 = vcmask 261120
      %v438 = vsel %vm436, %v419, 0
      %440 = vmatprep.subr.bf16.mxu0 0
      %441 = vmatpush1.bf16.msra.mxu0 %v432
      %442 = vmatprep.subr.bf16.mxu0 0
      %443 = vmatpush1.bf16.msra.mxu0 %v433
      %444 = vmatprep.subr.bf16.mxu0 0
      %445 = vmatpush1.bf16.msra.mxu0 0
      %446 = vmatprep.subr.bf16.mxu0 0
      %447 = vmatpush1.bf16.msra.mxu0 0
      %448 = vmatprep.subr.bf16.mxu0 0
      %449 = vmatpush1.bf16.msra.mxu0 0
      %450 = vmatprep.subr.bf16.mxu0 0
      %451 = vmatpush1.bf16.msra.mxu0 0
      %452 = vmatprep.subr.bf16.mxu0 0
      %453 = vmatpush1.bf16.msra.mxu0 0
      %454 = vmatprep.subr.bf16.mxu0 0
      %455 = vmatpush1.bf16.msra.mxu0 0
      %456 = vmatprep.subr.bf16.mxu0 0
      %457 = vmatpush1.bf16.msra.mxu0 0
      %458 = vmatprep.subr.bf16.mxu0 0
      %459 = vmatpush1.bf16.msra.mxu0 0
      %460 = vmatprep.subr.bf16.mxu0 0
      %461 = vmatpush1.bf16.msra.mxu0 0
      %462 = vmatprep.subr.bf16.mxu0 0
      %463 = vmatpush1.bf16.msra.mxu0 0
      %464 = vmatprep.subr.bf16.mxu0 0
      %465 = vmatpush1.bf16.msra.mxu0 0
      %466 = vmatprep.subr.bf16.mxu0 0
      %467 = vmatpush1.bf16.msra.mxu0 0
      %468 = vmatprep.subr.bf16.mxu0 0
      %469 = vmatpush1.bf16.msra.mxu0 0
      %470 = vmatprep.subr.bf16.mxu0 0
      %471 = vmatpush1.bf16.msra.mxu0 0
      %472 = vmatprep.mubr.bf16.mxu0 0
      %473 = vmatmul.mubr.bf16.gmra.mrb[0].mxu0 %v438
      %v474 = vpop.f32.mrb[0].mxu0
      %v475 = vadd.f32 0.0, %v474
      %v476 = vpop.f32.mrb[0].mxu0
      %v477 = vpop.f32.mrb[0].mxu0
      %v478 = vadd.f32 0.0, %v477
      %v479 = vpop.f32.mrb[0].mxu0
      %480 = vdwg.mxu0
      %v481 = vld [vmem:[%s5] sm:$0x1]
      %v482 = vlaneseq
      %v483 = vshrl.u32 %v482, 7
      %v484 = vadd.s32 %v483, 8
      %v485 = vand.u32 %v483, 3
      %v486 = vand.u32 %v484, 3
      %vm487 = vcmp.eq.s32.totalorder %v485, 3
      %vm488 = vcmp.eq.s32.totalorder %v486, 3
      %v489 = vsel %vm487, 1, 0
      %v490 = vsel %vm488, 1, 0
      %vm491 = vcmp.eq.s32.totalorder %v489, 1
      %vm492 = vcmp.eq.s32.totalorder %v490, 1
      %v493 = vsel %vm491, 0.0, %v475
      %v494 = vsel %vm492, 0.0, %v478
      %vm495 = vcmp.eq.s32.totalorder %v485, 0
      %vm496 = vcmp.eq.s32.totalorder %v486, 0
      %v497 = vsel %vm495, 1, 0
      %v498 = vsel %vm496, 1, 0
      %vm499 = vcmp.eq.s32.totalorder %v497, 1
      %vm500 = vcmp.eq.s32.totalorder %v498, 1
      %v501 = vsel %vm499, 0.0, %v475
      %v502 = vsel %vm500, 0.0, %v478
      %vm505 = vcmask 1044480
      %v506 = vrot.slane %v493, 3
      %v507 = vrot.slane %v494, 3
      %v508 = vsel %vm505, %v506, %v507
      %v511 = vsel %vm505, 0.0, %v506
      %v512 = vpack.c.bf16 %v508, %v511
      %v513 = vld [vmem:[%s4] sm:$0xf]
      %v514 = vld [vmem:[%s4 + $0x4] sm:$0xf]
      %vm517 = vcmask 1043456
      %v518 = vrot.slane %v475, 4
      %v519 = vrot.slane %v478, 4
      %v520 = vsel %vm517, %v518, %v519
      %v523 = vsel %vm517, 0.0, %v518
      %v524 = vpack.c.bf16 %v520, %v523
      %s525 = scalar_lea.vmem %s4, 8
      %v526 = vld [vmem:[%s525] sm:$0xf]
      %v527 = vld [vmem:[%s525 + $0x4] sm:$0xf]
      %v530 = vunpack.c.l.b16 %v526
      %v531 = vunpack.c.l.b16 %v527
      %v532 = vpack.c.b16 %v531, %v530
      %vm534 = vcmask 130048
      %v536 = vsel %vm534, %v524, 0
      %538 = vmatprep.subr.bf16.mxu0 0
      %539 = vmatpush1.bf16.msra.mxu0 %v532
      %540 = vmatprep.subr.bf16.mxu0 0
      %541 = vmatpush1.bf16.msra.mxu0 0
      %542 = vmatprep.subr.bf16.mxu0 0
      %543 = vmatpush1.bf16.msra.mxu0 0
      %544 = vmatprep.subr.bf16.mxu0 0
      %545 = vmatpush1.bf16.msra.mxu0 0
      %546 = vmatprep.subr.bf16.mxu0 0
      %547 = vmatpush1.bf16.msra.mxu0 0
      %548 = vmatprep.subr.bf16.mxu0 0
      %549 = vmatpush1.bf16.msra.mxu0 0
      %550 = vmatprep.subr.bf16.mxu0 0
      %551 = vmatpush1.bf16.msra.mxu0 0
      %552 = vmatprep.subr.bf16.mxu0 0
      %553 = vmatpush1.bf16.msra.mxu0 0
      %554 = vmatprep.subr.bf16.mxu0 0
      %555 = vmatpush1.bf16.msra.mxu0 0
      %556 = vmatprep.subr.bf16.mxu0 0
      %557 = vmatpush1.bf16.msra.mxu0 0
      %558 = vmatprep.subr.bf16.mxu0 0
      %559 = vmatpush1.bf16.msra.mxu0 0
      %560 = vmatprep.subr.bf16.mxu0 0
      %561 = vmatpush1.bf16.msra.mxu0 0
      %562 = vmatprep.subr.bf16.mxu0 0
      %563 = vmatpush1.bf16.msra.mxu0 0
      %564 = vmatprep.subr.bf16.mxu0 0
      %565 = vmatpush1.bf16.msra.mxu0 0
      %566 = vmatprep.subr.bf16.mxu0 0
      %567 = vmatpush1.bf16.msra.mxu0 0
      %568 = vmatprep.subr.bf16.mxu0 0
      %569 = vmatpush1.bf16.msra.mxu0 0
      %570 = vmatprep.mubr.bf16.mxu0 0
      %571 = vmatmul.mubr.bf16.gmra.mrb[0].mxu0 %v536
      %v572 = vpop.f32.mrb[0].mxu0
      %v573 = vadd.f32 0.0, %v572
      %v574 = vpop.f32.mrb[0].mxu0
      %v575 = vpop.f32.mrb[0].mxu0
      %v576 = vadd.f32 0.0, %v575
      %v577 = vpop.f32.mrb[0].mxu0
      %578 = vdwg.mxu0
      %v581 = vunpack.c.l.b16 %v513
      %v582 = vunpack.c.l.b16 %v514
      %v583 = vpack.c.b16 %v582, %v581
      %v586 = vsel %vm534, %v512, 0
      %588 = vmatprep.subr.bf16.mxu0 0
      %589 = vmatpush1.bf16.msra.mxu0 %v583
      %590 = vmatprep.subr.bf16.mxu0 0
      %591 = vmatpush1.bf16.msra.mxu0 0
      %592 = vmatprep.subr.bf16.mxu0 0
      %593 = vmatpush1.bf16.msra.mxu0 0
      %594 = vmatprep.subr.bf16.mxu0 0
      %595 = vmatpush1.bf16.msra.mxu0 0
      %596 = vmatprep.subr.bf16.mxu0 0
      %597 = vmatpush1.bf16.msra.mxu0 0
      %598 = vmatprep.subr.bf16.mxu0 0
      %599 = vmatpush1.bf16.msra.mxu0 0
      %600 = vmatprep.subr.bf16.mxu0 0
      %601 = vmatpush1.bf16.msra.mxu0 0
      %602 = vmatprep.subr.bf16.mxu0 0
      %603 = vmatpush1.bf16.msra.mxu0 0
      %604 = vmatprep.subr.bf16.mxu0 0
      %605 = vmatpush1.bf16.msra.mxu0 0
      %606 = vmatprep.subr.bf16.mxu0 0
      %607 = vmatpush1.bf16.msra.mxu0 0
      %608 = vmatprep.subr.bf16.mxu0 0
      %609 = vmatpush1.bf16.msra.mxu0 0
      %610 = vmatprep.subr.bf16.mxu0 0
      %611 = vmatpush1.bf16.msra.mxu0 0
      %612 = vmatprep.subr.bf16.mxu0 0
      %613 = vmatpush1.bf16.msra.mxu0 0
      %614 = vmatprep.subr.bf16.mxu0 0
      %615 = vmatpush1.bf16.msra.mxu0 0
      %616 = vmatprep.subr.bf16.mxu0 0
      %617 = vmatpush1.bf16.msra.mxu0 0
      %618 = vmatprep.subr.bf16.mxu0 0
      %619 = vmatpush1.bf16.msra.mxu0 0
      %620 = vmatprep.mubr.bf16.mxu0 0
      %621 = vmatmul.mubr.bf16.gmra.mrb[0].mxu0 %v586
      %v622 = vpop.f32.mrb[0].mxu0
      %v623 = vadd.f32 %v573, %v622
      %v624 = vpop.f32.mrb[0].mxu0
      %v625 = vpop.f32.mrb[0].mxu0
      %v626 = vadd.f32 %v576, %v625
      %v627 = vpop.f32.mrb[0].mxu0
      %628 = vdwg.mxu0
      %vm631 = vcmask 1042432
      %v632 = vrot.slane %v501, 5
      %v633 = vrot.slane %v502, 5
      %v634 = vsel %vm631, %v632, %v633
      %v637 = vsel %vm631, 0.0, %v632
      %v638 = vpack.c.bf16 %v634, %v637
      %s639 = scalar_lea.vmem %s4, 16
      %v640 = vld [vmem:[%s639] sm:$0xf]
      %v641 = vld [vmem:[%s639 + $0x4] sm:$0xf]
      %v644 = vunpack.c.l.b16 %v640
      %v645 = vunpack.c.l.b16 %v641
      %v646 = vpack.c.b16 %v645, %v644
      %v649 = vsel %vm534, %v638, 0
      %651 = vmatprep.subr.bf16.mxu0 0
      %652 = vmatpush1.bf16.msra.mxu0 %v646
      %653 = vmatprep.subr.bf16.mxu0 0
      %654 = vmatpush1.bf16.msra.mxu0 0
      %655 = vmatprep.subr.bf16.mxu0 0
      %656 = vmatpush1.bf16.msra.mxu0 0
      %657 = vmatprep.subr.bf16.mxu0 0
      %658 = vmatpush1.bf16.msra.mxu0 0
      %659 = vmatprep.subr.bf16.mxu0 0
      %660 = vmatpush1.bf16.msra.mxu0 0
      %661 = vmatprep.subr.bf16.mxu0 0
      %662 = vmatpush1.bf16.msra.mxu0 0
      %663 = vmatprep.subr.bf16.mxu0 0
      %664 = vmatpush1.bf16.msra.mxu0 0
      %665 = vmatprep.subr.bf16.mxu0 0
      %666 = vmatpush1.bf16.msra.mxu0 0
      %667 = vmatprep.subr.bf16.mxu0 0
      %668 = vmatpush1.bf16.msra.mxu0 0
      %669 = vmatprep.subr.bf16.mxu0 0
      %670 = vmatpush1.bf16.msra.mxu0 0
      %671 = vmatprep.subr.bf16.mxu0 0
      %672 = vmatpush1.bf16.msra.mxu0 0
      %673 = vmatprep.subr.bf16.mxu0 0
      %674 = vmatpush1.bf16.msra.mxu0 0
      %675 = vmatprep.subr.bf16.mxu0 0
      %676 = vmatpush1.bf16.msra.mxu0 0
      %677 = vmatprep.subr.bf16.mxu0 0
      %678 = vmatpush1.bf16.msra.mxu0 0
      %679 = vmatprep.subr.bf16.mxu0 0
      %680 = vmatpush1.bf16.msra.mxu0 0
      %681 = vmatprep.subr.bf16.mxu0 0
      %682 = vmatpush1.bf16.msra.mxu0 0
      %683 = vmatprep.mubr.bf16.mxu0 0
      %684 = vmatmul.mubr.bf16.gmra.mrb[0].mxu0 %v649
      %v685 = vpop.f32.mrb[0].mxu0
      %v686 = vadd.f32 0.0, %v685
      %v687 = vpop.f32.mrb[0].mxu0
      %v688 = vpop.f32.mrb[0].mxu0
      %v689 = vadd.f32 0.0, %v688
      %v690 = vpop.f32.mrb[0].mxu0
      %691 = vdwg.mxu0
      %v692 = vadd.f32 %v623, %v686
      %v693 = vadd.f32 %v626, %v689
      %vm694 = vcmask 1040384
      %v695 = vrot.slane %v493, 7
      %v696 = vrot.slane %v494, 7
      %v697 = vsel %vm694, %v695, %v696
      %v700 = vsel %vm694, 0.0, %v695
      %v701 = vpack.c.bf16 %v697, %v700
      %s702 = scalar_lea.vmem %s4, 24
      %v703 = vld [vmem:[%s702] sm:$0xf]
      %v704 = vld [vmem:[%s702 + $0x4] sm:$0xf]
      %v707 = vunpack.c.l.b16 %v703
      %v708 = vunpack.c.l.b16 %v704
      %v709 = vpack.c.b16 %v708, %v707
      %v712 = vsel %vm534, %v701, 0
      %714 = vmatprep.subr.bf16.mxu0 0
      %715 = vmatpush1.bf16.msra.mxu0 %v709
      %716 = vmatprep.subr.bf16.mxu0 0
      %717 = vmatpush1.bf16.msra.mxu0 0
      %718 = vmatprep.subr.bf16.mxu0 0
      %719 = vmatpush1.bf16.msra.mxu0 0
      %720 = vmatprep.subr.bf16.mxu0 0
      %721 = vmatpush1.bf16.msra.mxu0 0
      %722 = vmatprep.subr.bf16.mxu0 0
      %723 = vmatpush1.bf16.msra.mxu0 0
      %724 = vmatprep.subr.bf16.mxu0 0
      %725 = vmatpush1.bf16.msra.mxu0 0
      %726 = vmatprep.subr.bf16.mxu0 0
      %727 = vmatpush1.bf16.msra.mxu0 0
      %728 = vmatprep.subr.bf16.mxu0 0
      %729 = vmatpush1.bf16.msra.mxu0 0
      %730 = vmatprep.subr.bf16.mxu0 0
      %731 = vmatpush1.bf16.msra.mxu0 0
      %732 = vmatprep.subr.bf16.mxu0 0
      %733 = vmatpush1.bf16.msra.mxu0 0
      %734 = vmatprep.subr.bf16.mxu0 0
      %735 = vmatpush1.bf16.msra.mxu0 0
      %736 = vmatprep.subr.bf16.mxu0 0
      %737 = vmatpush1.bf16.msra.mxu0 0
      %738 = vmatprep.subr.bf16.mxu0 0
      %739 = vmatpush1.bf16.msra.mxu0 0
      %740 = vmatprep.subr.bf16.mxu0 0
      %741 = vmatpush1.bf16.msra.mxu0 0
      %742 = vmatprep.subr.bf16.mxu0 0
      %743 = vmatpush1.bf16.msra.mxu0 0
      %744 = vmatprep.subr.bf16.mxu0 0
      %745 = vmatpush1.bf16.msra.mxu0 0
      %746 = vmatprep.mubr.bf16.mxu0 0
      %747 = vmatmul.mubr.bf16.gmra.mrb[0].mxu0 %v712
      %v748 = vpop.f32.mrb[0].mxu0
      %v749 = vadd.f32 0.0, %v748
      %v750 = vpop.f32.mrb[0].mxu0
      %v751 = vpop.f32.mrb[0].mxu0
      %v752 = vadd.f32 0.0, %v751
      %v753 = vpop.f32.mrb[0].mxu0
      %754 = vdwg.mxu0
      %v755 = vadd.f32 %v692, %v749
      %v756 = vadd.f32 %v693, %v752
      %v757 = vpack.c.bf16 %v478, %v475
      %s758 = scalar_lea.vmem %s4, 32
      %v759 = vld [vmem:[%s758] sm:$0xf]
      %v760 = vld [vmem:[%s758 + $0x4] sm:$0xf]
      %v763 = vunpack.c.l.b16 %v759
      %v764 = vunpack.c.l.b16 %v760
      %v765 = vpack.c.b16 %v764, %v763
      %v768 = vsel %vm534, %v757, 0
      %770 = vmatprep.subr.bf16.mxu0 0
      %771 = vmatpush1.bf16.msra.mxu0 %v765
      %772 = vmatprep.subr.bf16.mxu0 0
      %773 = vmatpush1.bf16.msra.mxu0 0
      %774 = vmatprep.subr.bf16.mxu0 0
      %775 = vmatpush1.bf16.msra.mxu0 0
      %776 = vmatprep.subr.bf16.mxu0 0
      %777 = vmatpush1.bf16.msra.mxu0 0
      %778 = vmatprep.subr.bf16.mxu0 0
      %779 = vmatpush1.bf16.msra.mxu0 0
      %780 = vmatprep.subr.bf16.mxu0 0
      %781 = vmatpush1.bf16.msra.mxu0 0
      %782 = vmatprep.subr.bf16.mxu0 0
      %783 = vmatpush1.bf16.msra.mxu0 0
      %784 = vmatprep.subr.bf16.mxu0 0
      %785 = vmatpush1.bf16.msra.mxu0 0
      %786 = vmatprep.subr.bf16.mxu0 0
      %787 = vmatpush1.bf16.msra.mxu0 0
      %788 = vmatprep.subr.bf16.mxu0 0
      %789 = vmatpush1.bf16.msra.mxu0 0
      %790 = vmatprep.subr.bf16.mxu0 0
      %791 = vmatpush1.bf16.msra.mxu0 0
      %792 = vmatprep.subr.bf16.mxu0 0
      %793 = vmatpush1.bf16.msra.mxu0 0
      %794 = vmatprep.subr.bf16.mxu0 0
      %795 = vmatpush1.bf16.msra.mxu0 0
      %796 = vmatprep.subr.bf16.mxu0 0
      %797 = vmatpush1.bf16.msra.mxu0 0
      %798 = vmatprep.subr.bf16.mxu0 0
      %799 = vmatpush1.bf16.msra.mxu0 0
      %800 = vmatprep.subr.bf16.mxu0 0
      %801 = vmatpush1.bf16.msra.mxu0 0
      %802 = vmatprep.mubr.bf16.mxu0 0
      %803 = vmatmul.mubr.bf16.gmra.mrb[0].mxu0 %v768
      %v804 = vpop.f32.mrb[0].mxu0
      %v805 = vadd.f32 0.0, %v804
      %v806 = vpop.f32.mrb[0].mxu0
      %v807 = vpop.f32.mrb[0].mxu0
      %v808 = vadd.f32 0.0, %v807
      %v809 = vpop.f32.mrb[0].mxu0
      %810 = vdwg.mxu0
      %v811 = vadd.f32 %v755, %v805
      %v812 = vadd.f32 %v756, %v808
      %vm813 = vcmask 1046528
      %v814 = vrot.slane %v501, 1
      %v815 = vrot.slane %v502, 1
      %v816 = vsel %vm813, %v814, %v815
      %v819 = vsel %vm813, %v815, 0.0
      %v820 = vpack.c.bf16 %v819, %v816
      %s821 = scalar_lea.vmem %s4, 40
      %v822 = vld [vmem:[%s821] sm:$0xf]
      %v823 = vld [vmem:[%s821 + $0x4] sm:$0xf]
      %v826 = vunpack.c.l.b16 %v822
      %v827 = vunpack.c.l.b16 %v823
      %v828 = vpack.c.b16 %v827, %v826
      %v831 = vsel %vm534, %v820, 0
      %833 = vmatprep.subr.bf16.mxu0 0
      %834 = vmatpush1.bf16.msra.mxu0 %v828
      %835 = vmatprep.subr.bf16.mxu0 0
      %836 = vmatpush1.bf16.msra.mxu0 0
      %837 = vmatprep.subr.bf16.mxu0 0
      %838 = vmatpush1.bf16.msra.mxu0 0
      %839 = vmatprep.subr.bf16.mxu0 0
      %840 = vmatpush1.bf16.msra.mxu0 0
      %841 = vmatprep.subr.bf16.mxu0 0
      %842 = vmatpush1.bf16.msra.mxu0 0
      %843 = vmatprep.subr.bf16.mxu0 0
      %844 = vmatpush1.bf16.msra.mxu0 0
      %845 = vmatprep.subr.bf16.mxu0 0
      %846 = vmatpush1.bf16.msra.mxu0 0
      %847 = vmatprep.subr.bf16.mxu0 0
      %848 = vmatpush1.bf16.msra.mxu0 0
      %849 = vmatprep.subr.bf16.mxu0 0
      %850 = vmatpush1.bf16.msra.mxu0 0
      %851 = vmatprep.subr.bf16.mxu0 0
      %852 = vmatpush1.bf16.msra.mxu0 0
      %853 = vmatprep.subr.bf16.mxu0 0
      %854 = vmatpush1.bf16.msra.mxu0 0
      %855 = vmatprep.subr.bf16.mxu0 0
      %856 = vmatpush1.bf16.msra.mxu0 0
      %857 = vmatprep.subr.bf16.mxu0 0
      %858 = vmatpush1.bf16.msra.mxu0 0
      %859 = vmatprep.subr.bf16.mxu0 0
      %860 = vmatpush1.bf16.msra.mxu0 0
      %861 = vmatprep.subr.bf16.mxu0 0
      %862 = vmatpush1.bf16.msra.mxu0 0
      %863 = vmatprep.subr.bf16.mxu0 0
      %864 = vmatpush1.bf16.msra.mxu0 0
      %865 = vmatprep.mubr.bf16.mxu0 0
      %866 = vmatmul.mubr.bf16.gmra.mrb[0].mxu0 %v831
      %v867 = vpop.f32.mrb[0].mxu0
      %v868 = vadd.f32 0.0, %v867
      %v869 = vpop.f32.mrb[0].mxu0
      %v870 = vpop.f32.mrb[0].mxu0
      %v871 = vadd.f32 0.0, %v870
      %v872 = vpop.f32.mrb[0].mxu0
      %873 = vdwg.mxu0
      %v874 = vadd.f32 %v811, %v868
      %v875 = vadd.f32 %v812, %v871
      %v877 = vsel %vm505, %v507, 0.0
      %v878 = vpack.c.bf16 %v877, %v508
      %s879 = scalar_lea.vmem %s4, 48
      %v880 = vld [vmem:[%s879] sm:$0xf]
      %v881 = vld [vmem:[%s879 + $0x4] sm:$0xf]
      %v884 = vunpack.c.l.b16 %v880
      %v885 = vunpack.c.l.b16 %v881
      %v886 = vpack.c.b16 %v885, %v884
      %v889 = vsel %vm534, %v878, 0
      %891 = vmatprep.subr.bf16.mxu0 0
      %892 = vmatpush1.bf16.msra.mxu0 %v886
      %893 = vmatprep.subr.bf16.mxu0 0
      %894 = vmatpush1.bf16.msra.mxu0 0
      %895 = vmatprep.subr.bf16.mxu0 0
      %896 = vmatpush1.bf16.msra.mxu0 0
      %897 = vmatprep.subr.bf16.mxu0 0
      %898 = vmatpush1.bf16.msra.mxu0 0
      %899 = vmatprep.subr.bf16.mxu0 0
      %900 = vmatpush1.bf16.msra.mxu0 0
      %901 = vmatprep.subr.bf16.mxu0 0
      %902 = vmatpush1.bf16.msra.mxu0 0
      %903 = vmatprep.subr.bf16.mxu0 0
      %904 = vmatpush1.bf16.msra.mxu0 0
      %905 = vmatprep.subr.bf16.mxu0 0
      %906 = vmatpush1.bf16.msra.mxu0 0
      %907 = vmatprep.subr.bf16.mxu0 0
      %908 = vmatpush1.bf16.msra.mxu0 0
      %909 = vmatprep.subr.bf16.mxu0 0
      %910 = vmatpush1.bf16.msra.mxu0 0
      %911 = vmatprep.subr.bf16.mxu0 0
      %912 = vmatpush1.bf16.msra.mxu0 0
      %913 = vmatprep.subr.bf16.mxu0 0
      %914 = vmatpush1.bf16.msra.mxu0 0
      %915 = vmatprep.subr.bf16.mxu0 0
      %916 = vmatpush1.bf16.msra.mxu0 0
      %917 = vmatprep.subr.bf16.mxu0 0
      %918 = vmatpush1.bf16.msra.mxu0 0
      %919 = vmatprep.subr.bf16.mxu0 0
      %920 = vmatpush1.bf16.msra.mxu0 0
      %921 = vmatprep.subr.bf16.mxu0 0
      %922 = vmatpush1.bf16.msra.mxu0 0
      %923 = vmatprep.mubr.bf16.mxu0 0
      %924 = vmatmul.mubr.bf16.gmra.mrb[0].mxu0 %v889
      %v925 = vpop.f32.mrb[0].mxu0
      %v926 = vadd.f32 0.0, %v925
      %v927 = vpop.f32.mrb[0].mxu0
      %v928 = vpop.f32.mrb[0].mxu0
      %v929 = vadd.f32 0.0, %v928
      %v930 = vpop.f32.mrb[0].mxu0
      %931 = vdwg.mxu0
      %v932 = vadd.f32 %v874, %v926
      %v933 = vadd.f32 %v875, %v929
      %v935 = vsel %vm517, %v519, 0.0
      %v936 = vpack.c.bf16 %v935, %v520
      %s937 = scalar_lea.vmem %s4, 56
      %v938 = vld [vmem:[%s937] sm:$0xf]
      %v939 = vld [vmem:[%s937 + $0x4] sm:$0xf]
      %v942 = vunpack.c.l.b16 %v938
      %v943 = vunpack.c.l.b16 %v939
      %v944 = vpack.c.b16 %v943, %v942
      %v947 = vsel %vm534, %v936, 0
      %949 = vmatprep.subr.bf16.mxu0 0
      %950 = vmatpush1.bf16.msra.mxu0 %v944
      %951 = vmatprep.subr.bf16.mxu0 0
      %952 = vmatpush1.bf16.msra.mxu0 0
      %953 = vmatprep.subr.bf16.mxu0 0
      %954 = vmatpush1.bf16.msra.mxu0 0
      %955 = vmatprep.subr.bf16.mxu0 0
      %956 = vmatpush1.bf16.msra.mxu0 0
      %957 = vmatprep.subr.bf16.mxu0 0
      %958 = vmatpush1.bf16.msra.mxu0 0
      %959 = vmatprep.subr.bf16.mxu0 0
      %960 = vmatpush1.bf16.msra.mxu0 0
      %961 = vmatprep.subr.bf16.mxu0 0
      %962 = vmatpush1.bf16.msra.mxu0 0
      %963 = vmatprep.subr.bf16.mxu0 0
      %964 = vmatpush1.bf16.msra.mxu0 0
      %965 = vmatprep.subr.bf16.mxu0 0
      %966 = vmatpush1.bf16.msra.mxu0 0
      %967 = vmatprep.subr.bf16.mxu0 0
      %968 = vmatpush1.bf16.msra.mxu0 0
      %969 = vmatprep.subr.bf16.mxu0 0
      %970 = vmatpush1.bf16.msra.mxu0 0
      %971 = vmatprep.subr.bf16.mxu0 0
      %972 = vmatpush1.bf16.msra.mxu0 0
      %973 = vmatprep.subr.bf16.mxu0 0
      %974 = vmatpush1.bf16.msra.mxu0 0
      %975 = vmatprep.subr.bf16.mxu0 0
      %976 = vmatpush1.bf16.msra.mxu0 0
      %977 = vmatprep.subr.bf16.mxu0 0
      %978 = vmatpush1.bf16.msra.mxu0 0
      %979 = vmatprep.subr.bf16.mxu0 0
      %980 = vmatpush1.bf16.msra.mxu0 0
      %981 = vmatprep.mubr.bf16.mxu0 0
      %982 = vmatmul.mubr.bf16.gmra.mrb[0].mxu0 %v947
      %v983 = vpop.f32.mrb[0].mxu0
      %v984 = vadd.f32 0.0, %v983
      %v985 = vpop.f32.mrb[0].mxu0
      %v986 = vpop.f32.mrb[0].mxu0
      %v987 = vadd.f32 0.0, %v986
      %v988 = vpop.f32.mrb[0].mxu0
      %989 = vdwg.mxu0
      %v990 = vadd.f32 %v932, %v984
      %v991 = vadd.f32 %v933, %v987
      %v993 = vsel %vm631, %v633, 0.0
      %v994 = vpack.c.bf16 %v993, %v634
      %s995 = scalar_lea.vmem %s4, 64
      %v996 = vld [vmem:[%s995] sm:$0xf]
      %v997 = vld [vmem:[%s995 + $0x4] sm:$0xf]
      %v1000 = vunpack.c.l.b16 %v996
      %v1001 = vunpack.c.l.b16 %v997
      %v1002 = vpack.c.b16 %v1001, %v1000
      %v1005 = vsel %vm534, %v994, 0
      %1007 = vmatprep.subr.bf16.mxu0 0
      %1008 = vmatpush1.bf16.msra.mxu0 %v1002
      %1009 = vmatprep.subr.bf16.mxu0 0
      %1010 = vmatpush1.bf16.msra.mxu0 0
      %1011 = vmatprep.subr.bf16.mxu0 0
      %1012 = vmatpush1.bf16.msra.mxu0 0
      %1013 = vmatprep.subr.bf16.mxu0 0
      %1014 = vmatpush1.bf16.msra.mxu0 0
      %1015 = vmatprep.subr.bf16.mxu0 0
      %1016 = vmatpush1.bf16.msra.mxu0 0
      %1017 = vmatprep.subr.bf16.mxu0 0
      %1018 = vmatpush1.bf16.msra.mxu0 0
      %1019 = vmatprep.subr.bf16.mxu0 0
      %1020 = vmatpush1.bf16.msra.mxu0 0
      %1021 = vmatprep.subr.bf16.mxu0 0
      %1022 = vmatpush1.bf16.msra.mxu0 0
      %1023 = vmatprep.subr.bf16.mxu0 0
      %1024 = vmatpush1.bf16.msra.mxu0 0
      %1025 = vmatprep.subr.bf16.mxu0 0
      %1026 = vmatpush1.bf16.msra.mxu0 0
      %1027 = vmatprep.subr.bf16.mxu0 0
      %1028 = vmatpush1.bf16.msra.mxu0 0
      %1029 = vmatprep.subr.bf16.mxu0 0
      %1030 = vmatpush1.bf16.msra.mxu0 0
      %1031 = vmatprep.subr.bf16.mxu0 0
      %1032 = vmatpush1.bf16.msra.mxu0 0
      %1033 = vmatprep.subr.bf16.mxu0 0
      %1034 = vmatpush1.bf16.msra.mxu0 0
      %1035 = vmatprep.subr.bf16.mxu0 0
      %1036 = vmatpush1.bf16.msra.mxu0 0
      %1037 = vmatprep.subr.bf16.mxu0 0
      %1038 = vmatpush1.bf16.msra.mxu0 0
      %1039 = vmatprep.mubr.bf16.mxu0 0
      %1040 = vmatmul.mubr.bf16.gmra.mrb[0].mxu0 %v1005
      %v1041 = vpop.f32.mrb[0].mxu0
      %v1042 = vadd.f32 0.0, %v1041
      %v1043 = vpop.f32.mrb[0].mxu0
      %v1044 = vpop.f32.mrb[0].mxu0
      %v1045 = vadd.f32 0.0, %v1044
      %v1046 = vpop.f32.mrb[0].mxu0
      %1047 = vdwg.mxu0
      %v1048 = vadd.f32 %v990, %v1042
      %v1049 = vadd.f32 %v991, %v1045
      %v1051 = vlaneseq
      %v1052 = vshrl.u32 %v1051, 7
      %v1053 = vsub.s32 0, %v1052
      %v1054 = vrot.slane %v481, %v1053
      %v1056 = vadd.f32 %v1048, %v1054
      %v1057 = vadd.f32 %v1049, %v1054
      %v1058 = vmax.f32 %v1056, 0.0
      %v1059 = vmax.f32 %v1057, 0.0
      %v1060 = vpack.c.bf16 %v1059, %v1058
      %v1061 = vld [vmem:[%s6] sm:$0xf]
      %v1062 = vld [vmem:[%s6 + $0x4] sm:$0xf]
      %v1063 = vld [vmem:[%s6 + $0x8] sm:$0xf]
      %v1064 = vld [vmem:[%s6 + $0xc] sm:$0xf]
      %v1065 = vld [vmem:[%s7] sm:$0x1]
      %v1067 = vlaneseq
      %v1068 = vshrl.u32 %v1067, 7
      %v1069 = vsub.s32 0, %v1068
      %v1070 = vrot.slane %v1065, %v1069
      %v1076 = vunpack.c.l.b16 %v1061
      %v1077 = vunpack.c.l.b16 %v1062
      %v1078 = vunpack.c.l.b16 %v1063
      %v1079 = vunpack.c.l.b16 %v1064
      %v1080 = vpack.c.b16 %v1077, %v1076
      %v1081 = vpack.c.b16 %v1079, %v1078
      %v1085 = vsel %vm436, %v1060, 0
      %1087 = vmatprep.subr.bf16.mxu0 0
      %1088 = vmatpush1.bf16.msra.mxu0 %v1080
      %1089 = vmatprep.subr.bf16.mxu0 0
      %1090 = vmatpush1.bf16.msra.mxu0 %v1081
      %1091 = vmatprep.subr.bf16.mxu0 0
      %1092 = vmatpush1.bf16.msra.mxu0 0
      %1093 = vmatprep.subr.bf16.mxu0 0
      %1094 = vmatpush1.bf16.msra.mxu0 0
      %1095 = vmatprep.subr.bf16.mxu0 0
      %1096 = vmatpush1.bf16.msra.mxu0 0
      %1097 = vmatprep.subr.bf16.mxu0 0
      %1098 = vmatpush1.bf16.msra.mxu0 0
      %1099 = vmatprep.subr.bf16.mxu0 0
      %1100 = vmatpush1.bf16.msra.mxu0 0
      %1101 = vmatprep.subr.bf16.mxu0 0
      %1102 = vmatpush1.bf16.msra.mxu0 0
      %1103 = vmatprep.subr.bf16.mxu0 0
      %1104 = vmatpush1.bf16.msra.mxu0 0
      %1105 = vmatprep.subr.bf16.mxu0 0
      %1106 = vmatpush1.bf16.msra.mxu0 0
      %1107 = vmatprep.subr.bf16.mxu0 0
      %1108 = vmatpush1.bf16.msra.mxu0 0
      %1109 = vmatprep.subr.bf16.mxu0 0
      %1110 = vmatpush1.bf16.msra.mxu0 0
      %1111 = vmatprep.subr.bf16.mxu0 0
      %1112 = vmatpush1.bf16.msra.mxu0 0
      %1113 = vmatprep.subr.bf16.mxu0 0
      %1114 = vmatpush1.bf16.msra.mxu0 0
      %1115 = vmatprep.subr.bf16.mxu0 0
      %1116 = vmatpush1.bf16.msra.mxu0 0
      %1117 = vmatprep.subr.bf16.mxu0 0
      %1118 = vmatpush1.bf16.msra.mxu0 0
      %1119 = vmatprep.mubr.bf16.mxu0 0
      %1120 = vmatmul.mubr.bf16.gmra.mrb[0].mxu0 %v1085
      %v1121 = vpop.f32.mrb[0].mxu0
      %v1122 = vadd.f32 %v1070, %v1121
      %v1123 = vpop.f32.mrb[0].mxu0
      %v1124 = vpop.f32.mrb[0].mxu0
      %v1125 = vadd.f32 %v1070, %v1124
      %v1126 = vpop.f32.mrb[0].mxu0
      %1127 = vdwg.mxu0
      %v1128 = vmax.f32 %v1122, 0.0
      %v1129 = vmax.f32 %v1125, 0.0
      %v1130 = vld [vmem:[%s9] sm:$0x1]
      %v1131 = vsel %vm491, 0.0, %v1128
      %v1132 = vsel %vm492, 0.0, %v1129
      %v1133 = vsel %vm499, 0.0, %v1128
      %v1134 = vsel %vm500, 0.0, %v1129
      %v1137 = vrot.slane %v1131, 3
      %v1138 = vrot.slane %v1132, 3
      %v1139 = vsel %vm505, %v1137, %v1138
      %v1142 = vsel %vm505, 0.0, %v1137
      %v1143 = vpack.c.bf16 %v1139, %v1142
      %v1144 = vld [vmem:[%s8] sm:$0xf]
      %v1145 = vld [vmem:[%s8 + $0x4] sm:$0xf]
      %v1146 = vld [vmem:[%s8 + $0x8] sm:$0xf]
      %v1147 = vld [vmem:[%s8 + $0xc] sm:$0xf]
      %v1150 = vrot.slane %v1128, 4
      %v1151 = vrot.slane %v1129, 4
      %v1152 = vsel %vm517, %v1150, %v1151
      %v1155 = vsel %vm517, 0.0, %v1150
      %v1156 = vpack.c.bf16 %v1152, %v1155
      %s1157 = scalar_lea.vmem %s8, 16
      %v1158 = vld [vmem:[%s1157] sm:$0xf]
      %v1159 = vld [vmem:[%s1157 + $0x4] sm:$0xf]
      %v1160 = vld [vmem:[%s1157 + $0x8] sm:$0xf]
      %v1161 = vld [vmem:[%s1157 + $0xc] sm:$0xf]
      %v1166 = vunpack.c.l.b16 %v1158
      %v1167 = vunpack.c.l.b16 %v1159
      %v1168 = vunpack.c.l.b16 %v1160
      %v1169 = vunpack.c.l.b16 %v1161
      %v1170 = vpack.c.b16 %v1167, %v1166
      %v1171 = vpack.c.b16 %v1169, %v1168
      %v1175 = vsel %vm436, %v1156, 0
      %1177 = vmatprep.subr.bf16.mxu0 0
      %1178 = vmatpush1.bf16.msra.mxu0 %v1170
      %1179 = vmatprep.subr.bf16.mxu0 0
      %1180 = vmatpush1.bf16.msra.mxu0 %v1171
      %1181 = vmatprep.subr.bf16.mxu0 0
      %1182 = vmatpush1.bf16.msra.mxu0 0
      %1183 = vmatprep.subr.bf16.mxu0 0
      %1184 = vmatpush1.bf16.msra.mxu0 0
      %1185 = vmatprep.subr.bf16.mxu0 0
      %1186 = vmatpush1.bf16.msra.mxu0 0
      %1187 = vmatprep.subr.bf16.mxu0 0
      %1188 = vmatpush1.bf16.msra.mxu0 0
      %1189 = vmatprep.subr.bf16.mxu0 0
      %1190 = vmatpush1.bf16.msra.mxu0 0
      %1191 = vmatprep.subr.bf16.mxu0 0
      %1192 = vmatpush1.bf16.msra.mxu0 0
      %1193 = vmatprep.subr.bf16.mxu0 0
      %1194 = vmatpush1.bf16.msra.mxu0 0
      %1195 = vmatprep.subr.bf16.mxu0 0
      %1196 = vmatpush1.bf16.msra.mxu0 0
      %1197 = vmatprep.subr.bf16.mxu0 0
      %1198 = vmatpush1.bf16.msra.mxu0 0
      %1199 = vmatprep.subr.bf16.mxu0 0
      %1200 = vmatpush1.bf16.msra.mxu0 0
      %1201 = vmatprep.subr.bf16.mxu0 0
      %1202 = vmatpush1.bf16.msra.mxu0 0
      %1203 = vmatprep.subr.bf16.mxu0 0
      %1204 = vmatpush1.bf16.msra.mxu0 0
      %1205 = vmatprep.subr.bf16.mxu0 0
      %1206 = vmatpush1.bf16.msra.mxu0 0
      %1207 = vmatprep.subr.bf16.mxu0 0
      %1208 = vmatpush1.bf16.msra.mxu0 0
      %1209 = vmatprep.mubr.bf16.mxu0 0
      %1210 = vmatmul.mubr.bf16.gmra.mrb[0].mxu0 %v1175
      %v1211 = vpop.f32.mrb[0].mxu0
      %v1212 = vadd.f32 0.0, %v1211
      %v1213 = vpop.f32.mrb[0].mxu0
      %v1214 = vpop.f32.mrb[0].mxu0
      %v1215 = vadd.f32 0.0, %v1214
      %v1216 = vpop.f32.mrb[0].mxu0
      %1217 = vdwg.mxu0
      %v1222 = vunpack.c.l.b16 %v1144
      %v1223 = vunpack.c.l.b16 %v1145
      %v1224 = vunpack.c.l.b16 %v1146
      %v1225 = vunpack.c.l.b16 %v1147
      %v1226 = vpack.c.b16 %v1223, %v1222
      %v1227 = vpack.c.b16 %v1225, %v1224
      %v1231 = vsel %vm436, %v1143, 0
      %1233 = vmatprep.subr.bf16.mxu0 0
      %1234 = vmatpush1.bf16.msra.mxu0 %v1226
      %1235 = vmatprep.subr.bf16.mxu0 0
      %1236 = vmatpush1.bf16.msra.mxu0 %v1227
      %1237 = vmatprep.subr.bf16.mxu0 0
      %1238 = vmatpush1.bf16.msra.mxu0 0
      %1239 = vmatprep.subr.bf16.mxu0 0
      %1240 = vmatpush1.bf16.msra.mxu0 0
      %1241 = vmatprep.subr.bf16.mxu0 0
      %1242 = vmatpush1.bf16.msra.mxu0 0
      %1243 = vmatprep.subr.bf16.mxu0 0
      %1244 = vmatpush1.bf16.msra.mxu0 0
      %1245 = vmatprep.subr.bf16.mxu0 0
      %1246 = vmatpush1.bf16.msra.mxu0 0
      %1247 = vmatprep.subr.bf16.mxu0 0
      %1248 = vmatpush1.bf16.msra.mxu0 0
      %1249 = vmatprep.subr.bf16.mxu0 0
      %1250 = vmatpush1.bf16.msra.mxu0 0
      %1251 = vmatprep.subr.bf16.mxu0 0
      %1252 = vmatpush1.bf16.msra.mxu0 0
      %1253 = vmatprep.subr.bf16.mxu0 0
      %1254 = vmatpush1.bf16.msra.mxu0 0
      %1255 = vmatprep.subr.bf16.mxu0 0
      %1256 = vmatpush1.bf16.msra.mxu0 0
      %1257 = vmatprep.subr.bf16.mxu0 0
      %1258 = vmatpush1.bf16.msra.mxu0 0
      %1259 = vmatprep.subr.bf16.mxu0 0
      %1260 = vmatpush1.bf16.msra.mxu0 0
      %1261 = vmatprep.subr.bf16.mxu0 0
      %1262 = vmatpush1.bf16.msra.mxu0 0
      %1263 = vmatprep.subr.bf16.mxu0 0
      %1264 = vmatpush1.bf16.msra.mxu0 0
      %1265 = vmatprep.mubr.bf16.mxu0 0
      %1266 = vmatmul.mubr.bf16.gmra.mrb[0].mxu0 %v1231
      %v1267 = vpop.f32.mrb[0].mxu0
      %v1268 = vadd.f32 %v1212, %v1267
      %v1269 = vpop.f32.mrb[0].mxu0
      %v1270 = vpop.f32.mrb[0].mxu0
      %v1271 = vadd.f32 %v1215, %v1270
      %v1272 = vpop.f32.mrb[0].mxu0
      %1273 = vdwg.mxu0
      %v1276 = vrot.slane %v1133, 5
      %v1277 = vrot.slane %v1134, 5
      %v1278 = vsel %vm631, %v1276, %v1277
      %v1281 = vsel %vm631, 0.0, %v1276
      %v1282 = vpack.c.bf16 %v1278, %v1281
      %s1283 = scalar_lea.vmem %s8, 32
      %v1284 = vld [vmem:[%s1283] sm:$0xf]
      %v1285 = vld [vmem:[%s1283 + $0x4] sm:$0xf]
      %v1286 = vld [vmem:[%s1283 + $0x8] sm:$0xf]
      %v1287 = vld [vmem:[%s1283 + $0xc] sm:$0xf]
      %v1292 = vunpack.c.l.b16 %v1284
      %v1293 = vunpack.c.l.b16 %v1285
      %v1294 = vunpack.c.l.b16 %v1286
      %v1295 = vunpack.c.l.b16 %v1287
      %v1296 = vpack.c.b16 %v1293, %v1292
      %v1297 = vpack.c.b16 %v1295, %v1294
      %v1301 = vsel %vm436, %v1282, 0
      %1303 = vmatprep.subr.bf16.mxu0 0
      %1304 = vmatpush1.bf16.msra.mxu0 %v1296
      %1305 = vmatprep.subr.bf16.mxu0 0
      %1306 = vmatpush1.bf16.msra.mxu0 %v1297
      %1307 = vmatprep.subr.bf16.mxu0 0
      %1308 = vmatpush1.bf16.msra.mxu0 0
      %1309 = vmatprep.subr.bf16.mxu0 0
      %1310 = vmatpush1.bf16.msra.mxu0 0
      %1311 = vmatprep.subr.bf16.mxu0 0
      %1312 = vmatpush1.bf16.msra.mxu0 0
      %1313 = vmatprep.subr.bf16.mxu0 0
      %1314 = vmatpush1.bf16.msra.mxu0 0
      %1315 = vmatprep.subr.bf16.mxu0 0
      %1316 = vmatpush1.bf16.msra.mxu0 0
      %1317 = vmatprep.subr.bf16.mxu0 0
      %1318 = vmatpush1.bf16.msra.mxu0 0
      %1319 = vmatprep.subr.bf16.mxu0 0
      %1320 = vmatpush1.bf16.msra.mxu0 0
      %1321 = vmatprep.subr.bf16.mxu0 0
      %1322 = vmatpush1.bf16.msra.mxu0 0
      %1323 = vmatprep.subr.bf16.mxu0 0
      %1324 = vmatpush1.bf16.msra.mxu0 0
      %1325 = vmatprep.subr.bf16.mxu0 0
      %1326 = vmatpush1.bf16.msra.mxu0 0
      %1327 = vmatprep.subr.bf16.mxu0 0
      %1328 = vmatpush1.bf16.msra.mxu0 0
      %1329 = vmatprep.subr.bf16.mxu0 0
      %1330 = vmatpush1.bf16.msra.mxu0 0
      %1331 = vmatprep.subr.bf16.mxu0 0
      %1332 = vmatpush1.bf16.msra.mxu0 0
      %1333 = vmatprep.subr.bf16.mxu0 0
      %1334 = vmatpush1.bf16.msra.mxu0 0
      %1335 = vmatprep.mubr.bf16.mxu0 0
      %1336 = vmatmul.mubr.bf16.gmra.mrb[0].mxu0 %v1301
      %v1337 = vpop.f32.mrb[0].mxu0
      %v1338 = vadd.f32 0.0, %v1337
      %v1339 = vpop.f32.mrb[0].mxu0
      %v1340 = vpop.f32.mrb[0].mxu0
      %v1341 = vadd.f32 0.0, %v1340
      %v1342 = vpop.f32.mrb[0].mxu0
      %1343 = vdwg.mxu0
      %v1344 = vadd.f32 %v1268, %v1338
      %v1345 = vadd.f32 %v1271, %v1341
      %v1346 = vrot.slane %v1131, 7
      %v1347 = vrot.slane %v1132, 7
      %v1348 = vsel %vm694, %v1346, %v1347
      %v1351 = vsel %vm694, 0.0, %v1346
      %v1352 = vpack.c.bf16 %v1348, %v1351
      %s1353 = scalar_lea.vmem %s8, 48
      %v1354 = vld [vmem:[%s1353] sm:$0xf]
      %v1355 = vld [vmem:[%s1353 + $0x4] sm:$0xf]
      %v1356 = vld [vmem:[%s1353 + $0x8] sm:$0xf]
      %v1357 = vld [vmem:[%s1353 + $0xc] sm:$0xf]
      %v1362 = vunpack.c.l.b16 %v1354
      %v1363 = vunpack.c.l.b16 %v1355
      %v1364 = vunpack.c.l.b16 %v1356
      %v1365 = vunpack.c.l.b16 %v1357
      %v1366 = vpack.c.b16 %v1363, %v1362
      %v1367 = vpack.c.b16 %v1365, %v1364
      %v1371 = vsel %vm436, %v1352, 0
      %1373 = vmatprep.subr.bf16.mxu0 0
      %1374 = vmatpush1.bf16.msra.mxu0 %v1366
      %1375 = vmatprep.subr.bf16.mxu0 0
      %1376 = vmatpush1.bf16.msra.mxu0 %v1367
      %1377 = vmatprep.subr.bf16.mxu0 0
      %1378 = vmatpush1.bf16.msra.mxu0 0
      %1379 = vmatprep.subr.bf16.mxu0 0
      %1380 = vmatpush1.bf16.msra.mxu0 0
      %1381 = vmatprep.subr.bf16.mxu0 0
      %1382 = vmatpush1.bf16.msra.mxu0 0
      %1383 = vmatprep.subr.bf16.mxu0 0
      %1384 = vmatpush1.bf16.msra.mxu0 0
      %1385 = vmatprep.subr.bf16.mxu0 0
      %1386 = vmatpush1.bf16.msra.mxu0 0
      %1387 = vmatprep.subr.bf16.mxu0 0
      %1388 = vmatpush1.bf16.msra.mxu0 0
      %1389 = vmatprep.subr.bf16.mxu0 0
      %1390 = vmatpush1.bf16.msra.mxu0 0
      %1391 = vmatprep.subr.bf16.mxu0 0
      %1392 = vmatpush1.bf16.msra.mxu0 0
      %1393 = vmatprep.subr.bf16.mxu0 0
      %1394 = vmatpush1.bf16.msra.mxu0 0
      %1395 = vmatprep.subr.bf16.mxu0 0
      %1396 = vmatpush1.bf16.msra.mxu0 0
      %1397 = vmatprep.subr.bf16.mxu0 0
      %1398 = vmatpush1.bf16.msra.mxu0 0
      %1399 = vmatprep.subr.bf16.mxu0 0
      %1400 = vmatpush1.bf16.msra.mxu0 0
      %1401 = vmatprep.subr.bf16.mxu0 0
      %1402 = vmatpush1.bf16.msra.mxu0 0
      %1403 = vmatprep.subr.bf16.mxu0 0
      %1404 = vmatpush1.bf16.msra.mxu0 0
      %1405 = vmatprep.mubr.bf16.mxu0 0
      %1406 = vmatmul.mubr.bf16.gmra.mrb[0].mxu0 %v1371
      %v1407 = vpop.f32.mrb[0].mxu0
      %v1408 = vadd.f32 0.0, %v1407
      %v1409 = vpop.f32.mrb[0].mxu0
      %v1410 = vpop.f32.mrb[0].mxu0
      %v1411 = vadd.f32 0.0, %v1410
      %v1412 = vpop.f32.mrb[0].mxu0
      %1413 = vdwg.mxu0
      %v1414 = vadd.f32 %v1344, %v1408
      %v1415 = vadd.f32 %v1345, %v1411
      %v1416 = vpack.c.bf16 %v1129, %v1128
      %s1417 = scalar_lea.vmem %s8, 64
      %v1418 = vld [vmem:[%s1417] sm:$0xf]
      %v1419 = vld [vmem:[%s1417 + $0x4] sm:$0xf]
      %v1420 = vld [vmem:[%s1417 + $0x8] sm:$0xf]
      %v1421 = vld [vmem:[%s1417 + $0xc] sm:$0xf]
      %v1426 = vunpack.c.l.b16 %v1418
      %v1427 = vunpack.c.l.b16 %v1419
      %v1428 = vunpack.c.l.b16 %v1420
      %v1429 = vunpack.c.l.b16 %v1421
      %v1430 = vpack.c.b16 %v1427, %v1426
      %v1431 = vpack.c.b16 %v1429, %v1428
      %v1435 = vsel %vm436, %v1416, 0
      %1437 = vmatprep.subr.bf16.mxu0 0
      %1438 = vmatpush1.bf16.msra.mxu0 %v1430
      %1439 = vmatprep.subr.bf16.mxu0 0
      %1440 = vmatpush1.bf16.msra.mxu0 %v1431
      %1441 = vmatprep.subr.bf16.mxu0 0
      %1442 = vmatpush1.bf16.msra.mxu0 0
      %1443 = vmatprep.subr.bf16.mxu0 0
      %1444 = vmatpush1.bf16.msra.mxu0 0
      %1445 = vmatprep.subr.bf16.mxu0 0
      %1446 = vmatpush1.bf16.msra.mxu0 0
      %1447 = vmatprep.subr.bf16.mxu0 0
      %1448 = vmatpush1.bf16.msra.mxu0 0
      %1449 = vmatprep.subr.bf16.mxu0 0
      %1450 = vmatpush1.bf16.msra.mxu0 0
      %1451 = vmatprep.subr.bf16.mxu0 0
      %1452 = vmatpush1.bf16.msra.mxu0 0
      %1453 = vmatprep.subr.bf16.mxu0 0
      %1454 = vmatpush1.bf16.msra.mxu0 0
      %1455 = vmatprep.subr.bf16.mxu0 0
      %1456 = vmatpush1.bf16.msra.mxu0 0
      %1457 = vmatprep.subr.bf16.mxu0 0
      %1458 = vmatpush1.bf16.msra.mxu0 0
      %1459 = vmatprep.subr.bf16.mxu0 0
      %1460 = vmatpush1.bf16.msra.mxu0 0
      %1461 = vmatprep.subr.bf16.mxu0 0
      %1462 = vmatpush1.bf16.msra.mxu0 0
      %1463 = vmatprep.subr.bf16.mxu0 0
      %1464 = vmatpush1.bf16.msra.mxu0 0
      %1465 = vmatprep.subr.bf16.mxu0 0
      %1466 = vmatpush1.bf16.msra.mxu0 0
      %1467 = vmatprep.subr.bf16.mxu0 0
      %1468 = vmatpush1.bf16.msra.mxu0 0
      %1469 = vmatprep.mubr.bf16.mxu0 0
      %1470 = vmatmul.mubr.bf16.gmra.mrb[0].mxu0 %v1435
      %v1471 = vpop.f32.mrb[0].mxu0
      %v1472 = vadd.f32 0.0, %v1471
      %v1473 = vpop.f32.mrb[0].mxu0
      %v1474 = vpop.f32.mrb[0].mxu0
      %v1475 = vadd.f32 0.0, %v1474
      %v1476 = vpop.f32.mrb[0].mxu0
      %1477 = vdwg.mxu0
      %v1478 = vadd.f32 %v1414, %v1472
      %v1479 = vadd.f32 %v1415, %v1475
      %v1480 = vrot.slane %v1133, 1
      %v1481 = vrot.slane %v1134, 1
      %v1482 = vsel %vm813, %v1480, %v1481
      %v1485 = vsel %vm813, %v1481, 0.0
      %v1486 = vpack.c.bf16 %v1485, %v1482
      %s1487 = scalar_lea.vmem %s8, 80
      %v1488 = vld [vmem:[%s1487] sm:$0xf]
      %v1489 = vld [vmem:[%s1487 + $0x4] sm:$0xf]
      %v1490 = vld [vmem:[%s1487 + $0x8] sm:$0xf]
      %v1491 = vld [vmem:[%s1487 + $0xc] sm:$0xf]
      %v1496 = vunpack.c.l.b16 %v1488
      %v1497 = vunpack.c.l.b16 %v1489
      %v1498 = vunpack.c.l.b16 %v1490
      %v1499 = vunpack.c.l.b16 %v1491
      %v1500 = vpack.c.b16 %v1497, %v1496
      %v1501 = vpack.c.b16 %v1499, %v1498
      %v1505 = vsel %vm436, %v1486, 0
      %1507 = vmatprep.subr.bf16.mxu0 0
      %1508 = vmatpush1.bf16.msra.mxu0 %v1500
      %1509 = vmatprep.subr.bf16.mxu0 0
      %1510 = vmatpush1.bf16.msra.mxu0 %v1501
      %1511 = vmatprep.subr.bf16.mxu0 0
      %1512 = vmatpush1.bf16.msra.mxu0 0
      %1513 = vmatprep.subr.bf16.mxu0 0
      %1514 = vmatpush1.bf16.msra.mxu0 0
      %1515 = vmatprep.subr.bf16.mxu0 0
      %1516 = vmatpush1.bf16.msra.mxu0 0
      %1517 = vmatprep.subr.bf16.mxu0 0
      %1518 = vmatpush1.bf16.msra.mxu0 0
      %1519 = vmatprep.subr.bf16.mxu0 0
      %1520 = vmatpush1.bf16.msra.mxu0 0
      %1521 = vmatprep.subr.bf16.mxu0 0
      %1522 = vmatpush1.bf16.msra.mxu0 0
      %1523 = vmatprep.subr.bf16.mxu0 0
      %1524 = vmatpush1.bf16.msra.mxu0 0
      %1525 = vmatprep.subr.bf16.mxu0 0
      %1526 = vmatpush1.bf16.msra.mxu0 0
      %1527 = vmatprep.subr.bf16.mxu0 0
      %1528 = vmatpush1.bf16.msra.mxu0 0
      %1529 = vmatprep.subr.bf16.mxu0 0
      %1530 = vmatpush1.bf16.msra.mxu0 0
      %1531 = vmatprep.subr.bf16.mxu0 0
      %1532 = vmatpush1.bf16.msra.mxu0 0
      %1533 = vmatprep.subr.bf16.mxu0 0
      %1534 = vmatpush1.bf16.msra.mxu0 0
      %1535 = vmatprep.subr.bf16.mxu0 0
      %1536 = vmatpush1.bf16.msra.mxu0 0
      %1537 = vmatprep.subr.bf16.mxu0 0
      %1538 = vmatpush1.bf16.msra.mxu0 0
      %1539 = vmatprep.mubr.bf16.mxu0 0
      %1540 = vmatmul.mubr.bf16.gmra.mrb[0].mxu0 %v1505
      %v1541 = vpop.f32.mrb[0].mxu0
      %v1542 = vadd.f32 0.0, %v1541
      %v1543 = vpop.f32.mrb[0].mxu0
      %v1544 = vpop.f32.mrb[0].mxu0
      %v1545 = vadd.f32 0.0, %v1544
      %v1546 = vpop.f32.mrb[0].mxu0
      %1547 = vdwg.mxu0
      %v1548 = vadd.f32 %v1478, %v1542
      %v1549 = vadd.f32 %v1479, %v1545
      %v1551 = vsel %vm505, %v1138, 0.0
      %v1552 = vpack.c.bf16 %v1551, %v1139
      %s1553 = scalar_lea.vmem %s8, 96
      %v1554 = vld [vmem:[%s1553] sm:$0xf]
      %v1555 = vld [vmem:[%s1553 + $0x4] sm:$0xf]
      %v1556 = vld [vmem:[%s1553 + $0x8] sm:$0xf]
      %v1557 = vld [vmem:[%s1553 + $0xc] sm:$0xf]
      %v1562 = vunpack.c.l.b16 %v1554
      %v1563 = vunpack.c.l.b16 %v1555
      %v1564 = vunpack.c.l.b16 %v1556
      %v1565 = vunpack.c.l.b16 %v1557
      %v1566 = vpack.c.b16 %v1563, %v1562
      %v1567 = vpack.c.b16 %v1565, %v1564
      %v1571 = vsel %vm436, %v1552, 0
      %1573 = vmatprep.subr.bf16.mxu0 0
      %1574 = vmatpush1.bf16.msra.mxu0 %v1566
      %1575 = vmatprep.subr.bf16.mxu0 0
      %1576 = vmatpush1.bf16.msra.mxu0 %v1567
      %1577 = vmatprep.subr.bf16.mxu0 0
      %1578 = vmatpush1.bf16.msra.mxu0 0
      %1579 = vmatprep.subr.bf16.mxu0 0
      %1580 = vmatpush1.bf16.msra.mxu0 0
      %1581 = vmatprep.subr.bf16.mxu0 0
      %1582 = vmatpush1.bf16.msra.mxu0 0
      %1583 = vmatprep.subr.bf16.mxu0 0
      %1584 = vmatpush1.bf16.msra.mxu0 0
      %1585 = vmatprep.subr.bf16.mxu0 0
      %1586 = vmatpush1.bf16.msra.mxu0 0
      %1587 = vmatprep.subr.bf16.mxu0 0
      %1588 = vmatpush1.bf16.msra.mxu0 0
      %1589 = vmatprep.subr.bf16.mxu0 0
      %1590 = vmatpush1.bf16.msra.mxu0 0
      %1591 = vmatprep.subr.bf16.mxu0 0
      %1592 = vmatpush1.bf16.msra.mxu0 0
      %1593 = vmatprep.subr.bf16.mxu0 0
      %1594 = vmatpush1.bf16.msra.mxu0 0
      %1595 = vmatprep.subr.bf16.mxu0 0
      %1596 = vmatpush1.bf16.msra.mxu0 0
      %1597 = vmatprep.subr.bf16.mxu0 0
      %1598 = vmatpush1.bf16.msra.mxu0 0
      %1599 = vmatprep.subr.bf16.mxu0 0
      %1600 = vmatpush1.bf16.msra.mxu0 0
      %1601 = vmatprep.subr.bf16.mxu0 0
      %1602 = vmatpush1.bf16.msra.mxu0 0
      %1603 = vmatprep.subr.bf16.mxu0 0
      %1604 = vmatpush1.bf16.msra.mxu0 0
      %1605 = vmatprep.mubr.bf16.mxu0 0
      %1606 = vmatmul.mubr.bf16.gmra.mrb[0].mxu0 %v1571
      %v1607 = vpop.f32.mrb[0].mxu0
      %v1608 = vadd.f32 0.0, %v1607
      %v1609 = vpop.f32.mrb[0].mxu0
      %v1610 = vpop.f32.mrb[0].mxu0
      %v1611 = vadd.f32 0.0, %v1610
      %v1612 = vpop.f32.mrb[0].mxu0
      %1613 = vdwg.mxu0
      %v1614 = vadd.f32 %v1548, %v1608
      %v1615 = vadd.f32 %v1549, %v1611
      %v1617 = vsel %vm517, %v1151, 0.0
      %v1618 = vpack.c.bf16 %v1617, %v1152
      %s1619 = scalar_lea.vmem %s8, 112
      %v1620 = vld [vmem:[%s1619] sm:$0xf]
      %v1621 = vld [vmem:[%s1619 + $0x4] sm:$0xf]
      %v1622 = vld [vmem:[%s1619 + $0x8] sm:$0xf]
      %v1623 = vld [vmem:[%s1619 + $0xc] sm:$0xf]
      %v1628 = vunpack.c.l.b16 %v1620
      %v1629 = vunpack.c.l.b16 %v1621
      %v1630 = vunpack.c.l.b16 %v1622
      %v1631 = vunpack.c.l.b16 %v1623
      %v1632 = vpack.c.b16 %v1629, %v1628
      %v1633 = vpack.c.b16 %v1631, %v1630
      %v1637 = vsel %vm436, %v1618, 0
      %1639 = vmatprep.subr.bf16.mxu0 0
      %1640 = vmatpush1.bf16.msra.mxu0 %v1632
      %1641 = vmatprep.subr.bf16.mxu0 0
      %1642 = vmatpush1.bf16.msra.mxu0 %v1633
      %1643 = vmatprep.subr.bf16.mxu0 0
      %1644 = vmatpush1.bf16.msra.mxu0 0
      %1645 = vmatprep.subr.bf16.mxu0 0
      %1646 = vmatpush1.bf16.msra.mxu0 0
      %1647 = vmatprep.subr.bf16.mxu0 0
      %1648 = vmatpush1.bf16.msra.mxu0 0
      %1649 = vmatprep.subr.bf16.mxu0 0
      %1650 = vmatpush1.bf16.msra.mxu0 0
      %1651 = vmatprep.subr.bf16.mxu0 0
      %1652 = vmatpush1.bf16.msra.mxu0 0
      %1653 = vmatprep.subr.bf16.mxu0 0
      %1654 = vmatpush1.bf16.msra.mxu0 0
      %1655 = vmatprep.subr.bf16.mxu0 0
      %1656 = vmatpush1.bf16.msra.mxu0 0
      %1657 = vmatprep.subr.bf16.mxu0 0
      %1658 = vmatpush1.bf16.msra.mxu0 0
      %1659 = vmatprep.subr.bf16.mxu0 0
      %1660 = vmatpush1.bf16.msra.mxu0 0
      %1661 = vmatprep.subr.bf16.mxu0 0
      %1662 = vmatpush1.bf16.msra.mxu0 0
      %1663 = vmatprep.subr.bf16.mxu0 0
      %1664 = vmatpush1.bf16.msra.mxu0 0
      %1665 = vmatprep.subr.bf16.mxu0 0
      %1666 = vmatpush1.bf16.msra.mxu0 0
      %1667 = vmatprep.subr.bf16.mxu0 0
      %1668 = vmatpush1.bf16.msra.mxu0 0
      %1669 = vmatprep.subr.bf16.mxu0 0
      %1670 = vmatpush1.bf16.msra.mxu0 0
      %1671 = vmatprep.mubr.bf16.mxu0 0
      %1672 = vmatmul.mubr.bf16.gmra.mrb[0].mxu0 %v1637
      %v1673 = vpop.f32.mrb[0].mxu0
      %v1674 = vadd.f32 0.0, %v1673
      %v1675 = vpop.f32.mrb[0].mxu0
      %v1676 = vpop.f32.mrb[0].mxu0
      %v1677 = vadd.f32 0.0, %v1676
      %v1678 = vpop.f32.mrb[0].mxu0
      %1679 = vdwg.mxu0
      %v1680 = vadd.f32 %v1614, %v1674
      %v1681 = vadd.f32 %v1615, %v1677
      %v1683 = vsel %vm631, %v1277, 0.0
      %v1684 = vpack.c.bf16 %v1683, %v1278
      %s1685 = scalar_lea.vmem %s8, 128
      %v1686 = vld [vmem:[%s1685] sm:$0xf]
      %v1687 = vld [vmem:[%s1685 + $0x4] sm:$0xf]
      %v1688 = vld [vmem:[%s1685 + $0x8] sm:$0xf]
      %v1689 = vld [vmem:[%s1685 + $0xc] sm:$0xf]
      %v1694 = vunpack.c.l.b16 %v1686
      %v1695 = vunpack.c.l.b16 %v1687
      %v1696 = vunpack.c.l.b16 %v1688
      %v1697 = vunpack.c.l.b16 %v1689
      %v1698 = vpack.c.b16 %v1695, %v1694
      %v1699 = vpack.c.b16 %v1697, %v1696
      %v1703 = vsel %vm436, %v1684, 0
      %1705 = vmatprep.subr.bf16.mxu0 0
      %1706 = vmatpush1.bf16.msra.mxu0 %v1698
      %1707 = vmatprep.subr.bf16.mxu0 0
      %1708 = vmatpush1.bf16.msra.mxu0 %v1699
      %1709 = vmatprep.subr.bf16.mxu0 0
      %1710 = vmatpush1.bf16.msra.mxu0 0
      %1711 = vmatprep.subr.bf16.mxu0 0
      %1712 = vmatpush1.bf16.msra.mxu0 0
      %1713 = vmatprep.subr.bf16.mxu0 0
      %1714 = vmatpush1.bf16.msra.mxu0 0
      %1715 = vmatprep.subr.bf16.mxu0 0
      %1716 = vmatpush1.bf16.msra.mxu0 0
      %1717 = vmatprep.subr.bf16.mxu0 0
      %1718 = vmatpush1.bf16.msra.mxu0 0
      %1719 = vmatprep.subr.bf16.mxu0 0
      %1720 = vmatpush1.bf16.msra.mxu0 0
      %1721 = vmatprep.subr.bf16.mxu0 0
      %1722 = vmatpush1.bf16.msra.mxu0 0
      %1723 = vmatprep.subr.bf16.mxu0 0
      %1724 = vmatpush1.bf16.msra.mxu0 0
      %1725 = vmatprep.subr.bf16.mxu0 0
      %1726 = vmatpush1.bf16.msra.mxu0 0
      %1727 = vmatprep.subr.bf16.mxu0 0
      %1728 = vmatpush1.bf16.msra.mxu0 0
      %1729 = vmatprep.subr.bf16.mxu0 0
      %1730 = vmatpush1.bf16.msra.mxu0 0
      %1731 = vmatprep.subr.bf16.mxu0 0
      %1732 = vmatpush1.bf16.msra.mxu0 0
      %1733 = vmatprep.subr.bf16.mxu0 0
      %1734 = vmatpush1.bf16.msra.mxu0 0
      %1735 = vmatprep.subr.bf16.mxu0 0
      %1736 = vmatpush1.bf16.msra.mxu0 0
      %1737 = vmatprep.mubr.bf16.mxu0 0
      %1738 = vmatmul.mubr.bf16.gmra.mrb[0].mxu0 %v1703
      %v1739 = vpop.f32.mrb[0].mxu0
      %v1740 = vadd.f32 0.0, %v1739
      %v1741 = vpop.f32.mrb[0].mxu0
      %v1742 = vpop.f32.mrb[0].mxu0
      %v1743 = vadd.f32 0.0, %v1742
      %v1744 = vpop.f32.mrb[0].mxu0
      %1745 = vdwg.mxu0
      %v1746 = vadd.f32 %v1680, %v1740
      %v1747 = vadd.f32 %v1681, %v1743
      %v1749 = vlaneseq
      %v1750 = vshrl.u32 %v1749, 7
      %v1751 = vsub.s32 0, %v1750
      %v1752 = vrot.slane %v1130, %v1751
      %v1754 = vadd.f32 %v1746, %v1752
      %v1755 = vadd.f32 %v1747, %v1752
      %v1756 = vadd.f32 %v1754, 2.0
      %v1757 = vadd.f32 %v1755, 2.0
      %v1758 = vmin.f32 %v1756, 0.0
      %v1759 = vmin.f32 %v1757, 0.0
      %v1760 = vand.u32 2147483647, %v1756
      %v1761 = vand.u32 2147483647, %v1757
      %v1762 = vsub.f32 0.0, %v1760
      %v1763 = vsub.f32 0.0, %v1761
      %v1764 = vmul.f32 %v1762, 1.442695
      %v1765 = vpow.pop %v1764
      %v1766 = vmul.f32 %v1763, 1.442695
      %v1767 = vpow.pop %v1766
      %v1768 = vadd.f32 %v1765, 1.0
      %v1769 = vadd.f32 %v1767, 1.0
      %v1770 = vlog2.pop %v1768
      %v1771 = vmul.f32 %v1770, 0.6931472
      %v1772 = vlog2.pop %v1769
      %v1773 = vmul.f32 %v1772, 0.6931472
      %v1774 = vsub.f32 %v1758, %v1771
      %v1775 = vsub.f32 %v1759, %v1773
      %1778 = vrot.lane.b32.xlu0 %v1754, 16
      %v1779 = vpop.permute.xlu0 %1778
      %1780 = vrot.lane.b32.xlu0 %v1755, 16
      %v1781 = vpop.permute.xlu0 %1780
      %v1784 = vadd.f32 %v475, %v1779
      %v1785 = vadd.f32 %v478, %v1781
      %v1786 = vmul.f32 %v1774, 1.442695
      %v1787 = vpow.pop %v1786
      %v1788 = vmul.f32 %v1775, 1.442695
      %v1789 = vpow.pop %v1788
      %v1790 = vmul.f32 %v1784, %v1787
      %v1791 = vmul.f32 %v1785, %v1789
      %v1792 = vsel %vm534, %v475, %v1790
      %v1793 = vsel %vm534, %v478, %v1791
      %1794 = vst.msk [vmem:[%s392] sm:$0xff] %vm436, %v1792
      %1795 = vst.msk [vmem:[%s392 + $0x8] sm:$0xff] %vm436, %v1793
      %vm1796 = vcmask 261248
      %v1797 = vsel %vm1796, %v1774, 0.0
      %v1798 = vsel %vm1796, %v1775, 0.0
      %v1799 = vadd.f32 %v1797, %v1798
      %v1800 = vrot.slane %v1799, 4
      %v1801 = vadd.f32 %v1799, %v1800
      %v1802 = vrot.slane %v1801, 2
      %v1803 = vadd.f32 %v1801, %v1802
      %v1804 = vrot.slane %v1803, 1
      %v1805 = vadd.f32 %v1803, %v1804
      %1807 = vrot.lane.b32.xlu0 %v1805, 112
      %v1808 = vpop.permute.xlu0 %1807
      %vm1810 = vcmask 122880
      %1811 = vst.msk [vmem:[%s395] sm:$0x1] %vm1810, %v1808
      %p1812 = scmp.lt.s32.totalorder %s23, 1
      %s1813 = scalar_select %p1812, %s23, 1
      %s1814 = smul.addr %s1813, 2
      %s1815 = smul.addr %s1814, 8
      %s1816 = scalar_lea.vmem %s10, %s1815
      %p1817 = scmp.lt.s32.totalorder %s23, 1
      %s1818 = scalar_select %p1817, %s23, 1
      %s1819 = scalar_lea.vmem %s11, %s1818
      // Predicated region
      $region61: #{lr_normflow_forward.9} parent=59 // pred_check
        %p1820 = pneg %p256
      $region62: #{lr_normflow_forward.9} parent=59 // pred_check_branch
        %1822 = sbr.rel (%p1820) target = $region64
      $region63: #{lr_normflow_forward.9} parent=59 // pred_region
        _
      $region64: #{lr_normflow_forward.9} parent=59 // pred_fallthru
        _
      // Predicated region
      $region65: #{lr_normflow_forward.9} parent=59 // pred_check
        %p1823 = pneg %p282
      $region66: #{lr_normflow_forward.9} parent=59 // pred_check_branch
        %1825 = sbr.rel (%p1823) target = $region68
      $region67: #{lr_normflow_forward.9} parent=59 // pred_region
        _
      $region68: #{lr_normflow_forward.9} parent=59 // pred_fallthru
        _
    $region60: #{lr_normflow_forward.9} parent=5 // pred_fallthru
      _
    %p1826 = scmp.le.s32.totalorder 2, %s18
    // Predicated region
    $region69: #{lr_normflow_forward.9} parent=5 // pred_check
      %p1827 = pneg %p1826
    $region70: #{lr_normflow_forward.9} parent=5 // pred_check_branch
      %1829 = sbr.rel (%p1827) target = $region72
    $region71: #{lr_normflow_forward.9} parent=5 // pred_region
      %s1830 = ssub.s32 %s18, 2
      // Predicated region
      $region73: #{lr_normflow_forward.9} parent=71 // pred_check
        %p1831 = pneg %p262
      $region74: #{lr_normflow_forward.9} parent=71 // pred_check_branch
        %1833 = sbr.rel (%p1831) target = $region76
      $region75: #{lr_normflow_forward.9} parent=71 // pred_region
        %p1834 = scmp.lt.s32.totalorder %s24, 1
        %s1835 = scalar_select %p1834, %s24, 1
        %s1836 = smul.addr %s1835, 2
        %s1837 = smul.addr %s1836, 8
        %s1838 = scalar_lea.vmem %s10, %s1837
      $region76: #{lr_normflow_forward.9} parent=71 // pred_fallthru
        _
      // Predicated region
      $region77: #{lr_normflow_forward.9} parent=71 // pred_check
        %p1839 = pneg %p288
      $region78: #{lr_normflow_forward.9} parent=71 // pred_check_branch
        %1841 = sbr.rel (%p1839) target = $region80
      $region79: #{lr_normflow_forward.9} parent=71 // pred_region
        %p1842 = scmp.lt.s32.totalorder %s24, 1
        %s1843 = scalar_select %p1842, %s24, 1
        %s1844 = scalar_lea.vmem %s11, %s1843
      $region80: #{lr_normflow_forward.9} parent=71 // pred_fallthru
        _
    $region72: #{lr_normflow_forward.9} parent=5 // pred_fallthru
      _
  $region6: #{lr_normflow_forward.9} parent=0 // loop_footer
    %s22 = sadd.s32 1, %s18
  $region7: #{lr_normflow_forward.9} parent=0 // loop_footer_branch
    %17 = sbr.rel target = $region3
  $region8: #{lr_normflow_forward.9} parent=0 // loop_exit
    _

// kernel: custom-call.14
$region0: #{custom-call.14}
  %s0 = inlined_call_operand.hbm [shape: f32[16,16], index: 0, kind: input, shape index: {}]
  %s1 = inlined_call_operand.vmem [shape: f32[16,16], index: 1, kind: output, shape index: {0}]
  %s2 = inlined_call_operand.hbm [shape: s32[16], index: 2, kind: output, shape index: {1}]
  %s3 = inlined_call_operand.hbm [shape: s32[16], index: 3, kind: output, shape index: {2}]
  %4 = xla_tuple %s1, %s2, %s3
  $region1: #{custom-call.14} parent=0
    #allocation0 [shape = 'u8[8192]{0}', space=vmem, size = 0x2000, scoped, tag = 'operand span for operand 0']
    #allocation1 [shape = 's32[1]{0}', space=sflag, size = 0x4, scoped, tag = 'scoped memory for custom-call.14']
    #allocation2 [shape = 's32[1]{0}', space=sflag, size = 0x4, scoped, tag = 'scoped memory for custom-call.14']
    #allocation3 [shape = 'u8[8192]{0}', space=vmem, size = 0x2000, scoped, tag = 'operand span for operand 1']
    #allocation4 [shape = 'u8[4096]{0}', space=vmem, size = 0x1000, scoped, tag = 'operand span for operand 2']
    #allocation5 [shape = 'u8[512]{0}', space=vmem, size = 0x400, scoped, tag = 'packed  for operand 2']
    #allocation6 [shape = 'u8[4096]{0}', space=vmem, size = 0x1000, scoped, tag = 'operand span for operand 3']
    #allocation7 [shape = 'u8[512]{0}', space=vmem, size = 0x400, scoped, tag = 'packed  for operand 3']
    #allocation8 [shape = 's32[1]{0}', space=sflag, size = 0x4, scoped, tag = 'scoped memory for custom-call.14']
    #allocation9 [shape = 's32[16,128]{1,0}', space=vmem, size = 0x2000, scoped, tag = 'scratch for permutations']
    %5 = vsyncpa [#allocation1], 0
    %6 = vsyncpa [#allocation2], 0
    %7 = vsyncpa [#allocation8], 0
    %s9 = ssub.s32 256, 256
    %10 = vsyncadd [#allocation1], %s9
    %s11 = sshll.u32 [#allocation0], 4
    %s12 = int_to_ptr.vmem [resolvable:$true] %s11
    %14 = dma.hbm_to_vmem [thread:$0]  %s0, 256, %s12, [#allocation1]
    %15 = dma.done [#allocation1], 256
    %v16 = vld [vmem:[#allocation0] sm:$0xff]
    %17 = vst [vmem:[#allocation3] sm:$0xff] %v16
    %s18 = scalar_lea.vmem [#allocation3], 8
    %s19 = scalar_lea.vmem [#allocation0], 8
    %v20 = vld [vmem:[%s19] sm:$0xff]
    %21 = vst [vmem:[%s18] sm:$0xff] %v20
    %22 = vst [vmem:[#allocation4] sm:$0x1] 0
    %v23 = vlaneseq
    %v24 = vshrl.u32 %v23, 7
    %v25 = vmov %v24
    loop: start=0, step=1, limit=2
    $region2: #{custom-call.14} parent=1 // loop_pre_header
      _
    $region3: #{custom-call.14} parent=1 // loop_header
      %s27 = sphi 0, %s31
      %p28 = scmp.ge.s32.totalorder %s27, 2
    $region4: #{custom-call.14} parent=1 // loop_header_branch
      %30 = sbr.rel (%p28) target = $region8
    $region5: #{custom-call.14} parent=1 // loop_body
      %s32 = smul.addr %s27, 8
      %s33 = scalar_lea.vmem [#allocation9], %s32
      %s34 = smul.u32 %s27, 8
      %v35 = vstv %s34
      %v36 = vadd.s32 %v25, %v35
      %37 = vst [vmem:[%s33] sm:$0xff] %v36
    $region6: #{custom-call.14} parent=1 // loop_footer
      %s31 = sadd.s32 1, %s27
    $region7: #{custom-call.14} parent=1 // loop_footer_branch
      %26 = sbr.rel target = $region3
    $region8: #{custom-call.14} parent=1 // loop_exit
      _
    loop: start=0, step=1, limit=16
    $region9: #{custom-call.14} parent=1 // loop_pre_header
      _
    $region10: #{custom-call.14} parent=1 // loop_header
      %s39 = sphi 0, %s43
      %p40 = scmp.ge.s32.totalorder %s39, 16
    $region11: #{custom-call.14} parent=1 // loop_header_branch
      %42 = sbr.rel (%p40) target = $region15
    $region12: #{custom-call.14} parent=1 // loop_body
      %v44 = vstv %s39
      %v45 = vlaneseq
      %v46 = vshrl.u32 %v45, 7
      %v47 = vmov %v46
      %v48 = vld [vmem:[#allocation3] sm:$0xff]
      %v49 = vand.u32 2147483647, %v48
      %v51 = vstv %s39
      %vm52 = vcmp.ge.s32.totalorder %v47, %v51
      %vm53 = vcmp.lt.s32.totalorder %v47, 16
      %vm54 = vmand %vm52, %vm53
      %vm55 = vcmp.lt.f32.partialorder -inf, %v49
      %vm56 = vmand %vm54, %vm55
      %v57 = vsel %vm56, %v47, %v44
      %v58 = vsel %vm56, %v49, -inf
      %s59 = scalar_lea.vmem [#allocation3], 8
      %v60 = vld [vmem:[%s59] sm:$0xff]
      %v61 = vand.u32 2147483647, %v60
      %v62 = vadd.s32 %v47, 8
      %v63 = vstv %s39
      %vm64 = vcmp.ge.s32.totalorder %v62, %v63
      %vm65 = vcmp.lt.s32.totalorder %v62, 16
      %vm66 = vmand %vm64, %vm65
      %vm67 = vcmp.lt.f32.partialorder %v58, %v61
      %vm68 = vmand %vm66, %vm67
      %v69 = vsel %vm68, %v62, %v57
      %v70 = vsel %vm68, %v61, %v58
      %v71 = vrot.slane %v70, 1
      %v72 = vrot.slane %v69, 1
      %vm73 = vcmp.ge.f32.partialorder %v71, %v70
      %v74 = vsel %vm73, %v71, %v70
      %v75 = vsel %vm73, %v72, %v69
      %v76 = vrot.slane %v71, 1
      %v77 = vrot.slane %v72, 1
      %vm78 = vcmp.ge.f32.partialorder %v76, %v74
      %v79 = vsel %vm78, %v76, %v74
      %v80 = vsel %vm78, %v77, %v75
      %v81 = vrot.slane %v76, 1
      %v82 = vrot.slane %v77, 1
      %vm83 = vcmp.ge.f32.partialorder %v81, %v79
      %v84 = vsel %vm83, %v81, %v79
      %v85 = vsel %vm83, %v82, %v80
      %v86 = vrot.slane %v81, 1
      %v87 = vrot.slane %v82, 1
      %vm88 = vcmp.ge.f32.partialorder %v86, %v84
      %v89 = vsel %vm88, %v86, %v84
      %v90 = vsel %vm88, %v87, %v85
      %v91 = vrot.slane %v86, 1
      %v92 = vrot.slane %v87, 1
      %vm93 = vcmp.ge.f32.partialorder %v91, %v89
      %v94 = vsel %vm93, %v91, %v89
      %v95 = vsel %vm93, %v92, %v90
      %v96 = vrot.slane %v91, 1
      %v97 = vrot.slane %v92, 1
      %vm98 = vcmp.ge.f32.partialorder %v96, %v94
      %v99 = vsel %vm98, %v96, %v94
      %v100 = vsel %vm98, %v97, %v95
      %v101 = vrot.slane %v96, 1
      %v102 = vrot.slane %v97, 1
      %vm103 = vcmp.ge.f32.partialorder %v101, %v99
      %v104 = vsel %vm103, %v101, %v99
      %v105 = vsel %vm103, %v102, %v100
      %s106 = ssub.s32 128, %s39
      %107 = vrot.lane.b32.xlu0 %v105, %s106
      %v108 = vpop.permute.xlu0 %107
      %s109 = vtos %v108
      %v110 = vstv %s39
      %v111 = vlaneseq
      %v112 = vand.u32 %v111, 127
      %vm113 = vcmp.eq.s32.totalorder %v112, %v110
      %v114 = vstv %s109
      %v115 = vld [vmem:[#allocation4] ss:$0 sm:$0xff]
      %v116 = vsel %vm113, %v114, %v115
      %117 = vst [vmem:[#allocation4] sm:$0x1] %v116
      %s118 = scalar_lea.vmem [#allocation3], %s39
      %s119 = scalar_lea.vmem [#allocation3], %s109
      %v120 = vld [vmem:[%s118] ss:$0 sm:$0xff]
      %v121 = vld [vmem:[%s119] ss:$0 sm:$0xff]
      %122 = vst [vmem:[%s119] sm:$0x1] %v120
      %123 = vst [vmem:[%s118] sm:$0x1] %v121
      %s124 = scalar_lea.vmem [#allocation9], %s39
      %s125 = scalar_lea.vmem [#allocation9], %s109
      %v126 = vld [vmem:[%s124] ss:$0 sm:$0xff]
      %v127 = vld [vmem:[%s125] ss:$0 sm:$0xff]
      %128 = vst [vmem:[%s125] sm:$0x1] %v126
      %129 = vst [vmem:[%s124] sm:$0x1] %v127
      %vm130 = vcmp.ne.f32.partialorder %v121, 0.0
      %vm131 = vmand %vm113, %vm130
      %v132 = vsel %vm131, %v121, 1.0
      %v133 = vlaneseq
      %v134 = vand.u32 %v133, 127
      %v135 = vstv %s39
      %vm136 = vcmp.gt.s32.totalorder %v134, %v135
      %v137 = vsel %vm136, %v121, 0.0
      %v138 = vlaneseq
      %v139 = vshrl.u32 %v138, 7
      %v140 = vmov %v139
      %v141 = vld [vmem:[#allocation3] sm:$0xff]
      %v143 = vstv %s39
      %vm144 = vcmp.gt.s32.totalorder %v140, %v143
      %v145 = vsel %vm144, %v132, 1.0
      %v146 = vrcp.pop %v145
      %v147 = vmul.f32 %v141, %v146
      %vm148 = vmand %vm144, %vm113
      %v149 = vsel %vm148, %v147, 0.0
      %150 = vadd.xlane.f32.xlu0 %v149
      %v151 = vpop.xlane.xlu0 %150
      %v152 = vmul.f32 %v151, %v137
      %v153 = vsub.f32 %v147, %v152
      %154 = vst [vmem:[#allocation3] sm:$0xff] %v153
      %s155 = scalar_lea.vmem [#allocation3], 8
      %v156 = vld [vmem:[%s155] sm:$0xff]
      %v157 = vadd.s32 %v140, 8
      %v158 = vstv %s39
      %vm159 = vcmp.gt.s32.totalorder %v157, %v158
      %v160 = vsel %vm159, %v132, 1.0
      %v161 = vrcp.pop %v160
      %v162 = vmul.f32 %v156, %v161
      %vm163 = vmand %vm159, %vm113
      %v164 = vsel %vm163, %v162, 0.0
      %165 = vadd.xlane.f32.xlu0 %v164
      %v166 = vpop.xlane.xlu0 %165
      %v167 = vmul.f32 %v166, %v137
      %v168 = vsub.f32 %v162, %v167
      %169 = vst [vmem:[%s155] sm:$0xff] %v168
    $region13: #{custom-call.14} parent=1 // loop_footer
      %s43 = sadd.s32 1, %s39
    $region14: #{custom-call.14} parent=1 // loop_footer_branch
      %38 = sbr.rel target = $region10
    $region15: #{custom-call.14} parent=1 // loop_exit
      _
    %v170 = vld [vmem:[#allocation9] sm:$0xff]
    %s171 = scalar_lea.vmem [#allocation9], 8
    %v172 = vld [vmem:[%s171] sm:$0xff]
    %s173 = scalar_lea.vmem [#allocation9], 16
    %s174 = scalar_lea.vmem [#allocation9], 24
    %s175 = scalar_lea.vmem [#allocation9], 32
    %s176 = scalar_lea.vmem [#allocation9], 40
    %s177 = scalar_lea.vmem [#allocation9], 48
    %s178 = scalar_lea.vmem [#allocation9], 56
    %s179 = scalar_lea.vmem [#allocation9], 64
    %s180 = scalar_lea.vmem [#allocation9], 72
    %s181 = scalar_lea.vmem [#allocation9], 80
    %s182 = scalar_lea.vmem [#allocation9], 88
    %s183 = scalar_lea.vmem [#allocation9], 96
    %s184 = scalar_lea.vmem [#allocation9], 104
    %s185 = scalar_lea.vmem [#allocation9], 112
    %s186 = scalar_lea.vmem [#allocation9], 120
    %187 = vxpose.xlu0.b32.start [1/16] %v170, 128
    %188 = vxpose.xlu0.b32.cont [2/16] %v172, 128
    %189 = vxpose.xlu0.b32.cont [3/16] 0, 128
    %190 = vxpose.xlu0.b32.cont [4/16] 0, 128
    %191 = vxpose.xlu0.b32.cont [5/16] 0, 128
    %192 = vxpose.xlu0.b32.cont [6/16] 0, 128
    %193 = vxpose.xlu0.b32.cont [7/16] 0, 128
    %194 = vxpose.xlu0.b32.cont [8/16] 0, 128
    %195 = vxpose.xlu0.b32.cont [9/16] 0, 128
    %196 = vxpose.xlu0.b32.cont [10/16] 0, 128
    %197 = vxpose.xlu0.b32.cont [11/16] 0, 128
    %198 = vxpose.xlu0.b32.cont [12/16] 0, 128
    %199 = vxpose.xlu0.b32.cont [13/16] 0, 128
    %200 = vxpose.xlu0.b32.cont [14/16] 0, 128
    %201 = vxpose.xlu0.b32.cont [15/16] 0, 128
    %202 = vxpose.xlu0.b32.end [16/16] 0, 128
    %v203 = vpop.trf.xlu0
    %v204 = vpop.trf.xlu0
    %v205 = vpop.trf.xlu0
    %v206 = vpop.trf.xlu0
    %v207 = vpop.trf.xlu0
    %v208 = vpop.trf.xlu0
    %v209 = vpop.trf.xlu0
    %v210 = vpop.trf.xlu0
    %v211 = vpop.trf.xlu0
    %v212 = vpop.trf.xlu0
    %v213 = vpop.trf.xlu0
    %v214 = vpop.trf.xlu0
    %v215 = vpop.trf.xlu0
    %v216 = vpop.trf.xlu0
    %v217 = vpop.trf.xlu0
    %v218 = vpop.trf.xlu0
    %219 = vst [vmem:[#allocation6] sm:$0x1] %v203
    %s221 = sshllo.u32 0, 1
    %v223 = vld [vmem:[#allocation4] sm:%s221]
    %s224 = sshllo.u32 0, 1
    %225 = vst [vmem:[#allocation5] sm:%s224] %v223
    %s227 = sshllo.u32 0, 1
    %v229 = vld [vmem:[#allocation6] sm:%s227]
    %s230 = sshllo.u32 0, 1
    %231 = vst [vmem:[#allocation7] sm:%s230] %v229
    %p233 = scmp.gt.s32.totalorder 16, 0
    // Predicated region
    $region16: #{custom-call.14} parent=1 // pred_check
      %p234 = pneg %p233
    $region17: #{custom-call.14} parent=1 // pred_check_branch
      %236 = sbr.rel (%p234) target = $region19
    $region18: #{custom-call.14} parent=1 // pred_region
      %s237 = sshra.s32 16, 3
      %p238 = scmp.gt.s32.totalorder %s237, 0
      // Predicated region
      $region20: #{custom-call.14} parent=18 // pred_check
        %p239 = pneg %p238
      $region21: #{custom-call.14} parent=18 // pred_check_branch
        %241 = sbr.rel (%p239) target = $region23
      $region22: #{custom-call.14} parent=18 // pred_region
        %s242 = ssub.s32 %s237, 1
        %s243 = smul.u32 %s242, 128
        %s244 = sshra.s32 %s243, 4
        %s245 = scalar_lea.vmem [#allocation3], %s244
        %v246 = vld [vmem:[#allocation3] sm:$0xff]
        // While loop
        $region24: #{custom-call.14} parent=22 // loop_pre_header
          _
        $region25: #{custom-call.14} parent=22 // loop_header
          %s247 = sphi [#allocation3], %s269
          %s248 = sphi %s1, %s270
          %v249 = vphi %v246, %v271
          %s250 = ssub.s32 %s245, 64
          %p251 = scmp.gt.s32.totalorder %s247, %s250
        $region26: #{custom-call.14} parent=22 // loop_header_branch
          %253 = sbr.rel (%p251) target = $region30
        $region27: #{custom-call.14} parent=22 // loop_body
          %254 = vst [vmem:[%s248] sm:$0xff] %v249
          %v255 = vld [vmem:[%s247 + $0x8] sm:$0xff]
          %256 = vst [vmem:[%s248 + $0x8] sm:$0xff] %v255
          %v257 = vld [vmem:[%s247 + $0x10] sm:$0xff]
          %258 = vst [vmem:[%s248 + $0x10] sm:$0xff] %v257
          %v259 = vld [vmem:[%s247 + $0x18] sm:$0xff]
          %260 = vst [vmem:[%s248 + $0x18] sm:$0xff] %v259
          %v261 = vld [vmem:[%s247 + $0x20] sm:$0xff]
          %262 = vst [vmem:[%s248 + $0x20] sm:$0xff] %v261
          %v263 = vld [vmem:[%s247 + $0x28] sm:$0xff]
          %264 = vst [vmem:[%s248 + $0x28] sm:$0xff] %v263
          %v265 = vld [vmem:[%s247 + $0x30] sm:$0xff]
          %266 = vst [vmem:[%s248 + $0x30] sm:$0xff] %v265
          %v267 = vld [vmem:[%s247 + $0x38] sm:$0xff]
          %268 = vst [vmem:[%s248 + $0x38] sm:$0xff] %v267
        $region28: #{custom-call.14} parent=22 // loop_footer
          %s269 = scalar_lea.vmem %s247, 64
          %s270 = scalar_lea.vmem %s248, 64
          %v271 = vld [vmem:[%s247 + $0x40] sm:$0xff]
        $region29: #{custom-call.14} parent=22 // loop_footer_branch
          %272 = sbr.rel target = $region25
        $region30: #{custom-call.14} parent=22 // loop_exit
          _
        // While loop
        $region31: #{custom-call.14} parent=22 // loop_pre_header
          _
        $region32: #{custom-call.14} parent=22 // loop_header
          %s273 = sphi %s247, %s281
          %s274 = sphi %s248, %s282
          %v275 = vphi %v249, %v275
          %p276 = scmp.gt.s32.totalorder %s273, %s245
        $region33: #{custom-call.14} parent=22 // loop_header_branch
          %278 = sbr.rel (%p276) target = $region37
        $region34: #{custom-call.14} parent=22 // loop_body
          %v279 = vld [vmem:[%s273] sm:$0xff]
          %280 = vst [vmem:[%s274] sm:$0xff] %v279
        $region35: #{custom-call.14} parent=22 // loop_footer
          %s281 = scalar_lea.vmem %s273, 8
          %s282 = scalar_lea.vmem %s274, 8
        $region36: #{custom-call.14} parent=22 // loop_footer_branch
          %283 = sbr.rel target = $region32
        $region37: #{custom-call.14} parent=22 // loop_exit
          _
      $region23: #{custom-call.14} parent=18 // pred_fallthru
        _
      %s284 = sand.u32 16, 7
      %s285 = sshllo.u32 0, %s284
      %s286 = smul.u32 %s237, 128
      %s287 = sshra.s32 %s286, 4
      %s288 = scalar_lea.vmem %s1, %s287
      %s289 = smul.u32 %s237, 128
      %s290 = sshra.s32 %s289, 4
      %s291 = scalar_lea.vmem [#allocation3], %s290
      %v292 = vld [vmem:[%s291] sm:%s285]
      %293 = vst [vmem:[%s288] sm:%s285] %v292
    $region19: #{custom-call.14} parent=1 // pred_fallthru
      _
    // Predicated region
    $region38: #{custom-call.14} parent=1 // pred_check
      _
    $region39: #{custom-call.14} parent=1 // pred_check_branch
      %295 = sbr.rel (0) target = $region41
    $region40: #{custom-call.14} parent=1 // pred_region
      %s297 = ssub.s32 16, 16
      %298 = vsyncadd [#allocation2], %s297
      %s299 = sshll.u32 [#allocation5], 4
      %s300 = int_to_ptr.vmem [resolvable:$true] %s299
      %302 = dma.vmem_to_hbm [thread:$0]  %s300, 16, %s2, [#allocation2]
    $region41: #{custom-call.14} parent=1 // pred_fallthru
      _
    // Predicated region
    $region42: #{custom-call.14} parent=1 // pred_check
      _
    $region43: #{custom-call.14} parent=1 // pred_check_branch
      %304 = sbr.rel (0) target = $region45
    $region44: #{custom-call.14} parent=1 // pred_region
      %s306 = ssub.s32 16, 16
      %307 = vsyncadd [#allocation8], %s306
      %s308 = sshll.u32 [#allocation7], 4
      %s309 = int_to_ptr.vmem [resolvable:$true] %s308
      %311 = dma.vmem_to_hbm [thread:$0]  %s309, 16, %s3, [#allocation8]
    $region45: #{custom-call.14} parent=1 // pred_fallthru
      _
    // Predicated region
    $region46: #{custom-call.14} parent=1 // pred_check
      _
    $region47: #{custom-call.14} parent=1 // pred_check_branch
      %313 = sbr.rel (0) target = $region49
    $region48: #{custom-call.14} parent=1 // pred_region
      %314 = dma.done [#allocation2], 16
    $region49: #{custom-call.14} parent=1 // pred_fallthru
      _
    // Predicated region
    $region50: #{custom-call.14} parent=1 // pred_check
      _
    $region51: #{custom-call.14} parent=1 // pred_check_branch
      %316 = sbr.rel (0) target = $region53
    $region52: #{custom-call.14} parent=1 // pred_region
      %317 = dma.done [#allocation8], 16
    $region53: #{custom-call.14} parent=1 // pred_fallthru
      _
    %318 = vsyncpa [#allocation1], 1
    %319 = vsyncpa [#allocation2], 1
    %320 = vsyncpa [#allocation8], 1

// kernel: lr_normflow_forward.11
$region0: #{lr_normflow_forward.11}
  #allocation0 [shape = 'u32[]', space=smem, size = 0x4, offset = 0x4, fixed_abs, tag = 'smem constant byte address 0x4 - core index']
  #allocation1 [shape = 'u32[144,128]{1,0:T(1,128)}', space=vmem, size = 0x12000, scoped, tag = 'internal scratch']
  %s0 = inlined_call_operand.vmem [shape: f32[2,16,32], index: 0, kind: input, shape index: {}]
  %s1 = inlined_call_operand.vmem [shape: f32[2,16,32], index: 1, kind: input, shape index: {}]
  %s2 = inlined_call_operand.vmem [shape: f32[2,16,32], index: 2, kind: input, shape index: {}]
  %s3 = inlined_call_operand.vmem [shape: f32[2,1,32], index: 3, kind: output, shape index: {}]
  %s4 = sld [smem:[#allocation0]]
  $region45: #{lr_normflow_forward.11} parent=0
    _
  %s6 = ssub.s32 1, %s4
  %s7 = scalar_select 0, %s6, %s4
  loop: start=0, step=1, limit=4
  $region2: #{lr_normflow_forward.11} parent=0 // loop_pre_header
    _
  $region3: #{lr_normflow_forward.11} parent=0 // loop_header
    %s9 = sphi 0, %s13
    %p10 = scmp.ge.s32.totalorder %s9, 4
    %s19 = sphi 0, %s21
    %s22 = sphi 0, %s19
    %s23 = sphi 0, %s22
    %s39 = sphi 0, %s23
    %s45 = sphi 0, %s47
    %s48 = sphi 0, %s45
    %s49 = sphi 0, %s48
    %s65 = sphi 0, %s49
    %s71 = sphi 0, %s73
    %s74 = sphi 0, %s71
    %s75 = sphi 0, %s74
    %s91 = sphi 0, %s75
    %s97 = sphi 0, %s99
    %s100 = sphi 0, %s97
    %s101 = sphi 0, %s100
    %s117 = sphi 0, %s101
  $region4: #{lr_normflow_forward.11} parent=0 // loop_header_branch
    %12 = sbr.rel (%p10) target = $region8
  $region5: #{lr_normflow_forward.11} parent=0 // loop_body
    %s14 = ssub.s32 %s9, 1
    %s15 = ssub.s32 %s9, 2
    %s16 = sadd.s32 %s9, 1
    %s17 = ssub.s32 %s9, %s16
    %p18 = scmp.eq.s32.totalorder %s17, 0
    %s20 = sadd.s32 %s19, 1
    %s21 = scalar_select %p18, %s19, %s20
    %p24 = pneg %p18
    %p25 = scmp.eq.s32.totalorder %s9, 1
    %p26 = por %p24, %p25
    %p27 = scmp.ne.s32.totalorder %s19, %s22
    %p28 = scmp.eq.s32.totalorder %s9, 0
    %p29 = por %p27, %p28
    %p30 = scmp.ne.s32.totalorder %s19, %s22
    %p31 = scmp.eq.s32.totalorder %s14, 1
    %p32 = por %p30, %p31
    %p33 = scmp.ne.s32.totalorder %s22, %s23
    %p34 = scmp.eq.s32.totalorder %s14, 0
    %p35 = por %p33, %p34
    %p36 = scmp.ne.s32.totalorder %s22, %s23
    %p37 = scmp.eq.s32.totalorder %s15, 1
    %p38 = por %p36, %p37
    %p40 = scmp.ne.s32.totalorder %s23, %s39
    %p41 = scmp.eq.s32.totalorder %s15, 0
    %p42 = por %p40, %p41
    %s43 = ssub.s32 %s9, %s16
    %p44 = scmp.eq.s32.totalorder %s43, 0
    %s46 = sadd.s32 %s45, 1
    %s47 = scalar_select %p44, %s45, %s46
    %p50 = pneg %p44
    %p51 = scmp.eq.s32.totalorder %s9, 1
    %p52 = por %p50, %p51
    %p53 = scmp.ne.s32.totalorder %s45, %s48
    %p54 = scmp.eq.s32.totalorder %s9, 0
    %p55 = por %p53, %p54
    %p56 = scmp.ne.s32.totalorder %s45, %s48
    %p57 = scmp.eq.s32.totalorder %s14, 1
    %p58 = por %p56, %p57
    %p59 = scmp.ne.s32.totalorder %s48, %s49
    %p60 = scmp.eq.s32.totalorder %s14, 0
    %p61 = por %p59, %p60
    %p62 = scmp.ne.s32.totalorder %s48, %s49
    %p63 = scmp.eq.s32.totalorder %s15, 1
    %p64 = por %p62, %p63
    %p66 = scmp.ne.s32.totalorder %s49, %s65
    %p67 = scmp.eq.s32.totalorder %s15, 0
    %p68 = por %p66, %p67
    %s69 = ssub.s32 %s9, %s16
    %p70 = scmp.eq.s32.totalorder %s69, 0
    %s72 = sadd.s32 %s71, 1
    %s73 = scalar_select %p70, %s71, %s72
    %p76 = pneg %p70
    %p77 = scmp.eq.s32.totalorder %s9, 1
    %p78 = por %p76, %p77
    %p79 = scmp.ne.s32.totalorder %s71, %s74
    %p80 = scmp.eq.s32.totalorder %s9, 0
    %p81 = por %p79, %p80
    %p82 = scmp.ne.s32.totalorder %s71, %s74
    %p83 = scmp.eq.s32.totalorder %s14, 1
    %p84 = por %p82, %p83
    %p85 = scmp.ne.s32.totalorder %s74, %s75
    %p86 = scmp.eq.s32.totalorder %s14, 0
    %p87 = por %p85, %p86
    %p88 = scmp.ne.s32.totalorder %s74, %s75
    %p89 = scmp.eq.s32.totalorder %s15, 1
    %p90 = por %p88, %p89
    %p92 = scmp.ne.s32.totalorder %s75, %s91
    %p93 = scmp.eq.s32.totalorder %s15, 0
    %p94 = por %p92, %p93
    %s95 = ssub.s32 %s9, %s16
    %p96 = scmp.eq.s32.totalorder %s95, 0
    %s98 = sadd.s32 %s97, 1
    %s99 = scalar_select %p96, %s97, %s98
    %p102 = pneg %p96
    %p103 = scmp.eq.s32.totalorder %s9, 1
    %p104 = por %p102, %p103
    %p105 = scmp.ne.s32.totalorder %s97, %s100
    %p106 = scmp.eq.s32.totalorder %s9, 0
    %p107 = por %p105, %p106
    %p108 = scmp.ne.s32.totalorder %s97, %s100
    %p109 = scmp.eq.s32.totalorder %s14, 1
    %p110 = por %p108, %p109
    %p111 = scmp.ne.s32.totalorder %s100, %s101
    %p112 = scmp.eq.s32.totalorder %s14, 0
    %p113 = por %p111, %p112
    %p114 = scmp.ne.s32.totalorder %s100, %s101
    %p115 = scmp.eq.s32.totalorder %s15, 1
    %p116 = por %p114, %p115
    %p118 = scmp.ne.s32.totalorder %s101, %s117
    %p119 = scmp.eq.s32.totalorder %s15, 0
    %p120 = por %p118, %p119
    %p121 = scmp.le.s32.totalorder 1, %s9
    %p122 = scmp.lt.s32.totalorder %s9, 3
    %p123 = pnand %p121, %p122
    %p124 = pneg %p123
    // Predicated region
    $region9: #{lr_normflow_forward.11} parent=5 // pred_check
      _
    $region10: #{lr_normflow_forward.11} parent=5 // pred_check_branch
      %126 = sbr.rel (%p123) target = $region12
    $region11: #{lr_normflow_forward.11} parent=5 // pred_region
      %s127 = ssub.s32 %s9, 1
    $region12: #{lr_normflow_forward.11} parent=5 // pred_fallthru
      _
    %p128 = scmp.lt.s32.totalorder %s9, 2
    // Predicated region
    $region13: #{lr_normflow_forward.11} parent=5 // pred_check
      %p129 = pneg %p128
    $region14: #{lr_normflow_forward.11} parent=5 // pred_check_branch
      %131 = sbr.rel (%p129) target = $region16
    $region15: #{lr_normflow_forward.11} parent=5 // pred_region
      // Predicated region
      $region17: #{lr_normflow_forward.11} parent=15 // pred_check
        %p132 = pneg %p29
      $region18: #{lr_normflow_forward.11} parent=15 // pred_check_branch
        %134 = sbr.rel (%p132) target = $region20
      $region19: #{lr_normflow_forward.11} parent=15 // pred_region
        %p135 = scmp.lt.s32.totalorder %s9, 1
        %s136 = scalar_select %p135, %s9, 1
        %s137 = smul.addr %s136, 2
        %s138 = smul.addr %s137, 8
        %s139 = scalar_lea.vmem %s0, %s138
      $region20: #{lr_normflow_forward.11} parent=15 // pred_fallthru
        _
      // Predicated region
      $region21: #{lr_normflow_forward.11} parent=15 // pred_check
        %p140 = pneg %p55
      $region22: #{lr_normflow_forward.11} parent=15 // pred_check_branch
        %142 = sbr.rel (%p140) target = $region24
      $region23: #{lr_normflow_forward.11} parent=15 // pred_region
        %p143 = scmp.lt.s32.totalorder %s9, 1
        %s144 = scalar_select %p143, %s9, 1
        %s145 = smul.addr %s144, 2
        %s146 = smul.addr %s145, 8
        %s147 = scalar_lea.vmem %s1, %s146
      $region24: #{lr_normflow_forward.11} parent=15 // pred_fallthru
        _
      // Predicated region
      $region25: #{lr_normflow_forward.11} parent=15 // pred_check
        %p148 = pneg %p81
      $region26: #{lr_normflow_forward.11} parent=15 // pred_check_branch
        %150 = sbr.rel (%p148) target = $region28
      $region27: #{lr_normflow_forward.11} parent=15 // pred_region
        %p151 = scmp.lt.s32.totalorder %s9, 1
        %s152 = scalar_select %p151, %s9, 1
        %s153 = smul.addr %s152, 2
        %s154 = smul.addr %s153, 8
        %s155 = scalar_lea.vmem %s2, %s154
      $region28: #{lr_normflow_forward.11} parent=15 // pred_fallthru
        _
    $region16: #{lr_normflow_forward.11} parent=5 // pred_fallthru
      _
    %p156 = scmp.le.s32.totalorder 1, %s9
    %p157 = scmp.lt.s32.totalorder %s9, 3
    %p158 = pnand %p156, %p157
    %p159 = pneg %p158
    // Predicated region
    $region29: #{lr_normflow_forward.11} parent=5 // pred_check
      _
    $region30: #{lr_normflow_forward.11} parent=5 // pred_check_branch
      %161 = sbr.rel (%p158) target = $region32
    $region31: #{lr_normflow_forward.11} parent=5 // pred_region
      %s162 = ssub.s32 %s9, 1
      %p163 = scmp.lt.s32.totalorder %s14, 1
      %s164 = scalar_select %p163, %s14, 1
      %s165 = smul.addr %s164, 2
      %s166 = smul.addr %s165, 8
      %s167 = scalar_lea.vmem %s0, %s166
      %p168 = pneg %p35
      %p169 = pneg %p32
      %p170 = scmp.lt.s32.totalorder %s14, 1
      %s171 = scalar_select %p170, %s14, 1
      %s172 = smul.addr %s171, 2
      %s173 = smul.addr %s172, 8
      %s174 = scalar_lea.vmem %s1, %s173
      %p175 = pneg %p61
      %p176 = pneg %p58
      %p177 = scmp.lt.s32.totalorder %s14, 1
      %s178 = scalar_select %p177, %s14, 1
      %s179 = smul.addr %s178, 2
      %s180 = smul.addr %s179, 8
      %s181 = scalar_lea.vmem %s2, %s180
      %p182 = pneg %p87
      %p183 = pneg %p84
      %p184 = pneg %p113
      %p185 = pneg %p110
      %p186 = scmp.lt.s32.totalorder %s14, 1
      %s187 = scalar_select %p186, %s14, 1
      %s188 = scalar_lea.vmem %s3, %s187
      %p189 = scmp.lt.s32.totalorder %s14, 1
      %s190 = scalar_select %p189, %s14, 1
      %s191 = smul.addr %s190, 2
      %s192 = smul.addr %s191, 8
      %s193 = scalar_lea.vmem %s0, %s192
      %p194 = scmp.lt.s32.totalorder %s14, 1
      %s195 = scalar_select %p194, %s14, 1
      %s196 = smul.addr %s195, 2
      %s197 = smul.addr %s196, 8
      %s198 = scalar_lea.vmem %s1, %s197
      %p199 = scmp.lt.s32.totalorder %s14, 1
      %s200 = scalar_select %p199, %s14, 1
      %s201 = smul.addr %s200, 2
      %s202 = smul.addr %s201, 8
      %s203 = scalar_lea.vmem %s2, %s202
      %p204 = scmp.lt.s32.totalorder %s14, 1
      %s205 = scalar_select %p204, %s14, 1
      %s206 = scalar_lea.vmem %s3, %s205
      %v207 = vld [vmem:[%s193] sm:$0xff]
      %v208 = vld [vmem:[%s193 + $0x8] sm:$0xff]
      %v209 = vld [vmem:[%s198] sm:$0xff]
      %v210 = vld [vmem:[%s198 + $0x8] sm:$0xff]
      %v211 = vsub.f32 %v207, %v209
      %v212 = vsub.f32 %v208, %v210
      %v213 = vld [vmem:[%s203] sm:$0xff]
      %v214 = vld [vmem:[%s203 + $0x8] sm:$0xff]
      %v215 = vsub.f32 -0.9189385, %v213
      %v216 = vsub.f32 -0.9189385, %v214
      %v217 = vmul.f32 %v211, 0.5
      %v218 = vmul.f32 %v212, 0.5
      %v219 = vmul.f32 %v217, %v211
      %v220 = vmul.f32 %v218, %v212
      %v221 = vmul.f32 %v213, -2.0
      %v222 = vmul.f32 %v214, -2.0
      %v223 = vmul.f32 %v221, 1.442695
      %v224 = vpow.pop %v223
      %v225 = vmul.f32 %v222, 1.442695
      %v226 = vpow.pop %v225
      %v227 = vmul.f32 %v219, %v224
      %v228 = vmul.f32 %v220, %v226
      %v229 = vsub.f32 %v215, %v227
      %v230 = vsub.f32 %v216, %v228
      %vm231 = vcmask 261120
      %v232 = vsel %vm231, %v229, 0.0
      %v233 = vsel %vm231, %v230, 0.0
      %v234 = vadd.f32 %v232, %v233
      %v235 = vrot.slane %v234, 4
      %v236 = vadd.f32 %v234, %v235
      %v237 = vrot.slane %v236, 2
      %v238 = vadd.f32 %v236, %v237
      %v239 = vrot.slane %v238, 1
      %v240 = vadd.f32 %v238, %v239
      %vm241 = vcmask 253952
      %242 = vst.msk [vmem:[%s206] sm:$0x1] %vm241, %v240
      %p243 = scmp.lt.s32.totalorder %s14, 1
      %s244 = scalar_select %p243, %s14, 1
      %s245 = scalar_lea.vmem %s3, %s244
      // Predicated region
      $region33: #{lr_normflow_forward.11} parent=31 // pred_check
        %p246 = pneg %p110
      $region34: #{lr_normflow_forward.11} parent=31 // pred_check_branch
        %248 = sbr.rel (%p246) target = $region36
      $region35: #{lr_normflow_forward.11} parent=31 // pred_region
        _
      $region36: #{lr_normflow_forward.11} parent=31 // pred_fallthru
        _
    $region32: #{lr_normflow_forward.11} parent=5 // pred_fallthru
      _
    %p249 = scmp.le.s32.totalorder 2, %s9
    // Predicated region
    $region37: #{lr_normflow_forward.11} parent=5 // pred_check
      %p250 = pneg %p249
    $region38: #{lr_normflow_forward.11} parent=5 // pred_check_branch
      %252 = sbr.rel (%p250) target = $region40
    $region39: #{lr_normflow_forward.11} parent=5 // pred_region
      %s253 = ssub.s32 %s9, 2
      // Predicated region
      $region41: #{lr_normflow_forward.11} parent=39 // pred_check
        %p254 = pneg %p116
      $region42: #{lr_normflow_forward.11} parent=39 // pred_check_branch
        %256 = sbr.rel (%p254) target = $region44
      $region43: #{lr_normflow_forward.11} parent=39 // pred_region
        %p257 = scmp.lt.s32.totalorder %s15, 1
        %s258 = scalar_select %p257, %s15, 1
        %s259 = scalar_lea.vmem %s3, %s258
      $region44: #{lr_normflow_forward.11} parent=39 // pred_fallthru
        _
    $region40: #{lr_normflow_forward.11} parent=5 // pred_fallthru
      _
  $region6: #{lr_normflow_forward.11} parent=0 // loop_footer
    %s13 = sadd.s32 1, %s9
  $region7: #{lr_normflow_forward.11} parent=0 // loop_footer_branch
    %8 = sbr.rel target = $region3
  $region8: #{lr_normflow_forward.11} parent=0 // loop_exit
    _

</llo_original>
